<compile_context>
chip_gen: v7x
topology: tpu7x:2x2x1
jax: 0.10.0
libtpu: 0.0.40
codegen_flags: <defaults>
</compile_context>

<pallas_src>
import math

import jax
import jax.numpy as jnp
from jax import lax
from jax.experimental import pallas as pl
from jax.experimental.pallas import tpu as pltpu

TWO_PI = 3.1415926 * 2.0          # matches the reference constant
HALF_PI = 1.5707963267948966
HIDDEN = 100                      # reference MLP hidden size
HIDDEN_PAD = 128                  # zero-padded (lane-dense) hidden size
MLP_OUT_PAD = 128                 # zero-padded fused MLP output width


# =============================================================================
# In-kernel helpers.  A complex matrix A is represented by its real block
# embedding blk(A) = [[re, -im], [im, re]]  (shape (2m, 2n)).
#   blk(A) @ blk(B)            = blk(A @ B)
#   blk(A) @ blk(B)^T          = blk(A @ B^H)
#   blk(A)^T @ blk(B)          = blk(A^H @ B)
#   blk(s * I_n)               = s * I_2n
# =============================================================================
def _blk(re, im):
    return jnp.concatenate(
        [jnp.concatenate([re, -im], axis=1),
         jnp.concatenate([im, re], axis=1)], axis=0)


def _eye(n):
    r = lax.broadcasted_iota(jnp.int32, (n, n), 0)
    c = lax.broadcasted_iota(jnp.int32, (n, n), 1)
    return jnp.where(r == c, 1.0, 0.0).astype(jnp.float32)


def _dot(a, b, da, db):
    return lax.dot_general(a, b, ((da, db), ((), ())),
                           preferred_element_type=jnp.float32)


def _mm(a, b):        # blk(A @ B)
    return _dot(a, b, (1,), (0,))


def _mm_nh(a, b):     # blk(A @ B^H)   (no materialized transpose)
    return _dot(a, b, (1,), (1,))


def _mm_hn(a, b):     # blk(A^H @ B)   (no materialized transpose)
    return _dot(a, b, (0,), (0,))


def _cinv_2x2(ar, ai):
    """Closed-form complex 2x2 inverse (adjugate / determinant)."""
    a_r, a_i = ar[0:1, 0:1], ai[0:1, 0:1]
    b_r, b_i = ar[0:1, 1:2], ai[0:1, 1:2]
    c_r, c_i = ar[1:2, 0:1], ai[1:2, 0:1]
    d_r, d_i = ar[1:2, 1:2], ai[1:2, 1:2]
    det_r = (a_r * d_r - a_i * d_i) - (b_r * c_r - b_i * c_i)
    det_i = (a_r * d_i + a_i * d_r) - (b_r * c_i + b_i * c_r)
    den = det_r * det_r + det_i * det_i
    idr = det_r / den
    idi = -det_i / den
    ri = lax.broadcasted_iota(jnp.int32, (2, 2), 0)
    ci = lax.broadcasted_iota(jnp.int32, (2, 2), 1)
    idx = ri * 2 + ci
    adj_r = jnp.where(idx == 0, d_r,
            jnp.where(idx == 1, -b_r,
            jnp.where(idx == 2, -c_r, a_r)))
    adj_i = jnp.where(idx == 0, d_i,
            jnp.where(idx == 1, -b_i,
            jnp.where(idx == 2, -c_i, a_i)))
    inv_r = adj_r * idr - adj_i * idi
    inv_i = adj_r * idi + adj_i * idr
    return inv_r, inv_i


def _cinv_gj(ar, ai):
    """Unpivoted complex-domain Gauss-Jordan inverse (Hermitian PD input)."""
    n = ar.shape[0]
    augr = jnp.concatenate([ar, _eye(n)], axis=1)                  # (n, 2n)
    augi = jnp.concatenate([ai, jnp.zeros((n, n), jnp.float32)], axis=1)
    row_id = lax.broadcasted_iota(jnp.int32, (n, 1), 0)
    for i in range(n):
        prow_r = augr[i:i + 1, :]                                  # (1, 2n)
        prow_i = augi[i:i + 1, :]
        pr = prow_r[:, i:i + 1]                                    # (1, 1)
        pi = prow_i[:, i:i + 1]
        den = pr * pr + pi * pi
        inv_pr = pr / den
        inv_pi = -pi / den
        nrow_r = prow_r * inv_pr - prow_i * inv_pi                 # normalized row
        nrow_i = prow_r * inv_pi + prow_i * inv_pr
        fac_r = augr[:, i:i + 1]                                   # (n, 1)
        fac_i = augi[:, i:i + 1]
        elim_r = augr - (fac_r * nrow_r - fac_i * nrow_i)
        elim_i = augi - (fac_r * nrow_i + fac_i * nrow_r)
        is_i = row_id == i
        augr = jnp.where(is_i, nrow_r, elim_r)
        augi = jnp.where(is_i, nrow_i, elim_i)
    return augr[:, n:], augi[:, n:]


def _cinv(ar, ai):
    n = ar.shape[0]
    if n == 1:
        den = ar * ar + ai * ai
        return ar / den, -ai / den
    if n == 2:
        return _cinv_2x2(ar, ai)
    return _cinv_gj(ar, ai)


def _sincos(theta):
    """sin/cos for theta in [0, 2*pi) via range reduction + Taylor (VPU only)."""
    t = theta * (1.0 / HALF_PI)
    q = (jnp.where(t > 0.5, 1.0, 0.0) + jnp.where(t > 1.5, 1.0, 0.0)
         + jnp.where(t > 2.5, 1.0, 0.0) + jnp.where(t > 3.5, 1.0, 0.0))
    r = theta - q * HALF_PI                                        # |r| <= pi/4
    r2 = r * r
    s = r * (1.0 + r2 * (-1.0 / 6.0 + r2 * (1.0 / 120.0
            + r2 * (-1.0 / 5040.0 + r2 * (1.0 / 362880.0)))))
    c = 1.0 + r2 * (-0.5 + r2 * (1.0 / 24.0
            + r2 * (-1.0 / 720.0 + r2 * (1.0 / 40320.0))))
    qm = q - jnp.where(q > 3.5, 4.0, 0.0)                          # q mod 4
    cos_t = jnp.where(qm == 0.0, c,
            jnp.where(qm == 1.0, -s,
            jnp.where(qm == 2.0, -c, s)))
    sin_t = jnp.where(qm == 0.0, s,
            jnp.where(qm == 1.0, c,
            jnp.where(qm == 2.0, -s, -c)))
    return sin_t, cos_t


def _rows_from_flat(vec, base, rows, cols):
    """(rows, cols) matrix with row m = vec[0, base+m*cols : base+(m+1)*cols]."""
    row_id = lax.broadcasted_iota(jnp.int32, (rows, 1), 0)
    out = jnp.zeros((rows, cols), jnp.float32)
    for m in range(rows):
        piece = vec[:, base + m * cols: base + (m + 1) * cols]     # (1, cols)
        out = out + jnp.where(row_id == m, piece, 0.0)
    return out


# =============================================================================
# The single fused Pallas kernel
# =============================================================================
def _inner_layer_kernel(scal_ref, hflat_ref, H_ref, U_RF_ref, X_ref, Y_ref,
                        p4v_ref, p4x_ref,
                        w1_ref, b1_ref, w2_ref, b2_ref, w3_ref, b3_ref,
                        U_BB_out, V_BB_out, V_RF_out, U_RF_out, W_out, X_out):
    K, _, M, N = H_ref.shape
    M_RF = U_RF_ref.shape[3]
    N_RF = p4v_ref.shape[2]
    d = X_ref.shape[3]

    sigma = scal_ref[0]
    rho_vbb = scal_ref[1]
    rho_x = scal_ref[2]
    mu = scal_ref[3]

    # ---------------- fused CP_NN + PP_NN (3 lane-dense MXU dots) -----------
    x = hflat_ref[...]

    def sig(z):
        return 1.0 / (1.0 + jnp.exp(-z))

    h1 = sig(jnp.dot(x, w1_ref[...], preferred_element_type=jnp.float32)
             + b1_ref[...])
    h2 = sig(jnp.dot(h1, w2_ref[...], preferred_element_type=jnp.float32)
             + b2_ref[...])
    out3 = sig(jnp.dot(h2, w3_ref[...], preferred_element_type=jnp.float32)
               + b3_ref[...])
    ang = out3 * TWO_PI                   # lanes [0, K*M*M_RF + N*N_RF) valid

    # ---------------- angles -> U_RF_new / V_RF_new (in-kernel sin/cos) -----
    Unb = []
    for k in range(K):
        ang_k = _rows_from_flat(ang, k * M * M_RF, M, M_RF)
        sin_k, cos_k = _sincos(ang_k)
        U_RF_out[k, 0] = cos_k
        U_RF_out[k, 1] = sin_k
        Unb.append(_blk(cos_k, sin_k))
    ang_v = _rows_from_flat(ang, K * M * M_RF, N, N_RF)
    sin_v, cos_v = _sincos(ang_v)
    V_RF_out[0] = cos_v
    V_RF_out[1] = sin_v
    Vb = _blk(cos_v, sin_v)

    # ---------------- hoisted block embeddings & identities -----------------
    Hb = [_blk(H_ref[k, 0], H_ref[k, 1]) for k in range(K)]
    Ub = [_blk(U_RF_ref[k, 0], U_RF_ref[k, 1]) for k in range(K)]
    Xb = [_blk(X_ref[k, 0], X_ref[k, 1]) for k in range(K)]
    Yb = [_blk(Y_ref[k, 0], Y_ref[k, 1]) for k in range(K)]
    P4v = [_blk(p4v_ref[k, 0], p4v_ref[k, 1]) for k in range(K)]

    eye2M = _eye(2 * M)
    eye2d = _eye(2 * d)
    eye2N = _eye(2 * N)

    # ---------------- U_BB_layer + W_layer -----------------------------------
    # hoist: A[k] = H[k] (sum_j X[j] X[j]^H) H[k]^H + sigma^2 I
    Sxb = _mm_nh(Xb[0], Xb[0])
    for j in range(1, K):
        Sxb = Sxb + _mm_nh(Xb[j], Xb[j])

    s2 = sigma * sigma
    UBBb, Wb = [], []
    for k in range(K):
        Ab = _mm_nh(_mm(Hb[k], Sxb), Hb[k]) + s2 * eye2M            # (2M, 2M)
        tmpb = _mm(_mm_hn(Ub[k], Ab), Ub[k])                        # (2M_RF, 2M_RF)
        tir, tii = _cinv(tmpb[:M_RF, :M_RF], tmpb[M_RF:, :M_RF])
        tinvb = _blk(tir, tii)
        UhHXb = _mm_hn(Ub[k], _mm(Hb[k], Xb[k]))                    # (2M_RF, 2d)
        ubbb = _mm(tinvb, UhHXb)                                    # (2M_RF, 2d)
        UBBb.append(ubbb)
        U_BB_out[k, 0] = ubbb[:M_RF, :d]
        U_BB_out[k, 1] = ubbb[M_RF:, :d]

        Sb = eye2d - _mm_hn(ubbb, UhHXb)                            # (2d, 2d)
        wr, wi = _cinv(Sb[:d, :d], Sb[d:, :d])
        Wb.append(_blk(wr, wi))
        W_out[k, 0] = wr
        W_out[k, 1] = wi

    # ---------------- V_BB_layer ----------------------------------------------
    gramb = _mm_hn(Vb, Vb)                                          # (2N_RF, 2N_RF)
    gr, gi = _cinv(gramb[:N_RF, :N_RF], gramb[N_RF:, :N_RF])
    ginvb = _blk(gr, gi)
    VBBb = []
    for k in range(K):
        Zb = Xb[k] + rho_vbb * Yb[k]                                # (2N, 2d)
        vbbb = _mm(ginvb, _mm_hn(Vb, Zb)) + P4v[k]                  # (2N_RF, 2d)
        VBBb.append(vbbb)
        V_BB_out[k, 0] = vbbb[:N_RF, :d]
        V_BB_out[k, 1] = vbbb[N_RF:, :d]

    # ---------------- X_layer --------------------------------------------------
    TWb = []
    Arb = None
    for j in range(K):
        Tb = _mm(_mm_hn(Hb[j], Unb[j]), UBBb[j])                    # (2N, 2d)
        TjWb = _mm(Tb, Wb[j])                                       # (2N, 2d)
        TWb.append(TjWb)
        contrib = _mm_nh(TjWb, Tb)                                  # (2N, 2N)
        Arb = contrib if Arb is None else Arb + contrib
    Arb = Arb + (0.5 / rho_x + mu) * eye2N
    air, aii = _cinv(Arb[:N, :N], Arb[N:, :N])
    Ainvb = _blk(air, aii)

    inv_rho = 1.0 / rho_x
    for k in range(K):
        VVb = _mm(Vb, VBBb[k])                                      # (2N, 2d)
        Bb = TWb[k] + 0.5 * (inv_rho * VVb - Yb[k])
        xb = _mm(Ainvb, Bb)                                         # (2N, 2d)
        X_out[k, 0] = xb[:N, :d] + p4x_ref[k, 0]
        X_out[k, 1] = xb[N:, :d] + p4x_ref[k, 1]


# =============================================================================
# Parameter initialization (deterministic, synthetic).  The fused / padded MLP
# weights compute exactly the two reference 100-hidden networks.
# =============================================================================
def init_params(key, K, d, M, N, N_RF, M_RF):
    keys = jax.random.split(key, 16)
    din = 2 * K * M * N
    out_cp = K * M * M_RF
    out_pp = N * N_RF
    out_pad = max(MLP_OUT_PAD, ((out_cp + out_pp + 127) // 128) * 128)

    def lin(kw, kb, fan_in, fan_out):
        bound = 1.0 / math.sqrt(fan_in)
        w = jax.random.uniform(kw, (fan_in, fan_out), jnp.float32, -bound, bound)
        b = jax.random.uniform(kb, (1, fan_out), jnp.float32, -bound, bound)
        return w, b

    w1c, b1c = lin(keys[0], keys[1], din, HIDDEN)
    w2c, b2c = lin(keys[2], keys[3], HIDDEN, HIDDEN)
    w3c, b3c = lin(keys[4], keys[5], HIDDEN, out_cp)
    w1p, b1p = lin(keys[6], keys[7], din, HIDDEN)
    w2p, b2p = lin(keys[8], keys[9], HIDDEN, HIDDEN)
    w3p, b3p = lin(keys[10], keys[11], HIDDEN, out_pp)

    Hp = HIDDEN_PAD
    w1f = (jnp.zeros((din, 2 * Hp), jnp.float32)
           .at[:, :HIDDEN].set(w1c).at[:, Hp:Hp + HIDDEN].set(w1p))
    b1f = (jnp.zeros((1, 2 * Hp), jnp.float32)
           .at[:, :HIDDEN].set(b1c).at[:, Hp:Hp + HIDDEN].set(b1p))
    w2f = (jnp.zeros((2 * Hp, 2 * Hp), jnp.float32)
           .at[:HIDDEN, :HIDDEN].set(w2c)
           .at[Hp:Hp + HIDDEN, Hp:Hp + HIDDEN].set(w2p))
    b2f = (jnp.zeros((1, 2 * Hp), jnp.float32)
           .at[:, :HIDDEN].set(b2c).at[:, Hp:Hp + HIDDEN].set(b2p))
    w3f = (jnp.zeros((2 * Hp, out_pad), jnp.float32)
           .at[:HIDDEN, :out_cp].set(w3c)
           .at[Hp:Hp + HIDDEN, out_cp:out_cp + out_pp].set(w3p))
    b3f = (jnp.zeros((1, out_pad), jnp.float32)
           .at[:, :out_cp].set(b3c).at[:, out_cp:out_cp + out_pp].set(b3p))

    return {
        "mlp": (w1f, b1f, w2f, b2f, w3f, b3f),
        "p4_vbb": 0.01 * jax.random.normal(keys[12], (K, 2, N_RF, d), jnp.float32),
        "p4_x": 0.001 * jax.random.normal(keys[13], (K, 2, N, d), jnp.float32),
        "rho_vbb": jnp.float32(8.0),   # V_BB_layer.rho_V_BB_layer
        "rho_x": jnp.float32(6.0),     # X_layer.rho_X_layer
        "mu": jnp.float32(1.0),        # X_layer.mu
    }


# =============================================================================
# Inner_layer forward (jitted; exactly ONE pallas_call)
# =============================================================================
@jax.jit
def inner_layer_forward(params, H, U_BB, U_RF, V_BB, V_RF, W, X, Y, rho, sigma):
    del U_BB, V_BB, V_RF, W, rho   # overwritten / unused in the reference forward
    H = H.astype(jnp.float32)
    U_RF = U_RF.astype(jnp.float32)
    X = X.astype(jnp.float32)
    Y = Y.astype(jnp.float32)

    K, _, M, N = H.shape
    d = X.shape[-1]
    M_RF = U_RF.shape[-1]
    N_RF = params["p4_vbb"].shape[2]

    # [k][real|imag][M*N] flattening (matches the PyTorch H_temp construction)
    H_flat = H.reshape(1, -1)
    scal = jnp.stack([jnp.asarray(sigma, jnp.float32),
                      jnp.asarray(params["rho_vbb"], jnp.float32),
                      jnp.asarray(params["rho_x"], jnp.float32),
                      jnp.asarray(params["mu"], jnp.float32)])

    vmem = pl.BlockSpec(memory_space=pltpu.MemorySpace.VMEM)
    smem = pl.BlockSpec(memory_space=pltpu.MemorySpace.SMEM)

    U_BB_new, V_BB_new, V_RF_new, U_RF_new, W_new, X_new = pl.pallas_call(
        _inner_layer_kernel,
        out_shape=(jax.ShapeDtypeStruct((K, 2, M_RF, d), jnp.float32),
                   jax.ShapeDtypeStruct((K, 2, N_RF, d), jnp.float32),
                   jax.ShapeDtypeStruct((2, N, N_RF), jnp.float32),
                   jax.ShapeDtypeStruct((K, 2, M, M_RF), jnp.float32),
                   jax.ShapeDtypeStruct((K, 2, d, d), jnp.float32),
                   jax.ShapeDtypeStruct((K, 2, N, d), jnp.float32)),
        in_specs=[smem] + [vmem] * 13,
        out_specs=(vmem,) * 6,
    )(scal, H_flat, H, U_RF, X, Y,
      params["p4_vbb"], params["p4_x"], *params["mlp"])

    return U_BB_new, V_BB_new, V_RF_new, U_RF_new, W_new, X_new


# =============================================================================
if __name__ == "__main__":
    K, d, M, N, N_RF, M_RF = 2, 2, 8, 8, 4, 4
    sigma = 1.0
    rho = 5.0

    key = jax.random.PRNGKey(0)
    ks = jax.random.split(key, 10)
    H = jax.random.normal(ks[0], (K, 2, M, N), jnp.float32)
    U_BB = jax.random.normal(ks[1], (K, 2, M_RF, d), jnp.float32)
    U_RF = jax.random.normal(ks[2], (K, 2, M, M_RF), jnp.float32)
    V_BB = jax.random.normal(ks[3], (K, 2, N_RF, d), jnp.float32)
    V_RF = jax.random.normal(ks[4], (2, N, N_RF), jnp.float32)
    W = jax.random.normal(ks[5], (K, 2, d, d), jnp.float32)
    X = jax.random.normal(ks[6], (K, 2, N, d), jnp.float32)
    Y = jax.random.normal(ks[7], (K, 2, N, d), jnp.float32)

    params = init_params(ks[8], K, d, M, N, N_RF, M_RF)

    outs = inner_layer_forward(params, H, U_BB, U_RF, V_BB, V_RF, W, X, Y,
                               rho, sigma)
    outs = jax.block_until_ready(outs)

    U_BB_new, V_BB_new, V_RF_new, U_RF_new, W_new, X_new = outs
    assert U_BB_new.shape == (K, 2, M_RF, d)
    assert V_BB_new.shape == (K, 2, N_RF, d)
    assert V_RF_new.shape == (2, N, N_RF)
    assert U_RF_new.shape == (K, 2, M, M_RF)
    assert W_new.shape == (K, 2, d, d)
    assert X_new.shape == (K, 2, N, d)
    for o in outs:
        assert bool(jnp.all(jnp.isfinite(o)))

    # analog phase-shifter entries must be unit modulus (checks in-kernel sin/cos)
    mod_u = U_RF_new[:, 0] ** 2 + U_RF_new[:, 1] ** 2
    mod_v = V_RF_new[0] ** 2 + V_RF_new[1] ** 2
    assert float(jnp.max(jnp.abs(mod_u - 1.0))) < 1e-4
    assert float(jnp.max(jnp.abs(mod_v - 1.0))) < 1e-4

    print("KERNEL_OK")
</pallas_src>

<mosaic_0001>
module attributes {stable_mosaic.version = 11 : i64} {
  func.func @_inner_layer_kernel(%arg0: memref<4xf32, #tpu.memory_space<smem>>, %arg1: memref<1x256xf32, #tpu.memory_space<vmem>>, %arg2: memref<2x2x8x8xf32, #tpu.memory_space<vmem>>, %arg3: memref<2x2x8x4xf32, #tpu.memory_space<vmem>>, %arg4: memref<2x2x8x2xf32, #tpu.memory_space<vmem>>, %arg5: memref<2x2x8x2xf32, #tpu.memory_space<vmem>>, %arg6: memref<2x2x4x2xf32, #tpu.memory_space<vmem>>, %arg7: memref<2x2x8x2xf32, #tpu.memory_space<vmem>>, %arg8: memref<256x256xf32, #tpu.memory_space<vmem>>, %arg9: memref<1x256xf32, #tpu.memory_space<vmem>>, %arg10: memref<256x256xf32, #tpu.memory_space<vmem>>, %arg11: memref<1x256xf32, #tpu.memory_space<vmem>>, %arg12: memref<256x128xf32, #tpu.memory_space<vmem>>, %arg13: memref<1x128xf32, #tpu.memory_space<vmem>>, %arg14: memref<2x2x4x2xf32, #tpu.memory_space<vmem>>, %arg15: memref<2x2x4x2xf32, #tpu.memory_space<vmem>>, %arg16: memref<2x8x4xf32, #tpu.memory_space<vmem>>, %arg17: memref<2x2x8x4xf32, #tpu.memory_space<vmem>>, %arg18: memref<2x2x2x2xf32, #tpu.memory_space<vmem>>, %arg19: memref<2x2x8x2xf32, #tpu.memory_space<vmem>>) attributes {dimension_semantics = [], scalar_prefetch = 0 : i64, scratch_operands = 0 : i64, tpu.core_type = #tpu.core_type<tc>} {
    %c0 = arith.constant 0 : index
    %0 = memref.load %arg0[%c0] : memref<4xf32, #tpu.memory_space<smem>>
    %c1 = arith.constant 1 : index
    %1 = memref.load %arg0[%c1] : memref<4xf32, #tpu.memory_space<smem>>
    %c2 = arith.constant 2 : index
    %2 = memref.load %arg0[%c2] : memref<4xf32, #tpu.memory_space<smem>>
    %c3 = arith.constant 3 : index
    %3 = memref.load %arg0[%c3] : memref<4xf32, #tpu.memory_space<smem>>
    %c0_0 = arith.constant 0 : index
    %c0_1 = arith.constant 0 : index
    %4 = vector.load %arg1[%c0_0, %c0_1] : memref<1x256xf32, #tpu.memory_space<vmem>>, vector<1x256xf32>
    %c0_2 = arith.constant 0 : index
    %c0_3 = arith.constant 0 : index
    %5 = vector.load %arg8[%c0_2, %c0_3] : memref<256x256xf32, #tpu.memory_space<vmem>>, vector<256x256xf32>
    %cst = arith.constant dense<0.000000e+00> : vector<1x256xf32>
    %6 = tpu.matmul %4, %5, %cst {dimension_numbers = #tpu.dot_dimension_numbers<[1], [0], [0], [1], [0, 0, 1, 1], [], []>} : vector<1x256xf32>, vector<256x256xf32>, vector<1x256xf32> -> vector<1x256xf32>
    %c0_4 = arith.constant 0 : index
    %c0_5 = arith.constant 0 : index
    %7 = vector.load %arg9[%c0_4, %c0_5] : memref<1x256xf32, #tpu.memory_space<vmem>>, vector<1x256xf32>
    %8 = arith.addf %6, %7 : vector<1x256xf32>
    %cst_6 = arith.constant 0.000000e+00 : f32
    %9 = vector.broadcast %cst_6 : f32 to vector<1x256xf32>
    %10 = arith.subf %9, %8 : vector<1x256xf32>
    %11 = math.exp %10 : vector<1x256xf32>
    %cst_7 = arith.constant 1.000000e+00 : f32
    %12 = vector.broadcast %cst_7 : f32 to vector<1x256xf32>
    %13 = arith.addf %12, %11 : vector<1x256xf32>
    %cst_8 = arith.constant 1.000000e+00 : f32
    %14 = vector.broadcast %cst_8 : f32 to vector<1x256xf32>
    %15 = arith.divf %14, %13 : vector<1x256xf32>
    %c0_9 = arith.constant 0 : index
    %c0_10 = arith.constant 0 : index
    %16 = vector.load %arg10[%c0_9, %c0_10] : memref<256x256xf32, #tpu.memory_space<vmem>>, vector<256x256xf32>
    %cst_11 = arith.constant dense<0.000000e+00> : vector<1x256xf32>
    %17 = tpu.matmul %15, %16, %cst_11 {dimension_numbers = #tpu.dot_dimension_numbers<[1], [0], [0], [1], [0, 0, 1, 1], [], []>} : vector<1x256xf32>, vector<256x256xf32>, vector<1x256xf32> -> vector<1x256xf32>
    %c0_12 = arith.constant 0 : index
    %c0_13 = arith.constant 0 : index
    %18 = vector.load %arg11[%c0_12, %c0_13] : memref<1x256xf32, #tpu.memory_space<vmem>>, vector<1x256xf32>
    %19 = arith.addf %17, %18 : vector<1x256xf32>
    %cst_14 = arith.constant 0.000000e+00 : f32
    %20 = vector.broadcast %cst_14 : f32 to vector<1x256xf32>
    %21 = arith.subf %20, %19 : vector<1x256xf32>
    %22 = math.exp %21 : vector<1x256xf32>
    %cst_15 = arith.constant 1.000000e+00 : f32
    %23 = vector.broadcast %cst_15 : f32 to vector<1x256xf32>
    %24 = arith.addf %23, %22 : vector<1x256xf32>
    %cst_16 = arith.constant 1.000000e+00 : f32
    %25 = vector.broadcast %cst_16 : f32 to vector<1x256xf32>
    %26 = arith.divf %25, %24 : vector<1x256xf32>
    %c0_17 = arith.constant 0 : index
    %c0_18 = arith.constant 0 : index
    %27 = vector.load %arg12[%c0_17, %c0_18] : memref<256x128xf32, #tpu.memory_space<vmem>>, vector<256x128xf32>
    %cst_19 = arith.constant dense<0.000000e+00> : vector<1x128xf32>
    %28 = tpu.matmul %26, %27, %cst_19 {dimension_numbers = #tpu.dot_dimension_numbers<[1], [0], [0], [1], [0, 0, 1, 1], [], []>} : vector<1x256xf32>, vector<256x128xf32>, vector<1x128xf32> -> vector<1x128xf32>
    %c0_20 = arith.constant 0 : index
    %c0_21 = arith.constant 0 : index
    %29 = vector.load %arg13[%c0_20, %c0_21] : memref<1x128xf32, #tpu.memory_space<vmem>>, vector<1x128xf32>
    %30 = arith.addf %28, %29 : vector<1x128xf32>
    %cst_22 = arith.constant 0.000000e+00 : f32
    %31 = vector.broadcast %cst_22 : f32 to vector<1x128xf32>
    %32 = arith.subf %31, %30 : vector<1x128xf32>
    %33 = math.exp %32 : vector<1x128xf32>
    %cst_23 = arith.constant 1.000000e+00 : f32
    %34 = vector.broadcast %cst_23 : f32 to vector<1x128xf32>
    %35 = arith.addf %34, %33 : vector<1x128xf32>
    %cst_24 = arith.constant 1.000000e+00 : f32
    %36 = vector.broadcast %cst_24 : f32 to vector<1x128xf32>
    %37 = arith.divf %36, %35 : vector<1x128xf32>
    %cst_25 = arith.constant 6.283185 : f32
    %38 = vector.broadcast %cst_25 : f32 to vector<1x128xf32>
    %39 = arith.mulf %37, %38 : vector<1x128xf32>
    %40 = tpu.iota {dimensions = array<i32: 0>} : vector<8x1xi32>
    %cst_26 = arith.constant 0.000000e+00 : f32
    %41 = vector.broadcast %cst_26 : f32 to vector<8x4xf32>
    %42 = vector.extract_strided_slice %39 {offsets = [0, 0], sizes = [1, 4], strides = [1, 1]} : vector<1x128xf32> to vector<1x4xf32>
    %c0_i32 = arith.constant 0 : i32
    %43 = vector.broadcast %c0_i32 : i32 to vector<8x1xi32>
    %44 = arith.cmpi eq, %40, %43 : vector<8x1xi32>
    %cst_27 = arith.constant 0.000000e+00 : f32
    %45 = vector.shape_cast %44 : vector<8x1xi1> to vector<8x1xi1>
    %46 = vector.broadcast %45 : vector<8x1xi1> to vector<8x4xi1>
    %47 = vector.shape_cast %42 : vector<1x4xf32> to vector<1x4xf32>
    %48 = vector.broadcast %47 : vector<1x4xf32> to vector<8x4xf32>
    %49 = vector.broadcast %cst_27 : f32 to vector<8x4xf32>
    %50 = arith.select %46, %48, %49 : vector<8x4xi1>, vector<8x4xf32>
    %51 = arith.addf %41, %50 : vector<8x4xf32>
    %52 = vector.extract_strided_slice %39 {offsets = [0, 4], sizes = [1, 4], strides = [1, 1]} : vector<1x128xf32> to vector<1x4xf32>
    %c1_i32 = arith.constant 1 : i32
    %53 = vector.broadcast %c1_i32 : i32 to vector<8x1xi32>
    %54 = arith.cmpi eq, %40, %53 : vector<8x1xi32>
    %cst_28 = arith.constant 0.000000e+00 : f32
    %55 = vector.shape_cast %54 : vector<8x1xi1> to vector<8x1xi1>
    %56 = vector.broadcast %55 : vector<8x1xi1> to vector<8x4xi1>
    %57 = vector.shape_cast %52 : vector<1x4xf32> to vector<1x4xf32>
    %58 = vector.broadcast %57 : vector<1x4xf32> to vector<8x4xf32>
    %59 = vector.broadcast %cst_28 : f32 to vector<8x4xf32>
    %60 = arith.select %56, %58, %59 : vector<8x4xi1>, vector<8x4xf32>
    %61 = arith.addf %51, %60 : vector<8x4xf32>
    %62 = vector.extract_strided_slice %39 {offsets = [0, 8], sizes = [1, 4], strides = [1, 1]} : vector<1x128xf32> to vector<1x4xf32>
    %c2_i32 = arith.constant 2 : i32
    %63 = vector.broadcast %c2_i32 : i32 to vector<8x1xi32>
    %64 = arith.cmpi eq, %40, %63 : vector<8x1xi32>
    %cst_29 = arith.constant 0.000000e+00 : f32
    %65 = vector.shape_cast %64 : vector<8x1xi1> to vector<8x1xi1>
    %66 = vector.broadcast %65 : vector<8x1xi1> to vector<8x4xi1>
    %67 = vector.shape_cast %62 : vector<1x4xf32> to vector<1x4xf32>
    %68 = vector.broadcast %67 : vector<1x4xf32> to vector<8x4xf32>
    %69 = vector.broadcast %cst_29 : f32 to vector<8x4xf32>
    %70 = arith.select %66, %68, %69 : vector<8x4xi1>, vector<8x4xf32>
    %71 = arith.addf %61, %70 : vector<8x4xf32>
    %72 = vector.extract_strided_slice %39 {offsets = [0, 12], sizes = [1, 4], strides = [1, 1]} : vector<1x128xf32> to vector<1x4xf32>
    %c3_i32 = arith.constant 3 : i32
    %73 = vector.broadcast %c3_i32 : i32 to vector<8x1xi32>
    %74 = arith.cmpi eq, %40, %73 : vector<8x1xi32>
    %cst_30 = arith.constant 0.000000e+00 : f32
    %75 = vector.shape_cast %74 : vector<8x1xi1> to vector<8x1xi1>
    %76 = vector.broadcast %75 : vector<8x1xi1> to vector<8x4xi1>
    %77 = vector.shape_cast %72 : vector<1x4xf32> to vector<1x4xf32>
    %78 = vector.broadcast %77 : vector<1x4xf32> to vector<8x4xf32>
    %79 = vector.broadcast %cst_30 : f32 to vector<8x4xf32>
    %80 = arith.select %76, %78, %79 : vector<8x4xi1>, vector<8x4xf32>
    %81 = arith.addf %71, %80 : vector<8x4xf32>
    %82 = vector.extract_strided_slice %39 {offsets = [0, 16], sizes = [1, 4], strides = [1, 1]} : vector<1x128xf32> to vector<1x4xf32>
    %c4_i32 = arith.constant 4 : i32
    %83 = vector.broadcast %c4_i32 : i32 to vector<8x1xi32>
    %84 = arith.cmpi eq, %40, %83 : vector<8x1xi32>
    %cst_31 = arith.constant 0.000000e+00 : f32
    %85 = vector.shape_cast %84 : vector<8x1xi1> to vector<8x1xi1>
    %86 = vector.broadcast %85 : vector<8x1xi1> to vector<8x4xi1>
    %87 = vector.shape_cast %82 : vector<1x4xf32> to vector<1x4xf32>
    %88 = vector.broadcast %87 : vector<1x4xf32> to vector<8x4xf32>
    %89 = vector.broadcast %cst_31 : f32 to vector<8x4xf32>
    %90 = arith.select %86, %88, %89 : vector<8x4xi1>, vector<8x4xf32>
    %91 = arith.addf %81, %90 : vector<8x4xf32>
    %92 = vector.extract_strided_slice %39 {offsets = [0, 20], sizes = [1, 4], strides = [1, 1]} : vector<1x128xf32> to vector<1x4xf32>
    %c5_i32 = arith.constant 5 : i32
    %93 = vector.broadcast %c5_i32 : i32 to vector<8x1xi32>
    %94 = arith.cmpi eq, %40, %93 : vector<8x1xi32>
    %cst_32 = arith.constant 0.000000e+00 : f32
    %95 = vector.shape_cast %94 : vector<8x1xi1> to vector<8x1xi1>
    %96 = vector.broadcast %95 : vector<8x1xi1> to vector<8x4xi1>
    %97 = vector.shape_cast %92 : vector<1x4xf32> to vector<1x4xf32>
    %98 = vector.broadcast %97 : vector<1x4xf32> to vector<8x4xf32>
    %99 = vector.broadcast %cst_32 : f32 to vector<8x4xf32>
    %100 = arith.select %96, %98, %99 : vector<8x4xi1>, vector<8x4xf32>
    %101 = arith.addf %91, %100 : vector<8x4xf32>
    %102 = vector.extract_strided_slice %39 {offsets = [0, 24], sizes = [1, 4], strides = [1, 1]} : vector<1x128xf32> to vector<1x4xf32>
    %c6_i32 = arith.constant 6 : i32
    %103 = vector.broadcast %c6_i32 : i32 to vector<8x1xi32>
    %104 = arith.cmpi eq, %40, %103 : vector<8x1xi32>
    %cst_33 = arith.constant 0.000000e+00 : f32
    %105 = vector.shape_cast %104 : vector<8x1xi1> to vector<8x1xi1>
    %106 = vector.broadcast %105 : vector<8x1xi1> to vector<8x4xi1>
    %107 = vector.shape_cast %102 : vector<1x4xf32> to vector<1x4xf32>
    %108 = vector.broadcast %107 : vector<1x4xf32> to vector<8x4xf32>
    %109 = vector.broadcast %cst_33 : f32 to vector<8x4xf32>
    %110 = arith.select %106, %108, %109 : vector<8x4xi1>, vector<8x4xf32>
    %111 = arith.addf %101, %110 : vector<8x4xf32>
    %112 = vector.extract_strided_slice %39 {offsets = [0, 28], sizes = [1, 4], strides = [1, 1]} : vector<1x128xf32> to vector<1x4xf32>
    %c7_i32 = arith.constant 7 : i32
    %113 = vector.broadcast %c7_i32 : i32 to vector<8x1xi32>
    %114 = arith.cmpi eq, %40, %113 : vector<8x1xi32>
    %cst_34 = arith.constant 0.000000e+00 : f32
    %115 = vector.shape_cast %114 : vector<8x1xi1> to vector<8x1xi1>
    %116 = vector.broadcast %115 : vector<8x1xi1> to vector<8x4xi1>
    %117 = vector.shape_cast %112 : vector<1x4xf32> to vector<1x4xf32>
    %118 = vector.broadcast %117 : vector<1x4xf32> to vector<8x4xf32>
    %119 = vector.broadcast %cst_34 : f32 to vector<8x4xf32>
    %120 = arith.select %116, %118, %119 : vector<8x4xi1>, vector<8x4xf32>
    %121 = arith.addf %111, %120 : vector<8x4xf32>
    %cst_35 = arith.constant 0.636619746 : f32
    %122 = vector.broadcast %cst_35 : f32 to vector<8x4xf32>
    %123 = arith.mulf %121, %122 : vector<8x4xf32>
    %cst_36 = arith.constant 5.000000e-01 : f32
    %124 = vector.broadcast %cst_36 : f32 to vector<8x4xf32>
    %125 = arith.cmpf ogt, %123, %124 : vector<8x4xf32>
    %cst_37 = arith.constant 1.000000e+00 : f32
    %cst_38 = arith.constant 0.000000e+00 : f32
    %126 = vector.broadcast %cst_37 : f32 to vector<8x4xf32>
    %127 = vector.broadcast %cst_38 : f32 to vector<8x4xf32>
    %128 = arith.select %125, %126, %127 : vector<8x4xi1>, vector<8x4xf32>
    %cst_39 = arith.constant 1.500000e+00 : f32
    %129 = vector.broadcast %cst_39 : f32 to vector<8x4xf32>
    %130 = arith.cmpf ogt, %123, %129 : vector<8x4xf32>
    %cst_40 = arith.constant 1.000000e+00 : f32
    %cst_41 = arith.constant 0.000000e+00 : f32
    %131 = vector.broadcast %cst_40 : f32 to vector<8x4xf32>
    %132 = vector.broadcast %cst_41 : f32 to vector<8x4xf32>
    %133 = arith.select %130, %131, %132 : vector<8x4xi1>, vector<8x4xf32>
    %134 = arith.addf %128, %133 : vector<8x4xf32>
    %cst_42 = arith.constant 2.500000e+00 : f32
    %135 = vector.broadcast %cst_42 : f32 to vector<8x4xf32>
    %136 = arith.cmpf ogt, %123, %135 : vector<8x4xf32>
    %cst_43 = arith.constant 1.000000e+00 : f32
    %cst_44 = arith.constant 0.000000e+00 : f32
    %137 = vector.broadcast %cst_43 : f32 to vector<8x4xf32>
    %138 = vector.broadcast %cst_44 : f32 to vector<8x4xf32>
    %139 = arith.select %136, %137, %138 : vector<8x4xi1>, vector<8x4xf32>
    %140 = arith.addf %134, %139 : vector<8x4xf32>
    %cst_45 = arith.constant 3.500000e+00 : f32
    %141 = vector.broadcast %cst_45 : f32 to vector<8x4xf32>
    %142 = arith.cmpf ogt, %123, %141 : vector<8x4xf32>
    %cst_46 = arith.constant 1.000000e+00 : f32
    %cst_47 = arith.constant 0.000000e+00 : f32
    %143 = vector.broadcast %cst_46 : f32 to vector<8x4xf32>
    %144 = vector.broadcast %cst_47 : f32 to vector<8x4xf32>
    %145 = arith.select %142, %143, %144 : vector<8x4xi1>, vector<8x4xf32>
    %146 = arith.addf %140, %145 : vector<8x4xf32>
    %cst_48 = arith.constant 1.57079637 : f32
    %147 = vector.broadcast %cst_48 : f32 to vector<8x4xf32>
    %148 = arith.mulf %146, %147 : vector<8x4xf32>
    %149 = arith.subf %121, %148 : vector<8x4xf32>
    %150 = arith.mulf %149, %149 : vector<8x4xf32>
    %cst_49 = arith.constant 2.75573188E-6 : f32
    %151 = vector.broadcast %cst_49 : f32 to vector<8x4xf32>
    %152 = arith.mulf %150, %151 : vector<8x4xf32>
    %cst_50 = arith.constant -1.98412701E-4 : f32
    %153 = vector.broadcast %cst_50 : f32 to vector<8x4xf32>
    %154 = arith.addf %153, %152 : vector<8x4xf32>
    %155 = arith.mulf %150, %154 : vector<8x4xf32>
    %cst_51 = arith.constant 0.00833333377 : f32
    %156 = vector.broadcast %cst_51 : f32 to vector<8x4xf32>
    %157 = arith.addf %156, %155 : vector<8x4xf32>
    %158 = arith.mulf %150, %157 : vector<8x4xf32>
    %cst_52 = arith.constant -0.166666672 : f32
    %159 = vector.broadcast %cst_52 : f32 to vector<8x4xf32>
    %160 = arith.addf %159, %158 : vector<8x4xf32>
    %161 = arith.mulf %150, %160 : vector<8x4xf32>
    %cst_53 = arith.constant 1.000000e+00 : f32
    %162 = vector.broadcast %cst_53 : f32 to vector<8x4xf32>
    %163 = arith.addf %162, %161 : vector<8x4xf32>
    %164 = arith.mulf %149, %163 : vector<8x4xf32>
    %cst_54 = arith.constant 2.48015876E-5 : f32
    %165 = vector.broadcast %cst_54 : f32 to vector<8x4xf32>
    %166 = arith.mulf %150, %165 : vector<8x4xf32>
    %cst_55 = arith.constant -0.00138888892 : f32
    %167 = vector.broadcast %cst_55 : f32 to vector<8x4xf32>
    %168 = arith.addf %167, %166 : vector<8x4xf32>
    %169 = arith.mulf %150, %168 : vector<8x4xf32>
    %cst_56 = arith.constant 0.0416666679 : f32
    %170 = vector.broadcast %cst_56 : f32 to vector<8x4xf32>
    %171 = arith.addf %170, %169 : vector<8x4xf32>
    %172 = arith.mulf %150, %171 : vector<8x4xf32>
    %cst_57 = arith.constant -5.000000e-01 : f32
    %173 = vector.broadcast %cst_57 : f32 to vector<8x4xf32>
    %174 = arith.addf %173, %172 : vector<8x4xf32>
    %175 = arith.mulf %150, %174 : vector<8x4xf32>
    %cst_58 = arith.constant 1.000000e+00 : f32
    %176 = vector.broadcast %cst_58 : f32 to vector<8x4xf32>
    %177 = arith.addf %176, %175 : vector<8x4xf32>
    %cst_59 = arith.constant 3.500000e+00 : f32
    %178 = vector.broadcast %cst_59 : f32 to vector<8x4xf32>
    %179 = arith.cmpf ogt, %146, %178 : vector<8x4xf32>
    %cst_60 = arith.constant 4.000000e+00 : f32
    %cst_61 = arith.constant 0.000000e+00 : f32
    %180 = vector.broadcast %cst_60 : f32 to vector<8x4xf32>
    %181 = vector.broadcast %cst_61 : f32 to vector<8x4xf32>
    %182 = arith.select %179, %180, %181 : vector<8x4xi1>, vector<8x4xf32>
    %183 = arith.subf %146, %182 : vector<8x4xf32>
    %cst_62 = arith.constant 0.000000e+00 : f32
    %184 = vector.broadcast %cst_62 : f32 to vector<8x4xf32>
    %185 = arith.cmpf oeq, %183, %184 : vector<8x4xf32>
    %cst_63 = arith.constant 1.000000e+00 : f32
    %186 = vector.broadcast %cst_63 : f32 to vector<8x4xf32>
    %187 = arith.cmpf oeq, %183, %186 : vector<8x4xf32>
    %cst_64 = arith.constant 0.000000e+00 : f32
    %188 = vector.broadcast %cst_64 : f32 to vector<8x4xf32>
    %189 = arith.subf %188, %164 : vector<8x4xf32>
    %cst_65 = arith.constant 2.000000e+00 : f32
    %190 = vector.broadcast %cst_65 : f32 to vector<8x4xf32>
    %191 = arith.cmpf oeq, %183, %190 : vector<8x4xf32>
    %cst_66 = arith.constant 0.000000e+00 : f32
    %192 = vector.broadcast %cst_66 : f32 to vector<8x4xf32>
    %193 = arith.subf %192, %177 : vector<8x4xf32>
    %194 = arith.select %191, %193, %164 : vector<8x4xi1>, vector<8x4xf32>
    %195 = arith.select %187, %189, %194 : vector<8x4xi1>, vector<8x4xf32>
    %196 = arith.select %185, %177, %195 : vector<8x4xi1>, vector<8x4xf32>
    %cst_67 = arith.constant 0.000000e+00 : f32
    %197 = vector.broadcast %cst_67 : f32 to vector<8x4xf32>
    %198 = arith.cmpf oeq, %183, %197 : vector<8x4xf32>
    %cst_68 = arith.constant 1.000000e+00 : f32
    %199 = vector.broadcast %cst_68 : f32 to vector<8x4xf32>
    %200 = arith.cmpf oeq, %183, %199 : vector<8x4xf32>
    %cst_69 = arith.constant 2.000000e+00 : f32
    %201 = vector.broadcast %cst_69 : f32 to vector<8x4xf32>
    %202 = arith.cmpf oeq, %183, %201 : vector<8x4xf32>
    %cst_70 = arith.constant 0.000000e+00 : f32
    %203 = vector.broadcast %cst_70 : f32 to vector<8x4xf32>
    %204 = arith.subf %203, %164 : vector<8x4xf32>
    %cst_71 = arith.constant 0.000000e+00 : f32
    %205 = vector.broadcast %cst_71 : f32 to vector<8x4xf32>
    %206 = arith.subf %205, %177 : vector<8x4xf32>
    %207 = arith.select %202, %204, %206 : vector<8x4xi1>, vector<8x4xf32>
    %208 = arith.select %200, %177, %207 : vector<8x4xi1>, vector<8x4xf32>
    %209 = arith.select %198, %164, %208 : vector<8x4xi1>, vector<8x4xf32>
    %c0_72 = arith.constant 0 : index
    %c0_73 = arith.constant 0 : index
    %c0_74 = arith.constant 0 : index
    %c0_75 = arith.constant 0 : index
    %210 = vector.load %arg17[%c0_72, %c0_73, %c0_74, %c0_75] : memref<2x2x8x4xf32, #tpu.memory_space<vmem>>, vector<1x1x8x4xf32>
    %211 = vector.shape_cast %210 : vector<1x1x8x4xf32> to vector<8x4xf32>
    %212 = vector.shape_cast %196 : vector<8x4xf32> to vector<1x1x8x4xf32>
    tpu.vector_store %arg17[%c0_72, %c0_73, %c0_74, %c0_75], %212 {strides = array<i32>} : memref<2x2x8x4xf32, #tpu.memory_space<vmem>>, vector<1x1x8x4xf32>,
    %c0_76 = arith.constant 0 : index
    %c1_77 = arith.constant 1 : index
    %c0_78 = arith.constant 0 : index
    %c0_79 = arith.constant 0 : index
    %213 = vector.load %arg17[%c0_76, %c1_77, %c0_78, %c0_79] : memref<2x2x8x4xf32, #tpu.memory_space<vmem>>, vector<1x1x8x4xf32>
    %214 = vector.shape_cast %213 : vector<1x1x8x4xf32> to vector<8x4xf32>
    %215 = vector.shape_cast %209 : vector<8x4xf32> to vector<1x1x8x4xf32>
    tpu.vector_store %arg17[%c0_76, %c1_77, %c0_78, %c0_79], %215 {strides = array<i32>} : memref<2x2x8x4xf32, #tpu.memory_space<vmem>>, vector<1x1x8x4xf32>,
    %cst_80 = arith.constant 0.000000e+00 : f32
    %216 = vector.broadcast %cst_80 : f32 to vector<8x4xf32>
    %217 = arith.subf %216, %209 : vector<8x4xf32>
    %218 = tpu.concatenate %196, %217 in 1 : vector<8x4xf32>, vector<8x4xf32> -> vector<8x8xf32>
    %219 = tpu.concatenate %209, %196 in 1 : vector<8x4xf32>, vector<8x4xf32> -> vector<8x8xf32>
    %220 = tpu.concatenate %218, %219 in 0 : vector<8x8xf32>, vector<8x8xf32> -> vector<16x8xf32>
    %221 = tpu.iota {dimensions = array<i32: 0>} : vector<8x1xi32>
    %cst_81 = arith.constant 0.000000e+00 : f32
    %222 = vector.broadcast %cst_81 : f32 to vector<8x4xf32>
    %223 = vector.extract_strided_slice %39 {offsets = [0, 32], sizes = [1, 4], strides = [1, 1]} : vector<1x128xf32> to vector<1x4xf32>
    %c0_i32_82 = arith.constant 0 : i32
    %224 = vector.broadcast %c0_i32_82 : i32 to vector<8x1xi32>
    %225 = arith.cmpi eq, %221, %224 : vector<8x1xi32>
    %cst_83 = arith.constant 0.000000e+00 : f32
    %226 = vector.shape_cast %225 : vector<8x1xi1> to vector<8x1xi1>
    %227 = vector.broadcast %226 : vector<8x1xi1> to vector<8x4xi1>
    %228 = vector.shape_cast %223 : vector<1x4xf32> to vector<1x4xf32>
    %229 = vector.broadcast %228 : vector<1x4xf32> to vector<8x4xf32>
    %230 = vector.broadcast %cst_83 : f32 to vector<8x4xf32>
    %231 = arith.select %227, %229, %230 : vector<8x4xi1>, vector<8x4xf32>
    %232 = arith.addf %222, %231 : vector<8x4xf32>
    %233 = vector.extract_strided_slice %39 {offsets = [0, 36], sizes = [1, 4], strides = [1, 1]} : vector<1x128xf32> to vector<1x4xf32>
    %c1_i32_84 = arith.constant 1 : i32
    %234 = vector.broadcast %c1_i32_84 : i32 to vector<8x1xi32>
    %235 = arith.cmpi eq, %221, %234 : vector<8x1xi32>
    %cst_85 = arith.constant 0.000000e+00 : f32
    %236 = vector.shape_cast %235 : vector<8x1xi1> to vector<8x1xi1>
    %237 = vector.broadcast %236 : vector<8x1xi1> to vector<8x4xi1>
    %238 = vector.shape_cast %233 : vector<1x4xf32> to vector<1x4xf32>
    %239 = vector.broadcast %238 : vector<1x4xf32> to vector<8x4xf32>
    %240 = vector.broadcast %cst_85 : f32 to vector<8x4xf32>
    %241 = arith.select %237, %239, %240 : vector<8x4xi1>, vector<8x4xf32>
    %242 = arith.addf %232, %241 : vector<8x4xf32>
    %243 = vector.extract_strided_slice %39 {offsets = [0, 40], sizes = [1, 4], strides = [1, 1]} : vector<1x128xf32> to vector<1x4xf32>
    %c2_i32_86 = arith.constant 2 : i32
    %244 = vector.broadcast %c2_i32_86 : i32 to vector<8x1xi32>
    %245 = arith.cmpi eq, %221, %244 : vector<8x1xi32>
    %cst_87 = arith.constant 0.000000e+00 : f32
    %246 = vector.shape_cast %245 : vector<8x1xi1> to vector<8x1xi1>
    %247 = vector.broadcast %246 : vector<8x1xi1> to vector<8x4xi1>
    %248 = vector.shape_cast %243 : vector<1x4xf32> to vector<1x4xf32>
    %249 = vector.broadcast %248 : vector<1x4xf32> to vector<8x4xf32>
    %250 = vector.broadcast %cst_87 : f32 to vector<8x4xf32>
    %251 = arith.select %247, %249, %250 : vector<8x4xi1>, vector<8x4xf32>
    %252 = arith.addf %242, %251 : vector<8x4xf32>
    %253 = vector.extract_strided_slice %39 {offsets = [0, 44], sizes = [1, 4], strides = [1, 1]} : vector<1x128xf32> to vector<1x4xf32>
    %c3_i32_88 = arith.constant 3 : i32
    %254 = vector.broadcast %c3_i32_88 : i32 to vector<8x1xi32>
    %255 = arith.cmpi eq, %221, %254 : vector<8x1xi32>
    %cst_89 = arith.constant 0.000000e+00 : f32
    %256 = vector.shape_cast %255 : vector<8x1xi1> to vector<8x1xi1>
    %257 = vector.broadcast %256 : vector<8x1xi1> to vector<8x4xi1>
    %258 = vector.shape_cast %253 : vector<1x4xf32> to vector<1x4xf32>
    %259 = vector.broadcast %258 : vector<1x4xf32> to vector<8x4xf32>
    %260 = vector.broadcast %cst_89 : f32 to vector<8x4xf32>
    %261 = arith.select %257, %259, %260 : vector<8x4xi1>, vector<8x4xf32>
    %262 = arith.addf %252, %261 : vector<8x4xf32>
    %263 = vector.extract_strided_slice %39 {offsets = [0, 48], sizes = [1, 4], strides = [1, 1]} : vector<1x128xf32> to vector<1x4xf32>
    %c4_i32_90 = arith.constant 4 : i32
    %264 = vector.broadcast %c4_i32_90 : i32 to vector<8x1xi32>
    %265 = arith.cmpi eq, %221, %264 : vector<8x1xi32>
    %cst_91 = arith.constant 0.000000e+00 : f32
    %266 = vector.shape_cast %265 : vector<8x1xi1> to vector<8x1xi1>
    %267 = vector.broadcast %266 : vector<8x1xi1> to vector<8x4xi1>
    %268 = vector.shape_cast %263 : vector<1x4xf32> to vector<1x4xf32>
    %269 = vector.broadcast %268 : vector<1x4xf32> to vector<8x4xf32>
    %270 = vector.broadcast %cst_91 : f32 to vector<8x4xf32>
    %271 = arith.select %267, %269, %270 : vector<8x4xi1>, vector<8x4xf32>
    %272 = arith.addf %262, %271 : vector<8x4xf32>
    %273 = vector.extract_strided_slice %39 {offsets = [0, 52], sizes = [1, 4], strides = [1, 1]} : vector<1x128xf32> to vector<1x4xf32>
    %c5_i32_92 = arith.constant 5 : i32
    %274 = vector.broadcast %c5_i32_92 : i32 to vector<8x1xi32>
    %275 = arith.cmpi eq, %221, %274 : vector<8x1xi32>
    %cst_93 = arith.constant 0.000000e+00 : f32
    %276 = vector.shape_cast %275 : vector<8x1xi1> to vector<8x1xi1>
    %277 = vector.broadcast %276 : vector<8x1xi1> to vector<8x4xi1>
    %278 = vector.shape_cast %273 : vector<1x4xf32> to vector<1x4xf32>
    %279 = vector.broadcast %278 : vector<1x4xf32> to vector<8x4xf32>
    %280 = vector.broadcast %cst_93 : f32 to vector<8x4xf32>
    %281 = arith.select %277, %279, %280 : vector<8x4xi1>, vector<8x4xf32>
    %282 = arith.addf %272, %281 : vector<8x4xf32>
    %283 = vector.extract_strided_slice %39 {offsets = [0, 56], sizes = [1, 4], strides = [1, 1]} : vector<1x128xf32> to vector<1x4xf32>
    %c6_i32_94 = arith.constant 6 : i32
    %284 = vector.broadcast %c6_i32_94 : i32 to vector<8x1xi32>
    %285 = arith.cmpi eq, %221, %284 : vector<8x1xi32>
    %cst_95 = arith.constant 0.000000e+00 : f32
    %286 = vector.shape_cast %285 : vector<8x1xi1> to vector<8x1xi1>
    %287 = vector.broadcast %286 : vector<8x1xi1> to vector<8x4xi1>
    %288 = vector.shape_cast %283 : vector<1x4xf32> to vector<1x4xf32>
    %289 = vector.broadcast %288 : vector<1x4xf32> to vector<8x4xf32>
    %290 = vector.broadcast %cst_95 : f32 to vector<8x4xf32>
    %291 = arith.select %287, %289, %290 : vector<8x4xi1>, vector<8x4xf32>
    %292 = arith.addf %282, %291 : vector<8x4xf32>
    %293 = vector.extract_strided_slice %39 {offsets = [0, 60], sizes = [1, 4], strides = [1, 1]} : vector<1x128xf32> to vector<1x4xf32>
    %c7_i32_96 = arith.constant 7 : i32
    %294 = vector.broadcast %c7_i32_96 : i32 to vector<8x1xi32>
    %295 = arith.cmpi eq, %221, %294 : vector<8x1xi32>
    %cst_97 = arith.constant 0.000000e+00 : f32
    %296 = vector.shape_cast %295 : vector<8x1xi1> to vector<8x1xi1>
    %297 = vector.broadcast %296 : vector<8x1xi1> to vector<8x4xi1>
    %298 = vector.shape_cast %293 : vector<1x4xf32> to vector<1x4xf32>
    %299 = vector.broadcast %298 : vector<1x4xf32> to vector<8x4xf32>
    %300 = vector.broadcast %cst_97 : f32 to vector<8x4xf32>
    %301 = arith.select %297, %299, %300 : vector<8x4xi1>, vector<8x4xf32>
    %302 = arith.addf %292, %301 : vector<8x4xf32>
    %cst_98 = arith.constant 0.636619746 : f32
    %303 = vector.broadcast %cst_98 : f32 to vector<8x4xf32>
    %304 = arith.mulf %302, %303 : vector<8x4xf32>
    %cst_99 = arith.constant 5.000000e-01 : f32
    %305 = vector.broadcast %cst_99 : f32 to vector<8x4xf32>
    %306 = arith.cmpf ogt, %304, %305 : vector<8x4xf32>
    %cst_100 = arith.constant 1.000000e+00 : f32
    %cst_101 = arith.constant 0.000000e+00 : f32
    %307 = vector.broadcast %cst_100 : f32 to vector<8x4xf32>
    %308 = vector.broadcast %cst_101 : f32 to vector<8x4xf32>
    %309 = arith.select %306, %307, %308 : vector<8x4xi1>, vector<8x4xf32>
    %cst_102 = arith.constant 1.500000e+00 : f32
    %310 = vector.broadcast %cst_102 : f32 to vector<8x4xf32>
    %311 = arith.cmpf ogt, %304, %310 : vector<8x4xf32>
    %cst_103 = arith.constant 1.000000e+00 : f32
    %cst_104 = arith.constant 0.000000e+00 : f32
    %312 = vector.broadcast %cst_103 : f32 to vector<8x4xf32>
    %313 = vector.broadcast %cst_104 : f32 to vector<8x4xf32>
    %314 = arith.select %311, %312, %313 : vector<8x4xi1>, vector<8x4xf32>
    %315 = arith.addf %309, %314 : vector<8x4xf32>
    %cst_105 = arith.constant 2.500000e+00 : f32
    %316 = vector.broadcast %cst_105 : f32 to vector<8x4xf32>
    %317 = arith.cmpf ogt, %304, %316 : vector<8x4xf32>
    %cst_106 = arith.constant 1.000000e+00 : f32
    %cst_107 = arith.constant 0.000000e+00 : f32
    %318 = vector.broadcast %cst_106 : f32 to vector<8x4xf32>
    %319 = vector.broadcast %cst_107 : f32 to vector<8x4xf32>
    %320 = arith.select %317, %318, %319 : vector<8x4xi1>, vector<8x4xf32>
    %321 = arith.addf %315, %320 : vector<8x4xf32>
    %cst_108 = arith.constant 3.500000e+00 : f32
    %322 = vector.broadcast %cst_108 : f32 to vector<8x4xf32>
    %323 = arith.cmpf ogt, %304, %322 : vector<8x4xf32>
    %cst_109 = arith.constant 1.000000e+00 : f32
    %cst_110 = arith.constant 0.000000e+00 : f32
    %324 = vector.broadcast %cst_109 : f32 to vector<8x4xf32>
    %325 = vector.broadcast %cst_110 : f32 to vector<8x4xf32>
    %326 = arith.select %323, %324, %325 : vector<8x4xi1>, vector<8x4xf32>
    %327 = arith.addf %321, %326 : vector<8x4xf32>
    %cst_111 = arith.constant 1.57079637 : f32
    %328 = vector.broadcast %cst_111 : f32 to vector<8x4xf32>
    %329 = arith.mulf %327, %328 : vector<8x4xf32>
    %330 = arith.subf %302, %329 : vector<8x4xf32>
    %331 = arith.mulf %330, %330 : vector<8x4xf32>
    %cst_112 = arith.constant 2.75573188E-6 : f32
    %332 = vector.broadcast %cst_112 : f32 to vector<8x4xf32>
    %333 = arith.mulf %331, %332 : vector<8x4xf32>
    %cst_113 = arith.constant -1.98412701E-4 : f32
    %334 = vector.broadcast %cst_113 : f32 to vector<8x4xf32>
    %335 = arith.addf %334, %333 : vector<8x4xf32>
    %336 = arith.mulf %331, %335 : vector<8x4xf32>
    %cst_114 = arith.constant 0.00833333377 : f32
    %337 = vector.broadcast %cst_114 : f32 to vector<8x4xf32>
    %338 = arith.addf %337, %336 : vector<8x4xf32>
    %339 = arith.mulf %331, %338 : vector<8x4xf32>
    %cst_115 = arith.constant -0.166666672 : f32
    %340 = vector.broadcast %cst_115 : f32 to vector<8x4xf32>
    %341 = arith.addf %340, %339 : vector<8x4xf32>
    %342 = arith.mulf %331, %341 : vector<8x4xf32>
    %cst_116 = arith.constant 1.000000e+00 : f32
    %343 = vector.broadcast %cst_116 : f32 to vector<8x4xf32>
    %344 = arith.addf %343, %342 : vector<8x4xf32>
    %345 = arith.mulf %330, %344 : vector<8x4xf32>
    %cst_117 = arith.constant 2.48015876E-5 : f32
    %346 = vector.broadcast %cst_117 : f32 to vector<8x4xf32>
    %347 = arith.mulf %331, %346 : vector<8x4xf32>
    %cst_118 = arith.constant -0.00138888892 : f32
    %348 = vector.broadcast %cst_118 : f32 to vector<8x4xf32>
    %349 = arith.addf %348, %347 : vector<8x4xf32>
    %350 = arith.mulf %331, %349 : vector<8x4xf32>
    %cst_119 = arith.constant 0.0416666679 : f32
    %351 = vector.broadcast %cst_119 : f32 to vector<8x4xf32>
    %352 = arith.addf %351, %350 : vector<8x4xf32>
    %353 = arith.mulf %331, %352 : vector<8x4xf32>
    %cst_120 = arith.constant -5.000000e-01 : f32
    %354 = vector.broadcast %cst_120 : f32 to vector<8x4xf32>
    %355 = arith.addf %354, %353 : vector<8x4xf32>
    %356 = arith.mulf %331, %355 : vector<8x4xf32>
    %cst_121 = arith.constant 1.000000e+00 : f32
    %357 = vector.broadcast %cst_121 : f32 to vector<8x4xf32>
    %358 = arith.addf %357, %356 : vector<8x4xf32>
    %cst_122 = arith.constant 3.500000e+00 : f32
    %359 = vector.broadcast %cst_122 : f32 to vector<8x4xf32>
    %360 = arith.cmpf ogt, %327, %359 : vector<8x4xf32>
    %cst_123 = arith.constant 4.000000e+00 : f32
    %cst_124 = arith.constant 0.000000e+00 : f32
    %361 = vector.broadcast %cst_123 : f32 to vector<8x4xf32>
    %362 = vector.broadcast %cst_124 : f32 to vector<8x4xf32>
    %363 = arith.select %360, %361, %362 : vector<8x4xi1>, vector<8x4xf32>
    %364 = arith.subf %327, %363 : vector<8x4xf32>
    %cst_125 = arith.constant 0.000000e+00 : f32
    %365 = vector.broadcast %cst_125 : f32 to vector<8x4xf32>
    %366 = arith.cmpf oeq, %364, %365 : vector<8x4xf32>
    %cst_126 = arith.constant 1.000000e+00 : f32
    %367 = vector.broadcast %cst_126 : f32 to vector<8x4xf32>
    %368 = arith.cmpf oeq, %364, %367 : vector<8x4xf32>
    %cst_127 = arith.constant 0.000000e+00 : f32
    %369 = vector.broadcast %cst_127 : f32 to vector<8x4xf32>
    %370 = arith.subf %369, %345 : vector<8x4xf32>
    %cst_128 = arith.constant 2.000000e+00 : f32
    %371 = vector.broadcast %cst_128 : f32 to vector<8x4xf32>
    %372 = arith.cmpf oeq, %364, %371 : vector<8x4xf32>
    %cst_129 = arith.constant 0.000000e+00 : f32
    %373 = vector.broadcast %cst_129 : f32 to vector<8x4xf32>
    %374 = arith.subf %373, %358 : vector<8x4xf32>
    %375 = arith.select %372, %374, %345 : vector<8x4xi1>, vector<8x4xf32>
    %376 = arith.select %368, %370, %375 : vector<8x4xi1>, vector<8x4xf32>
    %377 = arith.select %366, %358, %376 : vector<8x4xi1>, vector<8x4xf32>
    %cst_130 = arith.constant 0.000000e+00 : f32
    %378 = vector.broadcast %cst_130 : f32 to vector<8x4xf32>
    %379 = arith.cmpf oeq, %364, %378 : vector<8x4xf32>
    %cst_131 = arith.constant 1.000000e+00 : f32
    %380 = vector.broadcast %cst_131 : f32 to vector<8x4xf32>
    %381 = arith.cmpf oeq, %364, %380 : vector<8x4xf32>
    %cst_132 = arith.constant 2.000000e+00 : f32
    %382 = vector.broadcast %cst_132 : f32 to vector<8x4xf32>
    %383 = arith.cmpf oeq, %364, %382 : vector<8x4xf32>
    %cst_133 = arith.constant 0.000000e+00 : f32
    %384 = vector.broadcast %cst_133 : f32 to vector<8x4xf32>
    %385 = arith.subf %384, %345 : vector<8x4xf32>
    %cst_134 = arith.constant 0.000000e+00 : f32
    %386 = vector.broadcast %cst_134 : f32 to vector<8x4xf32>
    %387 = arith.subf %386, %358 : vector<8x4xf32>
    %388 = arith.select %383, %385, %387 : vector<8x4xi1>, vector<8x4xf32>
    %389 = arith.select %381, %358, %388 : vector<8x4xi1>, vector<8x4xf32>
    %390 = arith.select %379, %345, %389 : vector<8x4xi1>, vector<8x4xf32>
    %c1_135 = arith.constant 1 : index
    %c0_136 = arith.constant 0 : index
    %c0_137 = arith.constant 0 : index
    %c0_138 = arith.constant 0 : index
    %391 = vector.load %arg17[%c1_135, %c0_136, %c0_137, %c0_138] : memref<2x2x8x4xf32, #tpu.memory_space<vmem>>, vector<1x1x8x4xf32>
    %392 = vector.shape_cast %391 : vector<1x1x8x4xf32> to vector<8x4xf32>
    %393 = vector.shape_cast %377 : vector<8x4xf32> to vector<1x1x8x4xf32>
    tpu.vector_store %arg17[%c1_135, %c0_136, %c0_137, %c0_138], %393 {strides = array<i32>} : memref<2x2x8x4xf32, #tpu.memory_space<vmem>>, vector<1x1x8x4xf32>,
    %c1_139 = arith.constant 1 : index
    %c1_140 = arith.constant 1 : index
    %c0_141 = arith.constant 0 : index
    %c0_142 = arith.constant 0 : index
    %394 = vector.load %arg17[%c1_139, %c1_140, %c0_141, %c0_142] : memref<2x2x8x4xf32, #tpu.memory_space<vmem>>, vector<1x1x8x4xf32>
    %395 = vector.shape_cast %394 : vector<1x1x8x4xf32> to vector<8x4xf32>
    %396 = vector.shape_cast %390 : vector<8x4xf32> to vector<1x1x8x4xf32>
    tpu.vector_store %arg17[%c1_139, %c1_140, %c0_141, %c0_142], %396 {strides = array<i32>} : memref<2x2x8x4xf32, #tpu.memory_space<vmem>>, vector<1x1x8x4xf32>,
    %cst_143 = arith.constant 0.000000e+00 : f32
    %397 = vector.broadcast %cst_143 : f32 to vector<8x4xf32>
    %398 = arith.subf %397, %390 : vector<8x4xf32>
    %399 = tpu.concatenate %377, %398 in 1 : vector<8x4xf32>, vector<8x4xf32> -> vector<8x8xf32>
    %400 = tpu.concatenate %390, %377 in 1 : vector<8x4xf32>, vector<8x4xf32> -> vector<8x8xf32>
    %401 = tpu.concatenate %399, %400 in 0 : vector<8x8xf32>, vector<8x8xf32> -> vector<16x8xf32>
    %402 = tpu.iota {dimensions = array<i32: 0>} : vector<8x1xi32>
    %cst_144 = arith.constant 0.000000e+00 : f32
    %403 = vector.broadcast %cst_144 : f32 to vector<8x4xf32>
    %404 = vector.extract_strided_slice %39 {offsets = [0, 64], sizes = [1, 4], strides = [1, 1]} : vector<1x128xf32> to vector<1x4xf32>
    %c0_i32_145 = arith.constant 0 : i32
    %405 = vector.broadcast %c0_i32_145 : i32 to vector<8x1xi32>
    %406 = arith.cmpi eq, %402, %405 : vector<8x1xi32>
    %cst_146 = arith.constant 0.000000e+00 : f32
    %407 = vector.shape_cast %406 : vector<8x1xi1> to vector<8x1xi1>
    %408 = vector.broadcast %407 : vector<8x1xi1> to vector<8x4xi1>
    %409 = vector.shape_cast %404 : vector<1x4xf32> to vector<1x4xf32>
    %410 = vector.broadcast %409 : vector<1x4xf32> to vector<8x4xf32>
    %411 = vector.broadcast %cst_146 : f32 to vector<8x4xf32>
    %412 = arith.select %408, %410, %411 : vector<8x4xi1>, vector<8x4xf32>
    %413 = arith.addf %403, %412 : vector<8x4xf32>
    %414 = vector.extract_strided_slice %39 {offsets = [0, 68], sizes = [1, 4], strides = [1, 1]} : vector<1x128xf32> to vector<1x4xf32>
    %c1_i32_147 = arith.constant 1 : i32
    %415 = vector.broadcast %c1_i32_147 : i32 to vector<8x1xi32>
    %416 = arith.cmpi eq, %402, %415 : vector<8x1xi32>
    %cst_148 = arith.constant 0.000000e+00 : f32
    %417 = vector.shape_cast %416 : vector<8x1xi1> to vector<8x1xi1>
    %418 = vector.broadcast %417 : vector<8x1xi1> to vector<8x4xi1>
    %419 = vector.shape_cast %414 : vector<1x4xf32> to vector<1x4xf32>
    %420 = vector.broadcast %419 : vector<1x4xf32> to vector<8x4xf32>
    %421 = vector.broadcast %cst_148 : f32 to vector<8x4xf32>
    %422 = arith.select %418, %420, %421 : vector<8x4xi1>, vector<8x4xf32>
    %423 = arith.addf %413, %422 : vector<8x4xf32>
    %424 = vector.extract_strided_slice %39 {offsets = [0, 72], sizes = [1, 4], strides = [1, 1]} : vector<1x128xf32> to vector<1x4xf32>
    %c2_i32_149 = arith.constant 2 : i32
    %425 = vector.broadcast %c2_i32_149 : i32 to vector<8x1xi32>
    %426 = arith.cmpi eq, %402, %425 : vector<8x1xi32>
    %cst_150 = arith.constant 0.000000e+00 : f32
    %427 = vector.shape_cast %426 : vector<8x1xi1> to vector<8x1xi1>
    %428 = vector.broadcast %427 : vector<8x1xi1> to vector<8x4xi1>
    %429 = vector.shape_cast %424 : vector<1x4xf32> to vector<1x4xf32>
    %430 = vector.broadcast %429 : vector<1x4xf32> to vector<8x4xf32>
    %431 = vector.broadcast %cst_150 : f32 to vector<8x4xf32>
    %432 = arith.select %428, %430, %431 : vector<8x4xi1>, vector<8x4xf32>
    %433 = arith.addf %423, %432 : vector<8x4xf32>
    %434 = vector.extract_strided_slice %39 {offsets = [0, 76], sizes = [1, 4], strides = [1, 1]} : vector<1x128xf32> to vector<1x4xf32>
    %c3_i32_151 = arith.constant 3 : i32
    %435 = vector.broadcast %c3_i32_151 : i32 to vector<8x1xi32>
    %436 = arith.cmpi eq, %402, %435 : vector<8x1xi32>
    %cst_152 = arith.constant 0.000000e+00 : f32
    %437 = vector.shape_cast %436 : vector<8x1xi1> to vector<8x1xi1>
    %438 = vector.broadcast %437 : vector<8x1xi1> to vector<8x4xi1>
    %439 = vector.shape_cast %434 : vector<1x4xf32> to vector<1x4xf32>
    %440 = vector.broadcast %439 : vector<1x4xf32> to vector<8x4xf32>
    %441 = vector.broadcast %cst_152 : f32 to vector<8x4xf32>
    %442 = arith.select %438, %440, %441 : vector<8x4xi1>, vector<8x4xf32>
    %443 = arith.addf %433, %442 : vector<8x4xf32>
    %444 = vector.extract_strided_slice %39 {offsets = [0, 80], sizes = [1, 4], strides = [1, 1]} : vector<1x128xf32> to vector<1x4xf32>
    %c4_i32_153 = arith.constant 4 : i32
    %445 = vector.broadcast %c4_i32_153 : i32 to vector<8x1xi32>
    %446 = arith.cmpi eq, %402, %445 : vector<8x1xi32>
    %cst_154 = arith.constant 0.000000e+00 : f32
    %447 = vector.shape_cast %446 : vector<8x1xi1> to vector<8x1xi1>
    %448 = vector.broadcast %447 : vector<8x1xi1> to vector<8x4xi1>
    %449 = vector.shape_cast %444 : vector<1x4xf32> to vector<1x4xf32>
    %450 = vector.broadcast %449 : vector<1x4xf32> to vector<8x4xf32>
    %451 = vector.broadcast %cst_154 : f32 to vector<8x4xf32>
    %452 = arith.select %448, %450, %451 : vector<8x4xi1>, vector<8x4xf32>
    %453 = arith.addf %443, %452 : vector<8x4xf32>
    %454 = vector.extract_strided_slice %39 {offsets = [0, 84], sizes = [1, 4], strides = [1, 1]} : vector<1x128xf32> to vector<1x4xf32>
    %c5_i32_155 = arith.constant 5 : i32
    %455 = vector.broadcast %c5_i32_155 : i32 to vector<8x1xi32>
    %456 = arith.cmpi eq, %402, %455 : vector<8x1xi32>
    %cst_156 = arith.constant 0.000000e+00 : f32
    %457 = vector.shape_cast %456 : vector<8x1xi1> to vector<8x1xi1>
    %458 = vector.broadcast %457 : vector<8x1xi1> to vector<8x4xi1>
    %459 = vector.shape_cast %454 : vector<1x4xf32> to vector<1x4xf32>
    %460 = vector.broadcast %459 : vector<1x4xf32> to vector<8x4xf32>
    %461 = vector.broadcast %cst_156 : f32 to vector<8x4xf32>
    %462 = arith.select %458, %460, %461 : vector<8x4xi1>, vector<8x4xf32>
    %463 = arith.addf %453, %462 : vector<8x4xf32>
    %464 = vector.extract_strided_slice %39 {offsets = [0, 88], sizes = [1, 4], strides = [1, 1]} : vector<1x128xf32> to vector<1x4xf32>
    %c6_i32_157 = arith.constant 6 : i32
    %465 = vector.broadcast %c6_i32_157 : i32 to vector<8x1xi32>
    %466 = arith.cmpi eq, %402, %465 : vector<8x1xi32>
    %cst_158 = arith.constant 0.000000e+00 : f32
    %467 = vector.shape_cast %466 : vector<8x1xi1> to vector<8x1xi1>
    %468 = vector.broadcast %467 : vector<8x1xi1> to vector<8x4xi1>
    %469 = vector.shape_cast %464 : vector<1x4xf32> to vector<1x4xf32>
    %470 = vector.broadcast %469 : vector<1x4xf32> to vector<8x4xf32>
    %471 = vector.broadcast %cst_158 : f32 to vector<8x4xf32>
    %472 = arith.select %468, %470, %471 : vector<8x4xi1>, vector<8x4xf32>
    %473 = arith.addf %463, %472 : vector<8x4xf32>
    %474 = vector.extract_strided_slice %39 {offsets = [0, 92], sizes = [1, 4], strides = [1, 1]} : vector<1x128xf32> to vector<1x4xf32>
    %c7_i32_159 = arith.constant 7 : i32
    %475 = vector.broadcast %c7_i32_159 : i32 to vector<8x1xi32>
    %476 = arith.cmpi eq, %402, %475 : vector<8x1xi32>
    %cst_160 = arith.constant 0.000000e+00 : f32
    %477 = vector.shape_cast %476 : vector<8x1xi1> to vector<8x1xi1>
    %478 = vector.broadcast %477 : vector<8x1xi1> to vector<8x4xi1>
    %479 = vector.shape_cast %474 : vector<1x4xf32> to vector<1x4xf32>
    %480 = vector.broadcast %479 : vector<1x4xf32> to vector<8x4xf32>
    %481 = vector.broadcast %cst_160 : f32 to vector<8x4xf32>
    %482 = arith.select %478, %480, %481 : vector<8x4xi1>, vector<8x4xf32>
    %483 = arith.addf %473, %482 : vector<8x4xf32>
    %cst_161 = arith.constant 0.636619746 : f32
    %484 = vector.broadcast %cst_161 : f32 to vector<8x4xf32>
    %485 = arith.mulf %483, %484 : vector<8x4xf32>
    %cst_162 = arith.constant 5.000000e-01 : f32
    %486 = vector.broadcast %cst_162 : f32 to vector<8x4xf32>
    %487 = arith.cmpf ogt, %485, %486 : vector<8x4xf32>
    %cst_163 = arith.constant 1.000000e+00 : f32
    %cst_164 = arith.constant 0.000000e+00 : f32
    %488 = vector.broadcast %cst_163 : f32 to vector<8x4xf32>
    %489 = vector.broadcast %cst_164 : f32 to vector<8x4xf32>
    %490 = arith.select %487, %488, %489 : vector<8x4xi1>, vector<8x4xf32>
    %cst_165 = arith.constant 1.500000e+00 : f32
    %491 = vector.broadcast %cst_165 : f32 to vector<8x4xf32>
    %492 = arith.cmpf ogt, %485, %491 : vector<8x4xf32>
    %cst_166 = arith.constant 1.000000e+00 : f32
    %cst_167 = arith.constant 0.000000e+00 : f32
    %493 = vector.broadcast %cst_166 : f32 to vector<8x4xf32>
    %494 = vector.broadcast %cst_167 : f32 to vector<8x4xf32>
    %495 = arith.select %492, %493, %494 : vector<8x4xi1>, vector<8x4xf32>
    %496 = arith.addf %490, %495 : vector<8x4xf32>
    %cst_168 = arith.constant 2.500000e+00 : f32
    %497 = vector.broadcast %cst_168 : f32 to vector<8x4xf32>
    %498 = arith.cmpf ogt, %485, %497 : vector<8x4xf32>
    %cst_169 = arith.constant 1.000000e+00 : f32
    %cst_170 = arith.constant 0.000000e+00 : f32
    %499 = vector.broadcast %cst_169 : f32 to vector<8x4xf32>
    %500 = vector.broadcast %cst_170 : f32 to vector<8x4xf32>
    %501 = arith.select %498, %499, %500 : vector<8x4xi1>, vector<8x4xf32>
    %502 = arith.addf %496, %501 : vector<8x4xf32>
    %cst_171 = arith.constant 3.500000e+00 : f32
    %503 = vector.broadcast %cst_171 : f32 to vector<8x4xf32>
    %504 = arith.cmpf ogt, %485, %503 : vector<8x4xf32>
    %cst_172 = arith.constant 1.000000e+00 : f32
    %cst_173 = arith.constant 0.000000e+00 : f32
    %505 = vector.broadcast %cst_172 : f32 to vector<8x4xf32>
    %506 = vector.broadcast %cst_173 : f32 to vector<8x4xf32>
    %507 = arith.select %504, %505, %506 : vector<8x4xi1>, vector<8x4xf32>
    %508 = arith.addf %502, %507 : vector<8x4xf32>
    %cst_174 = arith.constant 1.57079637 : f32
    %509 = vector.broadcast %cst_174 : f32 to vector<8x4xf32>
    %510 = arith.mulf %508, %509 : vector<8x4xf32>
    %511 = arith.subf %483, %510 : vector<8x4xf32>
    %512 = arith.mulf %511, %511 : vector<8x4xf32>
    %cst_175 = arith.constant 2.75573188E-6 : f32
    %513 = vector.broadcast %cst_175 : f32 to vector<8x4xf32>
    %514 = arith.mulf %512, %513 : vector<8x4xf32>
    %cst_176 = arith.constant -1.98412701E-4 : f32
    %515 = vector.broadcast %cst_176 : f32 to vector<8x4xf32>
    %516 = arith.addf %515, %514 : vector<8x4xf32>
    %517 = arith.mulf %512, %516 : vector<8x4xf32>
    %cst_177 = arith.constant 0.00833333377 : f32
    %518 = vector.broadcast %cst_177 : f32 to vector<8x4xf32>
    %519 = arith.addf %518, %517 : vector<8x4xf32>
    %520 = arith.mulf %512, %519 : vector<8x4xf32>
    %cst_178 = arith.constant -0.166666672 : f32
    %521 = vector.broadcast %cst_178 : f32 to vector<8x4xf32>
    %522 = arith.addf %521, %520 : vector<8x4xf32>
    %523 = arith.mulf %512, %522 : vector<8x4xf32>
    %cst_179 = arith.constant 1.000000e+00 : f32
    %524 = vector.broadcast %cst_179 : f32 to vector<8x4xf32>
    %525 = arith.addf %524, %523 : vector<8x4xf32>
    %526 = arith.mulf %511, %525 : vector<8x4xf32>
    %cst_180 = arith.constant 2.48015876E-5 : f32
    %527 = vector.broadcast %cst_180 : f32 to vector<8x4xf32>
    %528 = arith.mulf %512, %527 : vector<8x4xf32>
    %cst_181 = arith.constant -0.00138888892 : f32
    %529 = vector.broadcast %cst_181 : f32 to vector<8x4xf32>
    %530 = arith.addf %529, %528 : vector<8x4xf32>
    %531 = arith.mulf %512, %530 : vector<8x4xf32>
    %cst_182 = arith.constant 0.0416666679 : f32
    %532 = vector.broadcast %cst_182 : f32 to vector<8x4xf32>
    %533 = arith.addf %532, %531 : vector<8x4xf32>
    %534 = arith.mulf %512, %533 : vector<8x4xf32>
    %cst_183 = arith.constant -5.000000e-01 : f32
    %535 = vector.broadcast %cst_183 : f32 to vector<8x4xf32>
    %536 = arith.addf %535, %534 : vector<8x4xf32>
    %537 = arith.mulf %512, %536 : vector<8x4xf32>
    %cst_184 = arith.constant 1.000000e+00 : f32
    %538 = vector.broadcast %cst_184 : f32 to vector<8x4xf32>
    %539 = arith.addf %538, %537 : vector<8x4xf32>
    %cst_185 = arith.constant 3.500000e+00 : f32
    %540 = vector.broadcast %cst_185 : f32 to vector<8x4xf32>
    %541 = arith.cmpf ogt, %508, %540 : vector<8x4xf32>
    %cst_186 = arith.constant 4.000000e+00 : f32
    %cst_187 = arith.constant 0.000000e+00 : f32
    %542 = vector.broadcast %cst_186 : f32 to vector<8x4xf32>
    %543 = vector.broadcast %cst_187 : f32 to vector<8x4xf32>
    %544 = arith.select %541, %542, %543 : vector<8x4xi1>, vector<8x4xf32>
    %545 = arith.subf %508, %544 : vector<8x4xf32>
    %cst_188 = arith.constant 0.000000e+00 : f32
    %546 = vector.broadcast %cst_188 : f32 to vector<8x4xf32>
    %547 = arith.cmpf oeq, %545, %546 : vector<8x4xf32>
    %cst_189 = arith.constant 1.000000e+00 : f32
    %548 = vector.broadcast %cst_189 : f32 to vector<8x4xf32>
    %549 = arith.cmpf oeq, %545, %548 : vector<8x4xf32>
    %cst_190 = arith.constant 0.000000e+00 : f32
    %550 = vector.broadcast %cst_190 : f32 to vector<8x4xf32>
    %551 = arith.subf %550, %526 : vector<8x4xf32>
    %cst_191 = arith.constant 2.000000e+00 : f32
    %552 = vector.broadcast %cst_191 : f32 to vector<8x4xf32>
    %553 = arith.cmpf oeq, %545, %552 : vector<8x4xf32>
    %cst_192 = arith.constant 0.000000e+00 : f32
    %554 = vector.broadcast %cst_192 : f32 to vector<8x4xf32>
    %555 = arith.subf %554, %539 : vector<8x4xf32>
    %556 = arith.select %553, %555, %526 : vector<8x4xi1>, vector<8x4xf32>
    %557 = arith.select %549, %551, %556 : vector<8x4xi1>, vector<8x4xf32>
    %558 = arith.select %547, %539, %557 : vector<8x4xi1>, vector<8x4xf32>
    %cst_193 = arith.constant 0.000000e+00 : f32
    %559 = vector.broadcast %cst_193 : f32 to vector<8x4xf32>
    %560 = arith.cmpf oeq, %545, %559 : vector<8x4xf32>
    %cst_194 = arith.constant 1.000000e+00 : f32
    %561 = vector.broadcast %cst_194 : f32 to vector<8x4xf32>
    %562 = arith.cmpf oeq, %545, %561 : vector<8x4xf32>
    %cst_195 = arith.constant 2.000000e+00 : f32
    %563 = vector.broadcast %cst_195 : f32 to vector<8x4xf32>
    %564 = arith.cmpf oeq, %545, %563 : vector<8x4xf32>
    %cst_196 = arith.constant 0.000000e+00 : f32
    %565 = vector.broadcast %cst_196 : f32 to vector<8x4xf32>
    %566 = arith.subf %565, %526 : vector<8x4xf32>
    %cst_197 = arith.constant 0.000000e+00 : f32
    %567 = vector.broadcast %cst_197 : f32 to vector<8x4xf32>
    %568 = arith.subf %567, %539 : vector<8x4xf32>
    %569 = arith.select %564, %566, %568 : vector<8x4xi1>, vector<8x4xf32>
    %570 = arith.select %562, %539, %569 : vector<8x4xi1>, vector<8x4xf32>
    %571 = arith.select %560, %526, %570 : vector<8x4xi1>, vector<8x4xf32>
    %c0_198 = arith.constant 0 : index
    %c0_199 = arith.constant 0 : index
    %c0_200 = arith.constant 0 : index
    %572 = vector.load %arg16[%c0_198, %c0_199, %c0_200] : memref<2x8x4xf32, #tpu.memory_space<vmem>>, vector<1x8x4xf32>
    %573 = vector.shape_cast %572 : vector<1x8x4xf32> to vector<8x4xf32>
    %574 = vector.shape_cast %558 : vector<8x4xf32> to vector<1x8x4xf32>
    tpu.vector_store %arg16[%c0_198, %c0_199, %c0_200], %574 {strides = array<i32>} : memref<2x8x4xf32, #tpu.memory_space<vmem>>, vector<1x8x4xf32>,
    %c1_201 = arith.constant 1 : index
    %c0_202 = arith.constant 0 : index
    %c0_203 = arith.constant 0 : index
    %575 = vector.load %arg16[%c1_201, %c0_202, %c0_203] : memref<2x8x4xf32, #tpu.memory_space<vmem>>, vector<1x8x4xf32>
    %576 = vector.shape_cast %575 : vector<1x8x4xf32> to vector<8x4xf32>
    %577 = vector.shape_cast %571 : vector<8x4xf32> to vector<1x8x4xf32>
    tpu.vector_store %arg16[%c1_201, %c0_202, %c0_203], %577 {strides = array<i32>} : memref<2x8x4xf32, #tpu.memory_space<vmem>>, vector<1x8x4xf32>,
    %cst_204 = arith.constant 0.000000e+00 : f32
    %578 = vector.broadcast %cst_204 : f32 to vector<8x4xf32>
    %579 = arith.subf %578, %571 : vector<8x4xf32>
    %580 = tpu.concatenate %558, %579 in 1 : vector<8x4xf32>, vector<8x4xf32> -> vector<8x8xf32>
    %581 = tpu.concatenate %571, %558 in 1 : vector<8x4xf32>, vector<8x4xf32> -> vector<8x8xf32>
    %582 = tpu.concatenate %580, %581 in 0 : vector<8x8xf32>, vector<8x8xf32> -> vector<16x8xf32>
    %c0_205 = arith.constant 0 : index
    %c0_206 = arith.constant 0 : index
    %c0_207 = arith.constant 0 : index
    %c0_208 = arith.constant 0 : index
    %583 = vector.load %arg2[%c0_205, %c0_206, %c0_207, %c0_208] : memref<2x2x8x8xf32, #tpu.memory_space<vmem>>, vector<1x1x8x8xf32>
    %584 = vector.shape_cast %583 : vector<1x1x8x8xf32> to vector<8x8xf32>
    %c0_209 = arith.constant 0 : index
    %c1_210 = arith.constant 1 : index
    %c0_211 = arith.constant 0 : index
    %c0_212 = arith.constant 0 : index
    %585 = vector.load %arg2[%c0_209, %c1_210, %c0_211, %c0_212] : memref<2x2x8x8xf32, #tpu.memory_space<vmem>>, vector<1x1x8x8xf32>
    %586 = vector.shape_cast %585 : vector<1x1x8x8xf32> to vector<8x8xf32>
    %cst_213 = arith.constant 0.000000e+00 : f32
    %587 = vector.broadcast %cst_213 : f32 to vector<8x8xf32>
    %588 = arith.subf %587, %586 : vector<8x8xf32>
    %589 = tpu.concatenate %584, %588 in 1 : vector<8x8xf32>, vector<8x8xf32> -> vector<8x16xf32>
    %590 = tpu.concatenate %586, %584 in 1 : vector<8x8xf32>, vector<8x8xf32> -> vector<8x16xf32>
    %591 = tpu.concatenate %589, %590 in 0 : vector<8x16xf32>, vector<8x16xf32> -> vector<16x16xf32>
    %c1_214 = arith.constant 1 : index
    %c0_215 = arith.constant 0 : index
    %c0_216 = arith.constant 0 : index
    %c0_217 = arith.constant 0 : index
    %592 = vector.load %arg2[%c1_214, %c0_215, %c0_216, %c0_217] : memref<2x2x8x8xf32, #tpu.memory_space<vmem>>, vector<1x1x8x8xf32>
    %593 = vector.shape_cast %592 : vector<1x1x8x8xf32> to vector<8x8xf32>
    %c1_218 = arith.constant 1 : index
    %c1_219 = arith.constant 1 : index
    %c0_220 = arith.constant 0 : index
    %c0_221 = arith.constant 0 : index
    %594 = vector.load %arg2[%c1_218, %c1_219, %c0_220, %c0_221] : memref<2x2x8x8xf32, #tpu.memory_space<vmem>>, vector<1x1x8x8xf32>
    %595 = vector.shape_cast %594 : vector<1x1x8x8xf32> to vector<8x8xf32>
    %cst_222 = arith.constant 0.000000e+00 : f32
    %596 = vector.broadcast %cst_222 : f32 to vector<8x8xf32>
    %597 = arith.subf %596, %595 : vector<8x8xf32>
    %598 = tpu.concatenate %593, %597 in 1 : vector<8x8xf32>, vector<8x8xf32> -> vector<8x16xf32>
    %599 = tpu.concatenate %595, %593 in 1 : vector<8x8xf32>, vector<8x8xf32> -> vector<8x16xf32>
    %600 = tpu.concatenate %598, %599 in 0 : vector<8x16xf32>, vector<8x16xf32> -> vector<16x16xf32>
    %c0_223 = arith.constant 0 : index
    %c0_224 = arith.constant 0 : index
    %c0_225 = arith.constant 0 : index
    %c0_226 = arith.constant 0 : index
    %601 = vector.load %arg3[%c0_223, %c0_224, %c0_225, %c0_226] : memref<2x2x8x4xf32, #tpu.memory_space<vmem>>, vector<1x1x8x4xf32>
    %602 = vector.shape_cast %601 : vector<1x1x8x4xf32> to vector<8x4xf32>
    %c0_227 = arith.constant 0 : index
    %c1_228 = arith.constant 1 : index
    %c0_229 = arith.constant 0 : index
    %c0_230 = arith.constant 0 : index
    %603 = vector.load %arg3[%c0_227, %c1_228, %c0_229, %c0_230] : memref<2x2x8x4xf32, #tpu.memory_space<vmem>>, vector<1x1x8x4xf32>
    %604 = vector.shape_cast %603 : vector<1x1x8x4xf32> to vector<8x4xf32>
    %cst_231 = arith.constant 0.000000e+00 : f32
    %605 = vector.broadcast %cst_231 : f32 to vector<8x4xf32>
    %606 = arith.subf %605, %604 : vector<8x4xf32>
    %607 = tpu.concatenate %602, %606 in 1 : vector<8x4xf32>, vector<8x4xf32> -> vector<8x8xf32>
    %608 = tpu.concatenate %604, %602 in 1 : vector<8x4xf32>, vector<8x4xf32> -> vector<8x8xf32>
    %609 = tpu.concatenate %607, %608 in 0 : vector<8x8xf32>, vector<8x8xf32> -> vector<16x8xf32>
    %c1_232 = arith.constant 1 : index
    %c0_233 = arith.constant 0 : index
    %c0_234 = arith.constant 0 : index
    %c0_235 = arith.constant 0 : index
    %610 = vector.load %arg3[%c1_232, %c0_233, %c0_234, %c0_235] : memref<2x2x8x4xf32, #tpu.memory_space<vmem>>, vector<1x1x8x4xf32>
    %611 = vector.shape_cast %610 : vector<1x1x8x4xf32> to vector<8x4xf32>
    %c1_236 = arith.constant 1 : index
    %c1_237 = arith.constant 1 : index
    %c0_238 = arith.constant 0 : index
    %c0_239 = arith.constant 0 : index
    %612 = vector.load %arg3[%c1_236, %c1_237, %c0_238, %c0_239] : memref<2x2x8x4xf32, #tpu.memory_space<vmem>>, vector<1x1x8x4xf32>
    %613 = vector.shape_cast %612 : vector<1x1x8x4xf32> to vector<8x4xf32>
    %cst_240 = arith.constant 0.000000e+00 : f32
    %614 = vector.broadcast %cst_240 : f32 to vector<8x4xf32>
    %615 = arith.subf %614, %613 : vector<8x4xf32>
    %616 = tpu.concatenate %611, %615 in 1 : vector<8x4xf32>, vector<8x4xf32> -> vector<8x8xf32>
    %617 = tpu.concatenate %613, %611 in 1 : vector<8x4xf32>, vector<8x4xf32> -> vector<8x8xf32>
    %618 = tpu.concatenate %616, %617 in 0 : vector<8x8xf32>, vector<8x8xf32> -> vector<16x8xf32>
    %c0_241 = arith.constant 0 : index
    %c0_242 = arith.constant 0 : index
    %c0_243 = arith.constant 0 : index
    %c0_244 = arith.constant 0 : index
    %619 = vector.load %arg4[%c0_241, %c0_242, %c0_243, %c0_244] : memref<2x2x8x2xf32, #tpu.memory_space<vmem>>, vector<1x1x8x2xf32>
    %620 = vector.shape_cast %619 : vector<1x1x8x2xf32> to vector<8x2xf32>
    %c0_245 = arith.constant 0 : index
    %c1_246 = arith.constant 1 : index
    %c0_247 = arith.constant 0 : index
    %c0_248 = arith.constant 0 : index
    %621 = vector.load %arg4[%c0_245, %c1_246, %c0_247, %c0_248] : memref<2x2x8x2xf32, #tpu.memory_space<vmem>>, vector<1x1x8x2xf32>
    %622 = vector.shape_cast %621 : vector<1x1x8x2xf32> to vector<8x2xf32>
    %cst_249 = arith.constant 0.000000e+00 : f32
    %623 = vector.broadcast %cst_249 : f32 to vector<8x2xf32>
    %624 = arith.subf %623, %622 : vector<8x2xf32>
    %625 = tpu.concatenate %620, %624 in 1 : vector<8x2xf32>, vector<8x2xf32> -> vector<8x4xf32>
    %626 = tpu.concatenate %622, %620 in 1 : vector<8x2xf32>, vector<8x2xf32> -> vector<8x4xf32>
    %627 = tpu.concatenate %625, %626 in 0 : vector<8x4xf32>, vector<8x4xf32> -> vector<16x4xf32>
    %c1_250 = arith.constant 1 : index
    %c0_251 = arith.constant 0 : index
    %c0_252 = arith.constant 0 : index
    %c0_253 = arith.constant 0 : index
    %628 = vector.load %arg4[%c1_250, %c0_251, %c0_252, %c0_253] : memref<2x2x8x2xf32, #tpu.memory_space<vmem>>, vector<1x1x8x2xf32>
    %629 = vector.shape_cast %628 : vector<1x1x8x2xf32> to vector<8x2xf32>
    %c1_254 = arith.constant 1 : index
    %c1_255 = arith.constant 1 : index
    %c0_256 = arith.constant 0 : index
    %c0_257 = arith.constant 0 : index
    %630 = vector.load %arg4[%c1_254, %c1_255, %c0_256, %c0_257] : memref<2x2x8x2xf32, #tpu.memory_space<vmem>>, vector<1x1x8x2xf32>
    %631 = vector.shape_cast %630 : vector<1x1x8x2xf32> to vector<8x2xf32>
    %cst_258 = arith.constant 0.000000e+00 : f32
    %632 = vector.broadcast %cst_258 : f32 to vector<8x2xf32>
    %633 = arith.subf %632, %631 : vector<8x2xf32>
    %634 = tpu.concatenate %629, %633 in 1 : vector<8x2xf32>, vector<8x2xf32> -> vector<8x4xf32>
    %635 = tpu.concatenate %631, %629 in 1 : vector<8x2xf32>, vector<8x2xf32> -> vector<8x4xf32>
    %636 = tpu.concatenate %634, %635 in 0 : vector<8x4xf32>, vector<8x4xf32> -> vector<16x4xf32>
    %c0_259 = arith.constant 0 : index
    %c0_260 = arith.constant 0 : index
    %c0_261 = arith.constant 0 : index
    %c0_262 = arith.constant 0 : index
    %637 = vector.load %arg5[%c0_259, %c0_260, %c0_261, %c0_262] : memref<2x2x8x2xf32, #tpu.memory_space<vmem>>, vector<1x1x8x2xf32>
    %638 = vector.shape_cast %637 : vector<1x1x8x2xf32> to vector<8x2xf32>
    %c0_263 = arith.constant 0 : index
    %c1_264 = arith.constant 1 : index
    %c0_265 = arith.constant 0 : index
    %c0_266 = arith.constant 0 : index
    %639 = vector.load %arg5[%c0_263, %c1_264, %c0_265, %c0_266] : memref<2x2x8x2xf32, #tpu.memory_space<vmem>>, vector<1x1x8x2xf32>
    %640 = vector.shape_cast %639 : vector<1x1x8x2xf32> to vector<8x2xf32>
    %cst_267 = arith.constant 0.000000e+00 : f32
    %641 = vector.broadcast %cst_267 : f32 to vector<8x2xf32>
    %642 = arith.subf %641, %640 : vector<8x2xf32>
    %643 = tpu.concatenate %638, %642 in 1 : vector<8x2xf32>, vector<8x2xf32> -> vector<8x4xf32>
    %644 = tpu.concatenate %640, %638 in 1 : vector<8x2xf32>, vector<8x2xf32> -> vector<8x4xf32>
    %645 = tpu.concatenate %643, %644 in 0 : vector<8x4xf32>, vector<8x4xf32> -> vector<16x4xf32>
    %c1_268 = arith.constant 1 : index
    %c0_269 = arith.constant 0 : index
    %c0_270 = arith.constant 0 : index
    %c0_271 = arith.constant 0 : index
    %646 = vector.load %arg5[%c1_268, %c0_269, %c0_270, %c0_271] : memref<2x2x8x2xf32, #tpu.memory_space<vmem>>, vector<1x1x8x2xf32>
    %647 = vector.shape_cast %646 : vector<1x1x8x2xf32> to vector<8x2xf32>
    %c1_272 = arith.constant 1 : index
    %c1_273 = arith.constant 1 : index
    %c0_274 = arith.constant 0 : index
    %c0_275 = arith.constant 0 : index
    %648 = vector.load %arg5[%c1_272, %c1_273, %c0_274, %c0_275] : memref<2x2x8x2xf32, #tpu.memory_space<vmem>>, vector<1x1x8x2xf32>
    %649 = vector.shape_cast %648 : vector<1x1x8x2xf32> to vector<8x2xf32>
    %cst_276 = arith.constant 0.000000e+00 : f32
    %650 = vector.broadcast %cst_276 : f32 to vector<8x2xf32>
    %651 = arith.subf %650, %649 : vector<8x2xf32>
    %652 = tpu.concatenate %647, %651 in 1 : vector<8x2xf32>, vector<8x2xf32> -> vector<8x4xf32>
    %653 = tpu.concatenate %649, %647 in 1 : vector<8x2xf32>, vector<8x2xf32> -> vector<8x4xf32>
    %654 = tpu.concatenate %652, %653 in 0 : vector<8x4xf32>, vector<8x4xf32> -> vector<16x4xf32>
    %c0_277 = arith.constant 0 : index
    %c0_278 = arith.constant 0 : index
    %c0_279 = arith.constant 0 : index
    %c0_280 = arith.constant 0 : index
    %655 = vector.load %arg6[%c0_277, %c0_278, %c0_279, %c0_280] : memref<2x2x4x2xf32, #tpu.memory_space<vmem>>, vector<1x1x4x2xf32>
    %656 = vector.shape_cast %655 : vector<1x1x4x2xf32> to vector<4x2xf32>
    %c0_281 = arith.constant 0 : index
    %c1_282 = arith.constant 1 : index
    %c0_283 = arith.constant 0 : index
    %c0_284 = arith.constant 0 : index
    %657 = vector.load %arg6[%c0_281, %c1_282, %c0_283, %c0_284] : memref<2x2x4x2xf32, #tpu.memory_space<vmem>>, vector<1x1x4x2xf32>
    %658 = vector.shape_cast %657 : vector<1x1x4x2xf32> to vector<4x2xf32>
    %cst_285 = arith.constant 0.000000e+00 : f32
    %659 = vector.broadcast %cst_285 : f32 to vector<4x2xf32>
    %660 = arith.subf %659, %658 : vector<4x2xf32>
    %661 = tpu.concatenate %656, %660 in 1 : vector<4x2xf32>, vector<4x2xf32> -> vector<4x4xf32>
    %662 = tpu.concatenate %658, %656 in 1 : vector<4x2xf32>, vector<4x2xf32> -> vector<4x4xf32>
    %663 = tpu.concatenate %661, %662 in 0 : vector<4x4xf32>, vector<4x4xf32> -> vector<8x4xf32>
    %c1_286 = arith.constant 1 : index
    %c0_287 = arith.constant 0 : index
    %c0_288 = arith.constant 0 : index
    %c0_289 = arith.constant 0 : index
    %664 = vector.load %arg6[%c1_286, %c0_287, %c0_288, %c0_289] : memref<2x2x4x2xf32, #tpu.memory_space<vmem>>, vector<1x1x4x2xf32>
    %665 = vector.shape_cast %664 : vector<1x1x4x2xf32> to vector<4x2xf32>
    %c1_290 = arith.constant 1 : index
    %c1_291 = arith.constant 1 : index
    %c0_292 = arith.constant 0 : index
    %c0_293 = arith.constant 0 : index
    %666 = vector.load %arg6[%c1_290, %c1_291, %c0_292, %c0_293] : memref<2x2x4x2xf32, #tpu.memory_space<vmem>>, vector<1x1x4x2xf32>
    %667 = vector.shape_cast %666 : vector<1x1x4x2xf32> to vector<4x2xf32>
    %cst_294 = arith.constant 0.000000e+00 : f32
    %668 = vector.broadcast %cst_294 : f32 to vector<4x2xf32>
    %669 = arith.subf %668, %667 : vector<4x2xf32>
    %670 = tpu.concatenate %665, %669 in 1 : vector<4x2xf32>, vector<4x2xf32> -> vector<4x4xf32>
    %671 = tpu.concatenate %667, %665 in 1 : vector<4x2xf32>, vector<4x2xf32> -> vector<4x4xf32>
    %672 = tpu.concatenate %670, %671 in 0 : vector<4x4xf32>, vector<4x4xf32> -> vector<8x4xf32>
    %673 = tpu.iota {dimensions = array<i32: 0>} : vector<16x16xi32>
    %674 = tpu.iota {dimensions = array<i32: 1>} : vector<16x16xi32>
    %675 = arith.cmpi eq, %673, %674 : vector<16x16xi32>
    %cst_295 = arith.constant 1.000000e+00 : f32
    %cst_296 = arith.constant 0.000000e+00 : f32
    %676 = vector.broadcast %cst_295 : f32 to vector<16x16xf32>
    %677 = vector.broadcast %cst_296 : f32 to vector<16x16xf32>
    %678 = arith.select %675, %676, %677 : vector<16x16xi1>, vector<16x16xf32>
    %679 = tpu.iota {dimensions = array<i32: 0>} : vector<4x4xi32>
    %680 = tpu.iota {dimensions = array<i32: 1>} : vector<4x4xi32>
    %681 = arith.cmpi eq, %679, %680 : vector<4x4xi32>
    %cst_297 = arith.constant 1.000000e+00 : f32
    %cst_298 = arith.constant 0.000000e+00 : f32
    %682 = vector.broadcast %cst_297 : f32 to vector<4x4xf32>
    %683 = vector.broadcast %cst_298 : f32 to vector<4x4xf32>
    %684 = arith.select %681, %682, %683 : vector<4x4xi1>, vector<4x4xf32>
    %685 = tpu.iota {dimensions = array<i32: 0>} : vector<16x16xi32>
    %686 = tpu.iota {dimensions = array<i32: 1>} : vector<16x16xi32>
    %687 = arith.cmpi eq, %685, %686 : vector<16x16xi32>
    %cst_299 = arith.constant 1.000000e+00 : f32
    %cst_300 = arith.constant 0.000000e+00 : f32
    %688 = vector.broadcast %cst_299 : f32 to vector<16x16xf32>
    %689 = vector.broadcast %cst_300 : f32 to vector<16x16xf32>
    %690 = arith.select %687, %688, %689 : vector<16x16xi1>, vector<16x16xf32>
    %cst_301 = arith.constant dense<0.000000e+00> : vector<16x16xf32>
    %691 = tpu.matmul %627, %627, %cst_301 {dimension_numbers = #tpu.dot_dimension_numbers<[1], [1], [0], [0], [0, 0, 1, 0], [], []>} : vector<16x4xf32>, vector<16x4xf32>, vector<16x16xf32> -> vector<16x16xf32>
    %cst_302 = arith.constant dense<0.000000e+00> : vector<16x16xf32>
    %692 = tpu.matmul %636, %636, %cst_302 {dimension_numbers = #tpu.dot_dimension_numbers<[1], [1], [0], [0], [0, 0, 1, 0], [], []>} : vector<16x4xf32>, vector<16x4xf32>, vector<16x16xf32> -> vector<16x16xf32>
    %693 = arith.addf %691, %692 : vector<16x16xf32>
    %694 = arith.mulf %0, %0 : f32
    %cst_303 = arith.constant dense<0.000000e+00> : vector<16x16xf32>
    %695 = tpu.matmul %591, %693, %cst_303 {dimension_numbers = #tpu.dot_dimension_numbers<[1], [0], [0], [1], [0, 0, 1, 1], [], []>} : vector<16x16xf32>, vector<16x16xf32>, vector<16x16xf32> -> vector<16x16xf32>
    %cst_304 = arith.constant dense<0.000000e+00> : vector<16x16xf32>
    %696 = tpu.matmul %695, %591, %cst_304 {dimension_numbers = #tpu.dot_dimension_numbers<[1], [1], [0], [0], [0, 0, 1, 0], [], []>} : vector<16x16xf32>, vector<16x16xf32>, vector<16x16xf32> -> vector<16x16xf32>
    %697 = vector.broadcast %694 : f32 to vector<16x16xf32>
    %698 = arith.mulf %697, %678 : vector<16x16xf32>
    %699 = arith.addf %696, %698 : vector<16x16xf32>
    %cst_305 = arith.constant dense<0.000000e+00> : vector<8x16xf32>
    %700 = tpu.matmul %609, %699, %cst_305 {dimension_numbers = #tpu.dot_dimension_numbers<[0], [0], [1], [1], [0, 1, 1, 1], [], []>} : vector<16x8xf32>, vector<16x16xf32>, vector<8x16xf32> -> vector<8x16xf32>
    %cst_306 = arith.constant dense<0.000000e+00> : vector<8x8xf32>
    %701 = tpu.matmul %700, %609, %cst_306 {dimension_numbers = #tpu.dot_dimension_numbers<[1], [0], [0], [1], [0, 0, 1, 1], [], []>} : vector<8x16xf32>, vector<16x8xf32>, vector<8x8xf32> -> vector<8x8xf32>
    %702 = vector.extract_strided_slice %701 {offsets = [0, 0], sizes = [4, 4], strides = [1, 1]} : vector<8x8xf32> to vector<4x4xf32>
    %703 = vector.extract_strided_slice %701 {offsets = [4, 0], sizes = [4, 4], strides = [1, 1]} : vector<8x8xf32> to vector<4x4xf32>
    %704 = tpu.iota {dimensions = array<i32: 0>} : vector<4x4xi32>
    %705 = tpu.iota {dimensions = array<i32: 1>} : vector<4x4xi32>
    %706 = arith.cmpi eq, %704, %705 : vector<4x4xi32>
    %cst_307 = arith.constant 1.000000e+00 : f32
    %cst_308 = arith.constant 0.000000e+00 : f32
    %707 = vector.broadcast %cst_307 : f32 to vector<4x4xf32>
    %708 = vector.broadcast %cst_308 : f32 to vector<4x4xf32>
    %709 = arith.select %706, %707, %708 : vector<4x4xi1>, vector<4x4xf32>
    %710 = tpu.concatenate %702, %709 in 1 : vector<4x4xf32>, vector<4x4xf32> -> vector<4x8xf32>
    %cst_309 = arith.constant 0.000000e+00 : f32
    %711 = vector.broadcast %cst_309 : f32 to vector<4x4xf32>
    %712 = tpu.concatenate %703, %711 in 1 : vector<4x4xf32>, vector<4x4xf32> -> vector<4x8xf32>
    %713 = tpu.iota {dimensions = array<i32: 0>} : vector<4x1xi32>
    %714 = vector.extract_strided_slice %710 {offsets = [0, 0], sizes = [1, 8], strides = [1, 1]} : vector<4x8xf32> to vector<1x8xf32>
    %715 = vector.extract_strided_slice %712 {offsets = [0, 0], sizes = [1, 8], strides = [1, 1]} : vector<4x8xf32> to vector<1x8xf32>
    %716 = vector.extract_strided_slice %714 {offsets = [0, 0], sizes = [1, 1], strides = [1, 1]} : vector<1x8xf32> to vector<1x1xf32>
    %717 = vector.extract_strided_slice %715 {offsets = [0, 0], sizes = [1, 1], strides = [1, 1]} : vector<1x8xf32> to vector<1x1xf32>
    %718 = arith.mulf %716, %716 : vector<1x1xf32>
    %719 = arith.mulf %717, %717 : vector<1x1xf32>
    %720 = arith.addf %718, %719 : vector<1x1xf32>
    %721 = arith.divf %716, %720 : vector<1x1xf32>
    %cst_310 = arith.constant 0.000000e+00 : f32
    %722 = vector.broadcast %cst_310 : f32 to vector<1x1xf32>
    %723 = arith.subf %722, %717 : vector<1x1xf32>
    %724 = arith.divf %723, %720 : vector<1x1xf32>
    %725 = vector.broadcast %721 : vector<1x1xf32> to vector<1x8xf32>
    %726 = arith.mulf %714, %725 : vector<1x8xf32>
    %727 = vector.broadcast %724 : vector<1x1xf32> to vector<1x8xf32>
    %728 = arith.mulf %715, %727 : vector<1x8xf32>
    %729 = arith.subf %726, %728 : vector<1x8xf32>
    %730 = vector.broadcast %724 : vector<1x1xf32> to vector<1x8xf32>
    %731 = arith.mulf %714, %730 : vector<1x8xf32>
    %732 = vector.broadcast %721 : vector<1x1xf32> to vector<1x8xf32>
    %733 = arith.mulf %715, %732 : vector<1x8xf32>
    %734 = arith.addf %731, %733 : vector<1x8xf32>
    %735 = vector.extract_strided_slice %710 {offsets = [0, 0], sizes = [4, 1], strides = [1, 1]} : vector<4x8xf32> to vector<4x1xf32>
    %736 = vector.extract_strided_slice %712 {offsets = [0, 0], sizes = [4, 1], strides = [1, 1]} : vector<4x8xf32> to vector<4x1xf32>
    %737 = vector.broadcast %735 : vector<4x1xf32> to vector<4x8xf32>
    %738 = vector.broadcast %729 : vector<1x8xf32> to vector<4x8xf32>
    %739 = arith.mulf %737, %738 : vector<4x8xf32>
    %740 = vector.broadcast %736 : vector<4x1xf32> to vector<4x8xf32>
    %741 = vector.broadcast %734 : vector<1x8xf32> to vector<4x8xf32>
    %742 = arith.mulf %740, %741 : vector<4x8xf32>
    %743 = arith.subf %739, %742 : vector<4x8xf32>
    %744 = arith.subf %710, %743 : vector<4x8xf32>
    %745 = vector.broadcast %735 : vector<4x1xf32> to vector<4x8xf32>
    %746 = vector.broadcast %734 : vector<1x8xf32> to vector<4x8xf32>
    %747 = arith.mulf %745, %746 : vector<4x8xf32>
    %748 = vector.broadcast %736 : vector<4x1xf32> to vector<4x8xf32>
    %749 = vector.broadcast %729 : vector<1x8xf32> to vector<4x8xf32>
    %750 = arith.mulf %748, %749 : vector<4x8xf32>
    %751 = arith.addf %747, %750 : vector<4x8xf32>
    %752 = arith.subf %712, %751 : vector<4x8xf32>
    %c0_i32_311 = arith.constant 0 : i32
    %753 = vector.broadcast %c0_i32_311 : i32 to vector<4x1xi32>
    %754 = arith.cmpi eq, %713, %753 : vector<4x1xi32>
    %755 = vector.shape_cast %754 : vector<4x1xi1> to vector<4x1xi1>
    %756 = vector.broadcast %755 : vector<4x1xi1> to vector<4x8xi1>
    %757 = vector.shape_cast %729 : vector<1x8xf32> to vector<1x8xf32>
    %758 = vector.broadcast %757 : vector<1x8xf32> to vector<4x8xf32>
    %759 = arith.select %756, %758, %744 : vector<4x8xi1>, vector<4x8xf32>
    %760 = vector.shape_cast %754 : vector<4x1xi1> to vector<4x1xi1>
    %761 = vector.broadcast %760 : vector<4x1xi1> to vector<4x8xi1>
    %762 = vector.shape_cast %734 : vector<1x8xf32> to vector<1x8xf32>
    %763 = vector.broadcast %762 : vector<1x8xf32> to vector<4x8xf32>
    %764 = arith.select %761, %763, %752 : vector<4x8xi1>, vector<4x8xf32>
    %765 = vector.extract_strided_slice %759 {offsets = [1, 0], sizes = [1, 8], strides = [1, 1]} : vector<4x8xf32> to vector<1x8xf32>
    %766 = vector.extract_strided_slice %764 {offsets = [1, 0], sizes = [1, 8], strides = [1, 1]} : vector<4x8xf32> to vector<1x8xf32>
    %767 = vector.extract_strided_slice %765 {offsets = [0, 1], sizes = [1, 1], strides = [1, 1]} : vector<1x8xf32> to vector<1x1xf32>
    %768 = vector.extract_strided_slice %766 {offsets = [0, 1], sizes = [1, 1], strides = [1, 1]} : vector<1x8xf32> to vector<1x1xf32>
    %769 = arith.mulf %767, %767 : vector<1x1xf32>
    %770 = arith.mulf %768, %768 : vector<1x1xf32>
    %771 = arith.addf %769, %770 : vector<1x1xf32>
    %772 = arith.divf %767, %771 : vector<1x1xf32>
    %cst_312 = arith.constant 0.000000e+00 : f32
    %773 = vector.broadcast %cst_312 : f32 to vector<1x1xf32>
    %774 = arith.subf %773, %768 : vector<1x1xf32>
    %775 = arith.divf %774, %771 : vector<1x1xf32>
    %776 = vector.broadcast %772 : vector<1x1xf32> to vector<1x8xf32>
    %777 = arith.mulf %765, %776 : vector<1x8xf32>
    %778 = vector.broadcast %775 : vector<1x1xf32> to vector<1x8xf32>
    %779 = arith.mulf %766, %778 : vector<1x8xf32>
    %780 = arith.subf %777, %779 : vector<1x8xf32>
    %781 = vector.broadcast %775 : vector<1x1xf32> to vector<1x8xf32>
    %782 = arith.mulf %765, %781 : vector<1x8xf32>
    %783 = vector.broadcast %772 : vector<1x1xf32> to vector<1x8xf32>
    %784 = arith.mulf %766, %783 : vector<1x8xf32>
    %785 = arith.addf %782, %784 : vector<1x8xf32>
    %786 = vector.extract_strided_slice %759 {offsets = [0, 1], sizes = [4, 1], strides = [1, 1]} : vector<4x8xf32> to vector<4x1xf32>
    %787 = vector.extract_strided_slice %764 {offsets = [0, 1], sizes = [4, 1], strides = [1, 1]} : vector<4x8xf32> to vector<4x1xf32>
    %788 = vector.broadcast %786 : vector<4x1xf32> to vector<4x8xf32>
    %789 = vector.broadcast %780 : vector<1x8xf32> to vector<4x8xf32>
    %790 = arith.mulf %788, %789 : vector<4x8xf32>
    %791 = vector.broadcast %787 : vector<4x1xf32> to vector<4x8xf32>
    %792 = vector.broadcast %785 : vector<1x8xf32> to vector<4x8xf32>
    %793 = arith.mulf %791, %792 : vector<4x8xf32>
    %794 = arith.subf %790, %793 : vector<4x8xf32>
    %795 = arith.subf %759, %794 : vector<4x8xf32>
    %796 = vector.broadcast %786 : vector<4x1xf32> to vector<4x8xf32>
    %797 = vector.broadcast %785 : vector<1x8xf32> to vector<4x8xf32>
    %798 = arith.mulf %796, %797 : vector<4x8xf32>
    %799 = vector.broadcast %787 : vector<4x1xf32> to vector<4x8xf32>
    %800 = vector.broadcast %780 : vector<1x8xf32> to vector<4x8xf32>
    %801 = arith.mulf %799, %800 : vector<4x8xf32>
    %802 = arith.addf %798, %801 : vector<4x8xf32>
    %803 = arith.subf %764, %802 : vector<4x8xf32>
    %c1_i32_313 = arith.constant 1 : i32
    %804 = vector.broadcast %c1_i32_313 : i32 to vector<4x1xi32>
    %805 = arith.cmpi eq, %713, %804 : vector<4x1xi32>
    %806 = vector.shape_cast %805 : vector<4x1xi1> to vector<4x1xi1>
    %807 = vector.broadcast %806 : vector<4x1xi1> to vector<4x8xi1>
    %808 = vector.shape_cast %780 : vector<1x8xf32> to vector<1x8xf32>
    %809 = vector.broadcast %808 : vector<1x8xf32> to vector<4x8xf32>
    %810 = arith.select %807, %809, %795 : vector<4x8xi1>, vector<4x8xf32>
    %811 = vector.shape_cast %805 : vector<4x1xi1> to vector<4x1xi1>
    %812 = vector.broadcast %811 : vector<4x1xi1> to vector<4x8xi1>
    %813 = vector.shape_cast %785 : vector<1x8xf32> to vector<1x8xf32>
    %814 = vector.broadcast %813 : vector<1x8xf32> to vector<4x8xf32>
    %815 = arith.select %812, %814, %803 : vector<4x8xi1>, vector<4x8xf32>
    %816 = vector.extract_strided_slice %810 {offsets = [2, 0], sizes = [1, 8], strides = [1, 1]} : vector<4x8xf32> to vector<1x8xf32>
    %817 = vector.extract_strided_slice %815 {offsets = [2, 0], sizes = [1, 8], strides = [1, 1]} : vector<4x8xf32> to vector<1x8xf32>
    %818 = vector.extract_strided_slice %816 {offsets = [0, 2], sizes = [1, 1], strides = [1, 1]} : vector<1x8xf32> to vector<1x1xf32>
    %819 = vector.extract_strided_slice %817 {offsets = [0, 2], sizes = [1, 1], strides = [1, 1]} : vector<1x8xf32> to vector<1x1xf32>
    %820 = arith.mulf %818, %818 : vector<1x1xf32>
    %821 = arith.mulf %819, %819 : vector<1x1xf32>
    %822 = arith.addf %820, %821 : vector<1x1xf32>
    %823 = arith.divf %818, %822 : vector<1x1xf32>
    %cst_314 = arith.constant 0.000000e+00 : f32
    %824 = vector.broadcast %cst_314 : f32 to vector<1x1xf32>
    %825 = arith.subf %824, %819 : vector<1x1xf32>
    %826 = arith.divf %825, %822 : vector<1x1xf32>
    %827 = vector.broadcast %823 : vector<1x1xf32> to vector<1x8xf32>
    %828 = arith.mulf %816, %827 : vector<1x8xf32>
    %829 = vector.broadcast %826 : vector<1x1xf32> to vector<1x8xf32>
    %830 = arith.mulf %817, %829 : vector<1x8xf32>
    %831 = arith.subf %828, %830 : vector<1x8xf32>
    %832 = vector.broadcast %826 : vector<1x1xf32> to vector<1x8xf32>
    %833 = arith.mulf %816, %832 : vector<1x8xf32>
    %834 = vector.broadcast %823 : vector<1x1xf32> to vector<1x8xf32>
    %835 = arith.mulf %817, %834 : vector<1x8xf32>
    %836 = arith.addf %833, %835 : vector<1x8xf32>
    %837 = vector.extract_strided_slice %810 {offsets = [0, 2], sizes = [4, 1], strides = [1, 1]} : vector<4x8xf32> to vector<4x1xf32>
    %838 = vector.extract_strided_slice %815 {offsets = [0, 2], sizes = [4, 1], strides = [1, 1]} : vector<4x8xf32> to vector<4x1xf32>
    %839 = vector.broadcast %837 : vector<4x1xf32> to vector<4x8xf32>
    %840 = vector.broadcast %831 : vector<1x8xf32> to vector<4x8xf32>
    %841 = arith.mulf %839, %840 : vector<4x8xf32>
    %842 = vector.broadcast %838 : vector<4x1xf32> to vector<4x8xf32>
    %843 = vector.broadcast %836 : vector<1x8xf32> to vector<4x8xf32>
    %844 = arith.mulf %842, %843 : vector<4x8xf32>
    %845 = arith.subf %841, %844 : vector<4x8xf32>
    %846 = arith.subf %810, %845 : vector<4x8xf32>
    %847 = vector.broadcast %837 : vector<4x1xf32> to vector<4x8xf32>
    %848 = vector.broadcast %836 : vector<1x8xf32> to vector<4x8xf32>
    %849 = arith.mulf %847, %848 : vector<4x8xf32>
    %850 = vector.broadcast %838 : vector<4x1xf32> to vector<4x8xf32>
    %851 = vector.broadcast %831 : vector<1x8xf32> to vector<4x8xf32>
    %852 = arith.mulf %850, %851 : vector<4x8xf32>
    %853 = arith.addf %849, %852 : vector<4x8xf32>
    %854 = arith.subf %815, %853 : vector<4x8xf32>
    %c2_i32_315 = arith.constant 2 : i32
    %855 = vector.broadcast %c2_i32_315 : i32 to vector<4x1xi32>
    %856 = arith.cmpi eq, %713, %855 : vector<4x1xi32>
    %857 = vector.shape_cast %856 : vector<4x1xi1> to vector<4x1xi1>
    %858 = vector.broadcast %857 : vector<4x1xi1> to vector<4x8xi1>
    %859 = vector.shape_cast %831 : vector<1x8xf32> to vector<1x8xf32>
    %860 = vector.broadcast %859 : vector<1x8xf32> to vector<4x8xf32>
    %861 = arith.select %858, %860, %846 : vector<4x8xi1>, vector<4x8xf32>
    %862 = vector.shape_cast %856 : vector<4x1xi1> to vector<4x1xi1>
    %863 = vector.broadcast %862 : vector<4x1xi1> to vector<4x8xi1>
    %864 = vector.shape_cast %836 : vector<1x8xf32> to vector<1x8xf32>
    %865 = vector.broadcast %864 : vector<1x8xf32> to vector<4x8xf32>
    %866 = arith.select %863, %865, %854 : vector<4x8xi1>, vector<4x8xf32>
    %867 = vector.extract_strided_slice %861 {offsets = [3, 0], sizes = [1, 8], strides = [1, 1]} : vector<4x8xf32> to vector<1x8xf32>
    %868 = vector.extract_strided_slice %866 {offsets = [3, 0], sizes = [1, 8], strides = [1, 1]} : vector<4x8xf32> to vector<1x8xf32>
    %869 = vector.extract_strided_slice %867 {offsets = [0, 3], sizes = [1, 1], strides = [1, 1]} : vector<1x8xf32> to vector<1x1xf32>
    %870 = vector.extract_strided_slice %868 {offsets = [0, 3], sizes = [1, 1], strides = [1, 1]} : vector<1x8xf32> to vector<1x1xf32>
    %871 = arith.mulf %869, %869 : vector<1x1xf32>
    %872 = arith.mulf %870, %870 : vector<1x1xf32>
    %873 = arith.addf %871, %872 : vector<1x1xf32>
    %874 = arith.divf %869, %873 : vector<1x1xf32>
    %cst_316 = arith.constant 0.000000e+00 : f32
    %875 = vector.broadcast %cst_316 : f32 to vector<1x1xf32>
    %876 = arith.subf %875, %870 : vector<1x1xf32>
    %877 = arith.divf %876, %873 : vector<1x1xf32>
    %878 = vector.broadcast %874 : vector<1x1xf32> to vector<1x8xf32>
    %879 = arith.mulf %867, %878 : vector<1x8xf32>
    %880 = vector.broadcast %877 : vector<1x1xf32> to vector<1x8xf32>
    %881 = arith.mulf %868, %880 : vector<1x8xf32>
    %882 = arith.subf %879, %881 : vector<1x8xf32>
    %883 = vector.broadcast %877 : vector<1x1xf32> to vector<1x8xf32>
    %884 = arith.mulf %867, %883 : vector<1x8xf32>
    %885 = vector.broadcast %874 : vector<1x1xf32> to vector<1x8xf32>
    %886 = arith.mulf %868, %885 : vector<1x8xf32>
    %887 = arith.addf %884, %886 : vector<1x8xf32>
    %888 = vector.extract_strided_slice %861 {offsets = [0, 3], sizes = [4, 1], strides = [1, 1]} : vector<4x8xf32> to vector<4x1xf32>
    %889 = vector.extract_strided_slice %866 {offsets = [0, 3], sizes = [4, 1], strides = [1, 1]} : vector<4x8xf32> to vector<4x1xf32>
    %890 = vector.broadcast %888 : vector<4x1xf32> to vector<4x8xf32>
    %891 = vector.broadcast %882 : vector<1x8xf32> to vector<4x8xf32>
    %892 = arith.mulf %890, %891 : vector<4x8xf32>
    %893 = vector.broadcast %889 : vector<4x1xf32> to vector<4x8xf32>
    %894 = vector.broadcast %887 : vector<1x8xf32> to vector<4x8xf32>
    %895 = arith.mulf %893, %894 : vector<4x8xf32>
    %896 = arith.subf %892, %895 : vector<4x8xf32>
    %897 = arith.subf %861, %896 : vector<4x8xf32>
    %898 = vector.broadcast %888 : vector<4x1xf32> to vector<4x8xf32>
    %899 = vector.broadcast %887 : vector<1x8xf32> to vector<4x8xf32>
    %900 = arith.mulf %898, %899 : vector<4x8xf32>
    %901 = vector.broadcast %889 : vector<4x1xf32> to vector<4x8xf32>
    %902 = vector.broadcast %882 : vector<1x8xf32> to vector<4x8xf32>
    %903 = arith.mulf %901, %902 : vector<4x8xf32>
    %904 = arith.addf %900, %903 : vector<4x8xf32>
    %905 = arith.subf %866, %904 : vector<4x8xf32>
    %c3_i32_317 = arith.constant 3 : i32
    %906 = vector.broadcast %c3_i32_317 : i32 to vector<4x1xi32>
    %907 = arith.cmpi eq, %713, %906 : vector<4x1xi32>
    %908 = vector.shape_cast %907 : vector<4x1xi1> to vector<4x1xi1>
    %909 = vector.broadcast %908 : vector<4x1xi1> to vector<4x8xi1>
    %910 = vector.shape_cast %882 : vector<1x8xf32> to vector<1x8xf32>
    %911 = vector.broadcast %910 : vector<1x8xf32> to vector<4x8xf32>
    %912 = arith.select %909, %911, %897 : vector<4x8xi1>, vector<4x8xf32>
    %913 = vector.shape_cast %907 : vector<4x1xi1> to vector<4x1xi1>
    %914 = vector.broadcast %913 : vector<4x1xi1> to vector<4x8xi1>
    %915 = vector.shape_cast %887 : vector<1x8xf32> to vector<1x8xf32>
    %916 = vector.broadcast %915 : vector<1x8xf32> to vector<4x8xf32>
    %917 = arith.select %914, %916, %905 : vector<4x8xi1>, vector<4x8xf32>
    %918 = vector.extract_strided_slice %912 {offsets = [0, 4], sizes = [4, 4], strides = [1, 1]} : vector<4x8xf32> to vector<4x4xf32>
    %919 = vector.extract_strided_slice %917 {offsets = [0, 4], sizes = [4, 4], strides = [1, 1]} : vector<4x8xf32> to vector<4x4xf32>
    %cst_318 = arith.constant 0.000000e+00 : f32
    %920 = vector.broadcast %cst_318 : f32 to vector<4x4xf32>
    %921 = arith.subf %920, %919 : vector<4x4xf32>
    %922 = tpu.concatenate %918, %921 in 1 : vector<4x4xf32>, vector<4x4xf32> -> vector<4x8xf32>
    %923 = tpu.concatenate %919, %918 in 1 : vector<4x4xf32>, vector<4x4xf32> -> vector<4x8xf32>
    %924 = tpu.concatenate %922, %923 in 0 : vector<4x8xf32>, vector<4x8xf32> -> vector<8x8xf32>
    %cst_319 = arith.constant dense<0.000000e+00> : vector<16x4xf32>
    %925 = tpu.matmul %591, %627, %cst_319 {dimension_numbers = #tpu.dot_dimension_numbers<[1], [0], [0], [1], [0, 0, 1, 1], [], []>} : vector<16x16xf32>, vector<16x4xf32>, vector<16x4xf32> -> vector<16x4xf32>
    %cst_320 = arith.constant dense<0.000000e+00> : vector<8x4xf32>
    %926 = tpu.matmul %609, %925, %cst_320 {dimension_numbers = #tpu.dot_dimension_numbers<[0], [0], [1], [1], [0, 1, 1, 1], [], []>} : vector<16x8xf32>, vector<16x4xf32>, vector<8x4xf32> -> vector<8x4xf32>
    %cst_321 = arith.constant dense<0.000000e+00> : vector<8x4xf32>
    %927 = tpu.matmul %924, %926, %cst_321 {dimension_numbers = #tpu.dot_dimension_numbers<[1], [0], [0], [1], [0, 0, 1, 1], [], []>} : vector<8x8xf32>, vector<8x4xf32>, vector<8x4xf32> -> vector<8x4xf32>
    %928 = vector.extract_strided_slice %927 {offsets = [0, 0], sizes = [4, 2], strides = [1, 1]} : vector<8x4xf32> to vector<4x2xf32>
    %c0_322 = arith.constant 0 : index
    %c0_323 = arith.constant 0 : index
    %c0_324 = arith.constant 0 : index
    %c0_325 = arith.constant 0 : index
    %929 = vector.load %arg14[%c0_322, %c0_323, %c0_324, %c0_325] : memref<2x2x4x2xf32, #tpu.memory_space<vmem>>, vector<1x1x4x2xf32>
    %930 = vector.shape_cast %929 : vector<1x1x4x2xf32> to vector<4x2xf32>
    %931 = vector.shape_cast %928 : vector<4x2xf32> to vector<1x1x4x2xf32>
    tpu.vector_store %arg14[%c0_322, %c0_323, %c0_324, %c0_325], %931 {strides = array<i32>} : memref<2x2x4x2xf32, #tpu.memory_space<vmem>>, vector<1x1x4x2xf32>,
    %932 = vector.extract_strided_slice %927 {offsets = [4, 0], sizes = [4, 2], strides = [1, 1]} : vector<8x4xf32> to vector<4x2xf32>
    %c0_326 = arith.constant 0 : index
    %c1_327 = arith.constant 1 : index
    %c0_328 = arith.constant 0 : index
    %c0_329 = arith.constant 0 : index
    %933 = vector.load %arg14[%c0_326, %c1_327, %c0_328, %c0_329] : memref<2x2x4x2xf32, #tpu.memory_space<vmem>>, vector<1x1x4x2xf32>
    %934 = vector.shape_cast %933 : vector<1x1x4x2xf32> to vector<4x2xf32>
    %935 = vector.shape_cast %932 : vector<4x2xf32> to vector<1x1x4x2xf32>
    tpu.vector_store %arg14[%c0_326, %c1_327, %c0_328, %c0_329], %935 {strides = array<i32>} : memref<2x2x4x2xf32, #tpu.memory_space<vmem>>, vector<1x1x4x2xf32>,
    %cst_330 = arith.constant dense<0.000000e+00> : vector<4x4xf32>
    %936 = tpu.matmul %927, %926, %cst_330 {dimension_numbers = #tpu.dot_dimension_numbers<[0], [0], [1], [1], [0, 1, 1, 1], [], []>} : vector<8x4xf32>, vector<8x4xf32>, vector<4x4xf32> -> vector<4x4xf32>
    %937 = arith.subf %684, %936 : vector<4x4xf32>
    %938 = vector.extract_strided_slice %937 {offsets = [0, 0], sizes = [2, 2], strides = [1, 1]} : vector<4x4xf32> to vector<2x2xf32>
    %939 = vector.extract_strided_slice %937 {offsets = [2, 0], sizes = [2, 2], strides = [1, 1]} : vector<4x4xf32> to vector<2x2xf32>
    %940 = vector.extract_strided_slice %938 {offsets = [0, 0], sizes = [1, 1], strides = [1, 1]} : vector<2x2xf32> to vector<1x1xf32>
    %941 = vector.extract_strided_slice %939 {offsets = [0, 0], sizes = [1, 1], strides = [1, 1]} : vector<2x2xf32> to vector<1x1xf32>
    %942 = vector.extract_strided_slice %938 {offsets = [0, 1], sizes = [1, 1], strides = [1, 1]} : vector<2x2xf32> to vector<1x1xf32>
    %943 = vector.extract_strided_slice %939 {offsets = [0, 1], sizes = [1, 1], strides = [1, 1]} : vector<2x2xf32> to vector<1x1xf32>
    %944 = vector.extract_strided_slice %938 {offsets = [1, 0], sizes = [1, 1], strides = [1, 1]} : vector<2x2xf32> to vector<1x1xf32>
    %945 = vector.extract_strided_slice %939 {offsets = [1, 0], sizes = [1, 1], strides = [1, 1]} : vector<2x2xf32> to vector<1x1xf32>
    %946 = vector.extract_strided_slice %938 {offsets = [1, 1], sizes = [1, 1], strides = [1, 1]} : vector<2x2xf32> to vector<1x1xf32>
    %947 = vector.extract_strided_slice %939 {offsets = [1, 1], sizes = [1, 1], strides = [1, 1]} : vector<2x2xf32> to vector<1x1xf32>
    %948 = arith.mulf %940, %946 : vector<1x1xf32>
    %949 = arith.mulf %941, %947 : vector<1x1xf32>
    %950 = arith.subf %948, %949 : vector<1x1xf32>
    %951 = arith.mulf %942, %944 : vector<1x1xf32>
    %952 = arith.mulf %943, %945 : vector<1x1xf32>
    %953 = arith.subf %951, %952 : vector<1x1xf32>
    %954 = arith.subf %950, %953 : vector<1x1xf32>
    %955 = arith.mulf %940, %947 : vector<1x1xf32>
    %956 = arith.mulf %941, %946 : vector<1x1xf32>
    %957 = arith.addf %955, %956 : vector<1x1xf32>
    %958 = arith.mulf %942, %945 : vector<1x1xf32>
    %959 = arith.mulf %943, %944 : vector<1x1xf32>
    %960 = arith.addf %958, %959 : vector<1x1xf32>
    %961 = arith.subf %957, %960 : vector<1x1xf32>
    %962 = arith.mulf %954, %954 : vector<1x1xf32>
    %963 = arith.mulf %961, %961 : vector<1x1xf32>
    %964 = arith.addf %962, %963 : vector<1x1xf32>
    %965 = arith.divf %954, %964 : vector<1x1xf32>
    %cst_331 = arith.constant 0.000000e+00 : f32
    %966 = vector.broadcast %cst_331 : f32 to vector<1x1xf32>
    %967 = arith.subf %966, %961 : vector<1x1xf32>
    %968 = arith.divf %967, %964 : vector<1x1xf32>
    %969 = tpu.iota {dimensions = array<i32: 0>} : vector<2x2xi32>
    %970 = tpu.iota {dimensions = array<i32: 1>} : vector<2x2xi32>
    %c2_i32_332 = arith.constant 2 : i32
    %971 = vector.broadcast %c2_i32_332 : i32 to vector<2x2xi32>
    %972 = arith.muli %969, %971 : vector<2x2xi32>
    %973 = arith.addi %972, %970 : vector<2x2xi32>
    %c0_i32_333 = arith.constant 0 : i32
    %974 = vector.broadcast %c0_i32_333 : i32 to vector<2x2xi32>
    %975 = arith.cmpi eq, %973, %974 : vector<2x2xi32>
    %c1_i32_334 = arith.constant 1 : i32
    %976 = vector.broadcast %c1_i32_334 : i32 to vector<2x2xi32>
    %977 = arith.cmpi eq, %973, %976 : vector<2x2xi32>
    %cst_335 = arith.constant 0.000000e+00 : f32
    %978 = vector.broadcast %cst_335 : f32 to vector<1x1xf32>
    %979 = arith.subf %978, %942 : vector<1x1xf32>
    %c2_i32_336 = arith.constant 2 : i32
    %980 = vector.broadcast %c2_i32_336 : i32 to vector<2x2xi32>
    %981 = arith.cmpi eq, %973, %980 : vector<2x2xi32>
    %cst_337 = arith.constant 0.000000e+00 : f32
    %982 = vector.broadcast %cst_337 : f32 to vector<1x1xf32>
    %983 = arith.subf %982, %944 : vector<1x1xf32>
    %984 = vector.shape_cast %983 : vector<1x1xf32> to vector<1x1xf32>
    %985 = vector.broadcast %984 : vector<1x1xf32> to vector<2x2xf32>
    %986 = vector.shape_cast %940 : vector<1x1xf32> to vector<1x1xf32>
    %987 = vector.broadcast %986 : vector<1x1xf32> to vector<2x2xf32>
    %988 = arith.select %981, %985, %987 : vector<2x2xi1>, vector<2x2xf32>
    %989 = vector.shape_cast %979 : vector<1x1xf32> to vector<1x1xf32>
    %990 = vector.broadcast %989 : vector<1x1xf32> to vector<2x2xf32>
    %991 = arith.select %977, %990, %988 : vector<2x2xi1>, vector<2x2xf32>
    %992 = vector.shape_cast %946 : vector<1x1xf32> to vector<1x1xf32>
    %993 = vector.broadcast %992 : vector<1x1xf32> to vector<2x2xf32>
    %994 = arith.select %975, %993, %991 : vector<2x2xi1>, vector<2x2xf32>
    %c0_i32_338 = arith.constant 0 : i32
    %995 = vector.broadcast %c0_i32_338 : i32 to vector<2x2xi32>
    %996 = arith.cmpi eq, %973, %995 : vector<2x2xi32>
    %c1_i32_339 = arith.constant 1 : i32
    %997 = vector.broadcast %c1_i32_339 : i32 to vector<2x2xi32>
    %998 = arith.cmpi eq, %973, %997 : vector<2x2xi32>
    %cst_340 = arith.constant 0.000000e+00 : f32
    %999 = vector.broadcast %cst_340 : f32 to vector<1x1xf32>
    %1000 = arith.subf %999, %943 : vector<1x1xf32>
    %c2_i32_341 = arith.constant 2 : i32
    %1001 = vector.broadcast %c2_i32_341 : i32 to vector<2x2xi32>
    %1002 = arith.cmpi eq, %973, %1001 : vector<2x2xi32>
    %cst_342 = arith.constant 0.000000e+00 : f32
    %1003 = vector.broadcast %cst_342 : f32 to vector<1x1xf32>
    %1004 = arith.subf %1003, %945 : vector<1x1xf32>
    %1005 = vector.shape_cast %1004 : vector<1x1xf32> to vector<1x1xf32>
    %1006 = vector.broadcast %1005 : vector<1x1xf32> to vector<2x2xf32>
    %1007 = vector.shape_cast %941 : vector<1x1xf32> to vector<1x1xf32>
    %1008 = vector.broadcast %1007 : vector<1x1xf32> to vector<2x2xf32>
    %1009 = arith.select %1002, %1006, %1008 : vector<2x2xi1>, vector<2x2xf32>
    %1010 = vector.shape_cast %1000 : vector<1x1xf32> to vector<1x1xf32>
    %1011 = vector.broadcast %1010 : vector<1x1xf32> to vector<2x2xf32>
    %1012 = arith.select %998, %1011, %1009 : vector<2x2xi1>, vector<2x2xf32>
    %1013 = vector.shape_cast %947 : vector<1x1xf32> to vector<1x1xf32>
    %1014 = vector.broadcast %1013 : vector<1x1xf32> to vector<2x2xf32>
    %1015 = arith.select %996, %1014, %1012 : vector<2x2xi1>, vector<2x2xf32>
    %1016 = vector.broadcast %965 : vector<1x1xf32> to vector<2x2xf32>
    %1017 = arith.mulf %994, %1016 : vector<2x2xf32>
    %1018 = vector.broadcast %968 : vector<1x1xf32> to vector<2x2xf32>
    %1019 = arith.mulf %1015, %1018 : vector<2x2xf32>
    %1020 = arith.subf %1017, %1019 : vector<2x2xf32>
    %1021 = vector.broadcast %968 : vector<1x1xf32> to vector<2x2xf32>
    %1022 = arith.mulf %994, %1021 : vector<2x2xf32>
    %1023 = vector.broadcast %965 : vector<1x1xf32> to vector<2x2xf32>
    %1024 = arith.mulf %1015, %1023 : vector<2x2xf32>
    %1025 = arith.addf %1022, %1024 : vector<2x2xf32>
    %cst_343 = arith.constant 0.000000e+00 : f32
    %1026 = vector.broadcast %cst_343 : f32 to vector<2x2xf32>
    %1027 = arith.subf %1026, %1025 : vector<2x2xf32>
    %1028 = tpu.concatenate %1020, %1027 in 1 : vector<2x2xf32>, vector<2x2xf32> -> vector<2x4xf32>
    %1029 = tpu.concatenate %1025, %1020 in 1 : vector<2x2xf32>, vector<2x2xf32> -> vector<2x4xf32>
    %1030 = tpu.concatenate %1028, %1029 in 0 : vector<2x4xf32>, vector<2x4xf32> -> vector<4x4xf32>
    %c0_344 = arith.constant 0 : index
    %c0_345 = arith.constant 0 : index
    %c0_346 = arith.constant 0 : index
    %c0_347 = arith.constant 0 : index
    %1031 = vector.load %arg18[%c0_344, %c0_345, %c0_346, %c0_347] : memref<2x2x2x2xf32, #tpu.memory_space<vmem>>, vector<1x1x2x2xf32>
    %1032 = vector.shape_cast %1031 : vector<1x1x2x2xf32> to vector<2x2xf32>
    %1033 = vector.shape_cast %1020 : vector<2x2xf32> to vector<1x1x2x2xf32>
    tpu.vector_store %arg18[%c0_344, %c0_345, %c0_346, %c0_347], %1033 {strides = array<i32>} : memref<2x2x2x2xf32, #tpu.memory_space<vmem>>, vector<1x1x2x2xf32>,
    %c0_348 = arith.constant 0 : index
    %c1_349 = arith.constant 1 : index
    %c0_350 = arith.constant 0 : index
    %c0_351 = arith.constant 0 : index
    %1034 = vector.load %arg18[%c0_348, %c1_349, %c0_350, %c0_351] : memref<2x2x2x2xf32, #tpu.memory_space<vmem>>, vector<1x1x2x2xf32>
    %1035 = vector.shape_cast %1034 : vector<1x1x2x2xf32> to vector<2x2xf32>
    %1036 = vector.shape_cast %1025 : vector<2x2xf32> to vector<1x1x2x2xf32>
    tpu.vector_store %arg18[%c0_348, %c1_349, %c0_350, %c0_351], %1036 {strides = array<i32>} : memref<2x2x2x2xf32, #tpu.memory_space<vmem>>, vector<1x1x2x2xf32>,
    %cst_352 = arith.constant dense<0.000000e+00> : vector<16x16xf32>
    %1037 = tpu.matmul %600, %693, %cst_352 {dimension_numbers = #tpu.dot_dimension_numbers<[1], [0], [0], [1], [0, 0, 1, 1], [], []>} : vector<16x16xf32>, vector<16x16xf32>, vector<16x16xf32> -> vector<16x16xf32>
    %cst_353 = arith.constant dense<0.000000e+00> : vector<16x16xf32>
    %1038 = tpu.matmul %1037, %600, %cst_353 {dimension_numbers = #tpu.dot_dimension_numbers<[1], [1], [0], [0], [0, 0, 1, 0], [], []>} : vector<16x16xf32>, vector<16x16xf32>, vector<16x16xf32> -> vector<16x16xf32>
    %1039 = vector.broadcast %694 : f32 to vector<16x16xf32>
    %1040 = arith.mulf %1039, %678 : vector<16x16xf32>
    %1041 = arith.addf %1038, %1040 : vector<16x16xf32>
    %cst_354 = arith.constant dense<0.000000e+00> : vector<8x16xf32>
    %1042 = tpu.matmul %618, %1041, %cst_354 {dimension_numbers = #tpu.dot_dimension_numbers<[0], [0], [1], [1], [0, 1, 1, 1], [], []>} : vector<16x8xf32>, vector<16x16xf32>, vector<8x16xf32> -> vector<8x16xf32>
    %cst_355 = arith.constant dense<0.000000e+00> : vector<8x8xf32>
    %1043 = tpu.matmul %1042, %618, %cst_355 {dimension_numbers = #tpu.dot_dimension_numbers<[1], [0], [0], [1], [0, 0, 1, 1], [], []>} : vector<8x16xf32>, vector<16x8xf32>, vector<8x8xf32> -> vector<8x8xf32>
    %1044 = vector.extract_strided_slice %1043 {offsets = [0, 0], sizes = [4, 4], strides = [1, 1]} : vector<8x8xf32> to vector<4x4xf32>
    %1045 = vector.extract_strided_slice %1043 {offsets = [4, 0], sizes = [4, 4], strides = [1, 1]} : vector<8x8xf32> to vector<4x4xf32>
    %1046 = tpu.iota {dimensions = array<i32: 0>} : vector<4x4xi32>
    %1047 = tpu.iota {dimensions = array<i32: 1>} : vector<4x4xi32>
    %1048 = arith.cmpi eq, %1046, %1047 : vector<4x4xi32>
    %cst_356 = arith.constant 1.000000e+00 : f32
    %cst_357 = arith.constant 0.000000e+00 : f32
    %1049 = vector.broadcast %cst_356 : f32 to vector<4x4xf32>
    %1050 = vector.broadcast %cst_357 : f32 to vector<4x4xf32>
    %1051 = arith.select %1048, %1049, %1050 : vector<4x4xi1>, vector<4x4xf32>
    %1052 = tpu.concatenate %1044, %1051 in 1 : vector<4x4xf32>, vector<4x4xf32> -> vector<4x8xf32>
    %cst_358 = arith.constant 0.000000e+00 : f32
    %1053 = vector.broadcast %cst_358 : f32 to vector<4x4xf32>
    %1054 = tpu.concatenate %1045, %1053 in 1 : vector<4x4xf32>, vector<4x4xf32> -> vector<4x8xf32>
    %1055 = tpu.iota {dimensions = array<i32: 0>} : vector<4x1xi32>
    %1056 = vector.extract_strided_slice %1052 {offsets = [0, 0], sizes = [1, 8], strides = [1, 1]} : vector<4x8xf32> to vector<1x8xf32>
    %1057 = vector.extract_strided_slice %1054 {offsets = [0, 0], sizes = [1, 8], strides = [1, 1]} : vector<4x8xf32> to vector<1x8xf32>
    %1058 = vector.extract_strided_slice %1056 {offsets = [0, 0], sizes = [1, 1], strides = [1, 1]} : vector<1x8xf32> to vector<1x1xf32>
    %1059 = vector.extract_strided_slice %1057 {offsets = [0, 0], sizes = [1, 1], strides = [1, 1]} : vector<1x8xf32> to vector<1x1xf32>
    %1060 = arith.mulf %1058, %1058 : vector<1x1xf32>
    %1061 = arith.mulf %1059, %1059 : vector<1x1xf32>
    %1062 = arith.addf %1060, %1061 : vector<1x1xf32>
    %1063 = arith.divf %1058, %1062 : vector<1x1xf32>
    %cst_359 = arith.constant 0.000000e+00 : f32
    %1064 = vector.broadcast %cst_359 : f32 to vector<1x1xf32>
    %1065 = arith.subf %1064, %1059 : vector<1x1xf32>
    %1066 = arith.divf %1065, %1062 : vector<1x1xf32>
    %1067 = vector.broadcast %1063 : vector<1x1xf32> to vector<1x8xf32>
    %1068 = arith.mulf %1056, %1067 : vector<1x8xf32>
    %1069 = vector.broadcast %1066 : vector<1x1xf32> to vector<1x8xf32>
    %1070 = arith.mulf %1057, %1069 : vector<1x8xf32>
    %1071 = arith.subf %1068, %1070 : vector<1x8xf32>
    %1072 = vector.broadcast %1066 : vector<1x1xf32> to vector<1x8xf32>
    %1073 = arith.mulf %1056, %1072 : vector<1x8xf32>
    %1074 = vector.broadcast %1063 : vector<1x1xf32> to vector<1x8xf32>
    %1075 = arith.mulf %1057, %1074 : vector<1x8xf32>
    %1076 = arith.addf %1073, %1075 : vector<1x8xf32>
    %1077 = vector.extract_strided_slice %1052 {offsets = [0, 0], sizes = [4, 1], strides = [1, 1]} : vector<4x8xf32> to vector<4x1xf32>
    %1078 = vector.extract_strided_slice %1054 {offsets = [0, 0], sizes = [4, 1], strides = [1, 1]} : vector<4x8xf32> to vector<4x1xf32>
    %1079 = vector.broadcast %1077 : vector<4x1xf32> to vector<4x8xf32>
    %1080 = vector.broadcast %1071 : vector<1x8xf32> to vector<4x8xf32>
    %1081 = arith.mulf %1079, %1080 : vector<4x8xf32>
    %1082 = vector.broadcast %1078 : vector<4x1xf32> to vector<4x8xf32>
    %1083 = vector.broadcast %1076 : vector<1x8xf32> to vector<4x8xf32>
    %1084 = arith.mulf %1082, %1083 : vector<4x8xf32>
    %1085 = arith.subf %1081, %1084 : vector<4x8xf32>
    %1086 = arith.subf %1052, %1085 : vector<4x8xf32>
    %1087 = vector.broadcast %1077 : vector<4x1xf32> to vector<4x8xf32>
    %1088 = vector.broadcast %1076 : vector<1x8xf32> to vector<4x8xf32>
    %1089 = arith.mulf %1087, %1088 : vector<4x8xf32>
    %1090 = vector.broadcast %1078 : vector<4x1xf32> to vector<4x8xf32>
    %1091 = vector.broadcast %1071 : vector<1x8xf32> to vector<4x8xf32>
    %1092 = arith.mulf %1090, %1091 : vector<4x8xf32>
    %1093 = arith.addf %1089, %1092 : vector<4x8xf32>
    %1094 = arith.subf %1054, %1093 : vector<4x8xf32>
    %c0_i32_360 = arith.constant 0 : i32
    %1095 = vector.broadcast %c0_i32_360 : i32 to vector<4x1xi32>
    %1096 = arith.cmpi eq, %1055, %1095 : vector<4x1xi32>
    %1097 = vector.shape_cast %1096 : vector<4x1xi1> to vector<4x1xi1>
    %1098 = vector.broadcast %1097 : vector<4x1xi1> to vector<4x8xi1>
    %1099 = vector.shape_cast %1071 : vector<1x8xf32> to vector<1x8xf32>
    %1100 = vector.broadcast %1099 : vector<1x8xf32> to vector<4x8xf32>
    %1101 = arith.select %1098, %1100, %1086 : vector<4x8xi1>, vector<4x8xf32>
    %1102 = vector.shape_cast %1096 : vector<4x1xi1> to vector<4x1xi1>
    %1103 = vector.broadcast %1102 : vector<4x1xi1> to vector<4x8xi1>
    %1104 = vector.shape_cast %1076 : vector<1x8xf32> to vector<1x8xf32>
    %1105 = vector.broadcast %1104 : vector<1x8xf32> to vector<4x8xf32>
    %1106 = arith.select %1103, %1105, %1094 : vector<4x8xi1>, vector<4x8xf32>
    %1107 = vector.extract_strided_slice %1101 {offsets = [1, 0], sizes = [1, 8], strides = [1, 1]} : vector<4x8xf32> to vector<1x8xf32>
    %1108 = vector.extract_strided_slice %1106 {offsets = [1, 0], sizes = [1, 8], strides = [1, 1]} : vector<4x8xf32> to vector<1x8xf32>
    %1109 = vector.extract_strided_slice %1107 {offsets = [0, 1], sizes = [1, 1], strides = [1, 1]} : vector<1x8xf32> to vector<1x1xf32>
    %1110 = vector.extract_strided_slice %1108 {offsets = [0, 1], sizes = [1, 1], strides = [1, 1]} : vector<1x8xf32> to vector<1x1xf32>
    %1111 = arith.mulf %1109, %1109 : vector<1x1xf32>
    %1112 = arith.mulf %1110, %1110 : vector<1x1xf32>
    %1113 = arith.addf %1111, %1112 : vector<1x1xf32>
    %1114 = arith.divf %1109, %1113 : vector<1x1xf32>
    %cst_361 = arith.constant 0.000000e+00 : f32
    %1115 = vector.broadcast %cst_361 : f32 to vector<1x1xf32>
    %1116 = arith.subf %1115, %1110 : vector<1x1xf32>
    %1117 = arith.divf %1116, %1113 : vector<1x1xf32>
    %1118 = vector.broadcast %1114 : vector<1x1xf32> to vector<1x8xf32>
    %1119 = arith.mulf %1107, %1118 : vector<1x8xf32>
    %1120 = vector.broadcast %1117 : vector<1x1xf32> to vector<1x8xf32>
    %1121 = arith.mulf %1108, %1120 : vector<1x8xf32>
    %1122 = arith.subf %1119, %1121 : vector<1x8xf32>
    %1123 = vector.broadcast %1117 : vector<1x1xf32> to vector<1x8xf32>
    %1124 = arith.mulf %1107, %1123 : vector<1x8xf32>
    %1125 = vector.broadcast %1114 : vector<1x1xf32> to vector<1x8xf32>
    %1126 = arith.mulf %1108, %1125 : vector<1x8xf32>
    %1127 = arith.addf %1124, %1126 : vector<1x8xf32>
    %1128 = vector.extract_strided_slice %1101 {offsets = [0, 1], sizes = [4, 1], strides = [1, 1]} : vector<4x8xf32> to vector<4x1xf32>
    %1129 = vector.extract_strided_slice %1106 {offsets = [0, 1], sizes = [4, 1], strides = [1, 1]} : vector<4x8xf32> to vector<4x1xf32>
    %1130 = vector.broadcast %1128 : vector<4x1xf32> to vector<4x8xf32>
    %1131 = vector.broadcast %1122 : vector<1x8xf32> to vector<4x8xf32>
    %1132 = arith.mulf %1130, %1131 : vector<4x8xf32>
    %1133 = vector.broadcast %1129 : vector<4x1xf32> to vector<4x8xf32>
    %1134 = vector.broadcast %1127 : vector<1x8xf32> to vector<4x8xf32>
    %1135 = arith.mulf %1133, %1134 : vector<4x8xf32>
    %1136 = arith.subf %1132, %1135 : vector<4x8xf32>
    %1137 = arith.subf %1101, %1136 : vector<4x8xf32>
    %1138 = vector.broadcast %1128 : vector<4x1xf32> to vector<4x8xf32>
    %1139 = vector.broadcast %1127 : vector<1x8xf32> to vector<4x8xf32>
    %1140 = arith.mulf %1138, %1139 : vector<4x8xf32>
    %1141 = vector.broadcast %1129 : vector<4x1xf32> to vector<4x8xf32>
    %1142 = vector.broadcast %1122 : vector<1x8xf32> to vector<4x8xf32>
    %1143 = arith.mulf %1141, %1142 : vector<4x8xf32>
    %1144 = arith.addf %1140, %1143 : vector<4x8xf32>
    %1145 = arith.subf %1106, %1144 : vector<4x8xf32>
    %c1_i32_362 = arith.constant 1 : i32
    %1146 = vector.broadcast %c1_i32_362 : i32 to vector<4x1xi32>
    %1147 = arith.cmpi eq, %1055, %1146 : vector<4x1xi32>
    %1148 = vector.shape_cast %1147 : vector<4x1xi1> to vector<4x1xi1>
    %1149 = vector.broadcast %1148 : vector<4x1xi1> to vector<4x8xi1>
    %1150 = vector.shape_cast %1122 : vector<1x8xf32> to vector<1x8xf32>
    %1151 = vector.broadcast %1150 : vector<1x8xf32> to vector<4x8xf32>
    %1152 = arith.select %1149, %1151, %1137 : vector<4x8xi1>, vector<4x8xf32>
    %1153 = vector.shape_cast %1147 : vector<4x1xi1> to vector<4x1xi1>
    %1154 = vector.broadcast %1153 : vector<4x1xi1> to vector<4x8xi1>
    %1155 = vector.shape_cast %1127 : vector<1x8xf32> to vector<1x8xf32>
    %1156 = vector.broadcast %1155 : vector<1x8xf32> to vector<4x8xf32>
    %1157 = arith.select %1154, %1156, %1145 : vector<4x8xi1>, vector<4x8xf32>
    %1158 = vector.extract_strided_slice %1152 {offsets = [2, 0], sizes = [1, 8], strides = [1, 1]} : vector<4x8xf32> to vector<1x8xf32>
    %1159 = vector.extract_strided_slice %1157 {offsets = [2, 0], sizes = [1, 8], strides = [1, 1]} : vector<4x8xf32> to vector<1x8xf32>
    %1160 = vector.extract_strided_slice %1158 {offsets = [0, 2], sizes = [1, 1], strides = [1, 1]} : vector<1x8xf32> to vector<1x1xf32>
    %1161 = vector.extract_strided_slice %1159 {offsets = [0, 2], sizes = [1, 1], strides = [1, 1]} : vector<1x8xf32> to vector<1x1xf32>
    %1162 = arith.mulf %1160, %1160 : vector<1x1xf32>
    %1163 = arith.mulf %1161, %1161 : vector<1x1xf32>
    %1164 = arith.addf %1162, %1163 : vector<1x1xf32>
    %1165 = arith.divf %1160, %1164 : vector<1x1xf32>
    %cst_363 = arith.constant 0.000000e+00 : f32
    %1166 = vector.broadcast %cst_363 : f32 to vector<1x1xf32>
    %1167 = arith.subf %1166, %1161 : vector<1x1xf32>
    %1168 = arith.divf %1167, %1164 : vector<1x1xf32>
    %1169 = vector.broadcast %1165 : vector<1x1xf32> to vector<1x8xf32>
    %1170 = arith.mulf %1158, %1169 : vector<1x8xf32>
    %1171 = vector.broadcast %1168 : vector<1x1xf32> to vector<1x8xf32>
    %1172 = arith.mulf %1159, %1171 : vector<1x8xf32>
    %1173 = arith.subf %1170, %1172 : vector<1x8xf32>
    %1174 = vector.broadcast %1168 : vector<1x1xf32> to vector<1x8xf32>
    %1175 = arith.mulf %1158, %1174 : vector<1x8xf32>
    %1176 = vector.broadcast %1165 : vector<1x1xf32> to vector<1x8xf32>
    %1177 = arith.mulf %1159, %1176 : vector<1x8xf32>
    %1178 = arith.addf %1175, %1177 : vector<1x8xf32>
    %1179 = vector.extract_strided_slice %1152 {offsets = [0, 2], sizes = [4, 1], strides = [1, 1]} : vector<4x8xf32> to vector<4x1xf32>
    %1180 = vector.extract_strided_slice %1157 {offsets = [0, 2], sizes = [4, 1], strides = [1, 1]} : vector<4x8xf32> to vector<4x1xf32>
    %1181 = vector.broadcast %1179 : vector<4x1xf32> to vector<4x8xf32>
    %1182 = vector.broadcast %1173 : vector<1x8xf32> to vector<4x8xf32>
    %1183 = arith.mulf %1181, %1182 : vector<4x8xf32>
    %1184 = vector.broadcast %1180 : vector<4x1xf32> to vector<4x8xf32>
    %1185 = vector.broadcast %1178 : vector<1x8xf32> to vector<4x8xf32>
    %1186 = arith.mulf %1184, %1185 : vector<4x8xf32>
    %1187 = arith.subf %1183, %1186 : vector<4x8xf32>
    %1188 = arith.subf %1152, %1187 : vector<4x8xf32>
    %1189 = vector.broadcast %1179 : vector<4x1xf32> to vector<4x8xf32>
    %1190 = vector.broadcast %1178 : vector<1x8xf32> to vector<4x8xf32>
    %1191 = arith.mulf %1189, %1190 : vector<4x8xf32>
    %1192 = vector.broadcast %1180 : vector<4x1xf32> to vector<4x8xf32>
    %1193 = vector.broadcast %1173 : vector<1x8xf32> to vector<4x8xf32>
    %1194 = arith.mulf %1192, %1193 : vector<4x8xf32>
    %1195 = arith.addf %1191, %1194 : vector<4x8xf32>
    %1196 = arith.subf %1157, %1195 : vector<4x8xf32>
    %c2_i32_364 = arith.constant 2 : i32
    %1197 = vector.broadcast %c2_i32_364 : i32 to vector<4x1xi32>
    %1198 = arith.cmpi eq, %1055, %1197 : vector<4x1xi32>
    %1199 = vector.shape_cast %1198 : vector<4x1xi1> to vector<4x1xi1>
    %1200 = vector.broadcast %1199 : vector<4x1xi1> to vector<4x8xi1>
    %1201 = vector.shape_cast %1173 : vector<1x8xf32> to vector<1x8xf32>
    %1202 = vector.broadcast %1201 : vector<1x8xf32> to vector<4x8xf32>
    %1203 = arith.select %1200, %1202, %1188 : vector<4x8xi1>, vector<4x8xf32>
    %1204 = vector.shape_cast %1198 : vector<4x1xi1> to vector<4x1xi1>
    %1205 = vector.broadcast %1204 : vector<4x1xi1> to vector<4x8xi1>
    %1206 = vector.shape_cast %1178 : vector<1x8xf32> to vector<1x8xf32>
    %1207 = vector.broadcast %1206 : vector<1x8xf32> to vector<4x8xf32>
    %1208 = arith.select %1205, %1207, %1196 : vector<4x8xi1>, vector<4x8xf32>
    %1209 = vector.extract_strided_slice %1203 {offsets = [3, 0], sizes = [1, 8], strides = [1, 1]} : vector<4x8xf32> to vector<1x8xf32>
    %1210 = vector.extract_strided_slice %1208 {offsets = [3, 0], sizes = [1, 8], strides = [1, 1]} : vector<4x8xf32> to vector<1x8xf32>
    %1211 = vector.extract_strided_slice %1209 {offsets = [0, 3], sizes = [1, 1], strides = [1, 1]} : vector<1x8xf32> to vector<1x1xf32>
    %1212 = vector.extract_strided_slice %1210 {offsets = [0, 3], sizes = [1, 1], strides = [1, 1]} : vector<1x8xf32> to vector<1x1xf32>
    %1213 = arith.mulf %1211, %1211 : vector<1x1xf32>
    %1214 = arith.mulf %1212, %1212 : vector<1x1xf32>
    %1215 = arith.addf %1213, %1214 : vector<1x1xf32>
    %1216 = arith.divf %1211, %1215 : vector<1x1xf32>
    %cst_365 = arith.constant 0.000000e+00 : f32
    %1217 = vector.broadcast %cst_365 : f32 to vector<1x1xf32>
    %1218 = arith.subf %1217, %1212 : vector<1x1xf32>
    %1219 = arith.divf %1218, %1215 : vector<1x1xf32>
    %1220 = vector.broadcast %1216 : vector<1x1xf32> to vector<1x8xf32>
    %1221 = arith.mulf %1209, %1220 : vector<1x8xf32>
    %1222 = vector.broadcast %1219 : vector<1x1xf32> to vector<1x8xf32>
    %1223 = arith.mulf %1210, %1222 : vector<1x8xf32>
    %1224 = arith.subf %1221, %1223 : vector<1x8xf32>
    %1225 = vector.broadcast %1219 : vector<1x1xf32> to vector<1x8xf32>
    %1226 = arith.mulf %1209, %1225 : vector<1x8xf32>
    %1227 = vector.broadcast %1216 : vector<1x1xf32> to vector<1x8xf32>
    %1228 = arith.mulf %1210, %1227 : vector<1x8xf32>
    %1229 = arith.addf %1226, %1228 : vector<1x8xf32>
    %1230 = vector.extract_strided_slice %1203 {offsets = [0, 3], sizes = [4, 1], strides = [1, 1]} : vector<4x8xf32> to vector<4x1xf32>
    %1231 = vector.extract_strided_slice %1208 {offsets = [0, 3], sizes = [4, 1], strides = [1, 1]} : vector<4x8xf32> to vector<4x1xf32>
    %1232 = vector.broadcast %1230 : vector<4x1xf32> to vector<4x8xf32>
    %1233 = vector.broadcast %1224 : vector<1x8xf32> to vector<4x8xf32>
    %1234 = arith.mulf %1232, %1233 : vector<4x8xf32>
    %1235 = vector.broadcast %1231 : vector<4x1xf32> to vector<4x8xf32>
    %1236 = vector.broadcast %1229 : vector<1x8xf32> to vector<4x8xf32>
    %1237 = arith.mulf %1235, %1236 : vector<4x8xf32>
    %1238 = arith.subf %1234, %1237 : vector<4x8xf32>
    %1239 = arith.subf %1203, %1238 : vector<4x8xf32>
    %1240 = vector.broadcast %1230 : vector<4x1xf32> to vector<4x8xf32>
    %1241 = vector.broadcast %1229 : vector<1x8xf32> to vector<4x8xf32>
    %1242 = arith.mulf %1240, %1241 : vector<4x8xf32>
    %1243 = vector.broadcast %1231 : vector<4x1xf32> to vector<4x8xf32>
    %1244 = vector.broadcast %1224 : vector<1x8xf32> to vector<4x8xf32>
    %1245 = arith.mulf %1243, %1244 : vector<4x8xf32>
    %1246 = arith.addf %1242, %1245 : vector<4x8xf32>
    %1247 = arith.subf %1208, %1246 : vector<4x8xf32>
    %c3_i32_366 = arith.constant 3 : i32
    %1248 = vector.broadcast %c3_i32_366 : i32 to vector<4x1xi32>
    %1249 = arith.cmpi eq, %1055, %1248 : vector<4x1xi32>
    %1250 = vector.shape_cast %1249 : vector<4x1xi1> to vector<4x1xi1>
    %1251 = vector.broadcast %1250 : vector<4x1xi1> to vector<4x8xi1>
    %1252 = vector.shape_cast %1224 : vector<1x8xf32> to vector<1x8xf32>
    %1253 = vector.broadcast %1252 : vector<1x8xf32> to vector<4x8xf32>
    %1254 = arith.select %1251, %1253, %1239 : vector<4x8xi1>, vector<4x8xf32>
    %1255 = vector.shape_cast %1249 : vector<4x1xi1> to vector<4x1xi1>
    %1256 = vector.broadcast %1255 : vector<4x1xi1> to vector<4x8xi1>
    %1257 = vector.shape_cast %1229 : vector<1x8xf32> to vector<1x8xf32>
    %1258 = vector.broadcast %1257 : vector<1x8xf32> to vector<4x8xf32>
    %1259 = arith.select %1256, %1258, %1247 : vector<4x8xi1>, vector<4x8xf32>
    %1260 = vector.extract_strided_slice %1254 {offsets = [0, 4], sizes = [4, 4], strides = [1, 1]} : vector<4x8xf32> to vector<4x4xf32>
    %1261 = vector.extract_strided_slice %1259 {offsets = [0, 4], sizes = [4, 4], strides = [1, 1]} : vector<4x8xf32> to vector<4x4xf32>
    %cst_367 = arith.constant 0.000000e+00 : f32
    %1262 = vector.broadcast %cst_367 : f32 to vector<4x4xf32>
    %1263 = arith.subf %1262, %1261 : vector<4x4xf32>
    %1264 = tpu.concatenate %1260, %1263 in 1 : vector<4x4xf32>, vector<4x4xf32> -> vector<4x8xf32>
    %1265 = tpu.concatenate %1261, %1260 in 1 : vector<4x4xf32>, vector<4x4xf32> -> vector<4x8xf32>
    %1266 = tpu.concatenate %1264, %1265 in 0 : vector<4x8xf32>, vector<4x8xf32> -> vector<8x8xf32>
    %cst_368 = arith.constant dense<0.000000e+00> : vector<16x4xf32>
    %1267 = tpu.matmul %600, %636, %cst_368 {dimension_numbers = #tpu.dot_dimension_numbers<[1], [0], [0], [1], [0, 0, 1, 1], [], []>} : vector<16x16xf32>, vector<16x4xf32>, vector<16x4xf32> -> vector<16x4xf32>
    %cst_369 = arith.constant dense<0.000000e+00> : vector<8x4xf32>
    %1268 = tpu.matmul %618, %1267, %cst_369 {dimension_numbers = #tpu.dot_dimension_numbers<[0], [0], [1], [1], [0, 1, 1, 1], [], []>} : vector<16x8xf32>, vector<16x4xf32>, vector<8x4xf32> -> vector<8x4xf32>
    %cst_370 = arith.constant dense<0.000000e+00> : vector<8x4xf32>
    %1269 = tpu.matmul %1266, %1268, %cst_370 {dimension_numbers = #tpu.dot_dimension_numbers<[1], [0], [0], [1], [0, 0, 1, 1], [], []>} : vector<8x8xf32>, vector<8x4xf32>, vector<8x4xf32> -> vector<8x4xf32>
    %1270 = vector.extract_strided_slice %1269 {offsets = [0, 0], sizes = [4, 2], strides = [1, 1]} : vector<8x4xf32> to vector<4x2xf32>
    %c1_371 = arith.constant 1 : index
    %c0_372 = arith.constant 0 : index
    %c0_373 = arith.constant 0 : index
    %c0_374 = arith.constant 0 : index
    %1271 = vector.load %arg14[%c1_371, %c0_372, %c0_373, %c0_374] : memref<2x2x4x2xf32, #tpu.memory_space<vmem>>, vector<1x1x4x2xf32>
    %1272 = vector.shape_cast %1271 : vector<1x1x4x2xf32> to vector<4x2xf32>
    %1273 = vector.shape_cast %1270 : vector<4x2xf32> to vector<1x1x4x2xf32>
    tpu.vector_store %arg14[%c1_371, %c0_372, %c0_373, %c0_374], %1273 {strides = array<i32>} : memref<2x2x4x2xf32, #tpu.memory_space<vmem>>, vector<1x1x4x2xf32>,
    %1274 = vector.extract_strided_slice %1269 {offsets = [4, 0], sizes = [4, 2], strides = [1, 1]} : vector<8x4xf32> to vector<4x2xf32>
    %c1_375 = arith.constant 1 : index
    %c1_376 = arith.constant 1 : index
    %c0_377 = arith.constant 0 : index
    %c0_378 = arith.constant 0 : index
    %1275 = vector.load %arg14[%c1_375, %c1_376, %c0_377, %c0_378] : memref<2x2x4x2xf32, #tpu.memory_space<vmem>>, vector<1x1x4x2xf32>
    %1276 = vector.shape_cast %1275 : vector<1x1x4x2xf32> to vector<4x2xf32>
    %1277 = vector.shape_cast %1274 : vector<4x2xf32> to vector<1x1x4x2xf32>
    tpu.vector_store %arg14[%c1_375, %c1_376, %c0_377, %c0_378], %1277 {strides = array<i32>} : memref<2x2x4x2xf32, #tpu.memory_space<vmem>>, vector<1x1x4x2xf32>,
    %cst_379 = arith.constant dense<0.000000e+00> : vector<4x4xf32>
    %1278 = tpu.matmul %1269, %1268, %cst_379 {dimension_numbers = #tpu.dot_dimension_numbers<[0], [0], [1], [1], [0, 1, 1, 1], [], []>} : vector<8x4xf32>, vector<8x4xf32>, vector<4x4xf32> -> vector<4x4xf32>
    %1279 = arith.subf %684, %1278 : vector<4x4xf32>
    %1280 = vector.extract_strided_slice %1279 {offsets = [0, 0], sizes = [2, 2], strides = [1, 1]} : vector<4x4xf32> to vector<2x2xf32>
    %1281 = vector.extract_strided_slice %1279 {offsets = [2, 0], sizes = [2, 2], strides = [1, 1]} : vector<4x4xf32> to vector<2x2xf32>
    %1282 = vector.extract_strided_slice %1280 {offsets = [0, 0], sizes = [1, 1], strides = [1, 1]} : vector<2x2xf32> to vector<1x1xf32>
    %1283 = vector.extract_strided_slice %1281 {offsets = [0, 0], sizes = [1, 1], strides = [1, 1]} : vector<2x2xf32> to vector<1x1xf32>
    %1284 = vector.extract_strided_slice %1280 {offsets = [0, 1], sizes = [1, 1], strides = [1, 1]} : vector<2x2xf32> to vector<1x1xf32>
    %1285 = vector.extract_strided_slice %1281 {offsets = [0, 1], sizes = [1, 1], strides = [1, 1]} : vector<2x2xf32> to vector<1x1xf32>
    %1286 = vector.extract_strided_slice %1280 {offsets = [1, 0], sizes = [1, 1], strides = [1, 1]} : vector<2x2xf32> to vector<1x1xf32>
    %1287 = vector.extract_strided_slice %1281 {offsets = [1, 0], sizes = [1, 1], strides = [1, 1]} : vector<2x2xf32> to vector<1x1xf32>
    %1288 = vector.extract_strided_slice %1280 {offsets = [1, 1], sizes = [1, 1], strides = [1, 1]} : vector<2x2xf32> to vector<1x1xf32>
    %1289 = vector.extract_strided_slice %1281 {offsets = [1, 1], sizes = [1, 1], strides = [1, 1]} : vector<2x2xf32> to vector<1x1xf32>
    %1290 = arith.mulf %1282, %1288 : vector<1x1xf32>
    %1291 = arith.mulf %1283, %1289 : vector<1x1xf32>
    %1292 = arith.subf %1290, %1291 : vector<1x1xf32>
    %1293 = arith.mulf %1284, %1286 : vector<1x1xf32>
    %1294 = arith.mulf %1285, %1287 : vector<1x1xf32>
    %1295 = arith.subf %1293, %1294 : vector<1x1xf32>
    %1296 = arith.subf %1292, %1295 : vector<1x1xf32>
    %1297 = arith.mulf %1282, %1289 : vector<1x1xf32>
    %1298 = arith.mulf %1283, %1288 : vector<1x1xf32>
    %1299 = arith.addf %1297, %1298 : vector<1x1xf32>
    %1300 = arith.mulf %1284, %1287 : vector<1x1xf32>
    %1301 = arith.mulf %1285, %1286 : vector<1x1xf32>
    %1302 = arith.addf %1300, %1301 : vector<1x1xf32>
    %1303 = arith.subf %1299, %1302 : vector<1x1xf32>
    %1304 = arith.mulf %1296, %1296 : vector<1x1xf32>
    %1305 = arith.mulf %1303, %1303 : vector<1x1xf32>
    %1306 = arith.addf %1304, %1305 : vector<1x1xf32>
    %1307 = arith.divf %1296, %1306 : vector<1x1xf32>
    %cst_380 = arith.constant 0.000000e+00 : f32
    %1308 = vector.broadcast %cst_380 : f32 to vector<1x1xf32>
    %1309 = arith.subf %1308, %1303 : vector<1x1xf32>
    %1310 = arith.divf %1309, %1306 : vector<1x1xf32>
    %1311 = tpu.iota {dimensions = array<i32: 0>} : vector<2x2xi32>
    %1312 = tpu.iota {dimensions = array<i32: 1>} : vector<2x2xi32>
    %c2_i32_381 = arith.constant 2 : i32
    %1313 = vector.broadcast %c2_i32_381 : i32 to vector<2x2xi32>
    %1314 = arith.muli %1311, %1313 : vector<2x2xi32>
    %1315 = arith.addi %1314, %1312 : vector<2x2xi32>
    %c0_i32_382 = arith.constant 0 : i32
    %1316 = vector.broadcast %c0_i32_382 : i32 to vector<2x2xi32>
    %1317 = arith.cmpi eq, %1315, %1316 : vector<2x2xi32>
    %c1_i32_383 = arith.constant 1 : i32
    %1318 = vector.broadcast %c1_i32_383 : i32 to vector<2x2xi32>
    %1319 = arith.cmpi eq, %1315, %1318 : vector<2x2xi32>
    %cst_384 = arith.constant 0.000000e+00 : f32
    %1320 = vector.broadcast %cst_384 : f32 to vector<1x1xf32>
    %1321 = arith.subf %1320, %1284 : vector<1x1xf32>
    %c2_i32_385 = arith.constant 2 : i32
    %1322 = vector.broadcast %c2_i32_385 : i32 to vector<2x2xi32>
    %1323 = arith.cmpi eq, %1315, %1322 : vector<2x2xi32>
    %cst_386 = arith.constant 0.000000e+00 : f32
    %1324 = vector.broadcast %cst_386 : f32 to vector<1x1xf32>
    %1325 = arith.subf %1324, %1286 : vector<1x1xf32>
    %1326 = vector.shape_cast %1325 : vector<1x1xf32> to vector<1x1xf32>
    %1327 = vector.broadcast %1326 : vector<1x1xf32> to vector<2x2xf32>
    %1328 = vector.shape_cast %1282 : vector<1x1xf32> to vector<1x1xf32>
    %1329 = vector.broadcast %1328 : vector<1x1xf32> to vector<2x2xf32>
    %1330 = arith.select %1323, %1327, %1329 : vector<2x2xi1>, vector<2x2xf32>
    %1331 = vector.shape_cast %1321 : vector<1x1xf32> to vector<1x1xf32>
    %1332 = vector.broadcast %1331 : vector<1x1xf32> to vector<2x2xf32>
    %1333 = arith.select %1319, %1332, %1330 : vector<2x2xi1>, vector<2x2xf32>
    %1334 = vector.shape_cast %1288 : vector<1x1xf32> to vector<1x1xf32>
    %1335 = vector.broadcast %1334 : vector<1x1xf32> to vector<2x2xf32>
    %1336 = arith.select %1317, %1335, %1333 : vector<2x2xi1>, vector<2x2xf32>
    %c0_i32_387 = arith.constant 0 : i32
    %1337 = vector.broadcast %c0_i32_387 : i32 to vector<2x2xi32>
    %1338 = arith.cmpi eq, %1315, %1337 : vector<2x2xi32>
    %c1_i32_388 = arith.constant 1 : i32
    %1339 = vector.broadcast %c1_i32_388 : i32 to vector<2x2xi32>
    %1340 = arith.cmpi eq, %1315, %1339 : vector<2x2xi32>
    %cst_389 = arith.constant 0.000000e+00 : f32
    %1341 = vector.broadcast %cst_389 : f32 to vector<1x1xf32>
    %1342 = arith.subf %1341, %1285 : vector<1x1xf32>
    %c2_i32_390 = arith.constant 2 : i32
    %1343 = vector.broadcast %c2_i32_390 : i32 to vector<2x2xi32>
    %1344 = arith.cmpi eq, %1315, %1343 : vector<2x2xi32>
    %cst_391 = arith.constant 0.000000e+00 : f32
    %1345 = vector.broadcast %cst_391 : f32 to vector<1x1xf32>
    %1346 = arith.subf %1345, %1287 : vector<1x1xf32>
    %1347 = vector.shape_cast %1346 : vector<1x1xf32> to vector<1x1xf32>
    %1348 = vector.broadcast %1347 : vector<1x1xf32> to vector<2x2xf32>
    %1349 = vector.shape_cast %1283 : vector<1x1xf32> to vector<1x1xf32>
    %1350 = vector.broadcast %1349 : vector<1x1xf32> to vector<2x2xf32>
    %1351 = arith.select %1344, %1348, %1350 : vector<2x2xi1>, vector<2x2xf32>
    %1352 = vector.shape_cast %1342 : vector<1x1xf32> to vector<1x1xf32>
    %1353 = vector.broadcast %1352 : vector<1x1xf32> to vector<2x2xf32>
    %1354 = arith.select %1340, %1353, %1351 : vector<2x2xi1>, vector<2x2xf32>
    %1355 = vector.shape_cast %1289 : vector<1x1xf32> to vector<1x1xf32>
    %1356 = vector.broadcast %1355 : vector<1x1xf32> to vector<2x2xf32>
    %1357 = arith.select %1338, %1356, %1354 : vector<2x2xi1>, vector<2x2xf32>
    %1358 = vector.broadcast %1307 : vector<1x1xf32> to vector<2x2xf32>
    %1359 = arith.mulf %1336, %1358 : vector<2x2xf32>
    %1360 = vector.broadcast %1310 : vector<1x1xf32> to vector<2x2xf32>
    %1361 = arith.mulf %1357, %1360 : vector<2x2xf32>
    %1362 = arith.subf %1359, %1361 : vector<2x2xf32>
    %1363 = vector.broadcast %1310 : vector<1x1xf32> to vector<2x2xf32>
    %1364 = arith.mulf %1336, %1363 : vector<2x2xf32>
    %1365 = vector.broadcast %1307 : vector<1x1xf32> to vector<2x2xf32>
    %1366 = arith.mulf %1357, %1365 : vector<2x2xf32>
    %1367 = arith.addf %1364, %1366 : vector<2x2xf32>
    %cst_392 = arith.constant 0.000000e+00 : f32
    %1368 = vector.broadcast %cst_392 : f32 to vector<2x2xf32>
    %1369 = arith.subf %1368, %1367 : vector<2x2xf32>
    %1370 = tpu.concatenate %1362, %1369 in 1 : vector<2x2xf32>, vector<2x2xf32> -> vector<2x4xf32>
    %1371 = tpu.concatenate %1367, %1362 in 1 : vector<2x2xf32>, vector<2x2xf32> -> vector<2x4xf32>
    %1372 = tpu.concatenate %1370, %1371 in 0 : vector<2x4xf32>, vector<2x4xf32> -> vector<4x4xf32>
    %c1_393 = arith.constant 1 : index
    %c0_394 = arith.constant 0 : index
    %c0_395 = arith.constant 0 : index
    %c0_396 = arith.constant 0 : index
    %1373 = vector.load %arg18[%c1_393, %c0_394, %c0_395, %c0_396] : memref<2x2x2x2xf32, #tpu.memory_space<vmem>>, vector<1x1x2x2xf32>
    %1374 = vector.shape_cast %1373 : vector<1x1x2x2xf32> to vector<2x2xf32>
    %1375 = vector.shape_cast %1362 : vector<2x2xf32> to vector<1x1x2x2xf32>
    tpu.vector_store %arg18[%c1_393, %c0_394, %c0_395, %c0_396], %1375 {strides = array<i32>} : memref<2x2x2x2xf32, #tpu.memory_space<vmem>>, vector<1x1x2x2xf32>,
    %c1_397 = arith.constant 1 : index
    %c1_398 = arith.constant 1 : index
    %c0_399 = arith.constant 0 : index
    %c0_400 = arith.constant 0 : index
    %1376 = vector.load %arg18[%c1_397, %c1_398, %c0_399, %c0_400] : memref<2x2x2x2xf32, #tpu.memory_space<vmem>>, vector<1x1x2x2xf32>
    %1377 = vector.shape_cast %1376 : vector<1x1x2x2xf32> to vector<2x2xf32>
    %1378 = vector.shape_cast %1367 : vector<2x2xf32> to vector<1x1x2x2xf32>
    tpu.vector_store %arg18[%c1_397, %c1_398, %c0_399, %c0_400], %1378 {strides = array<i32>} : memref<2x2x2x2xf32, #tpu.memory_space<vmem>>, vector<1x1x2x2xf32>,
    %cst_401 = arith.constant dense<0.000000e+00> : vector<8x8xf32>
    %1379 = tpu.matmul %582, %582, %cst_401 {dimension_numbers = #tpu.dot_dimension_numbers<[0], [0], [1], [1], [0, 1, 1, 1], [], []>} : vector<16x8xf32>, vector<16x8xf32>, vector<8x8xf32> -> vector<8x8xf32>
    %1380 = vector.extract_strided_slice %1379 {offsets = [0, 0], sizes = [4, 4], strides = [1, 1]} : vector<8x8xf32> to vector<4x4xf32>
    %1381 = vector.extract_strided_slice %1379 {offsets = [4, 0], sizes = [4, 4], strides = [1, 1]} : vector<8x8xf32> to vector<4x4xf32>
    %1382 = tpu.iota {dimensions = array<i32: 0>} : vector<4x4xi32>
    %1383 = tpu.iota {dimensions = array<i32: 1>} : vector<4x4xi32>
    %1384 = arith.cmpi eq, %1382, %1383 : vector<4x4xi32>
    %cst_402 = arith.constant 1.000000e+00 : f32
    %cst_403 = arith.constant 0.000000e+00 : f32
    %1385 = vector.broadcast %cst_402 : f32 to vector<4x4xf32>
    %1386 = vector.broadcast %cst_403 : f32 to vector<4x4xf32>
    %1387 = arith.select %1384, %1385, %1386 : vector<4x4xi1>, vector<4x4xf32>
    %1388 = tpu.concatenate %1380, %1387 in 1 : vector<4x4xf32>, vector<4x4xf32> -> vector<4x8xf32>
    %cst_404 = arith.constant 0.000000e+00 : f32
    %1389 = vector.broadcast %cst_404 : f32 to vector<4x4xf32>
    %1390 = tpu.concatenate %1381, %1389 in 1 : vector<4x4xf32>, vector<4x4xf32> -> vector<4x8xf32>
    %1391 = tpu.iota {dimensions = array<i32: 0>} : vector<4x1xi32>
    %1392 = vector.extract_strided_slice %1388 {offsets = [0, 0], sizes = [1, 8], strides = [1, 1]} : vector<4x8xf32> to vector<1x8xf32>
    %1393 = vector.extract_strided_slice %1390 {offsets = [0, 0], sizes = [1, 8], strides = [1, 1]} : vector<4x8xf32> to vector<1x8xf32>
    %1394 = vector.extract_strided_slice %1392 {offsets = [0, 0], sizes = [1, 1], strides = [1, 1]} : vector<1x8xf32> to vector<1x1xf32>
    %1395 = vector.extract_strided_slice %1393 {offsets = [0, 0], sizes = [1, 1], strides = [1, 1]} : vector<1x8xf32> to vector<1x1xf32>
    %1396 = arith.mulf %1394, %1394 : vector<1x1xf32>
    %1397 = arith.mulf %1395, %1395 : vector<1x1xf32>
    %1398 = arith.addf %1396, %1397 : vector<1x1xf32>
    %1399 = arith.divf %1394, %1398 : vector<1x1xf32>
    %cst_405 = arith.constant 0.000000e+00 : f32
    %1400 = vector.broadcast %cst_405 : f32 to vector<1x1xf32>
    %1401 = arith.subf %1400, %1395 : vector<1x1xf32>
    %1402 = arith.divf %1401, %1398 : vector<1x1xf32>
    %1403 = vector.broadcast %1399 : vector<1x1xf32> to vector<1x8xf32>
    %1404 = arith.mulf %1392, %1403 : vector<1x8xf32>
    %1405 = vector.broadcast %1402 : vector<1x1xf32> to vector<1x8xf32>
    %1406 = arith.mulf %1393, %1405 : vector<1x8xf32>
    %1407 = arith.subf %1404, %1406 : vector<1x8xf32>
    %1408 = vector.broadcast %1402 : vector<1x1xf32> to vector<1x8xf32>
    %1409 = arith.mulf %1392, %1408 : vector<1x8xf32>
    %1410 = vector.broadcast %1399 : vector<1x1xf32> to vector<1x8xf32>
    %1411 = arith.mulf %1393, %1410 : vector<1x8xf32>
    %1412 = arith.addf %1409, %1411 : vector<1x8xf32>
    %1413 = vector.extract_strided_slice %1388 {offsets = [0, 0], sizes = [4, 1], strides = [1, 1]} : vector<4x8xf32> to vector<4x1xf32>
    %1414 = vector.extract_strided_slice %1390 {offsets = [0, 0], sizes = [4, 1], strides = [1, 1]} : vector<4x8xf32> to vector<4x1xf32>
    %1415 = vector.broadcast %1413 : vector<4x1xf32> to vector<4x8xf32>
    %1416 = vector.broadcast %1407 : vector<1x8xf32> to vector<4x8xf32>
    %1417 = arith.mulf %1415, %1416 : vector<4x8xf32>
    %1418 = vector.broadcast %1414 : vector<4x1xf32> to vector<4x8xf32>
    %1419 = vector.broadcast %1412 : vector<1x8xf32> to vector<4x8xf32>
    %1420 = arith.mulf %1418, %1419 : vector<4x8xf32>
    %1421 = arith.subf %1417, %1420 : vector<4x8xf32>
    %1422 = arith.subf %1388, %1421 : vector<4x8xf32>
    %1423 = vector.broadcast %1413 : vector<4x1xf32> to vector<4x8xf32>
    %1424 = vector.broadcast %1412 : vector<1x8xf32> to vector<4x8xf32>
    %1425 = arith.mulf %1423, %1424 : vector<4x8xf32>
    %1426 = vector.broadcast %1414 : vector<4x1xf32> to vector<4x8xf32>
    %1427 = vector.broadcast %1407 : vector<1x8xf32> to vector<4x8xf32>
    %1428 = arith.mulf %1426, %1427 : vector<4x8xf32>
    %1429 = arith.addf %1425, %1428 : vector<4x8xf32>
    %1430 = arith.subf %1390, %1429 : vector<4x8xf32>
    %c0_i32_406 = arith.constant 0 : i32
    %1431 = vector.broadcast %c0_i32_406 : i32 to vector<4x1xi32>
    %1432 = arith.cmpi eq, %1391, %1431 : vector<4x1xi32>
    %1433 = vector.shape_cast %1432 : vector<4x1xi1> to vector<4x1xi1>
    %1434 = vector.broadcast %1433 : vector<4x1xi1> to vector<4x8xi1>
    %1435 = vector.shape_cast %1407 : vector<1x8xf32> to vector<1x8xf32>
    %1436 = vector.broadcast %1435 : vector<1x8xf32> to vector<4x8xf32>
    %1437 = arith.select %1434, %1436, %1422 : vector<4x8xi1>, vector<4x8xf32>
    %1438 = vector.shape_cast %1432 : vector<4x1xi1> to vector<4x1xi1>
    %1439 = vector.broadcast %1438 : vector<4x1xi1> to vector<4x8xi1>
    %1440 = vector.shape_cast %1412 : vector<1x8xf32> to vector<1x8xf32>
    %1441 = vector.broadcast %1440 : vector<1x8xf32> to vector<4x8xf32>
    %1442 = arith.select %1439, %1441, %1430 : vector<4x8xi1>, vector<4x8xf32>
    %1443 = vector.extract_strided_slice %1437 {offsets = [1, 0], sizes = [1, 8], strides = [1, 1]} : vector<4x8xf32> to vector<1x8xf32>
    %1444 = vector.extract_strided_slice %1442 {offsets = [1, 0], sizes = [1, 8], strides = [1, 1]} : vector<4x8xf32> to vector<1x8xf32>
    %1445 = vector.extract_strided_slice %1443 {offsets = [0, 1], sizes = [1, 1], strides = [1, 1]} : vector<1x8xf32> to vector<1x1xf32>
    %1446 = vector.extract_strided_slice %1444 {offsets = [0, 1], sizes = [1, 1], strides = [1, 1]} : vector<1x8xf32> to vector<1x1xf32>
    %1447 = arith.mulf %1445, %1445 : vector<1x1xf32>
    %1448 = arith.mulf %1446, %1446 : vector<1x1xf32>
    %1449 = arith.addf %1447, %1448 : vector<1x1xf32>
    %1450 = arith.divf %1445, %1449 : vector<1x1xf32>
    %cst_407 = arith.constant 0.000000e+00 : f32
    %1451 = vector.broadcast %cst_407 : f32 to vector<1x1xf32>
    %1452 = arith.subf %1451, %1446 : vector<1x1xf32>
    %1453 = arith.divf %1452, %1449 : vector<1x1xf32>
    %1454 = vector.broadcast %1450 : vector<1x1xf32> to vector<1x8xf32>
    %1455 = arith.mulf %1443, %1454 : vector<1x8xf32>
    %1456 = vector.broadcast %1453 : vector<1x1xf32> to vector<1x8xf32>
    %1457 = arith.mulf %1444, %1456 : vector<1x8xf32>
    %1458 = arith.subf %1455, %1457 : vector<1x8xf32>
    %1459 = vector.broadcast %1453 : vector<1x1xf32> to vector<1x8xf32>
    %1460 = arith.mulf %1443, %1459 : vector<1x8xf32>
    %1461 = vector.broadcast %1450 : vector<1x1xf32> to vector<1x8xf32>
    %1462 = arith.mulf %1444, %1461 : vector<1x8xf32>
    %1463 = arith.addf %1460, %1462 : vector<1x8xf32>
    %1464 = vector.extract_strided_slice %1437 {offsets = [0, 1], sizes = [4, 1], strides = [1, 1]} : vector<4x8xf32> to vector<4x1xf32>
    %1465 = vector.extract_strided_slice %1442 {offsets = [0, 1], sizes = [4, 1], strides = [1, 1]} : vector<4x8xf32> to vector<4x1xf32>
    %1466 = vector.broadcast %1464 : vector<4x1xf32> to vector<4x8xf32>
    %1467 = vector.broadcast %1458 : vector<1x8xf32> to vector<4x8xf32>
    %1468 = arith.mulf %1466, %1467 : vector<4x8xf32>
    %1469 = vector.broadcast %1465 : vector<4x1xf32> to vector<4x8xf32>
    %1470 = vector.broadcast %1463 : vector<1x8xf32> to vector<4x8xf32>
    %1471 = arith.mulf %1469, %1470 : vector<4x8xf32>
    %1472 = arith.subf %1468, %1471 : vector<4x8xf32>
    %1473 = arith.subf %1437, %1472 : vector<4x8xf32>
    %1474 = vector.broadcast %1464 : vector<4x1xf32> to vector<4x8xf32>
    %1475 = vector.broadcast %1463 : vector<1x8xf32> to vector<4x8xf32>
    %1476 = arith.mulf %1474, %1475 : vector<4x8xf32>
    %1477 = vector.broadcast %1465 : vector<4x1xf32> to vector<4x8xf32>
    %1478 = vector.broadcast %1458 : vector<1x8xf32> to vector<4x8xf32>
    %1479 = arith.mulf %1477, %1478 : vector<4x8xf32>
    %1480 = arith.addf %1476, %1479 : vector<4x8xf32>
    %1481 = arith.subf %1442, %1480 : vector<4x8xf32>
    %c1_i32_408 = arith.constant 1 : i32
    %1482 = vector.broadcast %c1_i32_408 : i32 to vector<4x1xi32>
    %1483 = arith.cmpi eq, %1391, %1482 : vector<4x1xi32>
    %1484 = vector.shape_cast %1483 : vector<4x1xi1> to vector<4x1xi1>
    %1485 = vector.broadcast %1484 : vector<4x1xi1> to vector<4x8xi1>
    %1486 = vector.shape_cast %1458 : vector<1x8xf32> to vector<1x8xf32>
    %1487 = vector.broadcast %1486 : vector<1x8xf32> to vector<4x8xf32>
    %1488 = arith.select %1485, %1487, %1473 : vector<4x8xi1>, vector<4x8xf32>
    %1489 = vector.shape_cast %1483 : vector<4x1xi1> to vector<4x1xi1>
    %1490 = vector.broadcast %1489 : vector<4x1xi1> to vector<4x8xi1>
    %1491 = vector.shape_cast %1463 : vector<1x8xf32> to vector<1x8xf32>
    %1492 = vector.broadcast %1491 : vector<1x8xf32> to vector<4x8xf32>
    %1493 = arith.select %1490, %1492, %1481 : vector<4x8xi1>, vector<4x8xf32>
    %1494 = vector.extract_strided_slice %1488 {offsets = [2, 0], sizes = [1, 8], strides = [1, 1]} : vector<4x8xf32> to vector<1x8xf32>
    %1495 = vector.extract_strided_slice %1493 {offsets = [2, 0], sizes = [1, 8], strides = [1, 1]} : vector<4x8xf32> to vector<1x8xf32>
    %1496 = vector.extract_strided_slice %1494 {offsets = [0, 2], sizes = [1, 1], strides = [1, 1]} : vector<1x8xf32> to vector<1x1xf32>
    %1497 = vector.extract_strided_slice %1495 {offsets = [0, 2], sizes = [1, 1], strides = [1, 1]} : vector<1x8xf32> to vector<1x1xf32>
    %1498 = arith.mulf %1496, %1496 : vector<1x1xf32>
    %1499 = arith.mulf %1497, %1497 : vector<1x1xf32>
    %1500 = arith.addf %1498, %1499 : vector<1x1xf32>
    %1501 = arith.divf %1496, %1500 : vector<1x1xf32>
    %cst_409 = arith.constant 0.000000e+00 : f32
    %1502 = vector.broadcast %cst_409 : f32 to vector<1x1xf32>
    %1503 = arith.subf %1502, %1497 : vector<1x1xf32>
    %1504 = arith.divf %1503, %1500 : vector<1x1xf32>
    %1505 = vector.broadcast %1501 : vector<1x1xf32> to vector<1x8xf32>
    %1506 = arith.mulf %1494, %1505 : vector<1x8xf32>
    %1507 = vector.broadcast %1504 : vector<1x1xf32> to vector<1x8xf32>
    %1508 = arith.mulf %1495, %1507 : vector<1x8xf32>
    %1509 = arith.subf %1506, %1508 : vector<1x8xf32>
    %1510 = vector.broadcast %1504 : vector<1x1xf32> to vector<1x8xf32>
    %1511 = arith.mulf %1494, %1510 : vector<1x8xf32>
    %1512 = vector.broadcast %1501 : vector<1x1xf32> to vector<1x8xf32>
    %1513 = arith.mulf %1495, %1512 : vector<1x8xf32>
    %1514 = arith.addf %1511, %1513 : vector<1x8xf32>
    %1515 = vector.extract_strided_slice %1488 {offsets = [0, 2], sizes = [4, 1], strides = [1, 1]} : vector<4x8xf32> to vector<4x1xf32>
    %1516 = vector.extract_strided_slice %1493 {offsets = [0, 2], sizes = [4, 1], strides = [1, 1]} : vector<4x8xf32> to vector<4x1xf32>
    %1517 = vector.broadcast %1515 : vector<4x1xf32> to vector<4x8xf32>
    %1518 = vector.broadcast %1509 : vector<1x8xf32> to vector<4x8xf32>
    %1519 = arith.mulf %1517, %1518 : vector<4x8xf32>
    %1520 = vector.broadcast %1516 : vector<4x1xf32> to vector<4x8xf32>
    %1521 = vector.broadcast %1514 : vector<1x8xf32> to vector<4x8xf32>
    %1522 = arith.mulf %1520, %1521 : vector<4x8xf32>
    %1523 = arith.subf %1519, %1522 : vector<4x8xf32>
    %1524 = arith.subf %1488, %1523 : vector<4x8xf32>
    %1525 = vector.broadcast %1515 : vector<4x1xf32> to vector<4x8xf32>
    %1526 = vector.broadcast %1514 : vector<1x8xf32> to vector<4x8xf32>
    %1527 = arith.mulf %1525, %1526 : vector<4x8xf32>
    %1528 = vector.broadcast %1516 : vector<4x1xf32> to vector<4x8xf32>
    %1529 = vector.broadcast %1509 : vector<1x8xf32> to vector<4x8xf32>
    %1530 = arith.mulf %1528, %1529 : vector<4x8xf32>
    %1531 = arith.addf %1527, %1530 : vector<4x8xf32>
    %1532 = arith.subf %1493, %1531 : vector<4x8xf32>
    %c2_i32_410 = arith.constant 2 : i32
    %1533 = vector.broadcast %c2_i32_410 : i32 to vector<4x1xi32>
    %1534 = arith.cmpi eq, %1391, %1533 : vector<4x1xi32>
    %1535 = vector.shape_cast %1534 : vector<4x1xi1> to vector<4x1xi1>
    %1536 = vector.broadcast %1535 : vector<4x1xi1> to vector<4x8xi1>
    %1537 = vector.shape_cast %1509 : vector<1x8xf32> to vector<1x8xf32>
    %1538 = vector.broadcast %1537 : vector<1x8xf32> to vector<4x8xf32>
    %1539 = arith.select %1536, %1538, %1524 : vector<4x8xi1>, vector<4x8xf32>
    %1540 = vector.shape_cast %1534 : vector<4x1xi1> to vector<4x1xi1>
    %1541 = vector.broadcast %1540 : vector<4x1xi1> to vector<4x8xi1>
    %1542 = vector.shape_cast %1514 : vector<1x8xf32> to vector<1x8xf32>
    %1543 = vector.broadcast %1542 : vector<1x8xf32> to vector<4x8xf32>
    %1544 = arith.select %1541, %1543, %1532 : vector<4x8xi1>, vector<4x8xf32>
    %1545 = vector.extract_strided_slice %1539 {offsets = [3, 0], sizes = [1, 8], strides = [1, 1]} : vector<4x8xf32> to vector<1x8xf32>
    %1546 = vector.extract_strided_slice %1544 {offsets = [3, 0], sizes = [1, 8], strides = [1, 1]} : vector<4x8xf32> to vector<1x8xf32>
    %1547 = vector.extract_strided_slice %1545 {offsets = [0, 3], sizes = [1, 1], strides = [1, 1]} : vector<1x8xf32> to vector<1x1xf32>
    %1548 = vector.extract_strided_slice %1546 {offsets = [0, 3], sizes = [1, 1], strides = [1, 1]} : vector<1x8xf32> to vector<1x1xf32>
    %1549 = arith.mulf %1547, %1547 : vector<1x1xf32>
    %1550 = arith.mulf %1548, %1548 : vector<1x1xf32>
    %1551 = arith.addf %1549, %1550 : vector<1x1xf32>
    %1552 = arith.divf %1547, %1551 : vector<1x1xf32>
    %cst_411 = arith.constant 0.000000e+00 : f32
    %1553 = vector.broadcast %cst_411 : f32 to vector<1x1xf32>
    %1554 = arith.subf %1553, %1548 : vector<1x1xf32>
    %1555 = arith.divf %1554, %1551 : vector<1x1xf32>
    %1556 = vector.broadcast %1552 : vector<1x1xf32> to vector<1x8xf32>
    %1557 = arith.mulf %1545, %1556 : vector<1x8xf32>
    %1558 = vector.broadcast %1555 : vector<1x1xf32> to vector<1x8xf32>
    %1559 = arith.mulf %1546, %1558 : vector<1x8xf32>
    %1560 = arith.subf %1557, %1559 : vector<1x8xf32>
    %1561 = vector.broadcast %1555 : vector<1x1xf32> to vector<1x8xf32>
    %1562 = arith.mulf %1545, %1561 : vector<1x8xf32>
    %1563 = vector.broadcast %1552 : vector<1x1xf32> to vector<1x8xf32>
    %1564 = arith.mulf %1546, %1563 : vector<1x8xf32>
    %1565 = arith.addf %1562, %1564 : vector<1x8xf32>
    %1566 = vector.extract_strided_slice %1539 {offsets = [0, 3], sizes = [4, 1], strides = [1, 1]} : vector<4x8xf32> to vector<4x1xf32>
    %1567 = vector.extract_strided_slice %1544 {offsets = [0, 3], sizes = [4, 1], strides = [1, 1]} : vector<4x8xf32> to vector<4x1xf32>
    %1568 = vector.broadcast %1566 : vector<4x1xf32> to vector<4x8xf32>
    %1569 = vector.broadcast %1560 : vector<1x8xf32> to vector<4x8xf32>
    %1570 = arith.mulf %1568, %1569 : vector<4x8xf32>
    %1571 = vector.broadcast %1567 : vector<4x1xf32> to vector<4x8xf32>
    %1572 = vector.broadcast %1565 : vector<1x8xf32> to vector<4x8xf32>
    %1573 = arith.mulf %1571, %1572 : vector<4x8xf32>
    %1574 = arith.subf %1570, %1573 : vector<4x8xf32>
    %1575 = arith.subf %1539, %1574 : vector<4x8xf32>
    %1576 = vector.broadcast %1566 : vector<4x1xf32> to vector<4x8xf32>
    %1577 = vector.broadcast %1565 : vector<1x8xf32> to vector<4x8xf32>
    %1578 = arith.mulf %1576, %1577 : vector<4x8xf32>
    %1579 = vector.broadcast %1567 : vector<4x1xf32> to vector<4x8xf32>
    %1580 = vector.broadcast %1560 : vector<1x8xf32> to vector<4x8xf32>
    %1581 = arith.mulf %1579, %1580 : vector<4x8xf32>
    %1582 = arith.addf %1578, %1581 : vector<4x8xf32>
    %1583 = arith.subf %1544, %1582 : vector<4x8xf32>
    %c3_i32_412 = arith.constant 3 : i32
    %1584 = vector.broadcast %c3_i32_412 : i32 to vector<4x1xi32>
    %1585 = arith.cmpi eq, %1391, %1584 : vector<4x1xi32>
    %1586 = vector.shape_cast %1585 : vector<4x1xi1> to vector<4x1xi1>
    %1587 = vector.broadcast %1586 : vector<4x1xi1> to vector<4x8xi1>
    %1588 = vector.shape_cast %1560 : vector<1x8xf32> to vector<1x8xf32>
    %1589 = vector.broadcast %1588 : vector<1x8xf32> to vector<4x8xf32>
    %1590 = arith.select %1587, %1589, %1575 : vector<4x8xi1>, vector<4x8xf32>
    %1591 = vector.shape_cast %1585 : vector<4x1xi1> to vector<4x1xi1>
    %1592 = vector.broadcast %1591 : vector<4x1xi1> to vector<4x8xi1>
    %1593 = vector.shape_cast %1565 : vector<1x8xf32> to vector<1x8xf32>
    %1594 = vector.broadcast %1593 : vector<1x8xf32> to vector<4x8xf32>
    %1595 = arith.select %1592, %1594, %1583 : vector<4x8xi1>, vector<4x8xf32>
    %1596 = vector.extract_strided_slice %1590 {offsets = [0, 4], sizes = [4, 4], strides = [1, 1]} : vector<4x8xf32> to vector<4x4xf32>
    %1597 = vector.extract_strided_slice %1595 {offsets = [0, 4], sizes = [4, 4], strides = [1, 1]} : vector<4x8xf32> to vector<4x4xf32>
    %cst_413 = arith.constant 0.000000e+00 : f32
    %1598 = vector.broadcast %cst_413 : f32 to vector<4x4xf32>
    %1599 = arith.subf %1598, %1597 : vector<4x4xf32>
    %1600 = tpu.concatenate %1596, %1599 in 1 : vector<4x4xf32>, vector<4x4xf32> -> vector<4x8xf32>
    %1601 = tpu.concatenate %1597, %1596 in 1 : vector<4x4xf32>, vector<4x4xf32> -> vector<4x8xf32>
    %1602 = tpu.concatenate %1600, %1601 in 0 : vector<4x8xf32>, vector<4x8xf32> -> vector<8x8xf32>
    %1603 = vector.broadcast %1 : f32 to vector<16x4xf32>
    %1604 = arith.mulf %1603, %645 : vector<16x4xf32>
    %1605 = arith.addf %627, %1604 : vector<16x4xf32>
    %cst_414 = arith.constant dense<0.000000e+00> : vector<8x4xf32>
    %1606 = tpu.matmul %582, %1605, %cst_414 {dimension_numbers = #tpu.dot_dimension_numbers<[0], [0], [1], [1], [0, 1, 1, 1], [], []>} : vector<16x8xf32>, vector<16x4xf32>, vector<8x4xf32> -> vector<8x4xf32>
    %cst_415 = arith.constant dense<0.000000e+00> : vector<8x4xf32>
    %1607 = tpu.matmul %1602, %1606, %cst_415 {dimension_numbers = #tpu.dot_dimension_numbers<[1], [0], [0], [1], [0, 0, 1, 1], [], []>} : vector<8x8xf32>, vector<8x4xf32>, vector<8x4xf32> -> vector<8x4xf32>
    %1608 = arith.addf %1607, %663 : vector<8x4xf32>
    %1609 = vector.extract_strided_slice %1608 {offsets = [0, 0], sizes = [4, 2], strides = [1, 1]} : vector<8x4xf32> to vector<4x2xf32>
    %c0_416 = arith.constant 0 : index
    %c0_417 = arith.constant 0 : index
    %c0_418 = arith.constant 0 : index
    %c0_419 = arith.constant 0 : index
    %1610 = vector.load %arg15[%c0_416, %c0_417, %c0_418, %c0_419] : memref<2x2x4x2xf32, #tpu.memory_space<vmem>>, vector<1x1x4x2xf32>
    %1611 = vector.shape_cast %1610 : vector<1x1x4x2xf32> to vector<4x2xf32>
    %1612 = vector.shape_cast %1609 : vector<4x2xf32> to vector<1x1x4x2xf32>
    tpu.vector_store %arg15[%c0_416, %c0_417, %c0_418, %c0_419], %1612 {strides = array<i32>} : memref<2x2x4x2xf32, #tpu.memory_space<vmem>>, vector<1x1x4x2xf32>,
    %1613 = vector.extract_strided_slice %1608 {offsets = [4, 0], sizes = [4, 2], strides = [1, 1]} : vector<8x4xf32> to vector<4x2xf32>
    %c0_420 = arith.constant 0 : index
    %c1_421 = arith.constant 1 : index
    %c0_422 = arith.constant 0 : index
    %c0_423 = arith.constant 0 : index
    %1614 = vector.load %arg15[%c0_420, %c1_421, %c0_422, %c0_423] : memref<2x2x4x2xf32, #tpu.memory_space<vmem>>, vector<1x1x4x2xf32>
    %1615 = vector.shape_cast %1614 : vector<1x1x4x2xf32> to vector<4x2xf32>
    %1616 = vector.shape_cast %1613 : vector<4x2xf32> to vector<1x1x4x2xf32>
    tpu.vector_store %arg15[%c0_420, %c1_421, %c0_422, %c0_423], %1616 {strides = array<i32>} : memref<2x2x4x2xf32, #tpu.memory_space<vmem>>, vector<1x1x4x2xf32>,
    %1617 = vector.broadcast %1 : f32 to vector<16x4xf32>
    %1618 = arith.mulf %1617, %654 : vector<16x4xf32>
    %1619 = arith.addf %636, %1618 : vector<16x4xf32>
    %cst_424 = arith.constant dense<0.000000e+00> : vector<8x4xf32>
    %1620 = tpu.matmul %582, %1619, %cst_424 {dimension_numbers = #tpu.dot_dimension_numbers<[0], [0], [1], [1], [0, 1, 1, 1], [], []>} : vector<16x8xf32>, vector<16x4xf32>, vector<8x4xf32> -> vector<8x4xf32>
    %cst_425 = arith.constant dense<0.000000e+00> : vector<8x4xf32>
    %1621 = tpu.matmul %1602, %1620, %cst_425 {dimension_numbers = #tpu.dot_dimension_numbers<[1], [0], [0], [1], [0, 0, 1, 1], [], []>} : vector<8x8xf32>, vector<8x4xf32>, vector<8x4xf32> -> vector<8x4xf32>
    %1622 = arith.addf %1621, %672 : vector<8x4xf32>
    %1623 = vector.extract_strided_slice %1622 {offsets = [0, 0], sizes = [4, 2], strides = [1, 1]} : vector<8x4xf32> to vector<4x2xf32>
    %c1_426 = arith.constant 1 : index
    %c0_427 = arith.constant 0 : index
    %c0_428 = arith.constant 0 : index
    %c0_429 = arith.constant 0 : index
    %1624 = vector.load %arg15[%c1_426, %c0_427, %c0_428, %c0_429] : memref<2x2x4x2xf32, #tpu.memory_space<vmem>>, vector<1x1x4x2xf32>
    %1625 = vector.shape_cast %1624 : vector<1x1x4x2xf32> to vector<4x2xf32>
    %1626 = vector.shape_cast %1623 : vector<4x2xf32> to vector<1x1x4x2xf32>
    tpu.vector_store %arg15[%c1_426, %c0_427, %c0_428, %c0_429], %1626 {strides = array<i32>} : memref<2x2x4x2xf32, #tpu.memory_space<vmem>>, vector<1x1x4x2xf32>,
    %1627 = vector.extract_strided_slice %1622 {offsets = [4, 0], sizes = [4, 2], strides = [1, 1]} : vector<8x4xf32> to vector<4x2xf32>
    %c1_430 = arith.constant 1 : index
    %c1_431 = arith.constant 1 : index
    %c0_432 = arith.constant 0 : index
    %c0_433 = arith.constant 0 : index
    %1628 = vector.load %arg15[%c1_430, %c1_431, %c0_432, %c0_433] : memref<2x2x4x2xf32, #tpu.memory_space<vmem>>, vector<1x1x4x2xf32>
    %1629 = vector.shape_cast %1628 : vector<1x1x4x2xf32> to vector<4x2xf32>
    %1630 = vector.shape_cast %1627 : vector<4x2xf32> to vector<1x1x4x2xf32>
    tpu.vector_store %arg15[%c1_430, %c1_431, %c0_432, %c0_433], %1630 {strides = array<i32>} : memref<2x2x4x2xf32, #tpu.memory_space<vmem>>, vector<1x1x4x2xf32>,
    %cst_434 = arith.constant dense<0.000000e+00> : vector<16x8xf32>
    %1631 = tpu.matmul %591, %220, %cst_434 {dimension_numbers = #tpu.dot_dimension_numbers<[0], [0], [1], [1], [0, 1, 1, 1], [], []>} : vector<16x16xf32>, vector<16x8xf32>, vector<16x8xf32> -> vector<16x8xf32>
    %cst_435 = arith.constant dense<0.000000e+00> : vector<16x4xf32>
    %1632 = tpu.matmul %1631, %927, %cst_435 {dimension_numbers = #tpu.dot_dimension_numbers<[1], [0], [0], [1], [0, 0, 1, 1], [], []>} : vector<16x8xf32>, vector<8x4xf32>, vector<16x4xf32> -> vector<16x4xf32>
    %cst_436 = arith.constant dense<0.000000e+00> : vector<16x4xf32>
    %1633 = tpu.matmul %1632, %1030, %cst_436 {dimension_numbers = #tpu.dot_dimension_numbers<[1], [0], [0], [1], [0, 0, 1, 1], [], []>} : vector<16x4xf32>, vector<4x4xf32>, vector<16x4xf32> -> vector<16x4xf32>
    %cst_437 = arith.constant dense<0.000000e+00> : vector<16x16xf32>
    %1634 = tpu.matmul %1633, %1632, %cst_437 {dimension_numbers = #tpu.dot_dimension_numbers<[1], [1], [0], [0], [0, 0, 1, 0], [], []>} : vector<16x4xf32>, vector<16x4xf32>, vector<16x16xf32> -> vector<16x16xf32>
    %cst_438 = arith.constant dense<0.000000e+00> : vector<16x8xf32>
    %1635 = tpu.matmul %600, %401, %cst_438 {dimension_numbers = #tpu.dot_dimension_numbers<[0], [0], [1], [1], [0, 1, 1, 1], [], []>} : vector<16x16xf32>, vector<16x8xf32>, vector<16x8xf32> -> vector<16x8xf32>
    %cst_439 = arith.constant dense<0.000000e+00> : vector<16x4xf32>
    %1636 = tpu.matmul %1635, %1269, %cst_439 {dimension_numbers = #tpu.dot_dimension_numbers<[1], [0], [0], [1], [0, 0, 1, 1], [], []>} : vector<16x8xf32>, vector<8x4xf32>, vector<16x4xf32> -> vector<16x4xf32>
    %cst_440 = arith.constant dense<0.000000e+00> : vector<16x4xf32>
    %1637 = tpu.matmul %1636, %1372, %cst_440 {dimension_numbers = #tpu.dot_dimension_numbers<[1], [0], [0], [1], [0, 0, 1, 1], [], []>} : vector<16x4xf32>, vector<4x4xf32>, vector<16x4xf32> -> vector<16x4xf32>
    %cst_441 = arith.constant dense<0.000000e+00> : vector<16x16xf32>
    %1638 = tpu.matmul %1637, %1636, %cst_441 {dimension_numbers = #tpu.dot_dimension_numbers<[1], [1], [0], [0], [0, 0, 1, 0], [], []>} : vector<16x4xf32>, vector<16x4xf32>, vector<16x16xf32> -> vector<16x16xf32>
    %1639 = arith.addf %1634, %1638 : vector<16x16xf32>
    %cst_442 = arith.constant 5.000000e-01 : f32
    %1640 = arith.divf %cst_442, %2 : f32
    %1641 = arith.addf %1640, %3 : f32
    %1642 = vector.broadcast %1641 : f32 to vector<16x16xf32>
    %1643 = arith.mulf %1642, %690 : vector<16x16xf32>
    %1644 = arith.addf %1639, %1643 : vector<16x16xf32>
    %1645 = vector.extract_strided_slice %1644 {offsets = [0, 0], sizes = [8, 8], strides = [1, 1]} : vector<16x16xf32> to vector<8x8xf32>
    %1646 = vector.extract_strided_slice %1644 {offsets = [8, 0], sizes = [8, 8], strides = [1, 1]} : vector<16x16xf32> to vector<8x8xf32>
    %1647 = tpu.iota {dimensions = array<i32: 0>} : vector<8x8xi32>
    %1648 = tpu.iota {dimensions = array<i32: 1>} : vector<8x8xi32>
    %1649 = arith.cmpi eq, %1647, %1648 : vector<8x8xi32>
    %cst_443 = arith.constant 1.000000e+00 : f32
    %cst_444 = arith.constant 0.000000e+00 : f32
    %1650 = vector.broadcast %cst_443 : f32 to vector<8x8xf32>
    %1651 = vector.broadcast %cst_444 : f32 to vector<8x8xf32>
    %1652 = arith.select %1649, %1650, %1651 : vector<8x8xi1>, vector<8x8xf32>
    %1653 = tpu.concatenate %1645, %1652 in 1 : vector<8x8xf32>, vector<8x8xf32> -> vector<8x16xf32>
    %cst_445 = arith.constant 0.000000e+00 : f32
    %1654 = vector.broadcast %cst_445 : f32 to vector<8x8xf32>
    %1655 = tpu.concatenate %1646, %1654 in 1 : vector<8x8xf32>, vector<8x8xf32> -> vector<8x16xf32>
    %1656 = tpu.iota {dimensions = array<i32: 0>} : vector<8x1xi32>
    %1657 = vector.extract_strided_slice %1653 {offsets = [0, 0], sizes = [1, 16], strides = [1, 1]} : vector<8x16xf32> to vector<1x16xf32>
    %1658 = vector.extract_strided_slice %1655 {offsets = [0, 0], sizes = [1, 16], strides = [1, 1]} : vector<8x16xf32> to vector<1x16xf32>
    %1659 = vector.extract_strided_slice %1657 {offsets = [0, 0], sizes = [1, 1], strides = [1, 1]} : vector<1x16xf32> to vector<1x1xf32>
    %1660 = vector.extract_strided_slice %1658 {offsets = [0, 0], sizes = [1, 1], strides = [1, 1]} : vector<1x16xf32> to vector<1x1xf32>
    %1661 = arith.mulf %1659, %1659 : vector<1x1xf32>
    %1662 = arith.mulf %1660, %1660 : vector<1x1xf32>
    %1663 = arith.addf %1661, %1662 : vector<1x1xf32>
    %1664 = arith.divf %1659, %1663 : vector<1x1xf32>
    %cst_446 = arith.constant 0.000000e+00 : f32
    %1665 = vector.broadcast %cst_446 : f32 to vector<1x1xf32>
    %1666 = arith.subf %1665, %1660 : vector<1x1xf32>
    %1667 = arith.divf %1666, %1663 : vector<1x1xf32>
    %1668 = vector.broadcast %1664 : vector<1x1xf32> to vector<1x16xf32>
    %1669 = arith.mulf %1657, %1668 : vector<1x16xf32>
    %1670 = vector.broadcast %1667 : vector<1x1xf32> to vector<1x16xf32>
    %1671 = arith.mulf %1658, %1670 : vector<1x16xf32>
    %1672 = arith.subf %1669, %1671 : vector<1x16xf32>
    %1673 = vector.broadcast %1667 : vector<1x1xf32> to vector<1x16xf32>
    %1674 = arith.mulf %1657, %1673 : vector<1x16xf32>
    %1675 = vector.broadcast %1664 : vector<1x1xf32> to vector<1x16xf32>
    %1676 = arith.mulf %1658, %1675 : vector<1x16xf32>
    %1677 = arith.addf %1674, %1676 : vector<1x16xf32>
    %1678 = vector.extract_strided_slice %1653 {offsets = [0, 0], sizes = [8, 1], strides = [1, 1]} : vector<8x16xf32> to vector<8x1xf32>
    %1679 = vector.extract_strided_slice %1655 {offsets = [0, 0], sizes = [8, 1], strides = [1, 1]} : vector<8x16xf32> to vector<8x1xf32>
    %1680 = vector.broadcast %1678 : vector<8x1xf32> to vector<8x16xf32>
    %1681 = vector.broadcast %1672 : vector<1x16xf32> to vector<8x16xf32>
    %1682 = arith.mulf %1680, %1681 : vector<8x16xf32>
    %1683 = vector.broadcast %1679 : vector<8x1xf32> to vector<8x16xf32>
    %1684 = vector.broadcast %1677 : vector<1x16xf32> to vector<8x16xf32>
    %1685 = arith.mulf %1683, %1684 : vector<8x16xf32>
    %1686 = arith.subf %1682, %1685 : vector<8x16xf32>
    %1687 = arith.subf %1653, %1686 : vector<8x16xf32>
    %1688 = vector.broadcast %1678 : vector<8x1xf32> to vector<8x16xf32>
    %1689 = vector.broadcast %1677 : vector<1x16xf32> to vector<8x16xf32>
    %1690 = arith.mulf %1688, %1689 : vector<8x16xf32>
    %1691 = vector.broadcast %1679 : vector<8x1xf32> to vector<8x16xf32>
    %1692 = vector.broadcast %1672 : vector<1x16xf32> to vector<8x16xf32>
    %1693 = arith.mulf %1691, %1692 : vector<8x16xf32>
    %1694 = arith.addf %1690, %1693 : vector<8x16xf32>
    %1695 = arith.subf %1655, %1694 : vector<8x16xf32>
    %c0_i32_447 = arith.constant 0 : i32
    %1696 = vector.broadcast %c0_i32_447 : i32 to vector<8x1xi32>
    %1697 = arith.cmpi eq, %1656, %1696 : vector<8x1xi32>
    %1698 = vector.shape_cast %1697 : vector<8x1xi1> to vector<8x1xi1>
    %1699 = vector.broadcast %1698 : vector<8x1xi1> to vector<8x16xi1>
    %1700 = vector.shape_cast %1672 : vector<1x16xf32> to vector<1x16xf32>
    %1701 = vector.broadcast %1700 : vector<1x16xf32> to vector<8x16xf32>
    %1702 = arith.select %1699, %1701, %1687 : vector<8x16xi1>, vector<8x16xf32>
    %1703 = vector.shape_cast %1697 : vector<8x1xi1> to vector<8x1xi1>
    %1704 = vector.broadcast %1703 : vector<8x1xi1> to vector<8x16xi1>
    %1705 = vector.shape_cast %1677 : vector<1x16xf32> to vector<1x16xf32>
    %1706 = vector.broadcast %1705 : vector<1x16xf32> to vector<8x16xf32>
    %1707 = arith.select %1704, %1706, %1695 : vector<8x16xi1>, vector<8x16xf32>
    %1708 = vector.extract_strided_slice %1702 {offsets = [1, 0], sizes = [1, 16], strides = [1, 1]} : vector<8x16xf32> to vector<1x16xf32>
    %1709 = vector.extract_strided_slice %1707 {offsets = [1, 0], sizes = [1, 16], strides = [1, 1]} : vector<8x16xf32> to vector<1x16xf32>
    %1710 = vector.extract_strided_slice %1708 {offsets = [0, 1], sizes = [1, 1], strides = [1, 1]} : vector<1x16xf32> to vector<1x1xf32>
    %1711 = vector.extract_strided_slice %1709 {offsets = [0, 1], sizes = [1, 1], strides = [1, 1]} : vector<1x16xf32> to vector<1x1xf32>
    %1712 = arith.mulf %1710, %1710 : vector<1x1xf32>
    %1713 = arith.mulf %1711, %1711 : vector<1x1xf32>
    %1714 = arith.addf %1712, %1713 : vector<1x1xf32>
    %1715 = arith.divf %1710, %1714 : vector<1x1xf32>
    %cst_448 = arith.constant 0.000000e+00 : f32
    %1716 = vector.broadcast %cst_448 : f32 to vector<1x1xf32>
    %1717 = arith.subf %1716, %1711 : vector<1x1xf32>
    %1718 = arith.divf %1717, %1714 : vector<1x1xf32>
    %1719 = vector.broadcast %1715 : vector<1x1xf32> to vector<1x16xf32>
    %1720 = arith.mulf %1708, %1719 : vector<1x16xf32>
    %1721 = vector.broadcast %1718 : vector<1x1xf32> to vector<1x16xf32>
    %1722 = arith.mulf %1709, %1721 : vector<1x16xf32>
    %1723 = arith.subf %1720, %1722 : vector<1x16xf32>
    %1724 = vector.broadcast %1718 : vector<1x1xf32> to vector<1x16xf32>
    %1725 = arith.mulf %1708, %1724 : vector<1x16xf32>
    %1726 = vector.broadcast %1715 : vector<1x1xf32> to vector<1x16xf32>
    %1727 = arith.mulf %1709, %1726 : vector<1x16xf32>
    %1728 = arith.addf %1725, %1727 : vector<1x16xf32>
    %1729 = vector.extract_strided_slice %1702 {offsets = [0, 1], sizes = [8, 1], strides = [1, 1]} : vector<8x16xf32> to vector<8x1xf32>
    %1730 = vector.extract_strided_slice %1707 {offsets = [0, 1], sizes = [8, 1], strides = [1, 1]} : vector<8x16xf32> to vector<8x1xf32>
    %1731 = vector.broadcast %1729 : vector<8x1xf32> to vector<8x16xf32>
    %1732 = vector.broadcast %1723 : vector<1x16xf32> to vector<8x16xf32>
    %1733 = arith.mulf %1731, %1732 : vector<8x16xf32>
    %1734 = vector.broadcast %1730 : vector<8x1xf32> to vector<8x16xf32>
    %1735 = vector.broadcast %1728 : vector<1x16xf32> to vector<8x16xf32>
    %1736 = arith.mulf %1734, %1735 : vector<8x16xf32>
    %1737 = arith.subf %1733, %1736 : vector<8x16xf32>
    %1738 = arith.subf %1702, %1737 : vector<8x16xf32>
    %1739 = vector.broadcast %1729 : vector<8x1xf32> to vector<8x16xf32>
    %1740 = vector.broadcast %1728 : vector<1x16xf32> to vector<8x16xf32>
    %1741 = arith.mulf %1739, %1740 : vector<8x16xf32>
    %1742 = vector.broadcast %1730 : vector<8x1xf32> to vector<8x16xf32>
    %1743 = vector.broadcast %1723 : vector<1x16xf32> to vector<8x16xf32>
    %1744 = arith.mulf %1742, %1743 : vector<8x16xf32>
    %1745 = arith.addf %1741, %1744 : vector<8x16xf32>
    %1746 = arith.subf %1707, %1745 : vector<8x16xf32>
    %c1_i32_449 = arith.constant 1 : i32
    %1747 = vector.broadcast %c1_i32_449 : i32 to vector<8x1xi32>
    %1748 = arith.cmpi eq, %1656, %1747 : vector<8x1xi32>
    %1749 = vector.shape_cast %1748 : vector<8x1xi1> to vector<8x1xi1>
    %1750 = vector.broadcast %1749 : vector<8x1xi1> to vector<8x16xi1>
    %1751 = vector.shape_cast %1723 : vector<1x16xf32> to vector<1x16xf32>
    %1752 = vector.broadcast %1751 : vector<1x16xf32> to vector<8x16xf32>
    %1753 = arith.select %1750, %1752, %1738 : vector<8x16xi1>, vector<8x16xf32>
    %1754 = vector.shape_cast %1748 : vector<8x1xi1> to vector<8x1xi1>
    %1755 = vector.broadcast %1754 : vector<8x1xi1> to vector<8x16xi1>
    %1756 = vector.shape_cast %1728 : vector<1x16xf32> to vector<1x16xf32>
    %1757 = vector.broadcast %1756 : vector<1x16xf32> to vector<8x16xf32>
    %1758 = arith.select %1755, %1757, %1746 : vector<8x16xi1>, vector<8x16xf32>
    %1759 = vector.extract_strided_slice %1753 {offsets = [2, 0], sizes = [1, 16], strides = [1, 1]} : vector<8x16xf32> to vector<1x16xf32>
    %1760 = vector.extract_strided_slice %1758 {offsets = [2, 0], sizes = [1, 16], strides = [1, 1]} : vector<8x16xf32> to vector<1x16xf32>
    %1761 = vector.extract_strided_slice %1759 {offsets = [0, 2], sizes = [1, 1], strides = [1, 1]} : vector<1x16xf32> to vector<1x1xf32>
    %1762 = vector.extract_strided_slice %1760 {offsets = [0, 2], sizes = [1, 1], strides = [1, 1]} : vector<1x16xf32> to vector<1x1xf32>
    %1763 = arith.mulf %1761, %1761 : vector<1x1xf32>
    %1764 = arith.mulf %1762, %1762 : vector<1x1xf32>
    %1765 = arith.addf %1763, %1764 : vector<1x1xf32>
    %1766 = arith.divf %1761, %1765 : vector<1x1xf32>
    %cst_450 = arith.constant 0.000000e+00 : f32
    %1767 = vector.broadcast %cst_450 : f32 to vector<1x1xf32>
    %1768 = arith.subf %1767, %1762 : vector<1x1xf32>
    %1769 = arith.divf %1768, %1765 : vector<1x1xf32>
    %1770 = vector.broadcast %1766 : vector<1x1xf32> to vector<1x16xf32>
    %1771 = arith.mulf %1759, %1770 : vector<1x16xf32>
    %1772 = vector.broadcast %1769 : vector<1x1xf32> to vector<1x16xf32>
    %1773 = arith.mulf %1760, %1772 : vector<1x16xf32>
    %1774 = arith.subf %1771, %1773 : vector<1x16xf32>
    %1775 = vector.broadcast %1769 : vector<1x1xf32> to vector<1x16xf32>
    %1776 = arith.mulf %1759, %1775 : vector<1x16xf32>
    %1777 = vector.broadcast %1766 : vector<1x1xf32> to vector<1x16xf32>
    %1778 = arith.mulf %1760, %1777 : vector<1x16xf32>
    %1779 = arith.addf %1776, %1778 : vector<1x16xf32>
    %1780 = vector.extract_strided_slice %1753 {offsets = [0, 2], sizes = [8, 1], strides = [1, 1]} : vector<8x16xf32> to vector<8x1xf32>
    %1781 = vector.extract_strided_slice %1758 {offsets = [0, 2], sizes = [8, 1], strides = [1, 1]} : vector<8x16xf32> to vector<8x1xf32>
    %1782 = vector.broadcast %1780 : vector<8x1xf32> to vector<8x16xf32>
    %1783 = vector.broadcast %1774 : vector<1x16xf32> to vector<8x16xf32>
    %1784 = arith.mulf %1782, %1783 : vector<8x16xf32>
    %1785 = vector.broadcast %1781 : vector<8x1xf32> to vector<8x16xf32>
    %1786 = vector.broadcast %1779 : vector<1x16xf32> to vector<8x16xf32>
    %1787 = arith.mulf %1785, %1786 : vector<8x16xf32>
    %1788 = arith.subf %1784, %1787 : vector<8x16xf32>
    %1789 = arith.subf %1753, %1788 : vector<8x16xf32>
    %1790 = vector.broadcast %1780 : vector<8x1xf32> to vector<8x16xf32>
    %1791 = vector.broadcast %1779 : vector<1x16xf32> to vector<8x16xf32>
    %1792 = arith.mulf %1790, %1791 : vector<8x16xf32>
    %1793 = vector.broadcast %1781 : vector<8x1xf32> to vector<8x16xf32>
    %1794 = vector.broadcast %1774 : vector<1x16xf32> to vector<8x16xf32>
    %1795 = arith.mulf %1793, %1794 : vector<8x16xf32>
    %1796 = arith.addf %1792, %1795 : vector<8x16xf32>
    %1797 = arith.subf %1758, %1796 : vector<8x16xf32>
    %c2_i32_451 = arith.constant 2 : i32
    %1798 = vector.broadcast %c2_i32_451 : i32 to vector<8x1xi32>
    %1799 = arith.cmpi eq, %1656, %1798 : vector<8x1xi32>
    %1800 = vector.shape_cast %1799 : vector<8x1xi1> to vector<8x1xi1>
    %1801 = vector.broadcast %1800 : vector<8x1xi1> to vector<8x16xi1>
    %1802 = vector.shape_cast %1774 : vector<1x16xf32> to vector<1x16xf32>
    %1803 = vector.broadcast %1802 : vector<1x16xf32> to vector<8x16xf32>
    %1804 = arith.select %1801, %1803, %1789 : vector<8x16xi1>, vector<8x16xf32>
    %1805 = vector.shape_cast %1799 : vector<8x1xi1> to vector<8x1xi1>
    %1806 = vector.broadcast %1805 : vector<8x1xi1> to vector<8x16xi1>
    %1807 = vector.shape_cast %1779 : vector<1x16xf32> to vector<1x16xf32>
    %1808 = vector.broadcast %1807 : vector<1x16xf32> to vector<8x16xf32>
    %1809 = arith.select %1806, %1808, %1797 : vector<8x16xi1>, vector<8x16xf32>
    %1810 = vector.extract_strided_slice %1804 {offsets = [3, 0], sizes = [1, 16], strides = [1, 1]} : vector<8x16xf32> to vector<1x16xf32>
    %1811 = vector.extract_strided_slice %1809 {offsets = [3, 0], sizes = [1, 16], strides = [1, 1]} : vector<8x16xf32> to vector<1x16xf32>
    %1812 = vector.extract_strided_slice %1810 {offsets = [0, 3], sizes = [1, 1], strides = [1, 1]} : vector<1x16xf32> to vector<1x1xf32>
    %1813 = vector.extract_strided_slice %1811 {offsets = [0, 3], sizes = [1, 1], strides = [1, 1]} : vector<1x16xf32> to vector<1x1xf32>
    %1814 = arith.mulf %1812, %1812 : vector<1x1xf32>
    %1815 = arith.mulf %1813, %1813 : vector<1x1xf32>
    %1816 = arith.addf %1814, %1815 : vector<1x1xf32>
    %1817 = arith.divf %1812, %1816 : vector<1x1xf32>
    %cst_452 = arith.constant 0.000000e+00 : f32
    %1818 = vector.broadcast %cst_452 : f32 to vector<1x1xf32>
    %1819 = arith.subf %1818, %1813 : vector<1x1xf32>
    %1820 = arith.divf %1819, %1816 : vector<1x1xf32>
    %1821 = vector.broadcast %1817 : vector<1x1xf32> to vector<1x16xf32>
    %1822 = arith.mulf %1810, %1821 : vector<1x16xf32>
    %1823 = vector.broadcast %1820 : vector<1x1xf32> to vector<1x16xf32>
    %1824 = arith.mulf %1811, %1823 : vector<1x16xf32>
    %1825 = arith.subf %1822, %1824 : vector<1x16xf32>
    %1826 = vector.broadcast %1820 : vector<1x1xf32> to vector<1x16xf32>
    %1827 = arith.mulf %1810, %1826 : vector<1x16xf32>
    %1828 = vector.broadcast %1817 : vector<1x1xf32> to vector<1x16xf32>
    %1829 = arith.mulf %1811, %1828 : vector<1x16xf32>
    %1830 = arith.addf %1827, %1829 : vector<1x16xf32>
    %1831 = vector.extract_strided_slice %1804 {offsets = [0, 3], sizes = [8, 1], strides = [1, 1]} : vector<8x16xf32> to vector<8x1xf32>
    %1832 = vector.extract_strided_slice %1809 {offsets = [0, 3], sizes = [8, 1], strides = [1, 1]} : vector<8x16xf32> to vector<8x1xf32>
    %1833 = vector.broadcast %1831 : vector<8x1xf32> to vector<8x16xf32>
    %1834 = vector.broadcast %1825 : vector<1x16xf32> to vector<8x16xf32>
    %1835 = arith.mulf %1833, %1834 : vector<8x16xf32>
    %1836 = vector.broadcast %1832 : vector<8x1xf32> to vector<8x16xf32>
    %1837 = vector.broadcast %1830 : vector<1x16xf32> to vector<8x16xf32>
    %1838 = arith.mulf %1836, %1837 : vector<8x16xf32>
    %1839 = arith.subf %1835, %1838 : vector<8x16xf32>
    %1840 = arith.subf %1804, %1839 : vector<8x16xf32>
    %1841 = vector.broadcast %1831 : vector<8x1xf32> to vector<8x16xf32>
    %1842 = vector.broadcast %1830 : vector<1x16xf32> to vector<8x16xf32>
    %1843 = arith.mulf %1841, %1842 : vector<8x16xf32>
    %1844 = vector.broadcast %1832 : vector<8x1xf32> to vector<8x16xf32>
    %1845 = vector.broadcast %1825 : vector<1x16xf32> to vector<8x16xf32>
    %1846 = arith.mulf %1844, %1845 : vector<8x16xf32>
    %1847 = arith.addf %1843, %1846 : vector<8x16xf32>
    %1848 = arith.subf %1809, %1847 : vector<8x16xf32>
    %c3_i32_453 = arith.constant 3 : i32
    %1849 = vector.broadcast %c3_i32_453 : i32 to vector<8x1xi32>
    %1850 = arith.cmpi eq, %1656, %1849 : vector<8x1xi32>
    %1851 = vector.shape_cast %1850 : vector<8x1xi1> to vector<8x1xi1>
    %1852 = vector.broadcast %1851 : vector<8x1xi1> to vector<8x16xi1>
    %1853 = vector.shape_cast %1825 : vector<1x16xf32> to vector<1x16xf32>
    %1854 = vector.broadcast %1853 : vector<1x16xf32> to vector<8x16xf32>
    %1855 = arith.select %1852, %1854, %1840 : vector<8x16xi1>, vector<8x16xf32>
    %1856 = vector.shape_cast %1850 : vector<8x1xi1> to vector<8x1xi1>
    %1857 = vector.broadcast %1856 : vector<8x1xi1> to vector<8x16xi1>
    %1858 = vector.shape_cast %1830 : vector<1x16xf32> to vector<1x16xf32>
    %1859 = vector.broadcast %1858 : vector<1x16xf32> to vector<8x16xf32>
    %1860 = arith.select %1857, %1859, %1848 : vector<8x16xi1>, vector<8x16xf32>
    %1861 = vector.extract_strided_slice %1855 {offsets = [4, 0], sizes = [1, 16], strides = [1, 1]} : vector<8x16xf32> to vector<1x16xf32>
    %1862 = vector.extract_strided_slice %1860 {offsets = [4, 0], sizes = [1, 16], strides = [1, 1]} : vector<8x16xf32> to vector<1x16xf32>
    %1863 = vector.extract_strided_slice %1861 {offsets = [0, 4], sizes = [1, 1], strides = [1, 1]} : vector<1x16xf32> to vector<1x1xf32>
    %1864 = vector.extract_strided_slice %1862 {offsets = [0, 4], sizes = [1, 1], strides = [1, 1]} : vector<1x16xf32> to vector<1x1xf32>
    %1865 = arith.mulf %1863, %1863 : vector<1x1xf32>
    %1866 = arith.mulf %1864, %1864 : vector<1x1xf32>
    %1867 = arith.addf %1865, %1866 : vector<1x1xf32>
    %1868 = arith.divf %1863, %1867 : vector<1x1xf32>
    %cst_454 = arith.constant 0.000000e+00 : f32
    %1869 = vector.broadcast %cst_454 : f32 to vector<1x1xf32>
    %1870 = arith.subf %1869, %1864 : vector<1x1xf32>
    %1871 = arith.divf %1870, %1867 : vector<1x1xf32>
    %1872 = vector.broadcast %1868 : vector<1x1xf32> to vector<1x16xf32>
    %1873 = arith.mulf %1861, %1872 : vector<1x16xf32>
    %1874 = vector.broadcast %1871 : vector<1x1xf32> to vector<1x16xf32>
    %1875 = arith.mulf %1862, %1874 : vector<1x16xf32>
    %1876 = arith.subf %1873, %1875 : vector<1x16xf32>
    %1877 = vector.broadcast %1871 : vector<1x1xf32> to vector<1x16xf32>
    %1878 = arith.mulf %1861, %1877 : vector<1x16xf32>
    %1879 = vector.broadcast %1868 : vector<1x1xf32> to vector<1x16xf32>
    %1880 = arith.mulf %1862, %1879 : vector<1x16xf32>
    %1881 = arith.addf %1878, %1880 : vector<1x16xf32>
    %1882 = vector.extract_strided_slice %1855 {offsets = [0, 4], sizes = [8, 1], strides = [1, 1]} : vector<8x16xf32> to vector<8x1xf32>
    %1883 = vector.extract_strided_slice %1860 {offsets = [0, 4], sizes = [8, 1], strides = [1, 1]} : vector<8x16xf32> to vector<8x1xf32>
    %1884 = vector.broadcast %1882 : vector<8x1xf32> to vector<8x16xf32>
    %1885 = vector.broadcast %1876 : vector<1x16xf32> to vector<8x16xf32>
    %1886 = arith.mulf %1884, %1885 : vector<8x16xf32>
    %1887 = vector.broadcast %1883 : vector<8x1xf32> to vector<8x16xf32>
    %1888 = vector.broadcast %1881 : vector<1x16xf32> to vector<8x16xf32>
    %1889 = arith.mulf %1887, %1888 : vector<8x16xf32>
    %1890 = arith.subf %1886, %1889 : vector<8x16xf32>
    %1891 = arith.subf %1855, %1890 : vector<8x16xf32>
    %1892 = vector.broadcast %1882 : vector<8x1xf32> to vector<8x16xf32>
    %1893 = vector.broadcast %1881 : vector<1x16xf32> to vector<8x16xf32>
    %1894 = arith.mulf %1892, %1893 : vector<8x16xf32>
    %1895 = vector.broadcast %1883 : vector<8x1xf32> to vector<8x16xf32>
    %1896 = vector.broadcast %1876 : vector<1x16xf32> to vector<8x16xf32>
    %1897 = arith.mulf %1895, %1896 : vector<8x16xf32>
    %1898 = arith.addf %1894, %1897 : vector<8x16xf32>
    %1899 = arith.subf %1860, %1898 : vector<8x16xf32>
    %c4_i32_455 = arith.constant 4 : i32
    %1900 = vector.broadcast %c4_i32_455 : i32 to vector<8x1xi32>
    %1901 = arith.cmpi eq, %1656, %1900 : vector<8x1xi32>
    %1902 = vector.shape_cast %1901 : vector<8x1xi1> to vector<8x1xi1>
    %1903 = vector.broadcast %1902 : vector<8x1xi1> to vector<8x16xi1>
    %1904 = vector.shape_cast %1876 : vector<1x16xf32> to vector<1x16xf32>
    %1905 = vector.broadcast %1904 : vector<1x16xf32> to vector<8x16xf32>
    %1906 = arith.select %1903, %1905, %1891 : vector<8x16xi1>, vector<8x16xf32>
    %1907 = vector.shape_cast %1901 : vector<8x1xi1> to vector<8x1xi1>
    %1908 = vector.broadcast %1907 : vector<8x1xi1> to vector<8x16xi1>
    %1909 = vector.shape_cast %1881 : vector<1x16xf32> to vector<1x16xf32>
    %1910 = vector.broadcast %1909 : vector<1x16xf32> to vector<8x16xf32>
    %1911 = arith.select %1908, %1910, %1899 : vector<8x16xi1>, vector<8x16xf32>
    %1912 = vector.extract_strided_slice %1906 {offsets = [5, 0], sizes = [1, 16], strides = [1, 1]} : vector<8x16xf32> to vector<1x16xf32>
    %1913 = vector.extract_strided_slice %1911 {offsets = [5, 0], sizes = [1, 16], strides = [1, 1]} : vector<8x16xf32> to vector<1x16xf32>
    %1914 = vector.extract_strided_slice %1912 {offsets = [0, 5], sizes = [1, 1], strides = [1, 1]} : vector<1x16xf32> to vector<1x1xf32>
    %1915 = vector.extract_strided_slice %1913 {offsets = [0, 5], sizes = [1, 1], strides = [1, 1]} : vector<1x16xf32> to vector<1x1xf32>
    %1916 = arith.mulf %1914, %1914 : vector<1x1xf32>
    %1917 = arith.mulf %1915, %1915 : vector<1x1xf32>
    %1918 = arith.addf %1916, %1917 : vector<1x1xf32>
    %1919 = arith.divf %1914, %1918 : vector<1x1xf32>
    %cst_456 = arith.constant 0.000000e+00 : f32
    %1920 = vector.broadcast %cst_456 : f32 to vector<1x1xf32>
    %1921 = arith.subf %1920, %1915 : vector<1x1xf32>
    %1922 = arith.divf %1921, %1918 : vector<1x1xf32>
    %1923 = vector.broadcast %1919 : vector<1x1xf32> to vector<1x16xf32>
    %1924 = arith.mulf %1912, %1923 : vector<1x16xf32>
    %1925 = vector.broadcast %1922 : vector<1x1xf32> to vector<1x16xf32>
    %1926 = arith.mulf %1913, %1925 : vector<1x16xf32>
    %1927 = arith.subf %1924, %1926 : vector<1x16xf32>
    %1928 = vector.broadcast %1922 : vector<1x1xf32> to vector<1x16xf32>
    %1929 = arith.mulf %1912, %1928 : vector<1x16xf32>
    %1930 = vector.broadcast %1919 : vector<1x1xf32> to vector<1x16xf32>
    %1931 = arith.mulf %1913, %1930 : vector<1x16xf32>
    %1932 = arith.addf %1929, %1931 : vector<1x16xf32>
    %1933 = vector.extract_strided_slice %1906 {offsets = [0, 5], sizes = [8, 1], strides = [1, 1]} : vector<8x16xf32> to vector<8x1xf32>
    %1934 = vector.extract_strided_slice %1911 {offsets = [0, 5], sizes = [8, 1], strides = [1, 1]} : vector<8x16xf32> to vector<8x1xf32>
    %1935 = vector.broadcast %1933 : vector<8x1xf32> to vector<8x16xf32>
    %1936 = vector.broadcast %1927 : vector<1x16xf32> to vector<8x16xf32>
    %1937 = arith.mulf %1935, %1936 : vector<8x16xf32>
    %1938 = vector.broadcast %1934 : vector<8x1xf32> to vector<8x16xf32>
    %1939 = vector.broadcast %1932 : vector<1x16xf32> to vector<8x16xf32>
    %1940 = arith.mulf %1938, %1939 : vector<8x16xf32>
    %1941 = arith.subf %1937, %1940 : vector<8x16xf32>
    %1942 = arith.subf %1906, %1941 : vector<8x16xf32>
    %1943 = vector.broadcast %1933 : vector<8x1xf32> to vector<8x16xf32>
    %1944 = vector.broadcast %1932 : vector<1x16xf32> to vector<8x16xf32>
    %1945 = arith.mulf %1943, %1944 : vector<8x16xf32>
    %1946 = vector.broadcast %1934 : vector<8x1xf32> to vector<8x16xf32>
    %1947 = vector.broadcast %1927 : vector<1x16xf32> to vector<8x16xf32>
    %1948 = arith.mulf %1946, %1947 : vector<8x16xf32>
    %1949 = arith.addf %1945, %1948 : vector<8x16xf32>
    %1950 = arith.subf %1911, %1949 : vector<8x16xf32>
    %c5_i32_457 = arith.constant 5 : i32
    %1951 = vector.broadcast %c5_i32_457 : i32 to vector<8x1xi32>
    %1952 = arith.cmpi eq, %1656, %1951 : vector<8x1xi32>
    %1953 = vector.shape_cast %1952 : vector<8x1xi1> to vector<8x1xi1>
    %1954 = vector.broadcast %1953 : vector<8x1xi1> to vector<8x16xi1>
    %1955 = vector.shape_cast %1927 : vector<1x16xf32> to vector<1x16xf32>
    %1956 = vector.broadcast %1955 : vector<1x16xf32> to vector<8x16xf32>
    %1957 = arith.select %1954, %1956, %1942 : vector<8x16xi1>, vector<8x16xf32>
    %1958 = vector.shape_cast %1952 : vector<8x1xi1> to vector<8x1xi1>
    %1959 = vector.broadcast %1958 : vector<8x1xi1> to vector<8x16xi1>
    %1960 = vector.shape_cast %1932 : vector<1x16xf32> to vector<1x16xf32>
    %1961 = vector.broadcast %1960 : vector<1x16xf32> to vector<8x16xf32>
    %1962 = arith.select %1959, %1961, %1950 : vector<8x16xi1>, vector<8x16xf32>
    %1963 = vector.extract_strided_slice %1957 {offsets = [6, 0], sizes = [1, 16], strides = [1, 1]} : vector<8x16xf32> to vector<1x16xf32>
    %1964 = vector.extract_strided_slice %1962 {offsets = [6, 0], sizes = [1, 16], strides = [1, 1]} : vector<8x16xf32> to vector<1x16xf32>
    %1965 = vector.extract_strided_slice %1963 {offsets = [0, 6], sizes = [1, 1], strides = [1, 1]} : vector<1x16xf32> to vector<1x1xf32>
    %1966 = vector.extract_strided_slice %1964 {offsets = [0, 6], sizes = [1, 1], strides = [1, 1]} : vector<1x16xf32> to vector<1x1xf32>
    %1967 = arith.mulf %1965, %1965 : vector<1x1xf32>
    %1968 = arith.mulf %1966, %1966 : vector<1x1xf32>
    %1969 = arith.addf %1967, %1968 : vector<1x1xf32>
    %1970 = arith.divf %1965, %1969 : vector<1x1xf32>
    %cst_458 = arith.constant 0.000000e+00 : f32
    %1971 = vector.broadcast %cst_458 : f32 to vector<1x1xf32>
    %1972 = arith.subf %1971, %1966 : vector<1x1xf32>
    %1973 = arith.divf %1972, %1969 : vector<1x1xf32>
    %1974 = vector.broadcast %1970 : vector<1x1xf32> to vector<1x16xf32>
    %1975 = arith.mulf %1963, %1974 : vector<1x16xf32>
    %1976 = vector.broadcast %1973 : vector<1x1xf32> to vector<1x16xf32>
    %1977 = arith.mulf %1964, %1976 : vector<1x16xf32>
    %1978 = arith.subf %1975, %1977 : vector<1x16xf32>
    %1979 = vector.broadcast %1973 : vector<1x1xf32> to vector<1x16xf32>
    %1980 = arith.mulf %1963, %1979 : vector<1x16xf32>
    %1981 = vector.broadcast %1970 : vector<1x1xf32> to vector<1x16xf32>
    %1982 = arith.mulf %1964, %1981 : vector<1x16xf32>
    %1983 = arith.addf %1980, %1982 : vector<1x16xf32>
    %1984 = vector.extract_strided_slice %1957 {offsets = [0, 6], sizes = [8, 1], strides = [1, 1]} : vector<8x16xf32> to vector<8x1xf32>
    %1985 = vector.extract_strided_slice %1962 {offsets = [0, 6], sizes = [8, 1], strides = [1, 1]} : vector<8x16xf32> to vector<8x1xf32>
    %1986 = vector.broadcast %1984 : vector<8x1xf32> to vector<8x16xf32>
    %1987 = vector.broadcast %1978 : vector<1x16xf32> to vector<8x16xf32>
    %1988 = arith.mulf %1986, %1987 : vector<8x16xf32>
    %1989 = vector.broadcast %1985 : vector<8x1xf32> to vector<8x16xf32>
    %1990 = vector.broadcast %1983 : vector<1x16xf32> to vector<8x16xf32>
    %1991 = arith.mulf %1989, %1990 : vector<8x16xf32>
    %1992 = arith.subf %1988, %1991 : vector<8x16xf32>
    %1993 = arith.subf %1957, %1992 : vector<8x16xf32>
    %1994 = vector.broadcast %1984 : vector<8x1xf32> to vector<8x16xf32>
    %1995 = vector.broadcast %1983 : vector<1x16xf32> to vector<8x16xf32>
    %1996 = arith.mulf %1994, %1995 : vector<8x16xf32>
    %1997 = vector.broadcast %1985 : vector<8x1xf32> to vector<8x16xf32>
    %1998 = vector.broadcast %1978 : vector<1x16xf32> to vector<8x16xf32>
    %1999 = arith.mulf %1997, %1998 : vector<8x16xf32>
    %2000 = arith.addf %1996, %1999 : vector<8x16xf32>
    %2001 = arith.subf %1962, %2000 : vector<8x16xf32>
    %c6_i32_459 = arith.constant 6 : i32
    %2002 = vector.broadcast %c6_i32_459 : i32 to vector<8x1xi32>
    %2003 = arith.cmpi eq, %1656, %2002 : vector<8x1xi32>
    %2004 = vector.shape_cast %2003 : vector<8x1xi1> to vector<8x1xi1>
    %2005 = vector.broadcast %2004 : vector<8x1xi1> to vector<8x16xi1>
    %2006 = vector.shape_cast %1978 : vector<1x16xf32> to vector<1x16xf32>
    %2007 = vector.broadcast %2006 : vector<1x16xf32> to vector<8x16xf32>
    %2008 = arith.select %2005, %2007, %1993 : vector<8x16xi1>, vector<8x16xf32>
    %2009 = vector.shape_cast %2003 : vector<8x1xi1> to vector<8x1xi1>
    %2010 = vector.broadcast %2009 : vector<8x1xi1> to vector<8x16xi1>
    %2011 = vector.shape_cast %1983 : vector<1x16xf32> to vector<1x16xf32>
    %2012 = vector.broadcast %2011 : vector<1x16xf32> to vector<8x16xf32>
    %2013 = arith.select %2010, %2012, %2001 : vector<8x16xi1>, vector<8x16xf32>
    %2014 = vector.extract_strided_slice %2008 {offsets = [7, 0], sizes = [1, 16], strides = [1, 1]} : vector<8x16xf32> to vector<1x16xf32>
    %2015 = vector.extract_strided_slice %2013 {offsets = [7, 0], sizes = [1, 16], strides = [1, 1]} : vector<8x16xf32> to vector<1x16xf32>
    %2016 = vector.extract_strided_slice %2014 {offsets = [0, 7], sizes = [1, 1], strides = [1, 1]} : vector<1x16xf32> to vector<1x1xf32>
    %2017 = vector.extract_strided_slice %2015 {offsets = [0, 7], sizes = [1, 1], strides = [1, 1]} : vector<1x16xf32> to vector<1x1xf32>
    %2018 = arith.mulf %2016, %2016 : vector<1x1xf32>
    %2019 = arith.mulf %2017, %2017 : vector<1x1xf32>
    %2020 = arith.addf %2018, %2019 : vector<1x1xf32>
    %2021 = arith.divf %2016, %2020 : vector<1x1xf32>
    %cst_460 = arith.constant 0.000000e+00 : f32
    %2022 = vector.broadcast %cst_460 : f32 to vector<1x1xf32>
    %2023 = arith.subf %2022, %2017 : vector<1x1xf32>
    %2024 = arith.divf %2023, %2020 : vector<1x1xf32>
    %2025 = vector.broadcast %2021 : vector<1x1xf32> to vector<1x16xf32>
    %2026 = arith.mulf %2014, %2025 : vector<1x16xf32>
    %2027 = vector.broadcast %2024 : vector<1x1xf32> to vector<1x16xf32>
    %2028 = arith.mulf %2015, %2027 : vector<1x16xf32>
    %2029 = arith.subf %2026, %2028 : vector<1x16xf32>
    %2030 = vector.broadcast %2024 : vector<1x1xf32> to vector<1x16xf32>
    %2031 = arith.mulf %2014, %2030 : vector<1x16xf32>
    %2032 = vector.broadcast %2021 : vector<1x1xf32> to vector<1x16xf32>
    %2033 = arith.mulf %2015, %2032 : vector<1x16xf32>
    %2034 = arith.addf %2031, %2033 : vector<1x16xf32>
    %2035 = vector.extract_strided_slice %2008 {offsets = [0, 7], sizes = [8, 1], strides = [1, 1]} : vector<8x16xf32> to vector<8x1xf32>
    %2036 = vector.extract_strided_slice %2013 {offsets = [0, 7], sizes = [8, 1], strides = [1, 1]} : vector<8x16xf32> to vector<8x1xf32>
    %2037 = vector.broadcast %2035 : vector<8x1xf32> to vector<8x16xf32>
    %2038 = vector.broadcast %2029 : vector<1x16xf32> to vector<8x16xf32>
    %2039 = arith.mulf %2037, %2038 : vector<8x16xf32>
    %2040 = vector.broadcast %2036 : vector<8x1xf32> to vector<8x16xf32>
    %2041 = vector.broadcast %2034 : vector<1x16xf32> to vector<8x16xf32>
    %2042 = arith.mulf %2040, %2041 : vector<8x16xf32>
    %2043 = arith.subf %2039, %2042 : vector<8x16xf32>
    %2044 = arith.subf %2008, %2043 : vector<8x16xf32>
    %2045 = vector.broadcast %2035 : vector<8x1xf32> to vector<8x16xf32>
    %2046 = vector.broadcast %2034 : vector<1x16xf32> to vector<8x16xf32>
    %2047 = arith.mulf %2045, %2046 : vector<8x16xf32>
    %2048 = vector.broadcast %2036 : vector<8x1xf32> to vector<8x16xf32>
    %2049 = vector.broadcast %2029 : vector<1x16xf32> to vector<8x16xf32>
    %2050 = arith.mulf %2048, %2049 : vector<8x16xf32>
    %2051 = arith.addf %2047, %2050 : vector<8x16xf32>
    %2052 = arith.subf %2013, %2051 : vector<8x16xf32>
    %c7_i32_461 = arith.constant 7 : i32
    %2053 = vector.broadcast %c7_i32_461 : i32 to vector<8x1xi32>
    %2054 = arith.cmpi eq, %1656, %2053 : vector<8x1xi32>
    %2055 = vector.shape_cast %2054 : vector<8x1xi1> to vector<8x1xi1>
    %2056 = vector.broadcast %2055 : vector<8x1xi1> to vector<8x16xi1>
    %2057 = vector.shape_cast %2029 : vector<1x16xf32> to vector<1x16xf32>
    %2058 = vector.broadcast %2057 : vector<1x16xf32> to vector<8x16xf32>
    %2059 = arith.select %2056, %2058, %2044 : vector<8x16xi1>, vector<8x16xf32>
    %2060 = vector.shape_cast %2054 : vector<8x1xi1> to vector<8x1xi1>
    %2061 = vector.broadcast %2060 : vector<8x1xi1> to vector<8x16xi1>
    %2062 = vector.shape_cast %2034 : vector<1x16xf32> to vector<1x16xf32>
    %2063 = vector.broadcast %2062 : vector<1x16xf32> to vector<8x16xf32>
    %2064 = arith.select %2061, %2063, %2052 : vector<8x16xi1>, vector<8x16xf32>
    %2065 = vector.extract_strided_slice %2059 {offsets = [0, 8], sizes = [8, 8], strides = [1, 1]} : vector<8x16xf32> to vector<8x8xf32>
    %2066 = vector.extract_strided_slice %2064 {offsets = [0, 8], sizes = [8, 8], strides = [1, 1]} : vector<8x16xf32> to vector<8x8xf32>
    %cst_462 = arith.constant 0.000000e+00 : f32
    %2067 = vector.broadcast %cst_462 : f32 to vector<8x8xf32>
    %2068 = arith.subf %2067, %2066 : vector<8x8xf32>
    %2069 = tpu.concatenate %2065, %2068 in 1 : vector<8x8xf32>, vector<8x8xf32> -> vector<8x16xf32>
    %2070 = tpu.concatenate %2066, %2065 in 1 : vector<8x8xf32>, vector<8x8xf32> -> vector<8x16xf32>
    %2071 = tpu.concatenate %2069, %2070 in 0 : vector<8x16xf32>, vector<8x16xf32> -> vector<16x16xf32>
    %cst_463 = arith.constant 1.000000e+00 : f32
    %2072 = arith.divf %cst_463, %2 : f32
    %cst_464 = arith.constant dense<0.000000e+00> : vector<16x4xf32>
    %2073 = tpu.matmul %582, %1608, %cst_464 {dimension_numbers = #tpu.dot_dimension_numbers<[1], [0], [0], [1], [0, 0, 1, 1], [], []>} : vector<16x8xf32>, vector<8x4xf32>, vector<16x4xf32> -> vector<16x4xf32>
    %2074 = vector.broadcast %2072 : f32 to vector<16x4xf32>
    %2075 = arith.mulf %2074, %2073 : vector<16x4xf32>
    %2076 = arith.subf %2075, %645 : vector<16x4xf32>
    %cst_465 = arith.constant 5.000000e-01 : f32
    %2077 = vector.broadcast %cst_465 : f32 to vector<16x4xf32>
    %2078 = arith.mulf %2077, %2076 : vector<16x4xf32>
    %2079 = arith.addf %1633, %2078 : vector<16x4xf32>
    %cst_466 = arith.constant dense<0.000000e+00> : vector<16x4xf32>
    %2080 = tpu.matmul %2071, %2079, %cst_466 {dimension_numbers = #tpu.dot_dimension_numbers<[1], [0], [0], [1], [0, 0, 1, 1], [], []>} : vector<16x16xf32>, vector<16x4xf32>, vector<16x4xf32> -> vector<16x4xf32>
    %2081 = vector.extract_strided_slice %2080 {offsets = [0, 0], sizes = [8, 2], strides = [1, 1]} : vector<16x4xf32> to vector<8x2xf32>
    %c0_467 = arith.constant 0 : index
    %c0_468 = arith.constant 0 : index
    %c0_469 = arith.constant 0 : index
    %c0_470 = arith.constant 0 : index
    %2082 = vector.load %arg7[%c0_467, %c0_468, %c0_469, %c0_470] : memref<2x2x8x2xf32, #tpu.memory_space<vmem>>, vector<1x1x8x2xf32>
    %2083 = vector.shape_cast %2082 : vector<1x1x8x2xf32> to vector<8x2xf32>
    %2084 = arith.addf %2081, %2083 : vector<8x2xf32>
    %c0_471 = arith.constant 0 : index
    %c0_472 = arith.constant 0 : index
    %c0_473 = arith.constant 0 : index
    %c0_474 = arith.constant 0 : index
    %2085 = vector.load %arg19[%c0_471, %c0_472, %c0_473, %c0_474] : memref<2x2x8x2xf32, #tpu.memory_space<vmem>>, vector<1x1x8x2xf32>
    %2086 = vector.shape_cast %2085 : vector<1x1x8x2xf32> to vector<8x2xf32>
    %2087 = vector.shape_cast %2084 : vector<8x2xf32> to vector<1x1x8x2xf32>
    tpu.vector_store %arg19[%c0_471, %c0_472, %c0_473, %c0_474], %2087 {strides = array<i32>} : memref<2x2x8x2xf32, #tpu.memory_space<vmem>>, vector<1x1x8x2xf32>,
    %2088 = vector.extract_strided_slice %2080 {offsets = [8, 0], sizes = [8, 2], strides = [1, 1]} : vector<16x4xf32> to vector<8x2xf32>
    %c0_475 = arith.constant 0 : index
    %c1_476 = arith.constant 1 : index
    %c0_477 = arith.constant 0 : index
    %c0_478 = arith.constant 0 : index
    %2089 = vector.load %arg7[%c0_475, %c1_476, %c0_477, %c0_478] : memref<2x2x8x2xf32, #tpu.memory_space<vmem>>, vector<1x1x8x2xf32>
    %2090 = vector.shape_cast %2089 : vector<1x1x8x2xf32> to vector<8x2xf32>
    %2091 = arith.addf %2088, %2090 : vector<8x2xf32>
    %c0_479 = arith.constant 0 : index
    %c1_480 = arith.constant 1 : index
    %c0_481 = arith.constant 0 : index
    %c0_482 = arith.constant 0 : index
    %2092 = vector.load %arg19[%c0_479, %c1_480, %c0_481, %c0_482] : memref<2x2x8x2xf32, #tpu.memory_space<vmem>>, vector<1x1x8x2xf32>
    %2093 = vector.shape_cast %2092 : vector<1x1x8x2xf32> to vector<8x2xf32>
    %2094 = vector.shape_cast %2091 : vector<8x2xf32> to vector<1x1x8x2xf32>
    tpu.vector_store %arg19[%c0_479, %c1_480, %c0_481, %c0_482], %2094 {strides = array<i32>} : memref<2x2x8x2xf32, #tpu.memory_space<vmem>>, vector<1x1x8x2xf32>,
    %cst_483 = arith.constant dense<0.000000e+00> : vector<16x4xf32>
    %2095 = tpu.matmul %582, %1622, %cst_483 {dimension_numbers = #tpu.dot_dimension_numbers<[1], [0], [0], [1], [0, 0, 1, 1], [], []>} : vector<16x8xf32>, vector<8x4xf32>, vector<16x4xf32> -> vector<16x4xf32>
    %2096 = vector.broadcast %2072 : f32 to vector<16x4xf32>
    %2097 = arith.mulf %2096, %2095 : vector<16x4xf32>
    %2098 = arith.subf %2097, %654 : vector<16x4xf32>
    %cst_484 = arith.constant 5.000000e-01 : f32
    %2099 = vector.broadcast %cst_484 : f32 to vector<16x4xf32>
    %2100 = arith.mulf %2099, %2098 : vector<16x4xf32>
    %2101 = arith.addf %1637, %2100 : vector<16x4xf32>
    %cst_485 = arith.constant dense<0.000000e+00> : vector<16x4xf32>
    %2102 = tpu.matmul %2071, %2101, %cst_485 {dimension_numbers = #tpu.dot_dimension_numbers<[1], [0], [0], [1], [0, 0, 1, 1], [], []>} : vector<16x16xf32>, vector<16x4xf32>, vector<16x4xf32> -> vector<16x4xf32>
    %2103 = vector.extract_strided_slice %2102 {offsets = [0, 0], sizes = [8, 2], strides = [1, 1]} : vector<16x4xf32> to vector<8x2xf32>
    %c1_486 = arith.constant 1 : index
    %c0_487 = arith.constant 0 : index
    %c0_488 = arith.constant 0 : index
    %c0_489 = arith.constant 0 : index
    %2104 = vector.load %arg7[%c1_486, %c0_487, %c0_488, %c0_489] : memref<2x2x8x2xf32, #tpu.memory_space<vmem>>, vector<1x1x8x2xf32>
    %2105 = vector.shape_cast %2104 : vector<1x1x8x2xf32> to vector<8x2xf32>
    %2106 = arith.addf %2103, %2105 : vector<8x2xf32>
    %c1_490 = arith.constant 1 : index
    %c0_491 = arith.constant 0 : index
    %c0_492 = arith.constant 0 : index
    %c0_493 = arith.constant 0 : index
    %2107 = vector.load %arg19[%c1_490, %c0_491, %c0_492, %c0_493] : memref<2x2x8x2xf32, #tpu.memory_space<vmem>>, vector<1x1x8x2xf32>
    %2108 = vector.shape_cast %2107 : vector<1x1x8x2xf32> to vector<8x2xf32>
    %2109 = vector.shape_cast %2106 : vector<8x2xf32> to vector<1x1x8x2xf32>
    tpu.vector_store %arg19[%c1_490, %c0_491, %c0_492, %c0_493], %2109 {strides = array<i32>} : memref<2x2x8x2xf32, #tpu.memory_space<vmem>>, vector<1x1x8x2xf32>,
    %2110 = vector.extract_strided_slice %2102 {offsets = [8, 0], sizes = [8, 2], strides = [1, 1]} : vector<16x4xf32> to vector<8x2xf32>
    %c1_494 = arith.constant 1 : index
    %c1_495 = arith.constant 1 : index
    %c0_496 = arith.constant 0 : index
    %c0_497 = arith.constant 0 : index
    %2111 = vector.load %arg7[%c1_494, %c1_495, %c0_496, %c0_497] : memref<2x2x8x2xf32, #tpu.memory_space<vmem>>, vector<1x1x8x2xf32>
    %2112 = vector.shape_cast %2111 : vector<1x1x8x2xf32> to vector<8x2xf32>
    %2113 = arith.addf %2110, %2112 : vector<8x2xf32>
    %c1_498 = arith.constant 1 : index
    %c1_499 = arith.constant 1 : index
    %c0_500 = arith.constant 0 : index
    %c0_501 = arith.constant 0 : index
    %2114 = vector.load %arg19[%c1_498, %c1_499, %c0_500, %c0_501] : memref<2x2x8x2xf32, #tpu.memory_space<vmem>>, vector<1x1x8x2xf32>
    %2115 = vector.shape_cast %2114 : vector<1x1x8x2xf32> to vector<8x2xf32>
    %2116 = vector.shape_cast %2113 : vector<8x2xf32> to vector<1x1x8x2xf32>
    tpu.vector_store %arg19[%c1_498, %c1_499, %c0_500, %c0_501], %2116 {strides = array<i32>} : memref<2x2x8x2xf32, #tpu.memory_space<vmem>>, vector<1x1x8x2xf32>,
    return
  }
}

</mosaic_0001>

<llo_original>
// kernel: inner_layer_forward.1
$region0: #{inner_layer_forward.1}
  #allocation0 [shape = 'u32[]', space=smem, size = 0x4, offset = 0x4, fixed_abs, tag = 'smem constant byte address 0x4 - core index']
  #allocation1 [shape = 'u32[144,128]{1,0:T(1,128)}', space=vmem, size = 0x12000, scoped, tag = 'internal scratch']
  %s0 = inlined_call_operand.vmem [shape: f32[4], index: 0, kind: input, shape index: {}]
  %s1 = inlined_call_operand.vmem [shape: f32[1,256], index: 1, kind: input, shape index: {}]
  %s2 = inlined_call_operand.vmem [shape: f32[2,2,8,8], index: 2, kind: input, shape index: {}]
  %s3 = inlined_call_operand.vmem [shape: f32[2,2,8,4], index: 3, kind: input, shape index: {}]
  %s4 = inlined_call_operand.vmem [shape: f32[2,2,8,2], index: 4, kind: input, shape index: {}]
  %s5 = inlined_call_operand.vmem [shape: f32[2,2,8,2], index: 5, kind: input, shape index: {}]
  %s6 = inlined_call_operand.vmem [shape: f32[2,2,4,2], index: 6, kind: input, shape index: {}]
  %s7 = inlined_call_operand.vmem [shape: f32[2,2,8,2], index: 7, kind: input, shape index: {}]
  %s8 = inlined_call_operand.hbm [shape: f32[256,256], index: 8, kind: input, shape index: {}]
  %s9 = inlined_call_operand.vmem [shape: f32[1,256], index: 9, kind: input, shape index: {}]
  %s10 = inlined_call_operand.hbm [shape: f32[256,256], index: 10, kind: input, shape index: {}]
  %s11 = inlined_call_operand.hbm [shape: f32[1,256], index: 11, kind: input, shape index: {}]
  %s12 = inlined_call_operand.vmem [shape: f32[256,128], index: 12, kind: input, shape index: {}]
  %s13 = inlined_call_operand.vmem [shape: f32[1,128], index: 13, kind: input, shape index: {}]
  %s14 = inlined_call_operand.vmem [shape: f32[2,2,4,2], index: 14, kind: output, shape index: {0}]
  %s15 = inlined_call_operand.vmem [shape: f32[2,2,4,2], index: 15, kind: output, shape index: {1}]
  %s16 = inlined_call_operand.vmem [shape: f32[2,8,4], index: 16, kind: output, shape index: {2}]
  %s17 = inlined_call_operand.vmem [shape: f32[2,2,8,4], index: 17, kind: output, shape index: {3}]
  %s18 = inlined_call_operand.hbm [shape: f32[2,2,2,2], index: 18, kind: output, shape index: {4}]
  %s19 = inlined_call_operand.vmem [shape: f32[2,2,8,2], index: 19, kind: output, shape index: {5}]
  %20 = xla_tuple %s14, %s15, %s16, %s17, %s18, %s19
  %s21 = sld [smem:[#allocation0]]
  $region122: #{inner_layer_forward.1} parent=0
    _
  %s23 = ssub.s32 1, %s21
  %s24 = scalar_select 0, %s23, %s21
  $region1: #{inner_layer_forward.1} parent=0
    #allocation2 [shape = 'u8[512]{0}', space=smem, size = 0x200, scoped, tag = 'input window, operand 0, single buffered']
    #allocation3 [shape = 's32[1]{0}', space=sflag, size = 0x4, scoped, tag = 'scoped memory for inner_layer_forward.1']
    #allocation4 [shape = 's32[1]{0}', space=sflag, size = 0x4, scoped, tag = 'scoped memory for inner_layer_forward.1']
    #allocation5 [shape = 's32[1]{0}', space=sflag, size = 0x4, scoped, tag = 'scoped memory for inner_layer_forward.1']
    #allocation6 [shape = 'u8[262144]{0}', space=vmem, size = 0x40000, scoped, tag = 'input window, operand 8, single buffered']
    #allocation7 [shape = 'u8[262144]{0}', space=vmem, size = 0x40000, scoped, tag = 'input window, operand 10, single buffered']
    #allocation8 [shape = 's32[1]{0}', space=sflag, size = 0x4, scoped, tag = 'scoped memory for inner_layer_forward.1']
    #allocation9 [shape = 'u8[1024]{0}', space=vmem, size = 0x400, scoped, tag = 'input window, operand 11, single buffered']
    #allocation10 [shape = 'u8[4096]{0}', space=vmem, size = 0x1000, scoped, tag = 'output window, operand 4, single buffered']
    %25 = vsyncpa [#allocation5], 0
    %26 = vsyncpa [#allocation3], 0
    %27 = vsyncpa [#allocation8], 0
    %28 = vsyncpa [#allocation4], 0
    // Predicated region
    $region2: #{inner_layer_forward.1} parent=1 // pred_check
      _
    $region3: #{inner_layer_forward.1} parent=1 // pred_check_branch
      %30 = sbr.rel (0) target = $region5
    $region4: #{inner_layer_forward.1} parent=1 // pred_region
      %s32 = ssub.s32 16, 16
      %33 = vsyncadd [#allocation5], %s32
      %s35 = sshll.u32 %s0, 4
      %s36 = int_to_ptr.vmem [resolvable:$true] %s35
      %38 = dma.vmem_to_smem %s36, 16, [#allocation2], [#allocation5]
    $region5: #{inner_layer_forward.1} parent=1 // pred_fallthru
      _
    // Predicated region
    $region6: #{inner_layer_forward.1} parent=1 // pred_check
      _
    $region7: #{inner_layer_forward.1} parent=1 // pred_check_branch
      %40 = sbr.rel (0) target = $region9
    $region8: #{inner_layer_forward.1} parent=1 // pred_region
      _
    $region9: #{inner_layer_forward.1} parent=1 // pred_fallthru
      _
    // Predicated region
    $region10: #{inner_layer_forward.1} parent=1 // pred_check
      _
    $region11: #{inner_layer_forward.1} parent=1 // pred_check_branch
      %42 = sbr.rel (0) target = $region13
    $region12: #{inner_layer_forward.1} parent=1 // pred_region
      _
    $region13: #{inner_layer_forward.1} parent=1 // pred_fallthru
      _
    // Predicated region
    $region14: #{inner_layer_forward.1} parent=1 // pred_check
      _
    $region15: #{inner_layer_forward.1} parent=1 // pred_check_branch
      %44 = sbr.rel (0) target = $region17
    $region16: #{inner_layer_forward.1} parent=1 // pred_region
      _
    $region17: #{inner_layer_forward.1} parent=1 // pred_fallthru
      _
    // Predicated region
    $region18: #{inner_layer_forward.1} parent=1 // pred_check
      _
    $region19: #{inner_layer_forward.1} parent=1 // pred_check_branch
      %46 = sbr.rel (0) target = $region21
    $region20: #{inner_layer_forward.1} parent=1 // pred_region
      _
    $region21: #{inner_layer_forward.1} parent=1 // pred_fallthru
      _
    // Predicated region
    $region22: #{inner_layer_forward.1} parent=1 // pred_check
      _
    $region23: #{inner_layer_forward.1} parent=1 // pred_check_branch
      %48 = sbr.rel (0) target = $region25
    $region24: #{inner_layer_forward.1} parent=1 // pred_region
      _
    $region25: #{inner_layer_forward.1} parent=1 // pred_fallthru
      _
    // Predicated region
    $region26: #{inner_layer_forward.1} parent=1 // pred_check
      _
    $region27: #{inner_layer_forward.1} parent=1 // pred_check_branch
      %50 = sbr.rel (0) target = $region29
    $region28: #{inner_layer_forward.1} parent=1 // pred_region
      _
    $region29: #{inner_layer_forward.1} parent=1 // pred_fallthru
      _
    // Predicated region
    $region30: #{inner_layer_forward.1} parent=1 // pred_check
      _
    $region31: #{inner_layer_forward.1} parent=1 // pred_check_branch
      %52 = sbr.rel (0) target = $region33
    $region32: #{inner_layer_forward.1} parent=1 // pred_region
      _
    $region33: #{inner_layer_forward.1} parent=1 // pred_fallthru
      _
    // Predicated region
    $region34: #{inner_layer_forward.1} parent=1 // pred_check
      _
    $region35: #{inner_layer_forward.1} parent=1 // pred_check_branch
      %54 = sbr.rel (0) target = $region37
    $region36: #{inner_layer_forward.1} parent=1 // pred_region
      %s56 = ssub.s32 8192, 8192
      %57 = vsyncadd [#allocation3], %s56
      %s58 = sshll.u32 [#allocation6], 4
      %s59 = int_to_ptr.vmem [resolvable:$true] %s58
      %64 = dma.hbm_to_vmem [thread:$0]  %s8, 8192, %s59, [#allocation3], 256, 256, 16
    $region37: #{inner_layer_forward.1} parent=1 // pred_fallthru
      _
    // Predicated region
    $region38: #{inner_layer_forward.1} parent=1 // pred_check
      _
    $region39: #{inner_layer_forward.1} parent=1 // pred_check_branch
      %66 = sbr.rel (0) target = $region41
    $region40: #{inner_layer_forward.1} parent=1 // pred_region
      _
    $region41: #{inner_layer_forward.1} parent=1 // pred_fallthru
      _
    // Predicated region
    $region42: #{inner_layer_forward.1} parent=1 // pred_check
      _
    $region43: #{inner_layer_forward.1} parent=1 // pred_check_branch
      %68 = sbr.rel (0) target = $region45
    $region44: #{inner_layer_forward.1} parent=1 // pred_region
      %s70 = ssub.s32 8192, 8192
      %71 = vsyncadd [#allocation8], %s70
      %s72 = sshll.u32 [#allocation7], 4
      %s73 = int_to_ptr.vmem [resolvable:$true] %s72
      %78 = dma.hbm_to_vmem [thread:$0]  %s10, 8192, %s73, [#allocation8], 256, 256, 16
    $region45: #{inner_layer_forward.1} parent=1 // pred_fallthru
      _
    // Predicated region
    $region46: #{inner_layer_forward.1} parent=1 // pred_check
      _
    $region47: #{inner_layer_forward.1} parent=1 // pred_check_branch
      %80 = sbr.rel (0) target = $region49
    $region48: #{inner_layer_forward.1} parent=1 // pred_region
      %s82 = ssub.s32 32, 32
      %83 = vsyncadd [#allocation8], %s82
      %s85 = sshll.u32 [#allocation9], 4
      %s86 = int_to_ptr.vmem [resolvable:$true] %s85
      %88 = dma.hbm_to_vmem [thread:$0]  %s11, 32, %s86, [#allocation8]
    $region49: #{inner_layer_forward.1} parent=1 // pred_fallthru
      _
    // Predicated region
    $region50: #{inner_layer_forward.1} parent=1 // pred_check
      _
    $region51: #{inner_layer_forward.1} parent=1 // pred_check_branch
      %90 = sbr.rel (0) target = $region53
    $region52: #{inner_layer_forward.1} parent=1 // pred_region
      _
    $region53: #{inner_layer_forward.1} parent=1 // pred_fallthru
      _
    // Predicated region
    $region54: #{inner_layer_forward.1} parent=1 // pred_check
      _
    $region55: #{inner_layer_forward.1} parent=1 // pred_check_branch
      %92 = sbr.rel (0) target = $region57
    $region56: #{inner_layer_forward.1} parent=1 // pred_region
      _
    $region57: #{inner_layer_forward.1} parent=1 // pred_fallthru
      _
    // Predicated region
    $region58: #{inner_layer_forward.1} parent=1 // pred_check
      _
    $region59: #{inner_layer_forward.1} parent=1 // pred_check_branch
      %94 = sbr.rel (0) target = $region61
    $region60: #{inner_layer_forward.1} parent=1 // pred_region
      %95 = dma.done [#allocation5], 16
    $region61: #{inner_layer_forward.1} parent=1 // pred_fallthru
      _
    // Predicated region
    $region62: #{inner_layer_forward.1} parent=1 // pred_check
      _
    $region63: #{inner_layer_forward.1} parent=1 // pred_check_branch
      %97 = sbr.rel (0) target = $region65
    $region64: #{inner_layer_forward.1} parent=1 // pred_region
      %98 = dma.done [#allocation3], 8192
    $region65: #{inner_layer_forward.1} parent=1 // pred_fallthru
      _
    // Predicated region
    $region66: #{inner_layer_forward.1} parent=1 // pred_check
      _
    $region67: #{inner_layer_forward.1} parent=1 // pred_check_branch
      %100 = sbr.rel (0) target = $region69
    $region68: #{inner_layer_forward.1} parent=1 // pred_region
      %101 = dma.done [#allocation8], 8192
    $region69: #{inner_layer_forward.1} parent=1 // pred_fallthru
      _
    // Predicated region
    $region70: #{inner_layer_forward.1} parent=1 // pred_check
      _
    $region71: #{inner_layer_forward.1} parent=1 // pred_check_branch
      %103 = sbr.rel (0) target = $region73
    $region72: #{inner_layer_forward.1} parent=1 // pred_region
      %104 = dma.done [#allocation8], 32
    $region73: #{inner_layer_forward.1} parent=1 // pred_fallthru
      _
    %105 = sfence
    %s106 = sld [smem:[#allocation2]]
    %s107 = sld [smem:[#allocation2 + $0x1]]
    %s108 = sld [smem:[#allocation2 + $0x2]]
    %s109 = sld [smem:[#allocation2 + $0x3]]
    %v110 = vld [vmem:[%s1] sm:$0x3]
    %v111 = vld [vmem:[#allocation6] sm:$0xff]
    %v112 = vld [vmem:[#allocation6 + $0x8] sm:$0xff]
    %v113 = vld [vmem:[#allocation6 + $0x10] sm:$0xff]
    %v114 = vld [vmem:[#allocation6 + $0x18] sm:$0xff]
    %v115 = vld [vmem:[#allocation6 + $0x20] sm:$0xff]
    %v116 = vld [vmem:[#allocation6 + $0x28] sm:$0xff]
    %v117 = vld [vmem:[#allocation6 + $0x30] sm:$0xff]
    %v118 = vld [vmem:[#allocation6 + $0x38] sm:$0xff]
    %v119 = vld [vmem:[#allocation6 + $0x40] sm:$0xff]
    %v120 = vld [vmem:[#allocation6 + $0x48] sm:$0xff]
    %v121 = vld [vmem:[#allocation6 + $0x50] sm:$0xff]
    %v122 = vld [vmem:[#allocation6 + $0x58] sm:$0xff]
    %v123 = vld [vmem:[#allocation6 + $0x60] sm:$0xff]
    %v124 = vld [vmem:[#allocation6 + $0x68] sm:$0xff]
    %v125 = vld [vmem:[#allocation6 + $0x70] sm:$0xff]
    %v126 = vld [vmem:[#allocation6 + $0x78] sm:$0xff]
    %v127 = vld [vmem:[#allocation6 + $0x80] sm:$0xff]
    %v128 = vld [vmem:[#allocation6 + $0x88] sm:$0xff]
    %v129 = vld [vmem:[#allocation6 + $0x90] sm:$0xff]
    %v130 = vld [vmem:[#allocation6 + $0x98] sm:$0xff]
    %v131 = vld [vmem:[#allocation6 + $0xa0] sm:$0xff]
    %v132 = vld [vmem:[#allocation6 + $0xa8] sm:$0xff]
    %v133 = vld [vmem:[#allocation6 + $0xb0] sm:$0xff]
    %v134 = vld [vmem:[#allocation6 + $0xb8] sm:$0xff]
    %v135 = vld [vmem:[#allocation6 + $0xc0] sm:$0xff]
    %v136 = vld [vmem:[#allocation6 + $0xc8] sm:$0xff]
    %v137 = vld [vmem:[#allocation6 + $0xd0] sm:$0xff]
    %v138 = vld [vmem:[#allocation6 + $0xd8] sm:$0xff]
    %v139 = vld [vmem:[#allocation6 + $0xe0] sm:$0xff]
    %v140 = vld [vmem:[#allocation6 + $0xe8] sm:$0xff]
    %v141 = vld [vmem:[#allocation6 + $0xf0] sm:$0xff]
    %v142 = vld [vmem:[#allocation6 + $0xf8] sm:$0xff]
    %v143 = vld [vmem:[#allocation6 + $0x100] sm:$0xff]
    %v144 = vld [vmem:[#allocation6 + $0x108] sm:$0xff]
    %v145 = vld [vmem:[#allocation6 + $0x110] sm:$0xff]
    %v146 = vld [vmem:[#allocation6 + $0x118] sm:$0xff]
    %v147 = vld [vmem:[#allocation6 + $0x120] sm:$0xff]
    %v148 = vld [vmem:[#allocation6 + $0x128] sm:$0xff]
    %v149 = vld [vmem:[#allocation6 + $0x130] sm:$0xff]
    %v150 = vld [vmem:[#allocation6 + $0x138] sm:$0xff]
    %v151 = vld [vmem:[#allocation6 + $0x140] sm:$0xff]
    %v152 = vld [vmem:[#allocation6 + $0x148] sm:$0xff]
    %v153 = vld [vmem:[#allocation6 + $0x150] sm:$0xff]
    %v154 = vld [vmem:[#allocation6 + $0x158] sm:$0xff]
    %v155 = vld [vmem:[#allocation6 + $0x160] sm:$0xff]
    %v156 = vld [vmem:[#allocation6 + $0x168] sm:$0xff]
    %v157 = vld [vmem:[#allocation6 + $0x170] sm:$0xff]
    %v158 = vld [vmem:[#allocation6 + $0x178] sm:$0xff]
    %v159 = vld [vmem:[#allocation6 + $0x180] sm:$0xff]
    %v160 = vld [vmem:[#allocation6 + $0x188] sm:$0xff]
    %v161 = vld [vmem:[#allocation6 + $0x190] sm:$0xff]
    %v162 = vld [vmem:[#allocation6 + $0x198] sm:$0xff]
    %v163 = vld [vmem:[#allocation6 + $0x1a0] sm:$0xff]
    %v164 = vld [vmem:[#allocation6 + $0x1a8] sm:$0xff]
    %v165 = vld [vmem:[#allocation6 + $0x1b0] sm:$0xff]
    %v166 = vld [vmem:[#allocation6 + $0x1b8] sm:$0xff]
    %v167 = vld [vmem:[#allocation6 + $0x1c0] sm:$0xff]
    %v168 = vld [vmem:[#allocation6 + $0x1c8] sm:$0xff]
    %v169 = vld [vmem:[#allocation6 + $0x1d0] sm:$0xff]
    %v170 = vld [vmem:[#allocation6 + $0x1d8] sm:$0xff]
    %v171 = vld [vmem:[#allocation6 + $0x1e0] sm:$0xff]
    %v172 = vld [vmem:[#allocation6 + $0x1e8] sm:$0xff]
    %v173 = vld [vmem:[#allocation6 + $0x1f0] sm:$0xff]
    %v174 = vld [vmem:[#allocation6 + $0x1f8] sm:$0xff]
    %v175 = vld [vmem:[%s9] sm:$0x3]
    %v177 = vlaneseq
    %v178 = vshrl.u32 %v177, 7
    %v179 = vsub.s32 0, %v178
    %v180 = vrot.slane %v110, %v179
    %v181 = vlaneseq
    %v182 = vshrl.u32 %v181, 7
    %v183 = vsub.s32 1, %v182
    %v184 = vrot.slane %v110, %v183
    %v188 = vlaneseq
    %v189 = vshrl.u32 %v188, 7
    %v190 = vsub.s32 0, %v189
    %v191 = vrot.slane %v175, %v190
    %v192 = vlaneseq
    %v193 = vshrl.u32 %v192, 7
    %v194 = vsub.s32 1, %v193
    %v195 = vrot.slane %v175, %v194
    %198 = vmatprep.subr.mxu0 %v112
    %199 = vmatpush1.msra.mxu0 %v111
    %200 = vmatprep.subr.mxu0 %v114
    %201 = vmatpush1.msra.mxu0 %v113
    %202 = vmatprep.subr.mxu0 %v116
    %203 = vmatpush1.msra.mxu0 %v115
    %204 = vmatprep.subr.mxu0 %v118
    %205 = vmatpush1.msra.mxu0 %v117
    %206 = vmatprep.subr.mxu0 %v120
    %207 = vmatpush1.msra.mxu0 %v119
    %208 = vmatprep.subr.mxu0 %v122
    %209 = vmatpush1.msra.mxu0 %v121
    %210 = vmatprep.subr.mxu0 %v124
    %211 = vmatpush1.msra.mxu0 %v123
    %212 = vmatprep.subr.mxu0 %v126
    %213 = vmatpush1.msra.mxu0 %v125
    %214 = vmatprep.subr.mxu0 %v128
    %215 = vmatpush1.msra.mxu0 %v127
    %216 = vmatprep.subr.mxu0 %v130
    %217 = vmatpush1.msra.mxu0 %v129
    %218 = vmatprep.subr.mxu0 %v132
    %219 = vmatpush1.msra.mxu0 %v131
    %220 = vmatprep.subr.mxu0 %v134
    %221 = vmatpush1.msra.mxu0 %v133
    %222 = vmatprep.subr.mxu0 %v136
    %223 = vmatpush1.msra.mxu0 %v135
    %224 = vmatprep.subr.mxu0 %v138
    %225 = vmatpush1.msra.mxu0 %v137
    %226 = vmatprep.subr.mxu0 %v140
    %227 = vmatpush1.msra.mxu0 %v139
    %228 = vmatprep.subr.mxu0 %v142
    %229 = vmatpush1.msra.mxu0 %v141
    %230 = vmatprep.subr.mxu0 %v144
    %231 = vmatpush1.msra.mxu0 %v143
    %232 = vmatprep.subr.mxu0 %v146
    %233 = vmatpush1.msra.mxu0 %v145
    %234 = vmatprep.subr.mxu0 %v148
    %235 = vmatpush1.msra.mxu0 %v147
    %236 = vmatprep.subr.mxu0 %v150
    %237 = vmatpush1.msra.mxu0 %v149
    %238 = vmatprep.subr.mxu0 %v152
    %239 = vmatpush1.msra.mxu0 %v151
    %240 = vmatprep.subr.mxu0 %v154
    %241 = vmatpush1.msra.mxu0 %v153
    %242 = vmatprep.subr.mxu0 %v156
    %243 = vmatpush1.msra.mxu0 %v155
    %244 = vmatprep.subr.mxu0 %v158
    %245 = vmatpush1.msra.mxu0 %v157
    %246 = vmatprep.subr.mxu0 %v160
    %247 = vmatpush1.msra.mxu0 %v159
    %248 = vmatprep.subr.mxu0 %v162
    %249 = vmatpush1.msra.mxu0 %v161
    %250 = vmatprep.subr.mxu0 %v164
    %251 = vmatpush1.msra.mxu0 %v163
    %252 = vmatprep.subr.mxu0 %v166
    %253 = vmatpush1.msra.mxu0 %v165
    %254 = vmatprep.subr.mxu0 %v168
    %255 = vmatpush1.msra.mxu0 %v167
    %256 = vmatprep.subr.mxu0 %v170
    %257 = vmatpush1.msra.mxu0 %v169
    %258 = vmatprep.subr.mxu0 %v172
    %259 = vmatpush1.msra.mxu0 %v171
    %260 = vmatprep.subr.mxu0 %v174
    %261 = vmatpush1.msra.mxu0 %v173
    %262 = vmatprep.mubr.f32.mxu0 %v184
    %263 = vmatmul.mubr.f32.gmra.mrb[0].mxu0 %v180
    %v264 = vpop.f32.mrb[0].mxu0
    %v265 = vadd.f32 %v191, %v264
    %v266 = vpop.f32.mrb[0].mxu0
    %v267 = vadd.f32 %v195, %v266
    %268 = vdwg.mxu0
    %v269 = vsub.f32 0.0, %v265
    %v270 = vsub.f32 0.0, %v267
    %v271 = vmul.f32 %v269, 1.442695
    %v272 = vpow.pop %v271
    %v273 = vmul.f32 %v270, 1.442695
    %v274 = vpow.pop %v273
    %v275 = vadd.f32 %v272, 1.0
    %v276 = vadd.f32 %v274, 1.0
    %v277 = vrcp.pop %v275
    %v278 = vmul.f32 1.0, %v277
    %v279 = vrcp.pop %v276
    %v280 = vmul.f32 1.0, %v279
    %v281 = vld [vmem:[#allocation7] sm:$0xff]
    %v282 = vld [vmem:[#allocation7 + $0x8] sm:$0xff]
    %v283 = vld [vmem:[#allocation7 + $0x10] sm:$0xff]
    %v284 = vld [vmem:[#allocation7 + $0x18] sm:$0xff]
    %v285 = vld [vmem:[#allocation7 + $0x20] sm:$0xff]
    %v286 = vld [vmem:[#allocation7 + $0x28] sm:$0xff]
    %v287 = vld [vmem:[#allocation7 + $0x30] sm:$0xff]
    %v288 = vld [vmem:[#allocation7 + $0x38] sm:$0xff]
    %v289 = vld [vmem:[#allocation7 + $0x40] sm:$0xff]
    %v290 = vld [vmem:[#allocation7 + $0x48] sm:$0xff]
    %v291 = vld [vmem:[#allocation7 + $0x50] sm:$0xff]
    %v292 = vld [vmem:[#allocation7 + $0x58] sm:$0xff]
    %v293 = vld [vmem:[#allocation7 + $0x60] sm:$0xff]
    %v294 = vld [vmem:[#allocation7 + $0x68] sm:$0xff]
    %v295 = vld [vmem:[#allocation7 + $0x70] sm:$0xff]
    %v296 = vld [vmem:[#allocation7 + $0x78] sm:$0xff]
    %v297 = vld [vmem:[#allocation7 + $0x80] sm:$0xff]
    %v298 = vld [vmem:[#allocation7 + $0x88] sm:$0xff]
    %v299 = vld [vmem:[#allocation7 + $0x90] sm:$0xff]
    %v300 = vld [vmem:[#allocation7 + $0x98] sm:$0xff]
    %v301 = vld [vmem:[#allocation7 + $0xa0] sm:$0xff]
    %v302 = vld [vmem:[#allocation7 + $0xa8] sm:$0xff]
    %v303 = vld [vmem:[#allocation7 + $0xb0] sm:$0xff]
    %v304 = vld [vmem:[#allocation7 + $0xb8] sm:$0xff]
    %v305 = vld [vmem:[#allocation7 + $0xc0] sm:$0xff]
    %v306 = vld [vmem:[#allocation7 + $0xc8] sm:$0xff]
    %v307 = vld [vmem:[#allocation7 + $0xd0] sm:$0xff]
    %v308 = vld [vmem:[#allocation7 + $0xd8] sm:$0xff]
    %v309 = vld [vmem:[#allocation7 + $0xe0] sm:$0xff]
    %v310 = vld [vmem:[#allocation7 + $0xe8] sm:$0xff]
    %v311 = vld [vmem:[#allocation7 + $0xf0] sm:$0xff]
    %v312 = vld [vmem:[#allocation7 + $0xf8] sm:$0xff]
    %v313 = vld [vmem:[#allocation7 + $0x100] sm:$0xff]
    %v314 = vld [vmem:[#allocation7 + $0x108] sm:$0xff]
    %v315 = vld [vmem:[#allocation7 + $0x110] sm:$0xff]
    %v316 = vld [vmem:[#allocation7 + $0x118] sm:$0xff]
    %v317 = vld [vmem:[#allocation7 + $0x120] sm:$0xff]
    %v318 = vld [vmem:[#allocation7 + $0x128] sm:$0xff]
    %v319 = vld [vmem:[#allocation7 + $0x130] sm:$0xff]
    %v320 = vld [vmem:[#allocation7 + $0x138] sm:$0xff]
    %v321 = vld [vmem:[#allocation7 + $0x140] sm:$0xff]
    %v322 = vld [vmem:[#allocation7 + $0x148] sm:$0xff]
    %v323 = vld [vmem:[#allocation7 + $0x150] sm:$0xff]
    %v324 = vld [vmem:[#allocation7 + $0x158] sm:$0xff]
    %v325 = vld [vmem:[#allocation7 + $0x160] sm:$0xff]
    %v326 = vld [vmem:[#allocation7 + $0x168] sm:$0xff]
    %v327 = vld [vmem:[#allocation7 + $0x170] sm:$0xff]
    %v328 = vld [vmem:[#allocation7 + $0x178] sm:$0xff]
    %v329 = vld [vmem:[#allocation7 + $0x180] sm:$0xff]
    %v330 = vld [vmem:[#allocation7 + $0x188] sm:$0xff]
    %v331 = vld [vmem:[#allocation7 + $0x190] sm:$0xff]
    %v332 = vld [vmem:[#allocation7 + $0x198] sm:$0xff]
    %v333 = vld [vmem:[#allocation7 + $0x1a0] sm:$0xff]
    %v334 = vld [vmem:[#allocation7 + $0x1a8] sm:$0xff]
    %v335 = vld [vmem:[#allocation7 + $0x1b0] sm:$0xff]
    %v336 = vld [vmem:[#allocation7 + $0x1b8] sm:$0xff]
    %v337 = vld [vmem:[#allocation7 + $0x1c0] sm:$0xff]
    %v338 = vld [vmem:[#allocation7 + $0x1c8] sm:$0xff]
    %v339 = vld [vmem:[#allocation7 + $0x1d0] sm:$0xff]
    %v340 = vld [vmem:[#allocation7 + $0x1d8] sm:$0xff]
    %v341 = vld [vmem:[#allocation7 + $0x1e0] sm:$0xff]
    %v342 = vld [vmem:[#allocation7 + $0x1e8] sm:$0xff]
    %v343 = vld [vmem:[#allocation7 + $0x1f0] sm:$0xff]
    %v344 = vld [vmem:[#allocation7 + $0x1f8] sm:$0xff]
    %v345 = vld [vmem:[#allocation9] sm:$0x3]
    %v347 = vlaneseq
    %v348 = vshrl.u32 %v347, 7
    %v349 = vsub.s32 0, %v348
    %v350 = vrot.slane %v345, %v349
    %v351 = vlaneseq
    %v352 = vshrl.u32 %v351, 7
    %v353 = vsub.s32 1, %v352
    %v354 = vrot.slane %v345, %v353
    %357 = vmatprep.subr.mxu0 %v282
    %358 = vmatpush1.msra.mxu0 %v281
    %359 = vmatprep.subr.mxu0 %v284
    %360 = vmatpush1.msra.mxu0 %v283
    %361 = vmatprep.subr.mxu0 %v286
    %362 = vmatpush1.msra.mxu0 %v285
    %363 = vmatprep.subr.mxu0 %v288
    %364 = vmatpush1.msra.mxu0 %v287
    %365 = vmatprep.subr.mxu0 %v290
    %366 = vmatpush1.msra.mxu0 %v289
    %367 = vmatprep.subr.mxu0 %v292
    %368 = vmatpush1.msra.mxu0 %v291
    %369 = vmatprep.subr.mxu0 %v294
    %370 = vmatpush1.msra.mxu0 %v293
    %371 = vmatprep.subr.mxu0 %v296
    %372 = vmatpush1.msra.mxu0 %v295
    %373 = vmatprep.subr.mxu0 %v298
    %374 = vmatpush1.msra.mxu0 %v297
    %375 = vmatprep.subr.mxu0 %v300
    %376 = vmatpush1.msra.mxu0 %v299
    %377 = vmatprep.subr.mxu0 %v302
    %378 = vmatpush1.msra.mxu0 %v301
    %379 = vmatprep.subr.mxu0 %v304
    %380 = vmatpush1.msra.mxu0 %v303
    %381 = vmatprep.subr.mxu0 %v306
    %382 = vmatpush1.msra.mxu0 %v305
    %383 = vmatprep.subr.mxu0 %v308
    %384 = vmatpush1.msra.mxu0 %v307
    %385 = vmatprep.subr.mxu0 %v310
    %386 = vmatpush1.msra.mxu0 %v309
    %387 = vmatprep.subr.mxu0 %v312
    %388 = vmatpush1.msra.mxu0 %v311
    %389 = vmatprep.subr.mxu0 %v314
    %390 = vmatpush1.msra.mxu0 %v313
    %391 = vmatprep.subr.mxu0 %v316
    %392 = vmatpush1.msra.mxu0 %v315
    %393 = vmatprep.subr.mxu0 %v318
    %394 = vmatpush1.msra.mxu0 %v317
    %395 = vmatprep.subr.mxu0 %v320
    %396 = vmatpush1.msra.mxu0 %v319
    %397 = vmatprep.subr.mxu0 %v322
    %398 = vmatpush1.msra.mxu0 %v321
    %399 = vmatprep.subr.mxu0 %v324
    %400 = vmatpush1.msra.mxu0 %v323
    %401 = vmatprep.subr.mxu0 %v326
    %402 = vmatpush1.msra.mxu0 %v325
    %403 = vmatprep.subr.mxu0 %v328
    %404 = vmatpush1.msra.mxu0 %v327
    %405 = vmatprep.subr.mxu0 %v330
    %406 = vmatpush1.msra.mxu0 %v329
    %407 = vmatprep.subr.mxu0 %v332
    %408 = vmatpush1.msra.mxu0 %v331
    %409 = vmatprep.subr.mxu0 %v334
    %410 = vmatpush1.msra.mxu0 %v333
    %411 = vmatprep.subr.mxu0 %v336
    %412 = vmatpush1.msra.mxu0 %v335
    %413 = vmatprep.subr.mxu0 %v338
    %414 = vmatpush1.msra.mxu0 %v337
    %415 = vmatprep.subr.mxu0 %v340
    %416 = vmatpush1.msra.mxu0 %v339
    %417 = vmatprep.subr.mxu0 %v342
    %418 = vmatpush1.msra.mxu0 %v341
    %419 = vmatprep.subr.mxu0 %v344
    %420 = vmatpush1.msra.mxu0 %v343
    %421 = vmatprep.mubr.f32.mxu0 %v280
    %422 = vmatmul.mubr.f32.gmra.mrb[0].mxu0 %v278
    %v423 = vpop.f32.mrb[0].mxu0
    %v424 = vadd.f32 %v350, %v423
    %v425 = vpop.f32.mrb[0].mxu0
    %v426 = vadd.f32 %v354, %v425
    %427 = vdwg.mxu0
    %v428 = vsub.f32 0.0, %v424
    %v429 = vsub.f32 0.0, %v426
    %v430 = vmul.f32 %v428, 1.442695
    %v431 = vpow.pop %v430
    %v432 = vmul.f32 %v429, 1.442695
    %v433 = vpow.pop %v432
    %v434 = vadd.f32 %v431, 1.0
    %v435 = vadd.f32 %v433, 1.0
    %v436 = vrcp.pop %v434
    %v437 = vmul.f32 1.0, %v436
    %v438 = vrcp.pop %v435
    %v439 = vmul.f32 1.0, %v438
    %v440 = vld [vmem:[%s12] sm:$0xff]
    %v441 = vld [vmem:[%s12 + $0x8] sm:$0xff]
    %v442 = vld [vmem:[%s12 + $0x10] sm:$0xff]
    %v443 = vld [vmem:[%s12 + $0x18] sm:$0xff]
    %v444 = vld [vmem:[%s12 + $0x20] sm:$0xff]
    %v445 = vld [vmem:[%s12 + $0x28] sm:$0xff]
    %v446 = vld [vmem:[%s12 + $0x30] sm:$0xff]
    %v447 = vld [vmem:[%s12 + $0x38] sm:$0xff]
    %v448 = vld [vmem:[%s12 + $0x40] sm:$0xff]
    %v449 = vld [vmem:[%s12 + $0x48] sm:$0xff]
    %v450 = vld [vmem:[%s12 + $0x50] sm:$0xff]
    %v451 = vld [vmem:[%s12 + $0x58] sm:$0xff]
    %v452 = vld [vmem:[%s12 + $0x60] sm:$0xff]
    %v453 = vld [vmem:[%s12 + $0x68] sm:$0xff]
    %v454 = vld [vmem:[%s12 + $0x70] sm:$0xff]
    %v455 = vld [vmem:[%s12 + $0x78] sm:$0xff]
    %v456 = vld [vmem:[%s12 + $0x80] sm:$0xff]
    %v457 = vld [vmem:[%s12 + $0x88] sm:$0xff]
    %v458 = vld [vmem:[%s12 + $0x90] sm:$0xff]
    %v459 = vld [vmem:[%s12 + $0x98] sm:$0xff]
    %v460 = vld [vmem:[%s12 + $0xa0] sm:$0xff]
    %v461 = vld [vmem:[%s12 + $0xa8] sm:$0xff]
    %v462 = vld [vmem:[%s12 + $0xb0] sm:$0xff]
    %v463 = vld [vmem:[%s12 + $0xb8] sm:$0xff]
    %v464 = vld [vmem:[%s12 + $0xc0] sm:$0xff]
    %v465 = vld [vmem:[%s12 + $0xc8] sm:$0xff]
    %v466 = vld [vmem:[%s12 + $0xd0] sm:$0xff]
    %v467 = vld [vmem:[%s12 + $0xd8] sm:$0xff]
    %v468 = vld [vmem:[%s12 + $0xe0] sm:$0xff]
    %v469 = vld [vmem:[%s12 + $0xe8] sm:$0xff]
    %v470 = vld [vmem:[%s12 + $0xf0] sm:$0xff]
    %v471 = vld [vmem:[%s12 + $0xf8] sm:$0xff]
    %v472 = vld [vmem:[%s13] sm:$0x1]
    %473 = vmatprep.subr.mxu0 0.0
    %474 = vmatpush1.msra.mxu0 %v440
    %475 = vmatprep.subr.mxu0 0.0
    %476 = vmatpush1.msra.mxu0 %v441
    %477 = vmatprep.subr.mxu0 0.0
    %478 = vmatpush1.msra.mxu0 %v442
    %479 = vmatprep.subr.mxu0 0.0
    %480 = vmatpush1.msra.mxu0 %v443
    %481 = vmatprep.subr.mxu0 0.0
    %482 = vmatpush1.msra.mxu0 %v444
    %483 = vmatprep.subr.mxu0 0.0
    %484 = vmatpush1.msra.mxu0 %v445
    %485 = vmatprep.subr.mxu0 0.0
    %486 = vmatpush1.msra.mxu0 %v446
    %487 = vmatprep.subr.mxu0 0.0
    %488 = vmatpush1.msra.mxu0 %v447
    %489 = vmatprep.subr.mxu0 0.0
    %490 = vmatpush1.msra.mxu0 %v448
    %491 = vmatprep.subr.mxu0 0.0
    %492 = vmatpush1.msra.mxu0 %v449
    %493 = vmatprep.subr.mxu0 0.0
    %494 = vmatpush1.msra.mxu0 %v450
    %495 = vmatprep.subr.mxu0 0.0
    %496 = vmatpush1.msra.mxu0 %v451
    %497 = vmatprep.subr.mxu0 0.0
    %498 = vmatpush1.msra.mxu0 %v452
    %499 = vmatprep.subr.mxu0 0.0
    %500 = vmatpush1.msra.mxu0 %v453
    %501 = vmatprep.subr.mxu0 0.0
    %502 = vmatpush1.msra.mxu0 %v454
    %503 = vmatprep.subr.mxu0 0.0
    %504 = vmatpush1.msra.mxu0 %v455
    %505 = vmatprep.subr.mxu0 0.0
    %506 = vmatpush1.msra.mxu0 %v456
    %507 = vmatprep.subr.mxu0 0.0
    %508 = vmatpush1.msra.mxu0 %v457
    %509 = vmatprep.subr.mxu0 0.0
    %510 = vmatpush1.msra.mxu0 %v458
    %511 = vmatprep.subr.mxu0 0.0
    %512 = vmatpush1.msra.mxu0 %v459
    %513 = vmatprep.subr.mxu0 0.0
    %514 = vmatpush1.msra.mxu0 %v460
    %515 = vmatprep.subr.mxu0 0.0
    %516 = vmatpush1.msra.mxu0 %v461
    %517 = vmatprep.subr.mxu0 0.0
    %518 = vmatpush1.msra.mxu0 %v462
    %519 = vmatprep.subr.mxu0 0.0
    %520 = vmatpush1.msra.mxu0 %v463
    %521 = vmatprep.subr.mxu0 0.0
    %522 = vmatpush1.msra.mxu0 %v464
    %523 = vmatprep.subr.mxu0 0.0
    %524 = vmatpush1.msra.mxu0 %v465
    %525 = vmatprep.subr.mxu0 0.0
    %526 = vmatpush1.msra.mxu0 %v466
    %527 = vmatprep.subr.mxu0 0.0
    %528 = vmatpush1.msra.mxu0 %v467
    %529 = vmatprep.subr.mxu0 0.0
    %530 = vmatpush1.msra.mxu0 %v468
    %531 = vmatprep.subr.mxu0 0.0
    %532 = vmatpush1.msra.mxu0 %v469
    %533 = vmatprep.subr.mxu0 0.0
    %534 = vmatpush1.msra.mxu0 %v470
    %535 = vmatprep.subr.mxu0 0.0
    %536 = vmatpush1.msra.mxu0 %v471
    %537 = vmatprep.mubr.f32.mxu0 %v439
    %538 = vmatmul.mubr.f32.gmra.mrb[0].mxu0 %v437
    %v539 = vpop.f32.mrb[0].mxu0
    %v540 = vadd.f32 %v472, %v539
    %v541 = vpop.f32.mrb[0].mxu0
    %542 = vdwg.mxu0
    %v543 = vsub.f32 0.0, %v540
    %v544 = vmul.f32 %v543, 1.442695
    %v545 = vpow.pop %v544
    %v546 = vadd.f32 %v545, 1.0
    %v547 = vrcp.pop %v546
    %v548 = vmul.f32 1.0, %v547
    %v549 = vmul.f32 %v548, 6.283185
    %v550 = vlaneseq
    %v551 = vshrl.u32 %v550, 7
    %vm552 = vcmp.eq.s32.totalorder %v551, 0
    %v553 = vsel %vm552, 1, 0
    %vm554 = vcmp.eq.s32.totalorder %v553, 1
    %v555 = vlaneseq
    %v556 = vshrl.u32 %v555, 7
    %v557 = vsub.s32 0, %v556
    %v558 = vrot.slane %v549, %v557
    %v559 = vsel %vm554, %v558, 0.0
    %v560 = vadd.f32 %v559, 0.0
    %vm561 = vcmp.eq.s32.totalorder %v551, 1
    %v562 = vsel %vm561, 1, 0
    %vm563 = vcmp.eq.s32.totalorder %v562, 1
    %v564 = vsel %vm563, %v558, 0.0
    %566 = vrot.lane.b32.xlu0 %v564, 124
    %v567 = vpop.permute.xlu0 %566
    %v569 = vadd.f32 %v560, %v567
    %vm570 = vcmp.eq.s32.totalorder %v551, 2
    %v571 = vsel %vm570, 1, 0
    %vm572 = vcmp.eq.s32.totalorder %v571, 1
    %v573 = vsel %vm572, %v558, 0.0
    %575 = vrot.lane.b32.xlu0 %v573, 120
    %v576 = vpop.permute.xlu0 %575
    %v578 = vadd.f32 %v569, %v576
    %vm579 = vcmp.eq.s32.totalorder %v551, 3
    %v580 = vsel %vm579, 1, 0
    %vm581 = vcmp.eq.s32.totalorder %v580, 1
    %v582 = vsel %vm581, %v558, 0.0
    %584 = vrot.lane.b32.xlu0 %v582, 116
    %v585 = vpop.permute.xlu0 %584
    %v587 = vadd.f32 %v578, %v585
    %vm588 = vcmp.eq.s32.totalorder %v551, 4
    %v589 = vsel %vm588, 1, 0
    %vm590 = vcmp.eq.s32.totalorder %v589, 1
    %v591 = vsel %vm590, %v558, 0.0
    %593 = vrot.lane.b32.xlu0 %v591, 112
    %v594 = vpop.permute.xlu0 %593
    %v596 = vadd.f32 %v587, %v594
    %vm597 = vcmp.eq.s32.totalorder %v551, 5
    %v598 = vsel %vm597, 1, 0
    %vm599 = vcmp.eq.s32.totalorder %v598, 1
    %v600 = vsel %vm599, %v558, 0.0
    %602 = vrot.lane.b32.xlu0 %v600, 108
    %v603 = vpop.permute.xlu0 %602
    %v605 = vadd.f32 %v596, %v603
    %vm606 = vcmp.eq.s32.totalorder %v551, 6
    %v607 = vsel %vm606, 1, 0
    %vm608 = vcmp.eq.s32.totalorder %v607, 1
    %v609 = vsel %vm608, %v558, 0.0
    %611 = vrot.lane.b32.xlu0 %v609, 104
    %v612 = vpop.permute.xlu0 %611
    %v614 = vadd.f32 %v605, %v612
    %vm615 = vcmp.eq.s32.totalorder %v551, 7
    %v616 = vsel %vm615, 1, 0
    %vm617 = vcmp.eq.s32.totalorder %v616, 1
    %v618 = vsel %vm617, %v558, 0.0
    %620 = vrot.lane.b32.xlu0 %v618, 100
    %v621 = vpop.permute.xlu0 %620
    %v623 = vadd.f32 %v614, %v621
    %v624 = vmul.f32 %v623, 0.63661975
    %vm625 = vcmp.gt.f32.partialorder %v624, 0.5
    %v626 = vsel %vm625, 1.0, 0.0
    %vm627 = vcmp.gt.f32.partialorder %v624, 1.5
    %v628 = vsel %vm627, 1.0, 0.0
    %v629 = vadd.f32 %v626, %v628
    %vm630 = vcmp.gt.f32.partialorder %v624, 2.5
    %v631 = vsel %vm630, 1.0, 0.0
    %v632 = vadd.f32 %v629, %v631
    %vm633 = vcmp.gt.f32.partialorder %v624, 3.5
    %v634 = vsel %vm633, 1.0, 0.0
    %v635 = vadd.f32 %v632, %v634
    %v636 = vmul.f32 %v635, 1.5707964
    %v637 = vsub.f32 %v623, %v636
    %v638 = vmul.f32 %v637, %v637
    %v639 = vmul.f32 %v638, 2.7557319e-06
    %v640 = vadd.f32 %v639, -0.0001984127
    %v641 = vmul.f32 %v638, %v640
    %v642 = vadd.f32 %v641, 0.008333334
    %v643 = vmul.f32 %v638, %v642
    %v644 = vadd.f32 %v643, -0.16666667
    %v645 = vmul.f32 %v638, %v644
    %v646 = vadd.f32 %v645, 1.0
    %v647 = vmul.f32 %v637, %v646
    %v648 = vmul.f32 %v638, 2.4801588e-05
    %v649 = vadd.f32 %v648, -0.0013888889
    %v650 = vmul.f32 %v638, %v649
    %v651 = vadd.f32 %v650, 0.041666668
    %v652 = vmul.f32 %v638, %v651
    %v653 = vadd.f32 %v652, -0.5
    %v654 = vmul.f32 %v638, %v653
    %v655 = vadd.f32 %v654, 1.0
    %vm656 = vcmp.gt.f32.partialorder %v635, 3.5
    %v657 = vsel %vm656, 4.0, 0.0
    %v658 = vsub.f32 %v635, %v657
    %vm659 = vcmp.eq.f32.partialorder %v658, 0.0
    %vm660 = vcmp.eq.f32.partialorder %v658, 1.0
    %v661 = vsub.f32 0.0, %v647
    %vm662 = vcmp.eq.f32.partialorder %v658, 2.0
    %v663 = vsub.f32 0.0, %v655
    %v664 = vsel %vm662, %v663, %v647
    %v665 = vsel %vm660, %v661, %v664
    %v666 = vsel %vm659, %v655, %v665
    %v667 = vsel %vm662, %v661, %v663
    %v668 = vsel %vm660, %v655, %v667
    %v669 = vsel %vm659, %v647, %v668
    %vm670 = vcmask 31744
    %671 = vst.msk [vmem:[%s17] sm:$0xff] %vm670, %v666
    %s672 = scalar_lea.vmem %s17, 8
    %673 = vst.msk [vmem:[%s672] sm:$0xff] %vm670, %v669
    %v674 = vsub.f32 0.0, %v669
    %676 = vrot.lane.b32.xlu0 %v674, 4
    %v677 = vpop.permute.xlu0 %676
    %v679 = vsel %vm670, %v666, %v677
    %681 = vrot.lane.b32.xlu0 %v666, 4
    %v682 = vpop.permute.xlu0 %681
    %v684 = vsel %vm670, %v669, %v682
    %685 = vrot.lane.b32.xlu0 %v666, 96
    %v686 = vpop.permute.xlu0 %685
    %s688 = scalar_lea.vmem %s17, 16
    %689 = vst.msk [vmem:[%s688] sm:$0xff] %vm670, %v686
    %691 = vrot.lane.b32.xlu0 %v669, 96
    %v692 = vpop.permute.xlu0 %691
    %s694 = scalar_lea.vmem %s17, 24
    %695 = vst.msk [vmem:[%s694] sm:$0xff] %vm670, %v692
    %696 = vrot.lane.b32.xlu0 %v674, 100
    %v697 = vpop.permute.xlu0 %696
    %v699 = vsel %vm670, %v686, %v697
    %700 = vrot.lane.b32.xlu0 %v666, 100
    %v701 = vpop.permute.xlu0 %700
    %v703 = vsel %vm670, %v692, %v701
    %704 = vrot.lane.b32.xlu0 %v666, 64
    %v705 = vpop.permute.xlu0 %704
    %707 = vst.msk [vmem:[%s16] sm:$0xff] %vm670, %v705
    %708 = vrot.lane.b32.xlu0 %v669, 64
    %v709 = vpop.permute.xlu0 %708
    %s711 = scalar_lea.vmem %s16, 8
    %712 = vst.msk [vmem:[%s711] sm:$0xff] %vm670, %v709
    %713 = vrot.lane.b32.xlu0 %v674, 68
    %v714 = vpop.permute.xlu0 %713
    %v716 = vsel %vm670, %v705, %v714
    %717 = vrot.lane.b32.xlu0 %v666, 68
    %v718 = vpop.permute.xlu0 %717
    %v720 = vsel %vm670, %v709, %v718
    %v721 = vld [vmem:[%s2] sm:$0xff]
    %s722 = scalar_lea.vmem %s2, 8
    %v723 = vld [vmem:[%s722] sm:$0xff]
    %v724 = vsub.f32 0.0, %v723
    %726 = vrot.lane.b32.xlu0 %v724, 8
    %v727 = vpop.permute.xlu0 %726
    %vm729 = vcmask 64512
    %v730 = vsel %vm729, %v721, %v727
    %732 = vrot.lane.b32.xlu0 %v721, 8
    %v733 = vpop.permute.xlu0 %732
    %v735 = vsel %vm729, %v723, %v733
    %s736 = scalar_lea.vmem %s2, 16
    %v737 = vld [vmem:[%s736] sm:$0xff]
    %s738 = scalar_lea.vmem %s2, 24
    %v739 = vld [vmem:[%s738] sm:$0xff]
    %v740 = vsub.f32 0.0, %v739
    %742 = vrot.lane.b32.xlu0 %v740, 8
    %v743 = vpop.permute.xlu0 %742
    %v745 = vsel %vm729, %v737, %v743
    %747 = vrot.lane.b32.xlu0 %v737, 8
    %v748 = vpop.permute.xlu0 %747
    %v750 = vsel %vm729, %v739, %v748
    %v751 = vld [vmem:[%s3] sm:$0xff]
    %s752 = scalar_lea.vmem %s3, 8
    %v753 = vld [vmem:[%s752] sm:$0xff]
    %v754 = vsub.f32 0.0, %v753
    %756 = vrot.lane.b32.xlu0 %v754, 4
    %v757 = vpop.permute.xlu0 %756
    %v759 = vsel %vm670, %v751, %v757
    %761 = vrot.lane.b32.xlu0 %v751, 4
    %v762 = vpop.permute.xlu0 %761
    %v764 = vsel %vm670, %v753, %v762
    %s765 = scalar_lea.vmem %s3, 16
    %v766 = vld [vmem:[%s765] sm:$0xff]
    %s767 = scalar_lea.vmem %s3, 24
    %v768 = vld [vmem:[%s767] sm:$0xff]
    %v769 = vsub.f32 0.0, %v768
    %771 = vrot.lane.b32.xlu0 %v769, 4
    %v772 = vpop.permute.xlu0 %771
    %v774 = vsel %vm670, %v766, %v772
    %776 = vrot.lane.b32.xlu0 %v766, 4
    %v777 = vpop.permute.xlu0 %776
    %v779 = vsel %vm670, %v768, %v777
    %v780 = vld [vmem:[%s4] sm:$0xff]
    %s781 = scalar_lea.vmem %s4, 8
    %v782 = vld [vmem:[%s781] sm:$0xff]
    %v783 = vsub.f32 0.0, %v782
    %785 = vrot.lane.b32.xlu0 %v783, 2
    %v786 = vpop.permute.xlu0 %785
    %vm788 = vcmask 15360
    %v789 = vsel %vm788, %v780, %v786
    %791 = vrot.lane.b32.xlu0 %v780, 2
    %v792 = vpop.permute.xlu0 %791
    %v794 = vsel %vm788, %v782, %v792
    %s795 = scalar_lea.vmem %s4, 16
    %v796 = vld [vmem:[%s795] sm:$0xff]
    %s797 = scalar_lea.vmem %s4, 24
    %v798 = vld [vmem:[%s797] sm:$0xff]
    %v799 = vsub.f32 0.0, %v798
    %801 = vrot.lane.b32.xlu0 %v799, 2
    %v802 = vpop.permute.xlu0 %801
    %v804 = vsel %vm788, %v796, %v802
    %806 = vrot.lane.b32.xlu0 %v796, 2
    %v807 = vpop.permute.xlu0 %806
    %v809 = vsel %vm788, %v798, %v807
    %v810 = vld [vmem:[%s5] sm:$0xff]
    %s811 = scalar_lea.vmem %s5, 8
    %v812 = vld [vmem:[%s811] sm:$0xff]
    %v813 = vsub.f32 0.0, %v812
    %815 = vrot.lane.b32.xlu0 %v813, 2
    %v816 = vpop.permute.xlu0 %815
    %v818 = vsel %vm788, %v810, %v816
    %820 = vrot.lane.b32.xlu0 %v810, 2
    %v821 = vpop.permute.xlu0 %820
    %v823 = vsel %vm788, %v812, %v821
    %s824 = scalar_lea.vmem %s5, 16
    %v825 = vld [vmem:[%s824] sm:$0xff]
    %s826 = scalar_lea.vmem %s5, 24
    %v827 = vld [vmem:[%s826] sm:$0xff]
    %v828 = vsub.f32 0.0, %v827
    %830 = vrot.lane.b32.xlu0 %v828, 2
    %v831 = vpop.permute.xlu0 %830
    %v833 = vsel %vm788, %v825, %v831
    %835 = vrot.lane.b32.xlu0 %v825, 2
    %v836 = vpop.permute.xlu0 %835
    %v838 = vsel %vm788, %v827, %v836
    %v839 = vld [vmem:[%s6] sm:$0xf]
    %s840 = scalar_lea.vmem %s6, 4
    %v841 = vld [vmem:[%s840] sm:$0xf]
    %v842 = vsub.f32 0.0, %v841
    %844 = vrot.lane.b32.xlu0 %v842, 2
    %v845 = vpop.permute.xlu0 %844
    %v847 = vsel %vm788, %v839, %v845
    %849 = vrot.lane.b32.xlu0 %v839, 2
    %v850 = vpop.permute.xlu0 %849
    %v852 = vsel %vm788, %v841, %v850
    %v854 = vrot.slane %v852, 4
    %vm856 = vcmask 1043456
    %v857 = vsel %vm856, %v847, %v854
    %s858 = scalar_lea.vmem %s6, 8
    %v859 = vld [vmem:[%s858] sm:$0xf]
    %s860 = scalar_lea.vmem %s6, 12
    %v861 = vld [vmem:[%s860] sm:$0xf]
    %v862 = vsub.f32 0.0, %v861
    %864 = vrot.lane.b32.xlu0 %v862, 2
    %v865 = vpop.permute.xlu0 %864
    %v867 = vsel %vm788, %v859, %v865
    %869 = vrot.lane.b32.xlu0 %v859, 2
    %v870 = vpop.permute.xlu0 %869
    %v872 = vsel %vm788, %v861, %v870
    %v874 = vrot.slane %v872, 4
    %v876 = vsel %vm856, %v867, %v874
    %v877 = vadd.s32 %v551, 8
    %v878 = vlaneseq
    %v879 = vand.u32 %v878, 127
    %vm880 = vcmp.eq.s32.totalorder %v551, %v879
    %vm881 = vcmp.eq.s32.totalorder %v877, %v879
    %v882 = vsel %vm880, 1.0, 0.0
    %v883 = vsel %vm881, 1.0, 0.0
    %v885 = vsel %vm670, %v804, 0
    %v888 = vsel %vm670, %v809, 0
    %890 = vmatprep.subr.mxu0 0.0
    %891 = vmatpush1.xpose.msra.mxu0 %v885
    %892 = vmatprep.subr.mxu0 0.0
    %893 = vmatpush1.xpose.msra.mxu0 %v888
    %894 = vmatprep.subr.mxu0 0.0
    %895 = vmatpush1.xpose.msra.mxu0 0.0
    %896 = vmatprep.subr.mxu0 0.0
    %897 = vmatpush1.xpose.msra.mxu0 0.0
    %898 = vmatprep.subr.mxu0 0.0
    %899 = vmatpush1.xpose.msra.mxu0 0.0
    %900 = vmatprep.subr.mxu0 0.0
    %901 = vmatpush1.xpose.msra.mxu0 0.0
    %902 = vmatprep.subr.mxu0 0.0
    %903 = vmatpush1.xpose.msra.mxu0 0.0
    %904 = vmatprep.subr.mxu0 0.0
    %905 = vmatpush1.xpose.msra.mxu0 0.0
    %906 = vmatprep.subr.mxu0 0.0
    %907 = vmatpush1.xpose.msra.mxu0 0.0
    %908 = vmatprep.subr.mxu0 0.0
    %909 = vmatpush1.xpose.msra.mxu0 0.0
    %910 = vmatprep.subr.mxu0 0.0
    %911 = vmatpush1.xpose.msra.mxu0 0.0
    %912 = vmatprep.subr.mxu0 0.0
    %913 = vmatpush1.xpose.msra.mxu0 0.0
    %914 = vmatprep.subr.mxu0 0.0
    %915 = vmatpush1.xpose.msra.mxu0 0.0
    %916 = vmatprep.subr.mxu0 0.0
    %917 = vmatpush1.xpose.msra.mxu0 0.0
    %918 = vmatprep.subr.mxu0 0.0
    %919 = vmatpush1.xpose.msra.mxu0 0.0
    %920 = vmatprep.subr.mxu0 0.0
    %921 = vmatpush1.xpose.msra.mxu0 0.0
    %922 = vmatprep.subr.mxu0 0.0
    %923 = vmatpush1.xpose.msra.mxu0 0.0
    %924 = vmatprep.subr.mxu0 0.0
    %925 = vmatpush1.xpose.msra.mxu0 0.0
    %926 = vmatprep.subr.mxu0 0.0
    %927 = vmatpush1.xpose.msra.mxu0 0.0
    %928 = vmatprep.subr.mxu0 0.0
    %929 = vmatpush1.xpose.msra.mxu0 0.0
    %930 = vmatprep.subr.mxu0 0.0
    %931 = vmatpush1.xpose.msra.mxu0 0.0
    %932 = vmatprep.subr.mxu0 0.0
    %933 = vmatpush1.xpose.msra.mxu0 0.0
    %934 = vmatprep.subr.mxu0 0.0
    %935 = vmatpush1.xpose.msra.mxu0 0.0
    %936 = vmatprep.subr.mxu0 0.0
    %937 = vmatpush1.xpose.msra.mxu0 0.0
    %938 = vmatprep.subr.mxu0 0.0
    %939 = vmatpush1.xpose.msra.mxu0 0.0
    %940 = vmatprep.subr.mxu0 0.0
    %941 = vmatpush1.xpose.msra.mxu0 0.0
    %942 = vmatprep.subr.mxu0 0.0
    %943 = vmatpush1.xpose.msra.mxu0 0.0
    %944 = vmatprep.subr.mxu0 0.0
    %945 = vmatpush1.xpose.msra.mxu0 0.0
    %946 = vmatprep.subr.mxu0 0.0
    %947 = vmatpush1.xpose.msra.mxu0 0.0
    %948 = vmatprep.subr.mxu0 0.0
    %949 = vmatpush1.xpose.msra.mxu0 0.0
    %950 = vmatprep.subr.mxu0 0.0
    %951 = vmatpush1.xpose.msra.mxu0 0.0
    %952 = vmatprep.subr.mxu0 0.0
    %953 = vmatpush1.xpose.msra.mxu0 0.0
    %954 = vmatprep.mubr.f32.mxu0 0.0
    %955 = vmatmul.mubr.f32.gmra.mrb[0].mxu0 %v885
    %v956 = vpop.f32.mrb[0].mxu0
    %v957 = vadd.f32 0.0, %v956
    %v958 = vpop.f32.mrb[0].mxu0
    %959 = vmatprep.mubr.f32.mxu0 0.0
    %960 = vmatmul.mubr.f32.gmra.mrb[0].mxu0 %v888
    %v961 = vpop.f32.mrb[0].mxu0
    %v962 = vadd.f32 0.0, %v961
    %v963 = vpop.f32.mrb[0].mxu0
    %964 = vdwg.mxu0
    %v966 = vsel %vm670, %v789, 0
    %v969 = vsel %vm670, %v794, 0
    %971 = vmatprep.subr.mxu0 0.0
    %972 = vmatpush1.xpose.msra.mxu0 %v966
    %973 = vmatprep.subr.mxu0 0.0
    %974 = vmatpush1.xpose.msra.mxu0 %v969
    %975 = vmatprep.subr.mxu0 0.0
    %976 = vmatpush1.xpose.msra.mxu0 0.0
    %977 = vmatprep.subr.mxu0 0.0
    %978 = vmatpush1.xpose.msra.mxu0 0.0
    %979 = vmatprep.subr.mxu0 0.0
    %980 = vmatpush1.xpose.msra.mxu0 0.0
    %981 = vmatprep.subr.mxu0 0.0
    %982 = vmatpush1.xpose.msra.mxu0 0.0
    %983 = vmatprep.subr.mxu0 0.0
    %984 = vmatpush1.xpose.msra.mxu0 0.0
    %985 = vmatprep.subr.mxu0 0.0
    %986 = vmatpush1.xpose.msra.mxu0 0.0
    %987 = vmatprep.subr.mxu0 0.0
    %988 = vmatpush1.xpose.msra.mxu0 0.0
    %989 = vmatprep.subr.mxu0 0.0
    %990 = vmatpush1.xpose.msra.mxu0 0.0
    %991 = vmatprep.subr.mxu0 0.0
    %992 = vmatpush1.xpose.msra.mxu0 0.0
    %993 = vmatprep.subr.mxu0 0.0
    %994 = vmatpush1.xpose.msra.mxu0 0.0
    %995 = vmatprep.subr.mxu0 0.0
    %996 = vmatpush1.xpose.msra.mxu0 0.0
    %997 = vmatprep.subr.mxu0 0.0
    %998 = vmatpush1.xpose.msra.mxu0 0.0
    %999 = vmatprep.subr.mxu0 0.0
    %1000 = vmatpush1.xpose.msra.mxu0 0.0
    %1001 = vmatprep.subr.mxu0 0.0
    %1002 = vmatpush1.xpose.msra.mxu0 0.0
    %1003 = vmatprep.subr.mxu0 0.0
    %1004 = vmatpush1.xpose.msra.mxu0 0.0
    %1005 = vmatprep.subr.mxu0 0.0
    %1006 = vmatpush1.xpose.msra.mxu0 0.0
    %1007 = vmatprep.subr.mxu0 0.0
    %1008 = vmatpush1.xpose.msra.mxu0 0.0
    %1009 = vmatprep.subr.mxu0 0.0
    %1010 = vmatpush1.xpose.msra.mxu0 0.0
    %1011 = vmatprep.subr.mxu0 0.0
    %1012 = vmatpush1.xpose.msra.mxu0 0.0
    %1013 = vmatprep.subr.mxu0 0.0
    %1014 = vmatpush1.xpose.msra.mxu0 0.0
    %1015 = vmatprep.subr.mxu0 0.0
    %1016 = vmatpush1.xpose.msra.mxu0 0.0
    %1017 = vmatprep.subr.mxu0 0.0
    %1018 = vmatpush1.xpose.msra.mxu0 0.0
    %1019 = vmatprep.subr.mxu0 0.0
    %1020 = vmatpush1.xpose.msra.mxu0 0.0
    %1021 = vmatprep.subr.mxu0 0.0
    %1022 = vmatpush1.xpose.msra.mxu0 0.0
    %1023 = vmatprep.subr.mxu0 0.0
    %1024 = vmatpush1.xpose.msra.mxu0 0.0
    %1025 = vmatprep.subr.mxu0 0.0
    %1026 = vmatpush1.xpose.msra.mxu0 0.0
    %1027 = vmatprep.subr.mxu0 0.0
    %1028 = vmatpush1.xpose.msra.mxu0 0.0
    %1029 = vmatprep.subr.mxu0 0.0
    %1030 = vmatpush1.xpose.msra.mxu0 0.0
    %1031 = vmatprep.subr.mxu0 0.0
    %1032 = vmatpush1.xpose.msra.mxu0 0.0
    %1033 = vmatprep.subr.mxu0 0.0
    %1034 = vmatpush1.xpose.msra.mxu0 0.0
    %1035 = vmatprep.mubr.f32.mxu0 0.0
    %1036 = vmatmul.mubr.f32.gmra.mrb[0].mxu0 %v966
    %v1037 = vpop.f32.mrb[0].mxu0
    %v1038 = vadd.f32 %v957, %v1037
    %v1039 = vpop.f32.mrb[0].mxu0
    %1040 = vmatprep.mubr.f32.mxu0 0.0
    %1041 = vmatmul.mubr.f32.gmra.mrb[0].mxu0 %v969
    %v1042 = vpop.f32.mrb[0].mxu0
    %v1043 = vadd.f32 %v962, %v1042
    %v1044 = vpop.f32.mrb[0].mxu0
    %1045 = vdwg.mxu0
    %s1046 = smul.f32 %s106, %s106
    %vm1047 = vcmask 130048
    %v1049 = vsel %vm1047, %v730, 0
    %v1052 = vsel %vm1047, %v735, 0
    %1054 = vmatprep.subr.mxu0 0.0
    %1055 = vmatpush1.msra.mxu0 %v1038
    %1056 = vmatprep.subr.mxu0 0.0
    %1057 = vmatpush1.msra.mxu0 %v1043
    %1058 = vmatprep.subr.mxu0 0.0
    %1059 = vmatpush1.msra.mxu0 0.0
    %1060 = vmatprep.subr.mxu0 0.0
    %1061 = vmatpush1.msra.mxu0 0.0
    %1062 = vmatprep.subr.mxu0 0.0
    %1063 = vmatpush1.msra.mxu0 0.0
    %1064 = vmatprep.subr.mxu0 0.0
    %1065 = vmatpush1.msra.mxu0 0.0
    %1066 = vmatprep.subr.mxu0 0.0
    %1067 = vmatpush1.msra.mxu0 0.0
    %1068 = vmatprep.subr.mxu0 0.0
    %1069 = vmatpush1.msra.mxu0 0.0
    %1070 = vmatprep.subr.mxu0 0.0
    %1071 = vmatpush1.msra.mxu0 0.0
    %1072 = vmatprep.subr.mxu0 0.0
    %1073 = vmatpush1.msra.mxu0 0.0
    %1074 = vmatprep.subr.mxu0 0.0
    %1075 = vmatpush1.msra.mxu0 0.0
    %1076 = vmatprep.subr.mxu0 0.0
    %1077 = vmatpush1.msra.mxu0 0.0
    %1078 = vmatprep.subr.mxu0 0.0
    %1079 = vmatpush1.msra.mxu0 0.0
    %1080 = vmatprep.subr.mxu0 0.0
    %1081 = vmatpush1.msra.mxu0 0.0
    %1082 = vmatprep.subr.mxu0 0.0
    %1083 = vmatpush1.msra.mxu0 0.0
    %1084 = vmatprep.subr.mxu0 0.0
    %1085 = vmatpush1.msra.mxu0 0.0
    %1086 = vmatprep.subr.mxu0 0.0
    %1087 = vmatpush1.msra.mxu0 0.0
    %1088 = vmatprep.subr.mxu0 0.0
    %1089 = vmatpush1.msra.mxu0 0.0
    %1090 = vmatprep.subr.mxu0 0.0
    %1091 = vmatpush1.msra.mxu0 0.0
    %1092 = vmatprep.subr.mxu0 0.0
    %1093 = vmatpush1.msra.mxu0 0.0
    %1094 = vmatprep.subr.mxu0 0.0
    %1095 = vmatpush1.msra.mxu0 0.0
    %1096 = vmatprep.subr.mxu0 0.0
    %1097 = vmatpush1.msra.mxu0 0.0
    %1098 = vmatprep.subr.mxu0 0.0
    %1099 = vmatpush1.msra.mxu0 0.0
    %1100 = vmatprep.subr.mxu0 0.0
    %1101 = vmatpush1.msra.mxu0 0.0
    %1102 = vmatprep.subr.mxu0 0.0
    %1103 = vmatpush1.msra.mxu0 0.0
    %1104 = vmatprep.subr.mxu0 0.0
    %1105 = vmatpush1.msra.mxu0 0.0
    %1106 = vmatprep.subr.mxu0 0.0
    %1107 = vmatpush1.msra.mxu0 0.0
    %1108 = vmatprep.subr.mxu0 0.0
    %1109 = vmatpush1.msra.mxu0 0.0
    %1110 = vmatprep.subr.mxu0 0.0
    %1111 = vmatpush1.msra.mxu0 0.0
    %1112 = vmatprep.subr.mxu0 0.0
    %1113 = vmatpush1.msra.mxu0 0.0
    %1114 = vmatprep.subr.mxu0 0.0
    %1115 = vmatpush1.msra.mxu0 0.0
    %1116 = vmatprep.subr.mxu0 0.0
    %1117 = vmatpush1.msra.mxu0 0.0
    %1118 = vmatprep.mubr.f32.mxu0 0.0
    %1119 = vmatmul.mubr.f32.gmra.mrb[0].mxu0 %v1049
    %v1120 = vpop.f32.mrb[0].mxu0
    %v1121 = vadd.f32 0.0, %v1120
    %v1122 = vpop.f32.mrb[0].mxu0
    %1123 = vmatprep.mubr.f32.mxu0 0.0
    %1124 = vmatmul.mubr.f32.gmra.mrb[0].mxu0 %v1052
    %v1125 = vpop.f32.mrb[0].mxu0
    %v1126 = vadd.f32 0.0, %v1125
    %v1127 = vpop.f32.mrb[0].mxu0
    %1128 = vdwg.mxu0
    %v1129 = vstv %s1046
    %v1130 = vmul.f32 %v1129, %v882
    %v1131 = vmul.f32 %v1129, %v883
    %v1133 = vsel %vm1047, %v1121, 0
    %v1136 = vsel %vm1047, %v1126, 0
    %1138 = vmatprep.subr.mxu0 0.0
    %1139 = vmatpush1.xpose.msra.mxu0 %v1049
    %1140 = vmatprep.subr.mxu0 0.0
    %1141 = vmatpush1.xpose.msra.mxu0 %v1052
    %1142 = vmatprep.subr.mxu0 0.0
    %1143 = vmatpush1.xpose.msra.mxu0 0.0
    %1144 = vmatprep.subr.mxu0 0.0
    %1145 = vmatpush1.xpose.msra.mxu0 0.0
    %1146 = vmatprep.subr.mxu0 0.0
    %1147 = vmatpush1.xpose.msra.mxu0 0.0
    %1148 = vmatprep.subr.mxu0 0.0
    %1149 = vmatpush1.xpose.msra.mxu0 0.0
    %1150 = vmatprep.subr.mxu0 0.0
    %1151 = vmatpush1.xpose.msra.mxu0 0.0
    %1152 = vmatprep.subr.mxu0 0.0
    %1153 = vmatpush1.xpose.msra.mxu0 0.0
    %1154 = vmatprep.subr.mxu0 0.0
    %1155 = vmatpush1.xpose.msra.mxu0 0.0
    %1156 = vmatprep.subr.mxu0 0.0
    %1157 = vmatpush1.xpose.msra.mxu0 0.0
    %1158 = vmatprep.subr.mxu0 0.0
    %1159 = vmatpush1.xpose.msra.mxu0 0.0
    %1160 = vmatprep.subr.mxu0 0.0
    %1161 = vmatpush1.xpose.msra.mxu0 0.0
    %1162 = vmatprep.subr.mxu0 0.0
    %1163 = vmatpush1.xpose.msra.mxu0 0.0
    %1164 = vmatprep.subr.mxu0 0.0
    %1165 = vmatpush1.xpose.msra.mxu0 0.0
    %1166 = vmatprep.subr.mxu0 0.0
    %1167 = vmatpush1.xpose.msra.mxu0 0.0
    %1168 = vmatprep.subr.mxu0 0.0
    %1169 = vmatpush1.xpose.msra.mxu0 0.0
    %1170 = vmatprep.subr.mxu0 0.0
    %1171 = vmatpush1.xpose.msra.mxu0 0.0
    %1172 = vmatprep.subr.mxu0 0.0
    %1173 = vmatpush1.xpose.msra.mxu0 0.0
    %1174 = vmatprep.subr.mxu0 0.0
    %1175 = vmatpush1.xpose.msra.mxu0 0.0
    %1176 = vmatprep.subr.mxu0 0.0
    %1177 = vmatpush1.xpose.msra.mxu0 0.0
    %1178 = vmatprep.subr.mxu0 0.0
    %1179 = vmatpush1.xpose.msra.mxu0 0.0
    %1180 = vmatprep.subr.mxu0 0.0
    %1181 = vmatpush1.xpose.msra.mxu0 0.0
    %1182 = vmatprep.subr.mxu0 0.0
    %1183 = vmatpush1.xpose.msra.mxu0 0.0
    %1184 = vmatprep.subr.mxu0 0.0
    %1185 = vmatpush1.xpose.msra.mxu0 0.0
    %1186 = vmatprep.subr.mxu0 0.0
    %1187 = vmatpush1.xpose.msra.mxu0 0.0
    %1188 = vmatprep.subr.mxu0 0.0
    %1189 = vmatpush1.xpose.msra.mxu0 0.0
    %1190 = vmatprep.subr.mxu0 0.0
    %1191 = vmatpush1.xpose.msra.mxu0 0.0
    %1192 = vmatprep.subr.mxu0 0.0
    %1193 = vmatpush1.xpose.msra.mxu0 0.0
    %1194 = vmatprep.subr.mxu0 0.0
    %1195 = vmatpush1.xpose.msra.mxu0 0.0
    %1196 = vmatprep.subr.mxu0 0.0
    %1197 = vmatpush1.xpose.msra.mxu0 0.0
    %1198 = vmatprep.subr.mxu0 0.0
    %1199 = vmatpush1.xpose.msra.mxu0 0.0
    %1200 = vmatprep.subr.mxu0 0.0
    %1201 = vmatpush1.xpose.msra.mxu0 0.0
    %1202 = vmatprep.mubr.f32.mxu0 0.0
    %1203 = vmatmul.mubr.f32.gmra.mrb[0].mxu0 %v1133
    %v1204 = vpop.f32.mrb[0].mxu0
    %v1205 = vadd.f32 %v1130, %v1204
    %v1206 = vpop.f32.mrb[0].mxu0
    %1207 = vmatprep.mubr.f32.mxu0 0.0
    %1208 = vmatmul.mubr.f32.gmra.mrb[0].mxu0 %v1136
    %v1209 = vpop.f32.mrb[0].mxu0
    %v1210 = vadd.f32 %v1131, %v1209
    %v1211 = vpop.f32.mrb[0].mxu0
    %1212 = vdwg.mxu0
    %1213 = vxpose.xlu0.b32.start [1/16] %v759, 128
    %1214 = vxpose.xlu0.b32.cont [2/16] %v764, 128
    %1215 = vxpose.xlu0.b32.cont [3/16] 0.0, 128
    %1216 = vxpose.xlu0.b32.cont [4/16] 0.0, 128
    %1217 = vxpose.xlu0.b32.cont [5/16] 0.0, 128
    %1218 = vxpose.xlu0.b32.cont [6/16] 0.0, 128
    %1219 = vxpose.xlu0.b32.cont [7/16] 0.0, 128
    %1220 = vxpose.xlu0.b32.cont [8/16] 0.0, 128
    %1221 = vxpose.xlu0.b32.cont [9/16] 0.0, 128
    %1222 = vxpose.xlu0.b32.cont [10/16] 0.0, 128
    %1223 = vxpose.xlu0.b32.cont [11/16] 0.0, 128
    %1224 = vxpose.xlu0.b32.cont [12/16] 0.0, 128
    %1225 = vxpose.xlu0.b32.cont [13/16] 0.0, 128
    %1226 = vxpose.xlu0.b32.cont [14/16] 0.0, 128
    %1227 = vxpose.xlu0.b32.cont [15/16] 0.0, 128
    %1228 = vxpose.xlu0.b32.end [16/16] 0.0, 128
    %v1229 = vpop.trf.xlu0
    %v1230 = vpop.trf.xlu0
    %v1231 = vpop.trf.xlu0
    %v1232 = vpop.trf.xlu0
    %v1233 = vpop.trf.xlu0
    %v1234 = vpop.trf.xlu0
    %v1235 = vpop.trf.xlu0
    %v1236 = vpop.trf.xlu0
    %v1237 = vpop.trf.xlu0
    %v1238 = vpop.trf.xlu0
    %v1239 = vpop.trf.xlu0
    %v1240 = vpop.trf.xlu0
    %v1241 = vpop.trf.xlu0
    %v1242 = vpop.trf.xlu0
    %v1243 = vpop.trf.xlu0
    %v1244 = vpop.trf.xlu0
    %v1246 = vsel %vm1047, %v1229, 0
    %1248 = vmatprep.subr.mxu0 0.0
    %1249 = vmatpush1.msra.mxu0 %v1205
    %1250 = vmatprep.subr.mxu0 0.0
    %1251 = vmatpush1.msra.mxu0 %v1210
    %1252 = vmatprep.subr.mxu0 0.0
    %1253 = vmatpush1.msra.mxu0 0.0
    %1254 = vmatprep.subr.mxu0 0.0
    %1255 = vmatpush1.msra.mxu0 0.0
    %1256 = vmatprep.subr.mxu0 0.0
    %1257 = vmatpush1.msra.mxu0 0.0
    %1258 = vmatprep.subr.mxu0 0.0
    %1259 = vmatpush1.msra.mxu0 0.0
    %1260 = vmatprep.subr.mxu0 0.0
    %1261 = vmatpush1.msra.mxu0 0.0
    %1262 = vmatprep.subr.mxu0 0.0
    %1263 = vmatpush1.msra.mxu0 0.0
    %1264 = vmatprep.subr.mxu0 0.0
    %1265 = vmatpush1.msra.mxu0 0.0
    %1266 = vmatprep.subr.mxu0 0.0
    %1267 = vmatpush1.msra.mxu0 0.0
    %1268 = vmatprep.subr.mxu0 0.0
    %1269 = vmatpush1.msra.mxu0 0.0
    %1270 = vmatprep.subr.mxu0 0.0
    %1271 = vmatpush1.msra.mxu0 0.0
    %1272 = vmatprep.subr.mxu0 0.0
    %1273 = vmatpush1.msra.mxu0 0.0
    %1274 = vmatprep.subr.mxu0 0.0
    %1275 = vmatpush1.msra.mxu0 0.0
    %1276 = vmatprep.subr.mxu0 0.0
    %1277 = vmatpush1.msra.mxu0 0.0
    %1278 = vmatprep.subr.mxu0 0.0
    %1279 = vmatpush1.msra.mxu0 0.0
    %1280 = vmatprep.subr.mxu0 0.0
    %1281 = vmatpush1.msra.mxu0 0.0
    %1282 = vmatprep.subr.mxu0 0.0
    %1283 = vmatpush1.msra.mxu0 0.0
    %1284 = vmatprep.subr.mxu0 0.0
    %1285 = vmatpush1.msra.mxu0 0.0
    %1286 = vmatprep.subr.mxu0 0.0
    %1287 = vmatpush1.msra.mxu0 0.0
    %1288 = vmatprep.subr.mxu0 0.0
    %1289 = vmatpush1.msra.mxu0 0.0
    %1290 = vmatprep.subr.mxu0 0.0
    %1291 = vmatpush1.msra.mxu0 0.0
    %1292 = vmatprep.subr.mxu0 0.0
    %1293 = vmatpush1.msra.mxu0 0.0
    %1294 = vmatprep.subr.mxu0 0.0
    %1295 = vmatpush1.msra.mxu0 0.0
    %1296 = vmatprep.subr.mxu0 0.0
    %1297 = vmatpush1.msra.mxu0 0.0
    %1298 = vmatprep.subr.mxu0 0.0
    %1299 = vmatpush1.msra.mxu0 0.0
    %1300 = vmatprep.subr.mxu0 0.0
    %1301 = vmatpush1.msra.mxu0 0.0
    %1302 = vmatprep.subr.mxu0 0.0
    %1303 = vmatpush1.msra.mxu0 0.0
    %1304 = vmatprep.subr.mxu0 0.0
    %1305 = vmatpush1.msra.mxu0 0.0
    %1306 = vmatprep.subr.mxu0 0.0
    %1307 = vmatpush1.msra.mxu0 0.0
    %1308 = vmatprep.subr.mxu0 0.0
    %1309 = vmatpush1.msra.mxu0 0.0
    %1310 = vmatprep.subr.mxu0 0.0
    %1311 = vmatpush1.msra.mxu0 0.0
    %1312 = vmatprep.mubr.f32.mxu0 0.0
    %1313 = vmatmul.mubr.f32.gmra.mrb[0].mxu0 %v1246
    %v1314 = vpop.f32.mrb[0].mxu0
    %v1315 = vadd.f32 0.0, %v1314
    %v1316 = vpop.f32.mrb[0].mxu0
    %1317 = vdwg.mxu0
    %v1319 = vsel %vm1047, %v1315, 0
    %1321 = vmatprep.subr.mxu0 0.0
    %1322 = vmatpush1.msra.mxu0 %v759
    %1323 = vmatprep.subr.mxu0 0.0
    %1324 = vmatpush1.msra.mxu0 %v764
    %1325 = vmatprep.subr.mxu0 0.0
    %1326 = vmatpush1.msra.mxu0 0.0
    %1327 = vmatprep.subr.mxu0 0.0
    %1328 = vmatpush1.msra.mxu0 0.0
    %1329 = vmatprep.subr.mxu0 0.0
    %1330 = vmatpush1.msra.mxu0 0.0
    %1331 = vmatprep.subr.mxu0 0.0
    %1332 = vmatpush1.msra.mxu0 0.0
    %1333 = vmatprep.subr.mxu0 0.0
    %1334 = vmatpush1.msra.mxu0 0.0
    %1335 = vmatprep.subr.mxu0 0.0
    %1336 = vmatpush1.msra.mxu0 0.0
    %1337 = vmatprep.subr.mxu0 0.0
    %1338 = vmatpush1.msra.mxu0 0.0
    %1339 = vmatprep.subr.mxu0 0.0
    %1340 = vmatpush1.msra.mxu0 0.0
    %1341 = vmatprep.subr.mxu0 0.0
    %1342 = vmatpush1.msra.mxu0 0.0
    %1343 = vmatprep.subr.mxu0 0.0
    %1344 = vmatpush1.msra.mxu0 0.0
    %1345 = vmatprep.subr.mxu0 0.0
    %1346 = vmatpush1.msra.mxu0 0.0
    %1347 = vmatprep.subr.mxu0 0.0
    %1348 = vmatpush1.msra.mxu0 0.0
    %1349 = vmatprep.subr.mxu0 0.0
    %1350 = vmatpush1.msra.mxu0 0.0
    %1351 = vmatprep.subr.mxu0 0.0
    %1352 = vmatpush1.msra.mxu0 0.0
    %1353 = vmatprep.subr.mxu0 0.0
    %1354 = vmatpush1.msra.mxu0 0.0
    %1355 = vmatprep.subr.mxu0 0.0
    %1356 = vmatpush1.msra.mxu0 0.0
    %1357 = vmatprep.subr.mxu0 0.0
    %1358 = vmatpush1.msra.mxu0 0.0
    %1359 = vmatprep.subr.mxu0 0.0
    %1360 = vmatpush1.msra.mxu0 0.0
    %1361 = vmatprep.subr.mxu0 0.0
    %1362 = vmatpush1.msra.mxu0 0.0
    %1363 = vmatprep.subr.mxu0 0.0
    %1364 = vmatpush1.msra.mxu0 0.0
    %1365 = vmatprep.subr.mxu0 0.0
    %1366 = vmatpush1.msra.mxu0 0.0
    %1367 = vmatprep.subr.mxu0 0.0
    %1368 = vmatpush1.msra.mxu0 0.0
    %1369 = vmatprep.subr.mxu0 0.0
    %1370 = vmatpush1.msra.mxu0 0.0
    %1371 = vmatprep.subr.mxu0 0.0
    %1372 = vmatpush1.msra.mxu0 0.0
    %1373 = vmatprep.subr.mxu0 0.0
    %1374 = vmatpush1.msra.mxu0 0.0
    %1375 = vmatprep.subr.mxu0 0.0
    %1376 = vmatpush1.msra.mxu0 0.0
    %1377 = vmatprep.subr.mxu0 0.0
    %1378 = vmatpush1.msra.mxu0 0.0
    %1379 = vmatprep.subr.mxu0 0.0
    %1380 = vmatpush1.msra.mxu0 0.0
    %1381 = vmatprep.subr.mxu0 0.0
    %1382 = vmatpush1.msra.mxu0 0.0
    %1383 = vmatprep.subr.mxu0 0.0
    %1384 = vmatpush1.msra.mxu0 0.0
    %1385 = vmatprep.mubr.f32.mxu0 0.0
    %1386 = vmatmul.mubr.f32.gmra.mrb[0].mxu0 %v1319
    %v1387 = vpop.f32.mrb[0].mxu0
    %v1388 = vadd.f32 0.0, %v1387
    %v1389 = vpop.f32.mrb[0].mxu0
    %1390 = vdwg.mxu0
    %1392 = vrot.lane.b32.xlu0 %v882, 4
    %v1393 = vpop.permute.xlu0 %1392
    %v1395 = vsel %vm670, %v1388, %v1393
    %v1396 = vsel %vm670, %v1388, 0.0
    %v1397 = vmul.f32 %v1395, %v1395
    %v1398 = vmul.f32 %v1396, %v1396
    %v1400 = vrot.slane %v1398, 4
    %v1402 = vadd.f32 %v1397, %v1400
    %v1403 = vrcp.pop %v1402
    %v1404 = vmul.f32 %v1395, %v1403
    %v1405 = vsub.f32 0.0, %v1396
    %v1407 = vrot.slane %v1402, 4
    %v1409 = vrcp.pop %v1407
    %v1410 = vmul.f32 %v1405, %v1409
    %1412 = vset.pattern.permute.xlu0 0
    %1413 = vperm.xlu0 %1412, %v1404
    %v1414 = vpop.permute.xlu0 %1413
    %v1416 = vmul.f32 %v1395, %v1414
    %1418 = vset.pattern.permute.xlu0 0
    %1419 = vperm.xlu0 %1418, %v1410
    %v1420 = vpop.permute.xlu0 %1419
    %v1422 = vmul.f32 %v1396, %v1420
    %v1424 = vrot.slane %v1422, 4
    %v1426 = vsub.f32 %v1416, %v1424
    %v1427 = vrot.slane %v1420, 4
    %v1429 = vmul.f32 %v1395, %v1427
    %v1430 = vrot.slane %v1414, 4
    %v1432 = vmul.f32 %v1396, %v1430
    %v1434 = vrot.slane %v1432, 4
    %v1436 = vadd.f32 %v1429, %v1434
    %1438 = vset.pattern.permute.xlu0 0
    %1439 = vperm.xlu0 %1438, %v1395
    %v1440 = vpop.permute.xlu0 %1439
    %v1442 = vlaneseq
    %v1443 = vshrl.u32 %v1442, 7
    %v1444 = vsub.s32 0, %v1443
    %v1445 = vrot.slane %v1426, %v1444
    %v1446 = vmul.f32 %v1440, %v1445
    %1448 = vset.pattern.permute.xlu0 0
    %1449 = vperm.xlu0 %1448, %v1396
    %v1450 = vpop.permute.xlu0 %1449
    %v1452 = vlaneseq
    %v1453 = vshrl.u32 %v1452, 7
    %v1454 = vsub.s32 0, %v1453
    %v1455 = vrot.slane %v1436, %v1454
    %v1456 = vmul.f32 %v1450, %v1455
    %v1458 = vrot.slane %v1456, 4
    %v1460 = vsub.f32 %v1446, %v1458
    %v1461 = vsub.f32 %v1395, %v1460
    %v1462 = vmul.f32 %v1440, %v1455
    %v1463 = vmul.f32 %v1450, %v1445
    %v1465 = vrot.slane %v1463, 4
    %v1467 = vadd.f32 %v1462, %v1465
    %v1469 = vrot.slane %v1467, 4
    %v1471 = vsub.f32 %v1396, %v1469
    %v1472 = vsel %vm554, %v1445, %v1461
    %v1474 = vrot.slane %v1471, 4
    %v1476 = vsel %vm554, %v1455, %v1474
    %v1477 = vmul.f32 %v1472, %v1472
    %v1478 = vmul.f32 %v1476, %v1476
    %v1479 = vadd.f32 %v1477, %v1478
    %v1480 = vrcp.pop %v1479
    %v1481 = vmul.f32 %v1472, %v1480
    %v1482 = vsub.f32 0.0, %v1476
    %v1483 = vmul.f32 %v1482, %v1480
    %1485 = vset.pattern.permute.xlu0 1
    %1486 = vperm.xlu0 %1485, %v1481
    %v1487 = vpop.permute.xlu0 %1486
    %v1489 = vmul.f32 %v1472, %v1487
    %1491 = vset.pattern.permute.xlu0 1
    %1492 = vperm.xlu0 %1491, %v1483
    %v1493 = vpop.permute.xlu0 %1492
    %v1495 = vmul.f32 %v1476, %v1493
    %v1496 = vsub.f32 %v1489, %v1495
    %v1497 = vmul.f32 %v1472, %v1493
    %v1498 = vmul.f32 %v1476, %v1487
    %v1499 = vadd.f32 %v1497, %v1498
    %1501 = vset.pattern.permute.xlu0 1
    %1502 = vperm.xlu0 %1501, %v1472
    %v1503 = vpop.permute.xlu0 %1502
    %v1505 = vlaneseq
    %v1506 = vshrl.u32 %v1505, 7
    %v1507 = vsub.s32 1, %v1506
    %v1508 = vrot.slane %v1496, %v1507
    %v1509 = vmul.f32 %v1503, %v1508
    %1511 = vset.pattern.permute.xlu0 1
    %1512 = vperm.xlu0 %1511, %v1476
    %v1513 = vpop.permute.xlu0 %1512
    %v1515 = vlaneseq
    %v1516 = vshrl.u32 %v1515, 7
    %v1517 = vsub.s32 1, %v1516
    %v1518 = vrot.slane %v1499, %v1517
    %v1519 = vmul.f32 %v1513, %v1518
    %v1520 = vsub.f32 %v1509, %v1519
    %v1521 = vsub.f32 %v1472, %v1520
    %v1522 = vmul.f32 %v1503, %v1518
    %v1523 = vmul.f32 %v1513, %v1508
    %v1524 = vadd.f32 %v1522, %v1523
    %v1525 = vsub.f32 %v1476, %v1524
    %v1526 = vsel %vm563, %v1508, %v1521
    %v1527 = vsel %vm563, %v1518, %v1525
    %v1528 = vmul.f32 %v1526, %v1526
    %v1529 = vmul.f32 %v1527, %v1527
    %v1530 = vadd.f32 %v1528, %v1529
    %v1531 = vrcp.pop %v1530
    %v1532 = vmul.f32 %v1526, %v1531
    %v1533 = vsub.f32 0.0, %v1527
    %v1534 = vmul.f32 %v1533, %v1531
    %1536 = vset.pattern.permute.xlu0 2
    %1537 = vperm.xlu0 %1536, %v1532
    %v1538 = vpop.permute.xlu0 %1537
    %v1540 = vmul.f32 %v1526, %v1538
    %1542 = vset.pattern.permute.xlu0 2
    %1543 = vperm.xlu0 %1542, %v1534
    %v1544 = vpop.permute.xlu0 %1543
    %v1546 = vmul.f32 %v1527, %v1544
    %v1547 = vsub.f32 %v1540, %v1546
    %v1548 = vmul.f32 %v1526, %v1544
    %v1549 = vmul.f32 %v1527, %v1538
    %v1550 = vadd.f32 %v1548, %v1549
    %1552 = vset.pattern.permute.xlu0 2
    %1553 = vperm.xlu0 %1552, %v1526
    %v1554 = vpop.permute.xlu0 %1553
    %v1556 = vlaneseq
    %v1557 = vshrl.u32 %v1556, 7
    %v1558 = vsub.s32 2, %v1557
    %v1559 = vrot.slane %v1547, %v1558
    %v1560 = vmul.f32 %v1554, %v1559
    %1562 = vset.pattern.permute.xlu0 2
    %1563 = vperm.xlu0 %1562, %v1527
    %v1564 = vpop.permute.xlu0 %1563
    %v1566 = vlaneseq
    %v1567 = vshrl.u32 %v1566, 7
    %v1568 = vsub.s32 2, %v1567
    %v1569 = vrot.slane %v1550, %v1568
    %v1570 = vmul.f32 %v1564, %v1569
    %v1571 = vsub.f32 %v1560, %v1570
    %v1572 = vsub.f32 %v1526, %v1571
    %v1573 = vmul.f32 %v1554, %v1569
    %v1574 = vmul.f32 %v1564, %v1559
    %v1575 = vadd.f32 %v1573, %v1574
    %v1576 = vsub.f32 %v1527, %v1575
    %v1577 = vsel %vm572, %v1559, %v1572
    %v1578 = vsel %vm572, %v1569, %v1576
    %v1579 = vmul.f32 %v1577, %v1577
    %v1580 = vmul.f32 %v1578, %v1578
    %v1581 = vadd.f32 %v1579, %v1580
    %v1582 = vrcp.pop %v1581
    %v1583 = vmul.f32 %v1577, %v1582
    %v1584 = vsub.f32 0.0, %v1578
    %v1585 = vmul.f32 %v1584, %v1582
    %1587 = vset.pattern.permute.xlu0 3
    %1588 = vperm.xlu0 %1587, %v1583
    %v1589 = vpop.permute.xlu0 %1588
    %v1591 = vmul.f32 %v1577, %v1589
    %1593 = vset.pattern.permute.xlu0 3
    %1594 = vperm.xlu0 %1593, %v1585
    %v1595 = vpop.permute.xlu0 %1594
    %v1597 = vmul.f32 %v1578, %v1595
    %v1598 = vsub.f32 %v1591, %v1597
    %v1599 = vmul.f32 %v1577, %v1595
    %v1600 = vmul.f32 %v1578, %v1589
    %v1601 = vadd.f32 %v1599, %v1600
    %1603 = vset.pattern.permute.xlu0 3
    %1604 = vperm.xlu0 %1603, %v1577
    %v1605 = vpop.permute.xlu0 %1604
    %v1607 = vlaneseq
    %v1608 = vshrl.u32 %v1607, 7
    %v1609 = vsub.s32 3, %v1608
    %v1610 = vrot.slane %v1598, %v1609
    %v1611 = vmul.f32 %v1605, %v1610
    %1613 = vset.pattern.permute.xlu0 3
    %1614 = vperm.xlu0 %1613, %v1578
    %v1615 = vpop.permute.xlu0 %1614
    %v1617 = vlaneseq
    %v1618 = vshrl.u32 %v1617, 7
    %v1619 = vsub.s32 3, %v1618
    %v1620 = vrot.slane %v1601, %v1619
    %v1621 = vmul.f32 %v1615, %v1620
    %v1622 = vsub.f32 %v1611, %v1621
    %v1623 = vsub.f32 %v1577, %v1622
    %v1624 = vmul.f32 %v1605, %v1620
    %v1625 = vmul.f32 %v1615, %v1610
    %v1626 = vadd.f32 %v1624, %v1625
    %v1627 = vsub.f32 %v1578, %v1626
    %v1628 = vsel %vm581, %v1610, %v1623
    %v1629 = vsel %vm581, %v1620, %v1627
    %v1630 = vsub.f32 0.0, %v1629
    %1632 = vrot.lane.b32.xlu0 %v1628, 124
    %v1633 = vpop.permute.xlu0 %1632
    %v1635 = vsel %vm670, %v1633, %v1630
    %1637 = vrot.lane.b32.xlu0 %v1629, 124
    %v1638 = vpop.permute.xlu0 %1637
    %v1640 = vsel %vm670, %v1638, %v1628
    %v1642 = vrot.slane %v1640, 4
    %v1644 = vsel %vm856, %v1635, %v1642
    %1645 = vmatprep.subr.mxu0 0.0
    %1646 = vmatpush1.msra.mxu0 %v789
    %1647 = vmatprep.subr.mxu0 0.0
    %1648 = vmatpush1.msra.mxu0 %v794
    %1649 = vmatprep.subr.mxu0 0.0
    %1650 = vmatpush1.msra.mxu0 0.0
    %1651 = vmatprep.subr.mxu0 0.0
    %1652 = vmatpush1.msra.mxu0 0.0
    %1653 = vmatprep.subr.mxu0 0.0
    %1654 = vmatpush1.msra.mxu0 0.0
    %1655 = vmatprep.subr.mxu0 0.0
    %1656 = vmatpush1.msra.mxu0 0.0
    %1657 = vmatprep.subr.mxu0 0.0
    %1658 = vmatpush1.msra.mxu0 0.0
    %1659 = vmatprep.subr.mxu0 0.0
    %1660 = vmatpush1.msra.mxu0 0.0
    %1661 = vmatprep.subr.mxu0 0.0
    %1662 = vmatpush1.msra.mxu0 0.0
    %1663 = vmatprep.subr.mxu0 0.0
    %1664 = vmatpush1.msra.mxu0 0.0
    %1665 = vmatprep.subr.mxu0 0.0
    %1666 = vmatpush1.msra.mxu0 0.0
    %1667 = vmatprep.subr.mxu0 0.0
    %1668 = vmatpush1.msra.mxu0 0.0
    %1669 = vmatprep.subr.mxu0 0.0
    %1670 = vmatpush1.msra.mxu0 0.0
    %1671 = vmatprep.subr.mxu0 0.0
    %1672 = vmatpush1.msra.mxu0 0.0
    %1673 = vmatprep.subr.mxu0 0.0
    %1674 = vmatpush1.msra.mxu0 0.0
    %1675 = vmatprep.subr.mxu0 0.0
    %1676 = vmatpush1.msra.mxu0 0.0
    %1677 = vmatprep.subr.mxu0 0.0
    %1678 = vmatpush1.msra.mxu0 0.0
    %1679 = vmatprep.subr.mxu0 0.0
    %1680 = vmatpush1.msra.mxu0 0.0
    %1681 = vmatprep.subr.mxu0 0.0
    %1682 = vmatpush1.msra.mxu0 0.0
    %1683 = vmatprep.subr.mxu0 0.0
    %1684 = vmatpush1.msra.mxu0 0.0
    %1685 = vmatprep.subr.mxu0 0.0
    %1686 = vmatpush1.msra.mxu0 0.0
    %1687 = vmatprep.subr.mxu0 0.0
    %1688 = vmatpush1.msra.mxu0 0.0
    %1689 = vmatprep.subr.mxu0 0.0
    %1690 = vmatpush1.msra.mxu0 0.0
    %1691 = vmatprep.subr.mxu0 0.0
    %1692 = vmatpush1.msra.mxu0 0.0
    %1693 = vmatprep.subr.mxu0 0.0
    %1694 = vmatpush1.msra.mxu0 0.0
    %1695 = vmatprep.subr.mxu0 0.0
    %1696 = vmatpush1.msra.mxu0 0.0
    %1697 = vmatprep.subr.mxu0 0.0
    %1698 = vmatpush1.msra.mxu0 0.0
    %1699 = vmatprep.subr.mxu0 0.0
    %1700 = vmatpush1.msra.mxu0 0.0
    %1701 = vmatprep.subr.mxu0 0.0
    %1702 = vmatpush1.msra.mxu0 0.0
    %1703 = vmatprep.subr.mxu0 0.0
    %1704 = vmatpush1.msra.mxu0 0.0
    %1705 = vmatprep.subr.mxu0 0.0
    %1706 = vmatpush1.msra.mxu0 0.0
    %1707 = vmatprep.subr.mxu0 0.0
    %1708 = vmatpush1.msra.mxu0 0.0
    %1709 = vmatprep.mubr.f32.mxu0 0.0
    %1710 = vmatmul.mubr.f32.gmra.mrb[0].mxu0 %v1049
    %v1711 = vpop.f32.mrb[0].mxu0
    %v1712 = vadd.f32 0.0, %v1711
    %v1713 = vpop.f32.mrb[0].mxu0
    %1714 = vmatprep.mubr.f32.mxu0 0.0
    %1715 = vmatmul.mubr.f32.gmra.mrb[0].mxu0 %v1052
    %v1716 = vpop.f32.mrb[0].mxu0
    %v1717 = vadd.f32 0.0, %v1716
    %v1718 = vpop.f32.mrb[0].mxu0
    %1719 = vdwg.mxu0
    %1720 = vmatprep.subr.mxu0 0.0
    %1721 = vmatpush1.msra.mxu0 %v1712
    %1722 = vmatprep.subr.mxu0 0.0
    %1723 = vmatpush1.msra.mxu0 %v1717
    %1724 = vmatprep.subr.mxu0 0.0
    %1725 = vmatpush1.msra.mxu0 0.0
    %1726 = vmatprep.subr.mxu0 0.0
    %1727 = vmatpush1.msra.mxu0 0.0
    %1728 = vmatprep.subr.mxu0 0.0
    %1729 = vmatpush1.msra.mxu0 0.0
    %1730 = vmatprep.subr.mxu0 0.0
    %1731 = vmatpush1.msra.mxu0 0.0
    %1732 = vmatprep.subr.mxu0 0.0
    %1733 = vmatpush1.msra.mxu0 0.0
    %1734 = vmatprep.subr.mxu0 0.0
    %1735 = vmatpush1.msra.mxu0 0.0
    %1736 = vmatprep.subr.mxu0 0.0
    %1737 = vmatpush1.msra.mxu0 0.0
    %1738 = vmatprep.subr.mxu0 0.0
    %1739 = vmatpush1.msra.mxu0 0.0
    %1740 = vmatprep.subr.mxu0 0.0
    %1741 = vmatpush1.msra.mxu0 0.0
    %1742 = vmatprep.subr.mxu0 0.0
    %1743 = vmatpush1.msra.mxu0 0.0
    %1744 = vmatprep.subr.mxu0 0.0
    %1745 = vmatpush1.msra.mxu0 0.0
    %1746 = vmatprep.subr.mxu0 0.0
    %1747 = vmatpush1.msra.mxu0 0.0
    %1748 = vmatprep.subr.mxu0 0.0
    %1749 = vmatpush1.msra.mxu0 0.0
    %1750 = vmatprep.subr.mxu0 0.0
    %1751 = vmatpush1.msra.mxu0 0.0
    %1752 = vmatprep.subr.mxu0 0.0
    %1753 = vmatpush1.msra.mxu0 0.0
    %1754 = vmatprep.subr.mxu0 0.0
    %1755 = vmatpush1.msra.mxu0 0.0
    %1756 = vmatprep.subr.mxu0 0.0
    %1757 = vmatpush1.msra.mxu0 0.0
    %1758 = vmatprep.subr.mxu0 0.0
    %1759 = vmatpush1.msra.mxu0 0.0
    %1760 = vmatprep.subr.mxu0 0.0
    %1761 = vmatpush1.msra.mxu0 0.0
    %1762 = vmatprep.subr.mxu0 0.0
    %1763 = vmatpush1.msra.mxu0 0.0
    %1764 = vmatprep.subr.mxu0 0.0
    %1765 = vmatpush1.msra.mxu0 0.0
    %1766 = vmatprep.subr.mxu0 0.0
    %1767 = vmatpush1.msra.mxu0 0.0
    %1768 = vmatprep.subr.mxu0 0.0
    %1769 = vmatpush1.msra.mxu0 0.0
    %1770 = vmatprep.subr.mxu0 0.0
    %1771 = vmatpush1.msra.mxu0 0.0
    %1772 = vmatprep.subr.mxu0 0.0
    %1773 = vmatpush1.msra.mxu0 0.0
    %1774 = vmatprep.subr.mxu0 0.0
    %1775 = vmatpush1.msra.mxu0 0.0
    %1776 = vmatprep.subr.mxu0 0.0
    %1777 = vmatpush1.msra.mxu0 0.0
    %1778 = vmatprep.subr.mxu0 0.0
    %1779 = vmatpush1.msra.mxu0 0.0
    %1780 = vmatprep.subr.mxu0 0.0
    %1781 = vmatpush1.msra.mxu0 0.0
    %1782 = vmatprep.subr.mxu0 0.0
    %1783 = vmatpush1.msra.mxu0 0.0
    %1784 = vmatprep.mubr.f32.mxu0 0.0
    %1785 = vmatmul.mubr.f32.gmra.mrb[0].mxu0 %v1246
    %v1786 = vpop.f32.mrb[0].mxu0
    %v1787 = vadd.f32 0.0, %v1786
    %v1788 = vpop.f32.mrb[0].mxu0
    %1789 = vdwg.mxu0
    %v1791 = vsel %vm729, %v1644, 0
    %1793 = vmatprep.subr.mxu0 0.0
    %1794 = vmatpush1.msra.mxu0 %v1787
    %1795 = vmatprep.subr.mxu0 0.0
    %1796 = vmatpush1.msra.mxu0 0.0
    %1797 = vmatprep.subr.mxu0 0.0
    %1798 = vmatpush1.msra.mxu0 0.0
    %1799 = vmatprep.subr.mxu0 0.0
    %1800 = vmatpush1.msra.mxu0 0.0
    %1801 = vmatprep.subr.mxu0 0.0
    %1802 = vmatpush1.msra.mxu0 0.0
    %1803 = vmatprep.subr.mxu0 0.0
    %1804 = vmatpush1.msra.mxu0 0.0
    %1805 = vmatprep.subr.mxu0 0.0
    %1806 = vmatpush1.msra.mxu0 0.0
    %1807 = vmatprep.subr.mxu0 0.0
    %1808 = vmatpush1.msra.mxu0 0.0
    %1809 = vmatprep.subr.mxu0 0.0
    %1810 = vmatpush1.msra.mxu0 0.0
    %1811 = vmatprep.subr.mxu0 0.0
    %1812 = vmatpush1.msra.mxu0 0.0
    %1813 = vmatprep.subr.mxu0 0.0
    %1814 = vmatpush1.msra.mxu0 0.0
    %1815 = vmatprep.subr.mxu0 0.0
    %1816 = vmatpush1.msra.mxu0 0.0
    %1817 = vmatprep.subr.mxu0 0.0
    %1818 = vmatpush1.msra.mxu0 0.0
    %1819 = vmatprep.subr.mxu0 0.0
    %1820 = vmatpush1.msra.mxu0 0.0
    %1821 = vmatprep.subr.mxu0 0.0
    %1822 = vmatpush1.msra.mxu0 0.0
    %1823 = vmatprep.subr.mxu0 0.0
    %1824 = vmatpush1.msra.mxu0 0.0
    %1825 = vmatprep.subr.mxu0 0.0
    %1826 = vmatpush1.msra.mxu0 0.0
    %1827 = vmatprep.subr.mxu0 0.0
    %1828 = vmatpush1.msra.mxu0 0.0
    %1829 = vmatprep.subr.mxu0 0.0
    %1830 = vmatpush1.msra.mxu0 0.0
    %1831 = vmatprep.subr.mxu0 0.0
    %1832 = vmatpush1.msra.mxu0 0.0
    %1833 = vmatprep.subr.mxu0 0.0
    %1834 = vmatpush1.msra.mxu0 0.0
    %1835 = vmatprep.subr.mxu0 0.0
    %1836 = vmatpush1.msra.mxu0 0.0
    %1837 = vmatprep.subr.mxu0 0.0
    %1838 = vmatpush1.msra.mxu0 0.0
    %1839 = vmatprep.subr.mxu0 0.0
    %1840 = vmatpush1.msra.mxu0 0.0
    %1841 = vmatprep.subr.mxu0 0.0
    %1842 = vmatpush1.msra.mxu0 0.0
    %1843 = vmatprep.subr.mxu0 0.0
    %1844 = vmatpush1.msra.mxu0 0.0
    %1845 = vmatprep.subr.mxu0 0.0
    %1846 = vmatpush1.msra.mxu0 0.0
    %1847 = vmatprep.subr.mxu0 0.0
    %1848 = vmatpush1.msra.mxu0 0.0
    %1849 = vmatprep.subr.mxu0 0.0
    %1850 = vmatpush1.msra.mxu0 0.0
    %1851 = vmatprep.subr.mxu0 0.0
    %1852 = vmatpush1.msra.mxu0 0.0
    %1853 = vmatprep.subr.mxu0 0.0
    %1854 = vmatpush1.msra.mxu0 0.0
    %1855 = vmatprep.subr.mxu0 0.0
    %1856 = vmatpush1.msra.mxu0 0.0
    %1857 = vmatprep.mubr.f32.mxu0 0.0
    %1858 = vmatmul.mubr.f32.gmra.mrb[0].mxu0 %v1791
    %v1859 = vpop.f32.mrb[0].mxu0
    %v1860 = vadd.f32 0.0, %v1859
    %v1861 = vpop.f32.mrb[0].mxu0
    %1862 = vdwg.mxu0
    %vm1863 = vcmask 11264
    %1864 = vst.msk [vmem:[%s14] sm:$0xf] %vm1863, %v1860
    %s1865 = scalar_lea.vmem %s14, 4
    %vm1866 = vcmask 15364
    %1867 = vst.msk [vmem:[%s1865 - $0x4] sm:$0xf0] %vm1866, %v1860
    %1868 = vxpose.xlu0.b32.start [1/16] %v1860, 128
    %1869 = vxpose.xlu0.b32.cont [2/16] 0.0, 128
    %1870 = vxpose.xlu0.b32.cont [3/16] 0.0, 128
    %1871 = vxpose.xlu0.b32.cont [4/16] 0.0, 128
    %1872 = vxpose.xlu0.b32.cont [5/16] 0.0, 128
    %1873 = vxpose.xlu0.b32.cont [6/16] 0.0, 128
    %1874 = vxpose.xlu0.b32.cont [7/16] 0.0, 128
    %1875 = vxpose.xlu0.b32.cont [8/16] 0.0, 128
    %1876 = vxpose.xlu0.b32.cont [9/16] 0.0, 128
    %1877 = vxpose.xlu0.b32.cont [10/16] 0.0, 128
    %1878 = vxpose.xlu0.b32.cont [11/16] 0.0, 128
    %1879 = vxpose.xlu0.b32.cont [12/16] 0.0, 128
    %1880 = vxpose.xlu0.b32.cont [13/16] 0.0, 128
    %1881 = vxpose.xlu0.b32.cont [14/16] 0.0, 128
    %1882 = vxpose.xlu0.b32.cont [15/16] 0.0, 128
    %1883 = vxpose.xlu0.b32.end [16/16] 0.0, 128
    %v1884 = vpop.trf.xlu0
    %v1885 = vpop.trf.xlu0
    %v1886 = vpop.trf.xlu0
    %v1887 = vpop.trf.xlu0
    %v1888 = vpop.trf.xlu0
    %v1889 = vpop.trf.xlu0
    %v1890 = vpop.trf.xlu0
    %v1891 = vpop.trf.xlu0
    %v1892 = vpop.trf.xlu0
    %v1893 = vpop.trf.xlu0
    %v1894 = vpop.trf.xlu0
    %v1895 = vpop.trf.xlu0
    %v1896 = vpop.trf.xlu0
    %v1897 = vpop.trf.xlu0
    %v1898 = vpop.trf.xlu0
    %v1899 = vpop.trf.xlu0
    %v1901 = vsel %vm729, %v1884, 0
    %1903 = vmatprep.subr.mxu0 0.0
    %1904 = vmatpush1.msra.mxu0 %v1787
    %1905 = vmatprep.subr.mxu0 0.0
    %1906 = vmatpush1.msra.mxu0 0.0
    %1907 = vmatprep.subr.mxu0 0.0
    %1908 = vmatpush1.msra.mxu0 0.0
    %1909 = vmatprep.subr.mxu0 0.0
    %1910 = vmatpush1.msra.mxu0 0.0
    %1911 = vmatprep.subr.mxu0 0.0
    %1912 = vmatpush1.msra.mxu0 0.0
    %1913 = vmatprep.subr.mxu0 0.0
    %1914 = vmatpush1.msra.mxu0 0.0
    %1915 = vmatprep.subr.mxu0 0.0
    %1916 = vmatpush1.msra.mxu0 0.0
    %1917 = vmatprep.subr.mxu0 0.0
    %1918 = vmatpush1.msra.mxu0 0.0
    %1919 = vmatprep.subr.mxu0 0.0
    %1920 = vmatpush1.msra.mxu0 0.0
    %1921 = vmatprep.subr.mxu0 0.0
    %1922 = vmatpush1.msra.mxu0 0.0
    %1923 = vmatprep.subr.mxu0 0.0
    %1924 = vmatpush1.msra.mxu0 0.0
    %1925 = vmatprep.subr.mxu0 0.0
    %1926 = vmatpush1.msra.mxu0 0.0
    %1927 = vmatprep.subr.mxu0 0.0
    %1928 = vmatpush1.msra.mxu0 0.0
    %1929 = vmatprep.subr.mxu0 0.0
    %1930 = vmatpush1.msra.mxu0 0.0
    %1931 = vmatprep.subr.mxu0 0.0
    %1932 = vmatpush1.msra.mxu0 0.0
    %1933 = vmatprep.subr.mxu0 0.0
    %1934 = vmatpush1.msra.mxu0 0.0
    %1935 = vmatprep.subr.mxu0 0.0
    %1936 = vmatpush1.msra.mxu0 0.0
    %1937 = vmatprep.subr.mxu0 0.0
    %1938 = vmatpush1.msra.mxu0 0.0
    %1939 = vmatprep.subr.mxu0 0.0
    %1940 = vmatpush1.msra.mxu0 0.0
    %1941 = vmatprep.subr.mxu0 0.0
    %1942 = vmatpush1.msra.mxu0 0.0
    %1943 = vmatprep.subr.mxu0 0.0
    %1944 = vmatpush1.msra.mxu0 0.0
    %1945 = vmatprep.subr.mxu0 0.0
    %1946 = vmatpush1.msra.mxu0 0.0
    %1947 = vmatprep.subr.mxu0 0.0
    %1948 = vmatpush1.msra.mxu0 0.0
    %1949 = vmatprep.subr.mxu0 0.0
    %1950 = vmatpush1.msra.mxu0 0.0
    %1951 = vmatprep.subr.mxu0 0.0
    %1952 = vmatpush1.msra.mxu0 0.0
    %1953 = vmatprep.subr.mxu0 0.0
    %1954 = vmatpush1.msra.mxu0 0.0
    %1955 = vmatprep.subr.mxu0 0.0
    %1956 = vmatpush1.msra.mxu0 0.0
    %1957 = vmatprep.subr.mxu0 0.0
    %1958 = vmatpush1.msra.mxu0 0.0
    %1959 = vmatprep.subr.mxu0 0.0
    %1960 = vmatpush1.msra.mxu0 0.0
    %1961 = vmatprep.subr.mxu0 0.0
    %1962 = vmatpush1.msra.mxu0 0.0
    %1963 = vmatprep.subr.mxu0 0.0
    %1964 = vmatpush1.msra.mxu0 0.0
    %1965 = vmatprep.subr.mxu0 0.0
    %1966 = vmatpush1.msra.mxu0 0.0
    %1967 = vmatprep.mubr.f32.mxu0 0.0
    %1968 = vmatmul.mubr.f32.gmra.mrb[0].mxu0 %v1901
    %v1969 = vpop.f32.mrb[0].mxu0
    %v1970 = vadd.f32 0.0, %v1969
    %v1971 = vpop.f32.mrb[0].mxu0
    %1972 = vdwg.mxu0
    %v1973 = vsub.f32 %v882, %v1970
    %v1975 = vrot.slane %v1973, 1
    %1976 = vrot.lane.b32.xlu0 %v1975, 127
    %v1977 = vpop.permute.xlu0 %1976
    %v1979 = vmul.f32 %v1973, %v1977
    %v1981 = vrot.slane %v1979, 2
    %v1983 = vsub.f32 %v1979, %v1981
    %1984 = vrot.lane.b32.xlu0 %v1975, 1
    %v1985 = vpop.permute.xlu0 %1984
    %v1987 = vmul.f32 %v1973, %v1985
    %v1989 = vrot.slane %v1987, 2
    %v1991 = vsub.f32 %v1987, %v1989
    %1993 = vrot.lane.b32.xlu0 %v1991, 127
    %v1994 = vpop.permute.xlu0 %1993
    %v1996 = vsub.f32 %v1983, %v1994
    %v1997 = vrot.slane %v1973, 3
    %1998 = vrot.lane.b32.xlu0 %v1997, 127
    %v1999 = vpop.permute.xlu0 %1998
    %v2001 = vmul.f32 %v1973, %v1999
    %v2002 = vrot.slane %v1973, 7
    %2003 = vrot.lane.b32.xlu0 %v2002, 127
    %v2004 = vpop.permute.xlu0 %2003
    %v2006 = vmul.f32 %v1973, %v2004
    %v2008 = vrot.slane %v2006, 2
    %v2010 = vadd.f32 %v2001, %v2008
    %2011 = vrot.lane.b32.xlu0 %v1997, 1
    %v2012 = vpop.permute.xlu0 %2011
    %v2014 = vmul.f32 %v1973, %v2012
    %2015 = vrot.lane.b32.xlu0 %v2002, 1
    %v2016 = vpop.permute.xlu0 %2015
    %v2018 = vmul.f32 %v1973, %v2016
    %v2020 = vrot.slane %v2018, 2
    %v2022 = vadd.f32 %v2014, %v2020
    %2024 = vrot.lane.b32.xlu0 %v2022, 127
    %v2025 = vpop.permute.xlu0 %2024
    %v2027 = vsub.f32 %v2010, %v2025
    %v2028 = vmul.f32 %v1996, %v1996
    %v2029 = vmul.f32 %v2027, %v2027
    %v2030 = vadd.f32 %v2028, %v2029
    %v2031 = vrcp.pop %v2030
    %v2032 = vmul.f32 %v1996, %v2031
    %v2033 = vsub.f32 0.0, %v2027
    %v2034 = vmul.f32 %v2033, %v2031
    %v2035 = vmul.u32 %v551, 2
    %v2036 = vadd.s32 %v2035, %v879
    %vm2037 = vcmp.eq.s32.totalorder %v2036, 0
    %vm2038 = vcmp.eq.s32.totalorder %v2036, 1
    %v2039 = vsub.f32 0.0, %v1973
    %vm2040 = vcmp.eq.s32.totalorder %v2036, 2
    %v2042 = vrot.slane %v2039, 1
    %s2043 = vtos %v2042
    %v2044 = vstv %s2043
    %s2046 = vtos %v1973
    %v2047 = vstv %s2046
    %v2049 = vsel %vm2040, %v2044, %v2047
    %2050 = vrot.lane.b32.xlu0 %v2039, 127
    %v2051 = vpop.permute.xlu0 %2050
    %s2052 = vtos %v2051
    %v2053 = vstv %s2052
    %v2055 = vsel %vm2038, %v2053, %v2049
    %s2056 = vtos %v1977
    %v2057 = vstv %s2056
    %v2059 = vsel %vm2037, %v2057, %v2055
    %v2060 = vrot.slane %v2039, 3
    %s2061 = vtos %v2060
    %v2062 = vstv %s2061
    %v2064 = vrot.slane %v1973, 2
    %s2065 = vtos %v2064
    %v2066 = vstv %s2065
    %v2068 = vsel %vm2040, %v2062, %v2066
    %v2069 = vrot.slane %v2039, 2
    %2070 = vrot.lane.b32.xlu0 %v2069, 127
    %v2071 = vpop.permute.xlu0 %2070
    %s2072 = vtos %v2071
    %v2073 = vstv %s2072
    %v2075 = vsel %vm2038, %v2073, %v2068
    %s2076 = vtos %v1999
    %v2077 = vstv %s2076
    %v2079 = vsel %vm2037, %v2077, %v2075
    %s2081 = vtos %v2032
    %v2082 = vstv %s2081
    %v2084 = vmul.f32 %v2059, %v2082
    %s2086 = vtos %v2034
    %v2087 = vstv %s2086
    %v2089 = vmul.f32 %v2079, %v2087
    %v2090 = vsub.f32 %v2084, %v2089
    %v2091 = vmul.f32 %v2059, %v2087
    %v2092 = vmul.f32 %v2079, %v2082
    %v2093 = vadd.f32 %v2091, %v2092
    %v2094 = vsub.f32 0.0, %v2093
    %2096 = vrot.lane.b32.xlu0 %v2094, 2
    %v2097 = vpop.permute.xlu0 %2096
    %v2099 = vsel %vm788, %v2090, %v2097
    %2101 = vrot.lane.b32.xlu0 %v2090, 2
    %v2102 = vpop.permute.xlu0 %2101
    %v2104 = vsel %vm788, %v2093, %v2102
    %v2106 = vrot.slane %v2104, 6
    %vm2108 = vcmask 1041408
    %v2109 = vsel %vm2108, %v2099, %v2106
    %vm2110 = vcmask 9216
    %2111 = vst.msk [vmem:[#allocation10] sm:$0x3] %vm2110, %v2090
    %s2112 = scalar_lea.vmem [#allocation10], 2
    %2113 = vst.msk [vmem:[%s2112] sm:$0x3] %vm2110, %v2093
    %v2115 = vsel %vm1047, %v745, 0
    %v2118 = vsel %vm1047, %v750, 0
    %2120 = vmatprep.subr.mxu0 0.0
    %2121 = vmatpush1.msra.mxu0 %v1038
    %2122 = vmatprep.subr.mxu0 0.0
    %2123 = vmatpush1.msra.mxu0 %v1043
    %2124 = vmatprep.subr.mxu0 0.0
    %2125 = vmatpush1.msra.mxu0 0.0
    %2126 = vmatprep.subr.mxu0 0.0
    %2127 = vmatpush1.msra.mxu0 0.0
    %2128 = vmatprep.subr.mxu0 0.0
    %2129 = vmatpush1.msra.mxu0 0.0
    %2130 = vmatprep.subr.mxu0 0.0
    %2131 = vmatpush1.msra.mxu0 0.0
    %2132 = vmatprep.subr.mxu0 0.0
    %2133 = vmatpush1.msra.mxu0 0.0
    %2134 = vmatprep.subr.mxu0 0.0
    %2135 = vmatpush1.msra.mxu0 0.0
    %2136 = vmatprep.subr.mxu0 0.0
    %2137 = vmatpush1.msra.mxu0 0.0
    %2138 = vmatprep.subr.mxu0 0.0
    %2139 = vmatpush1.msra.mxu0 0.0
    %2140 = vmatprep.subr.mxu0 0.0
    %2141 = vmatpush1.msra.mxu0 0.0
    %2142 = vmatprep.subr.mxu0 0.0
    %2143 = vmatpush1.msra.mxu0 0.0
    %2144 = vmatprep.subr.mxu0 0.0
    %2145 = vmatpush1.msra.mxu0 0.0
    %2146 = vmatprep.subr.mxu0 0.0
    %2147 = vmatpush1.msra.mxu0 0.0
    %2148 = vmatprep.subr.mxu0 0.0
    %2149 = vmatpush1.msra.mxu0 0.0
    %2150 = vmatprep.subr.mxu0 0.0
    %2151 = vmatpush1.msra.mxu0 0.0
    %2152 = vmatprep.subr.mxu0 0.0
    %2153 = vmatpush1.msra.mxu0 0.0
    %2154 = vmatprep.subr.mxu0 0.0
    %2155 = vmatpush1.msra.mxu0 0.0
    %2156 = vmatprep.subr.mxu0 0.0
    %2157 = vmatpush1.msra.mxu0 0.0
    %2158 = vmatprep.subr.mxu0 0.0
    %2159 = vmatpush1.msra.mxu0 0.0
    %2160 = vmatprep.subr.mxu0 0.0
    %2161 = vmatpush1.msra.mxu0 0.0
    %2162 = vmatprep.subr.mxu0 0.0
    %2163 = vmatpush1.msra.mxu0 0.0
    %2164 = vmatprep.subr.mxu0 0.0
    %2165 = vmatpush1.msra.mxu0 0.0
    %2166 = vmatprep.subr.mxu0 0.0
    %2167 = vmatpush1.msra.mxu0 0.0
    %2168 = vmatprep.subr.mxu0 0.0
    %2169 = vmatpush1.msra.mxu0 0.0
    %2170 = vmatprep.subr.mxu0 0.0
    %2171 = vmatpush1.msra.mxu0 0.0
    %2172 = vmatprep.subr.mxu0 0.0
    %2173 = vmatpush1.msra.mxu0 0.0
    %2174 = vmatprep.subr.mxu0 0.0
    %2175 = vmatpush1.msra.mxu0 0.0
    %2176 = vmatprep.subr.mxu0 0.0
    %2177 = vmatpush1.msra.mxu0 0.0
    %2178 = vmatprep.subr.mxu0 0.0
    %2179 = vmatpush1.msra.mxu0 0.0
    %2180 = vmatprep.subr.mxu0 0.0
    %2181 = vmatpush1.msra.mxu0 0.0
    %2182 = vmatprep.subr.mxu0 0.0
    %2183 = vmatpush1.msra.mxu0 0.0
    %2184 = vmatprep.mubr.f32.mxu0 0.0
    %2185 = vmatmul.mubr.f32.gmra.mrb[0].mxu0 %v2115
    %v2186 = vpop.f32.mrb[0].mxu0
    %v2187 = vadd.f32 0.0, %v2186
    %v2188 = vpop.f32.mrb[0].mxu0
    %2189 = vmatprep.mubr.f32.mxu0 0.0
    %2190 = vmatmul.mubr.f32.gmra.mrb[0].mxu0 %v2118
    %v2191 = vpop.f32.mrb[0].mxu0
    %v2192 = vadd.f32 0.0, %v2191
    %v2193 = vpop.f32.mrb[0].mxu0
    %2194 = vdwg.mxu0
    %v2196 = vsel %vm1047, %v2187, 0
    %v2199 = vsel %vm1047, %v2192, 0
    %2201 = vmatprep.subr.mxu0 0.0
    %2202 = vmatpush1.xpose.msra.mxu0 %v2115
    %2203 = vmatprep.subr.mxu0 0.0
    %2204 = vmatpush1.xpose.msra.mxu0 %v2118
    %2205 = vmatprep.subr.mxu0 0.0
    %2206 = vmatpush1.xpose.msra.mxu0 0.0
    %2207 = vmatprep.subr.mxu0 0.0
    %2208 = vmatpush1.xpose.msra.mxu0 0.0
    %2209 = vmatprep.subr.mxu0 0.0
    %2210 = vmatpush1.xpose.msra.mxu0 0.0
    %2211 = vmatprep.subr.mxu0 0.0
    %2212 = vmatpush1.xpose.msra.mxu0 0.0
    %2213 = vmatprep.subr.mxu0 0.0
    %2214 = vmatpush1.xpose.msra.mxu0 0.0
    %2215 = vmatprep.subr.mxu0 0.0
    %2216 = vmatpush1.xpose.msra.mxu0 0.0
    %2217 = vmatprep.subr.mxu0 0.0
    %2218 = vmatpush1.xpose.msra.mxu0 0.0
    %2219 = vmatprep.subr.mxu0 0.0
    %2220 = vmatpush1.xpose.msra.mxu0 0.0
    %2221 = vmatprep.subr.mxu0 0.0
    %2222 = vmatpush1.xpose.msra.mxu0 0.0
    %2223 = vmatprep.subr.mxu0 0.0
    %2224 = vmatpush1.xpose.msra.mxu0 0.0
    %2225 = vmatprep.subr.mxu0 0.0
    %2226 = vmatpush1.xpose.msra.mxu0 0.0
    %2227 = vmatprep.subr.mxu0 0.0
    %2228 = vmatpush1.xpose.msra.mxu0 0.0
    %2229 = vmatprep.subr.mxu0 0.0
    %2230 = vmatpush1.xpose.msra.mxu0 0.0
    %2231 = vmatprep.subr.mxu0 0.0
    %2232 = vmatpush1.xpose.msra.mxu0 0.0
    %2233 = vmatprep.subr.mxu0 0.0
    %2234 = vmatpush1.xpose.msra.mxu0 0.0
    %2235 = vmatprep.subr.mxu0 0.0
    %2236 = vmatpush1.xpose.msra.mxu0 0.0
    %2237 = vmatprep.subr.mxu0 0.0
    %2238 = vmatpush1.xpose.msra.mxu0 0.0
    %2239 = vmatprep.subr.mxu0 0.0
    %2240 = vmatpush1.xpose.msra.mxu0 0.0
    %2241 = vmatprep.subr.mxu0 0.0
    %2242 = vmatpush1.xpose.msra.mxu0 0.0
    %2243 = vmatprep.subr.mxu0 0.0
    %2244 = vmatpush1.xpose.msra.mxu0 0.0
    %2245 = vmatprep.subr.mxu0 0.0
    %2246 = vmatpush1.xpose.msra.mxu0 0.0
    %2247 = vmatprep.subr.mxu0 0.0
    %2248 = vmatpush1.xpose.msra.mxu0 0.0
    %2249 = vmatprep.subr.mxu0 0.0
    %2250 = vmatpush1.xpose.msra.mxu0 0.0
    %2251 = vmatprep.subr.mxu0 0.0
    %2252 = vmatpush1.xpose.msra.mxu0 0.0
    %2253 = vmatprep.subr.mxu0 0.0
    %2254 = vmatpush1.xpose.msra.mxu0 0.0
    %2255 = vmatprep.subr.mxu0 0.0
    %2256 = vmatpush1.xpose.msra.mxu0 0.0
    %2257 = vmatprep.subr.mxu0 0.0
    %2258 = vmatpush1.xpose.msra.mxu0 0.0
    %2259 = vmatprep.subr.mxu0 0.0
    %2260 = vmatpush1.xpose.msra.mxu0 0.0
    %2261 = vmatprep.subr.mxu0 0.0
    %2262 = vmatpush1.xpose.msra.mxu0 0.0
    %2263 = vmatprep.subr.mxu0 0.0
    %2264 = vmatpush1.xpose.msra.mxu0 0.0
    %2265 = vmatprep.mubr.f32.mxu0 0.0
    %2266 = vmatmul.mubr.f32.gmra.mrb[0].mxu0 %v2196
    %v2267 = vpop.f32.mrb[0].mxu0
    %v2268 = vadd.f32 %v1130, %v2267
    %v2269 = vpop.f32.mrb[0].mxu0
    %2270 = vmatprep.mubr.f32.mxu0 0.0
    %2271 = vmatmul.mubr.f32.gmra.mrb[0].mxu0 %v2199
    %v2272 = vpop.f32.mrb[0].mxu0
    %v2273 = vadd.f32 %v1131, %v2272
    %v2274 = vpop.f32.mrb[0].mxu0
    %2275 = vdwg.mxu0
    %2276 = vxpose.xlu0.b32.start [1/16] %v774, 128
    %2277 = vxpose.xlu0.b32.cont [2/16] %v779, 128
    %2278 = vxpose.xlu0.b32.cont [3/16] 0.0, 128
    %2279 = vxpose.xlu0.b32.cont [4/16] 0.0, 128
    %2280 = vxpose.xlu0.b32.cont [5/16] 0.0, 128
    %2281 = vxpose.xlu0.b32.cont [6/16] 0.0, 128
    %2282 = vxpose.xlu0.b32.cont [7/16] 0.0, 128
    %2283 = vxpose.xlu0.b32.cont [8/16] 0.0, 128
    %2284 = vxpose.xlu0.b32.cont [9/16] 0.0, 128
    %2285 = vxpose.xlu0.b32.cont [10/16] 0.0, 128
    %2286 = vxpose.xlu0.b32.cont [11/16] 0.0, 128
    %2287 = vxpose.xlu0.b32.cont [12/16] 0.0, 128
    %2288 = vxpose.xlu0.b32.cont [13/16] 0.0, 128
    %2289 = vxpose.xlu0.b32.cont [14/16] 0.0, 128
    %2290 = vxpose.xlu0.b32.cont [15/16] 0.0, 128
    %2291 = vxpose.xlu0.b32.end [16/16] 0.0, 128
    %v2292 = vpop.trf.xlu0
    %v2293 = vpop.trf.xlu0
    %v2294 = vpop.trf.xlu0
    %v2295 = vpop.trf.xlu0
    %v2296 = vpop.trf.xlu0
    %v2297 = vpop.trf.xlu0
    %v2298 = vpop.trf.xlu0
    %v2299 = vpop.trf.xlu0
    %v2300 = vpop.trf.xlu0
    %v2301 = vpop.trf.xlu0
    %v2302 = vpop.trf.xlu0
    %v2303 = vpop.trf.xlu0
    %v2304 = vpop.trf.xlu0
    %v2305 = vpop.trf.xlu0
    %v2306 = vpop.trf.xlu0
    %v2307 = vpop.trf.xlu0
    %v2309 = vsel %vm1047, %v2292, 0
    %2311 = vmatprep.subr.mxu0 0.0
    %2312 = vmatpush1.msra.mxu0 %v2268
    %2313 = vmatprep.subr.mxu0 0.0
    %2314 = vmatpush1.msra.mxu0 %v2273
    %2315 = vmatprep.subr.mxu0 0.0
    %2316 = vmatpush1.msra.mxu0 0.0
    %2317 = vmatprep.subr.mxu0 0.0
    %2318 = vmatpush1.msra.mxu0 0.0
    %2319 = vmatprep.subr.mxu0 0.0
    %2320 = vmatpush1.msra.mxu0 0.0
    %2321 = vmatprep.subr.mxu0 0.0
    %2322 = vmatpush1.msra.mxu0 0.0
    %2323 = vmatprep.subr.mxu0 0.0
    %2324 = vmatpush1.msra.mxu0 0.0
    %2325 = vmatprep.subr.mxu0 0.0
    %2326 = vmatpush1.msra.mxu0 0.0
    %2327 = vmatprep.subr.mxu0 0.0
    %2328 = vmatpush1.msra.mxu0 0.0
    %2329 = vmatprep.subr.mxu0 0.0
    %2330 = vmatpush1.msra.mxu0 0.0
    %2331 = vmatprep.subr.mxu0 0.0
    %2332 = vmatpush1.msra.mxu0 0.0
    %2333 = vmatprep.subr.mxu0 0.0
    %2334 = vmatpush1.msra.mxu0 0.0
    %2335 = vmatprep.subr.mxu0 0.0
    %2336 = vmatpush1.msra.mxu0 0.0
    %2337 = vmatprep.subr.mxu0 0.0
    %2338 = vmatpush1.msra.mxu0 0.0
    %2339 = vmatprep.subr.mxu0 0.0
    %2340 = vmatpush1.msra.mxu0 0.0
    %2341 = vmatprep.subr.mxu0 0.0
    %2342 = vmatpush1.msra.mxu0 0.0
    %2343 = vmatprep.subr.mxu0 0.0
    %2344 = vmatpush1.msra.mxu0 0.0
    %2345 = vmatprep.subr.mxu0 0.0
    %2346 = vmatpush1.msra.mxu0 0.0
    %2347 = vmatprep.subr.mxu0 0.0
    %2348 = vmatpush1.msra.mxu0 0.0
    %2349 = vmatprep.subr.mxu0 0.0
    %2350 = vmatpush1.msra.mxu0 0.0
    %2351 = vmatprep.subr.mxu0 0.0
    %2352 = vmatpush1.msra.mxu0 0.0
    %2353 = vmatprep.subr.mxu0 0.0
    %2354 = vmatpush1.msra.mxu0 0.0
    %2355 = vmatprep.subr.mxu0 0.0
    %2356 = vmatpush1.msra.mxu0 0.0
    %2357 = vmatprep.subr.mxu0 0.0
    %2358 = vmatpush1.msra.mxu0 0.0
    %2359 = vmatprep.subr.mxu0 0.0
    %2360 = vmatpush1.msra.mxu0 0.0
    %2361 = vmatprep.subr.mxu0 0.0
    %2362 = vmatpush1.msra.mxu0 0.0
    %2363 = vmatprep.subr.mxu0 0.0
    %2364 = vmatpush1.msra.mxu0 0.0
    %2365 = vmatprep.subr.mxu0 0.0
    %2366 = vmatpush1.msra.mxu0 0.0
    %2367 = vmatprep.subr.mxu0 0.0
    %2368 = vmatpush1.msra.mxu0 0.0
    %2369 = vmatprep.subr.mxu0 0.0
    %2370 = vmatpush1.msra.mxu0 0.0
    %2371 = vmatprep.subr.mxu0 0.0
    %2372 = vmatpush1.msra.mxu0 0.0
    %2373 = vmatprep.subr.mxu0 0.0
    %2374 = vmatpush1.msra.mxu0 0.0
    %2375 = vmatprep.mubr.f32.mxu0 0.0
    %2376 = vmatmul.mubr.f32.gmra.mrb[0].mxu0 %v2309
    %v2377 = vpop.f32.mrb[0].mxu0
    %v2378 = vadd.f32 0.0, %v2377
    %v2379 = vpop.f32.mrb[0].mxu0
    %2380 = vdwg.mxu0
    %v2382 = vsel %vm1047, %v2378, 0
    %2384 = vmatprep.subr.mxu0 0.0
    %2385 = vmatpush1.msra.mxu0 %v774
    %2386 = vmatprep.subr.mxu0 0.0
    %2387 = vmatpush1.msra.mxu0 %v779
    %2388 = vmatprep.subr.mxu0 0.0
    %2389 = vmatpush1.msra.mxu0 0.0
    %2390 = vmatprep.subr.mxu0 0.0
    %2391 = vmatpush1.msra.mxu0 0.0
    %2392 = vmatprep.subr.mxu0 0.0
    %2393 = vmatpush1.msra.mxu0 0.0
    %2394 = vmatprep.subr.mxu0 0.0
    %2395 = vmatpush1.msra.mxu0 0.0
    %2396 = vmatprep.subr.mxu0 0.0
    %2397 = vmatpush1.msra.mxu0 0.0
    %2398 = vmatprep.subr.mxu0 0.0
    %2399 = vmatpush1.msra.mxu0 0.0
    %2400 = vmatprep.subr.mxu0 0.0
    %2401 = vmatpush1.msra.mxu0 0.0
    %2402 = vmatprep.subr.mxu0 0.0
    %2403 = vmatpush1.msra.mxu0 0.0
    %2404 = vmatprep.subr.mxu0 0.0
    %2405 = vmatpush1.msra.mxu0 0.0
    %2406 = vmatprep.subr.mxu0 0.0
    %2407 = vmatpush1.msra.mxu0 0.0
    %2408 = vmatprep.subr.mxu0 0.0
    %2409 = vmatpush1.msra.mxu0 0.0
    %2410 = vmatprep.subr.mxu0 0.0
    %2411 = vmatpush1.msra.mxu0 0.0
    %2412 = vmatprep.subr.mxu0 0.0
    %2413 = vmatpush1.msra.mxu0 0.0
    %2414 = vmatprep.subr.mxu0 0.0
    %2415 = vmatpush1.msra.mxu0 0.0
    %2416 = vmatprep.subr.mxu0 0.0
    %2417 = vmatpush1.msra.mxu0 0.0
    %2418 = vmatprep.subr.mxu0 0.0
    %2419 = vmatpush1.msra.mxu0 0.0
    %2420 = vmatprep.subr.mxu0 0.0
    %2421 = vmatpush1.msra.mxu0 0.0
    %2422 = vmatprep.subr.mxu0 0.0
    %2423 = vmatpush1.msra.mxu0 0.0
    %2424 = vmatprep.subr.mxu0 0.0
    %2425 = vmatpush1.msra.mxu0 0.0
    %2426 = vmatprep.subr.mxu0 0.0
    %2427 = vmatpush1.msra.mxu0 0.0
    %2428 = vmatprep.subr.mxu0 0.0
    %2429 = vmatpush1.msra.mxu0 0.0
    %2430 = vmatprep.subr.mxu0 0.0
    %2431 = vmatpush1.msra.mxu0 0.0
    %2432 = vmatprep.subr.mxu0 0.0
    %2433 = vmatpush1.msra.mxu0 0.0
    %2434 = vmatprep.subr.mxu0 0.0
    %2435 = vmatpush1.msra.mxu0 0.0
    %2436 = vmatprep.subr.mxu0 0.0
    %2437 = vmatpush1.msra.mxu0 0.0
    %2438 = vmatprep.subr.mxu0 0.0
    %2439 = vmatpush1.msra.mxu0 0.0
    %2440 = vmatprep.subr.mxu0 0.0
    %2441 = vmatpush1.msra.mxu0 0.0
    %2442 = vmatprep.subr.mxu0 0.0
    %2443 = vmatpush1.msra.mxu0 0.0
    %2444 = vmatprep.subr.mxu0 0.0
    %2445 = vmatpush1.msra.mxu0 0.0
    %2446 = vmatprep.subr.mxu0 0.0
    %2447 = vmatpush1.msra.mxu0 0.0
    %2448 = vmatprep.mubr.f32.mxu0 0.0
    %2449 = vmatmul.mubr.f32.gmra.mrb[0].mxu0 %v2382
    %v2450 = vpop.f32.mrb[0].mxu0
    %v2451 = vadd.f32 0.0, %v2450
    %v2452 = vpop.f32.mrb[0].mxu0
    %2453 = vdwg.mxu0
    %v2454 = vsel %vm670, %v2451, %v1393
    %v2455 = vsel %vm670, %v2451, 0.0
    %v2456 = vmul.f32 %v2454, %v2454
    %v2457 = vmul.f32 %v2455, %v2455
    %v2459 = vrot.slane %v2457, 4
    %v2461 = vadd.f32 %v2456, %v2459
    %v2462 = vrcp.pop %v2461
    %v2463 = vmul.f32 %v2454, %v2462
    %v2464 = vsub.f32 0.0, %v2455
    %v2466 = vrot.slane %v2461, 4
    %v2468 = vrcp.pop %v2466
    %v2469 = vmul.f32 %v2464, %v2468
    %2471 = vset.pattern.permute.xlu0 0
    %2472 = vperm.xlu0 %2471, %v2463
    %v2473 = vpop.permute.xlu0 %2472
    %v2475 = vmul.f32 %v2454, %v2473
    %2477 = vset.pattern.permute.xlu0 0
    %2478 = vperm.xlu0 %2477, %v2469
    %v2479 = vpop.permute.xlu0 %2478
    %v2481 = vmul.f32 %v2455, %v2479
    %v2483 = vrot.slane %v2481, 4
    %v2485 = vsub.f32 %v2475, %v2483
    %v2486 = vrot.slane %v2479, 4
    %v2488 = vmul.f32 %v2454, %v2486
    %v2489 = vrot.slane %v2473, 4
    %v2491 = vmul.f32 %v2455, %v2489
    %v2493 = vrot.slane %v2491, 4
    %v2495 = vadd.f32 %v2488, %v2493
    %2497 = vset.pattern.permute.xlu0 0
    %2498 = vperm.xlu0 %2497, %v2454
    %v2499 = vpop.permute.xlu0 %2498
    %v2501 = vlaneseq
    %v2502 = vshrl.u32 %v2501, 7
    %v2503 = vsub.s32 0, %v2502
    %v2504 = vrot.slane %v2485, %v2503
    %v2505 = vmul.f32 %v2499, %v2504
    %2507 = vset.pattern.permute.xlu0 0
    %2508 = vperm.xlu0 %2507, %v2455
    %v2509 = vpop.permute.xlu0 %2508
    %v2511 = vlaneseq
    %v2512 = vshrl.u32 %v2511, 7
    %v2513 = vsub.s32 0, %v2512
    %v2514 = vrot.slane %v2495, %v2513
    %v2515 = vmul.f32 %v2509, %v2514
    %v2517 = vrot.slane %v2515, 4
    %v2519 = vsub.f32 %v2505, %v2517
    %v2520 = vsub.f32 %v2454, %v2519
    %v2521 = vmul.f32 %v2499, %v2514
    %v2522 = vmul.f32 %v2509, %v2504
    %v2524 = vrot.slane %v2522, 4
    %v2526 = vadd.f32 %v2521, %v2524
    %v2528 = vrot.slane %v2526, 4
    %v2530 = vsub.f32 %v2455, %v2528
    %v2531 = vsel %vm554, %v2504, %v2520
    %v2533 = vrot.slane %v2530, 4
    %v2535 = vsel %vm554, %v2514, %v2533
    %v2536 = vmul.f32 %v2531, %v2531
    %v2537 = vmul.f32 %v2535, %v2535
    %v2538 = vadd.f32 %v2536, %v2537
    %v2539 = vrcp.pop %v2538
    %v2540 = vmul.f32 %v2531, %v2539
    %v2541 = vsub.f32 0.0, %v2535
    %v2542 = vmul.f32 %v2541, %v2539
    %2544 = vset.pattern.permute.xlu0 1
    %2545 = vperm.xlu0 %2544, %v2540
    %v2546 = vpop.permute.xlu0 %2545
    %v2548 = vmul.f32 %v2531, %v2546
    %2550 = vset.pattern.permute.xlu0 1
    %2551 = vperm.xlu0 %2550, %v2542
    %v2552 = vpop.permute.xlu0 %2551
    %v2554 = vmul.f32 %v2535, %v2552
    %v2555 = vsub.f32 %v2548, %v2554
    %v2556 = vmul.f32 %v2531, %v2552
    %v2557 = vmul.f32 %v2535, %v2546
    %v2558 = vadd.f32 %v2556, %v2557
    %2560 = vset.pattern.permute.xlu0 1
    %2561 = vperm.xlu0 %2560, %v2531
    %v2562 = vpop.permute.xlu0 %2561
    %v2564 = vlaneseq
    %v2565 = vshrl.u32 %v2564, 7
    %v2566 = vsub.s32 1, %v2565
    %v2567 = vrot.slane %v2555, %v2566
    %v2568 = vmul.f32 %v2562, %v2567
    %2570 = vset.pattern.permute.xlu0 1
    %2571 = vperm.xlu0 %2570, %v2535
    %v2572 = vpop.permute.xlu0 %2571
    %v2574 = vlaneseq
    %v2575 = vshrl.u32 %v2574, 7
    %v2576 = vsub.s32 1, %v2575
    %v2577 = vrot.slane %v2558, %v2576
    %v2578 = vmul.f32 %v2572, %v2577
    %v2579 = vsub.f32 %v2568, %v2578
    %v2580 = vsub.f32 %v2531, %v2579
    %v2581 = vmul.f32 %v2562, %v2577
    %v2582 = vmul.f32 %v2572, %v2567
    %v2583 = vadd.f32 %v2581, %v2582
    %v2584 = vsub.f32 %v2535, %v2583
    %v2585 = vsel %vm563, %v2567, %v2580
    %v2586 = vsel %vm563, %v2577, %v2584
    %v2587 = vmul.f32 %v2585, %v2585
    %v2588 = vmul.f32 %v2586, %v2586
    %v2589 = vadd.f32 %v2587, %v2588
    %v2590 = vrcp.pop %v2589
    %v2591 = vmul.f32 %v2585, %v2590
    %v2592 = vsub.f32 0.0, %v2586
    %v2593 = vmul.f32 %v2592, %v2590
    %2595 = vset.pattern.permute.xlu0 2
    %2596 = vperm.xlu0 %2595, %v2591
    %v2597 = vpop.permute.xlu0 %2596
    %v2599 = vmul.f32 %v2585, %v2597
    %2601 = vset.pattern.permute.xlu0 2
    %2602 = vperm.xlu0 %2601, %v2593
    %v2603 = vpop.permute.xlu0 %2602
    %v2605 = vmul.f32 %v2586, %v2603
    %v2606 = vsub.f32 %v2599, %v2605
    %v2607 = vmul.f32 %v2585, %v2603
    %v2608 = vmul.f32 %v2586, %v2597
    %v2609 = vadd.f32 %v2607, %v2608
    %2611 = vset.pattern.permute.xlu0 2
    %2612 = vperm.xlu0 %2611, %v2585
    %v2613 = vpop.permute.xlu0 %2612
    %v2615 = vlaneseq
    %v2616 = vshrl.u32 %v2615, 7
    %v2617 = vsub.s32 2, %v2616
    %v2618 = vrot.slane %v2606, %v2617
    %v2619 = vmul.f32 %v2613, %v2618
    %2621 = vset.pattern.permute.xlu0 2
    %2622 = vperm.xlu0 %2621, %v2586
    %v2623 = vpop.permute.xlu0 %2622
    %v2625 = vlaneseq
    %v2626 = vshrl.u32 %v2625, 7
    %v2627 = vsub.s32 2, %v2626
    %v2628 = vrot.slane %v2609, %v2627
    %v2629 = vmul.f32 %v2623, %v2628
    %v2630 = vsub.f32 %v2619, %v2629
    %v2631 = vsub.f32 %v2585, %v2630
    %v2632 = vmul.f32 %v2613, %v2628
    %v2633 = vmul.f32 %v2623, %v2618
    %v2634 = vadd.f32 %v2632, %v2633
    %v2635 = vsub.f32 %v2586, %v2634
    %v2636 = vsel %vm572, %v2618, %v2631
    %v2637 = vsel %vm572, %v2628, %v2635
    %v2638 = vmul.f32 %v2636, %v2636
    %v2639 = vmul.f32 %v2637, %v2637
    %v2640 = vadd.f32 %v2638, %v2639
    %v2641 = vrcp.pop %v2640
    %v2642 = vmul.f32 %v2636, %v2641
    %v2643 = vsub.f32 0.0, %v2637
    %v2644 = vmul.f32 %v2643, %v2641
    %2646 = vset.pattern.permute.xlu0 3
    %2647 = vperm.xlu0 %2646, %v2642
    %v2648 = vpop.permute.xlu0 %2647
    %v2650 = vmul.f32 %v2636, %v2648
    %2652 = vset.pattern.permute.xlu0 3
    %2653 = vperm.xlu0 %2652, %v2644
    %v2654 = vpop.permute.xlu0 %2653
    %v2656 = vmul.f32 %v2637, %v2654
    %v2657 = vsub.f32 %v2650, %v2656
    %v2658 = vmul.f32 %v2636, %v2654
    %v2659 = vmul.f32 %v2637, %v2648
    %v2660 = vadd.f32 %v2658, %v2659
    %2662 = vset.pattern.permute.xlu0 3
    %2663 = vperm.xlu0 %2662, %v2636
    %v2664 = vpop.permute.xlu0 %2663
    %v2666 = vlaneseq
    %v2667 = vshrl.u32 %v2666, 7
    %v2668 = vsub.s32 3, %v2667
    %v2669 = vrot.slane %v2657, %v2668
    %v2670 = vmul.f32 %v2664, %v2669
    %2672 = vset.pattern.permute.xlu0 3
    %2673 = vperm.xlu0 %2672, %v2637
    %v2674 = vpop.permute.xlu0 %2673
    %v2676 = vlaneseq
    %v2677 = vshrl.u32 %v2676, 7
    %v2678 = vsub.s32 3, %v2677
    %v2679 = vrot.slane %v2660, %v2678
    %v2680 = vmul.f32 %v2674, %v2679
    %v2681 = vsub.f32 %v2670, %v2680
    %v2682 = vsub.f32 %v2636, %v2681
    %v2683 = vmul.f32 %v2664, %v2679
    %v2684 = vmul.f32 %v2674, %v2669
    %v2685 = vadd.f32 %v2683, %v2684
    %v2686 = vsub.f32 %v2637, %v2685
    %v2687 = vsel %vm581, %v2669, %v2682
    %v2688 = vsel %vm581, %v2679, %v2686
    %v2689 = vsub.f32 0.0, %v2688
    %2691 = vrot.lane.b32.xlu0 %v2687, 124
    %v2692 = vpop.permute.xlu0 %2691
    %v2694 = vsel %vm670, %v2692, %v2689
    %2696 = vrot.lane.b32.xlu0 %v2688, 124
    %v2697 = vpop.permute.xlu0 %2696
    %v2699 = vsel %vm670, %v2697, %v2687
    %v2701 = vrot.slane %v2699, 4
    %v2703 = vsel %vm856, %v2694, %v2701
    %2704 = vmatprep.subr.mxu0 0.0
    %2705 = vmatpush1.msra.mxu0 %v804
    %2706 = vmatprep.subr.mxu0 0.0
    %2707 = vmatpush1.msra.mxu0 %v809
    %2708 = vmatprep.subr.mxu0 0.0
    %2709 = vmatpush1.msra.mxu0 0.0
    %2710 = vmatprep.subr.mxu0 0.0
    %2711 = vmatpush1.msra.mxu0 0.0
    %2712 = vmatprep.subr.mxu0 0.0
    %2713 = vmatpush1.msra.mxu0 0.0
    %2714 = vmatprep.subr.mxu0 0.0
    %2715 = vmatpush1.msra.mxu0 0.0
    %2716 = vmatprep.subr.mxu0 0.0
    %2717 = vmatpush1.msra.mxu0 0.0
    %2718 = vmatprep.subr.mxu0 0.0
    %2719 = vmatpush1.msra.mxu0 0.0
    %2720 = vmatprep.subr.mxu0 0.0
    %2721 = vmatpush1.msra.mxu0 0.0
    %2722 = vmatprep.subr.mxu0 0.0
    %2723 = vmatpush1.msra.mxu0 0.0
    %2724 = vmatprep.subr.mxu0 0.0
    %2725 = vmatpush1.msra.mxu0 0.0
    %2726 = vmatprep.subr.mxu0 0.0
    %2727 = vmatpush1.msra.mxu0 0.0
    %2728 = vmatprep.subr.mxu0 0.0
    %2729 = vmatpush1.msra.mxu0 0.0
    %2730 = vmatprep.subr.mxu0 0.0
    %2731 = vmatpush1.msra.mxu0 0.0
    %2732 = vmatprep.subr.mxu0 0.0
    %2733 = vmatpush1.msra.mxu0 0.0
    %2734 = vmatprep.subr.mxu0 0.0
    %2735 = vmatpush1.msra.mxu0 0.0
    %2736 = vmatprep.subr.mxu0 0.0
    %2737 = vmatpush1.msra.mxu0 0.0
    %2738 = vmatprep.subr.mxu0 0.0
    %2739 = vmatpush1.msra.mxu0 0.0
    %2740 = vmatprep.subr.mxu0 0.0
    %2741 = vmatpush1.msra.mxu0 0.0
    %2742 = vmatprep.subr.mxu0 0.0
    %2743 = vmatpush1.msra.mxu0 0.0
    %2744 = vmatprep.subr.mxu0 0.0
    %2745 = vmatpush1.msra.mxu0 0.0
    %2746 = vmatprep.subr.mxu0 0.0
    %2747 = vmatpush1.msra.mxu0 0.0
    %2748 = vmatprep.subr.mxu0 0.0
    %2749 = vmatpush1.msra.mxu0 0.0
    %2750 = vmatprep.subr.mxu0 0.0
    %2751 = vmatpush1.msra.mxu0 0.0
    %2752 = vmatprep.subr.mxu0 0.0
    %2753 = vmatpush1.msra.mxu0 0.0
    %2754 = vmatprep.subr.mxu0 0.0
    %2755 = vmatpush1.msra.mxu0 0.0
    %2756 = vmatprep.subr.mxu0 0.0
    %2757 = vmatpush1.msra.mxu0 0.0
    %2758 = vmatprep.subr.mxu0 0.0
    %2759 = vmatpush1.msra.mxu0 0.0
    %2760 = vmatprep.subr.mxu0 0.0
    %2761 = vmatpush1.msra.mxu0 0.0
    %2762 = vmatprep.subr.mxu0 0.0
    %2763 = vmatpush1.msra.mxu0 0.0
    %2764 = vmatprep.subr.mxu0 0.0
    %2765 = vmatpush1.msra.mxu0 0.0
    %2766 = vmatprep.subr.mxu0 0.0
    %2767 = vmatpush1.msra.mxu0 0.0
    %2768 = vmatprep.mubr.f32.mxu0 0.0
    %2769 = vmatmul.mubr.f32.gmra.mrb[0].mxu0 %v2115
    %v2770 = vpop.f32.mrb[0].mxu0
    %v2771 = vadd.f32 0.0, %v2770
    %v2772 = vpop.f32.mrb[0].mxu0
    %2773 = vmatprep.mubr.f32.mxu0 0.0
    %2774 = vmatmul.mubr.f32.gmra.mrb[0].mxu0 %v2118
    %v2775 = vpop.f32.mrb[0].mxu0
    %v2776 = vadd.f32 0.0, %v2775
    %v2777 = vpop.f32.mrb[0].mxu0
    %2778 = vdwg.mxu0
    %2779 = vmatprep.subr.mxu0 0.0
    %2780 = vmatpush1.msra.mxu0 %v2771
    %2781 = vmatprep.subr.mxu0 0.0
    %2782 = vmatpush1.msra.mxu0 %v2776
    %2783 = vmatprep.subr.mxu0 0.0
    %2784 = vmatpush1.msra.mxu0 0.0
    %2785 = vmatprep.subr.mxu0 0.0
    %2786 = vmatpush1.msra.mxu0 0.0
    %2787 = vmatprep.subr.mxu0 0.0
    %2788 = vmatpush1.msra.mxu0 0.0
    %2789 = vmatprep.subr.mxu0 0.0
    %2790 = vmatpush1.msra.mxu0 0.0
    %2791 = vmatprep.subr.mxu0 0.0
    %2792 = vmatpush1.msra.mxu0 0.0
    %2793 = vmatprep.subr.mxu0 0.0
    %2794 = vmatpush1.msra.mxu0 0.0
    %2795 = vmatprep.subr.mxu0 0.0
    %2796 = vmatpush1.msra.mxu0 0.0
    %2797 = vmatprep.subr.mxu0 0.0
    %2798 = vmatpush1.msra.mxu0 0.0
    %2799 = vmatprep.subr.mxu0 0.0
    %2800 = vmatpush1.msra.mxu0 0.0
    %2801 = vmatprep.subr.mxu0 0.0
    %2802 = vmatpush1.msra.mxu0 0.0
    %2803 = vmatprep.subr.mxu0 0.0
    %2804 = vmatpush1.msra.mxu0 0.0
    %2805 = vmatprep.subr.mxu0 0.0
    %2806 = vmatpush1.msra.mxu0 0.0
    %2807 = vmatprep.subr.mxu0 0.0
    %2808 = vmatpush1.msra.mxu0 0.0
    %2809 = vmatprep.subr.mxu0 0.0
    %2810 = vmatpush1.msra.mxu0 0.0
    %2811 = vmatprep.subr.mxu0 0.0
    %2812 = vmatpush1.msra.mxu0 0.0
    %2813 = vmatprep.subr.mxu0 0.0
    %2814 = vmatpush1.msra.mxu0 0.0
    %2815 = vmatprep.subr.mxu0 0.0
    %2816 = vmatpush1.msra.mxu0 0.0
    %2817 = vmatprep.subr.mxu0 0.0
    %2818 = vmatpush1.msra.mxu0 0.0
    %2819 = vmatprep.subr.mxu0 0.0
    %2820 = vmatpush1.msra.mxu0 0.0
    %2821 = vmatprep.subr.mxu0 0.0
    %2822 = vmatpush1.msra.mxu0 0.0
    %2823 = vmatprep.subr.mxu0 0.0
    %2824 = vmatpush1.msra.mxu0 0.0
    %2825 = vmatprep.subr.mxu0 0.0
    %2826 = vmatpush1.msra.mxu0 0.0
    %2827 = vmatprep.subr.mxu0 0.0
    %2828 = vmatpush1.msra.mxu0 0.0
    %2829 = vmatprep.subr.mxu0 0.0
    %2830 = vmatpush1.msra.mxu0 0.0
    %2831 = vmatprep.subr.mxu0 0.0
    %2832 = vmatpush1.msra.mxu0 0.0
    %2833 = vmatprep.subr.mxu0 0.0
    %2834 = vmatpush1.msra.mxu0 0.0
    %2835 = vmatprep.subr.mxu0 0.0
    %2836 = vmatpush1.msra.mxu0 0.0
    %2837 = vmatprep.subr.mxu0 0.0
    %2838 = vmatpush1.msra.mxu0 0.0
    %2839 = vmatprep.subr.mxu0 0.0
    %2840 = vmatpush1.msra.mxu0 0.0
    %2841 = vmatprep.subr.mxu0 0.0
    %2842 = vmatpush1.msra.mxu0 0.0
    %2843 = vmatprep.mubr.f32.mxu0 0.0
    %2844 = vmatmul.mubr.f32.gmra.mrb[0].mxu0 %v2309
    %v2845 = vpop.f32.mrb[0].mxu0
    %v2846 = vadd.f32 0.0, %v2845
    %v2847 = vpop.f32.mrb[0].mxu0
    %2848 = vdwg.mxu0
    %v2850 = vsel %vm729, %v2703, 0
    %2852 = vmatprep.subr.mxu0 0.0
    %2853 = vmatpush1.msra.mxu0 %v2846
    %2854 = vmatprep.subr.mxu0 0.0
    %2855 = vmatpush1.msra.mxu0 0.0
    %2856 = vmatprep.subr.mxu0 0.0
    %2857 = vmatpush1.msra.mxu0 0.0
    %2858 = vmatprep.subr.mxu0 0.0
    %2859 = vmatpush1.msra.mxu0 0.0
    %2860 = vmatprep.subr.mxu0 0.0
    %2861 = vmatpush1.msra.mxu0 0.0
    %2862 = vmatprep.subr.mxu0 0.0
    %2863 = vmatpush1.msra.mxu0 0.0
    %2864 = vmatprep.subr.mxu0 0.0
    %2865 = vmatpush1.msra.mxu0 0.0
    %2866 = vmatprep.subr.mxu0 0.0
    %2867 = vmatpush1.msra.mxu0 0.0
    %2868 = vmatprep.subr.mxu0 0.0
    %2869 = vmatpush1.msra.mxu0 0.0
    %2870 = vmatprep.subr.mxu0 0.0
    %2871 = vmatpush1.msra.mxu0 0.0
    %2872 = vmatprep.subr.mxu0 0.0
    %2873 = vmatpush1.msra.mxu0 0.0
    %2874 = vmatprep.subr.mxu0 0.0
    %2875 = vmatpush1.msra.mxu0 0.0
    %2876 = vmatprep.subr.mxu0 0.0
    %2877 = vmatpush1.msra.mxu0 0.0
    %2878 = vmatprep.subr.mxu0 0.0
    %2879 = vmatpush1.msra.mxu0 0.0
    %2880 = vmatprep.subr.mxu0 0.0
    %2881 = vmatpush1.msra.mxu0 0.0
    %2882 = vmatprep.subr.mxu0 0.0
    %2883 = vmatpush1.msra.mxu0 0.0
    %2884 = vmatprep.subr.mxu0 0.0
    %2885 = vmatpush1.msra.mxu0 0.0
    %2886 = vmatprep.subr.mxu0 0.0
    %2887 = vmatpush1.msra.mxu0 0.0
    %2888 = vmatprep.subr.mxu0 0.0
    %2889 = vmatpush1.msra.mxu0 0.0
    %2890 = vmatprep.subr.mxu0 0.0
    %2891 = vmatpush1.msra.mxu0 0.0
    %2892 = vmatprep.subr.mxu0 0.0
    %2893 = vmatpush1.msra.mxu0 0.0
    %2894 = vmatprep.subr.mxu0 0.0
    %2895 = vmatpush1.msra.mxu0 0.0
    %2896 = vmatprep.subr.mxu0 0.0
    %2897 = vmatpush1.msra.mxu0 0.0
    %2898 = vmatprep.subr.mxu0 0.0
    %2899 = vmatpush1.msra.mxu0 0.0
    %2900 = vmatprep.subr.mxu0 0.0
    %2901 = vmatpush1.msra.mxu0 0.0
    %2902 = vmatprep.subr.mxu0 0.0
    %2903 = vmatpush1.msra.mxu0 0.0
    %2904 = vmatprep.subr.mxu0 0.0
    %2905 = vmatpush1.msra.mxu0 0.0
    %2906 = vmatprep.subr.mxu0 0.0
    %2907 = vmatpush1.msra.mxu0 0.0
    %2908 = vmatprep.subr.mxu0 0.0
    %2909 = vmatpush1.msra.mxu0 0.0
    %2910 = vmatprep.subr.mxu0 0.0
    %2911 = vmatpush1.msra.mxu0 0.0
    %2912 = vmatprep.subr.mxu0 0.0
    %2913 = vmatpush1.msra.mxu0 0.0
    %2914 = vmatprep.subr.mxu0 0.0
    %2915 = vmatpush1.msra.mxu0 0.0
    %2916 = vmatprep.mubr.f32.mxu0 0.0
    %2917 = vmatmul.mubr.f32.gmra.mrb[0].mxu0 %v2850
    %v2918 = vpop.f32.mrb[0].mxu0
    %v2919 = vadd.f32 0.0, %v2918
    %v2920 = vpop.f32.mrb[0].mxu0
    %2921 = vdwg.mxu0
    %s2922 = scalar_lea.vmem %s14, 8
    %2923 = vst.msk [vmem:[%s2922] sm:$0xf] %vm1863, %v2919
    %s2924 = scalar_lea.vmem %s14, 12
    %2925 = vst.msk [vmem:[%s2924 - $0x4] sm:$0xf0] %vm1866, %v2919
    %2926 = vxpose.xlu0.b32.start [1/16] %v2919, 128
    %2927 = vxpose.xlu0.b32.cont [2/16] 0.0, 128
    %2928 = vxpose.xlu0.b32.cont [3/16] 0.0, 128
    %2929 = vxpose.xlu0.b32.cont [4/16] 0.0, 128
    %2930 = vxpose.xlu0.b32.cont [5/16] 0.0, 128
    %2931 = vxpose.xlu0.b32.cont [6/16] 0.0, 128
    %2932 = vxpose.xlu0.b32.cont [7/16] 0.0, 128
    %2933 = vxpose.xlu0.b32.cont [8/16] 0.0, 128
    %2934 = vxpose.xlu0.b32.cont [9/16] 0.0, 128
    %2935 = vxpose.xlu0.b32.cont [10/16] 0.0, 128
    %2936 = vxpose.xlu0.b32.cont [11/16] 0.0, 128
    %2937 = vxpose.xlu0.b32.cont [12/16] 0.0, 128
    %2938 = vxpose.xlu0.b32.cont [13/16] 0.0, 128
    %2939 = vxpose.xlu0.b32.cont [14/16] 0.0, 128
    %2940 = vxpose.xlu0.b32.cont [15/16] 0.0, 128
    %2941 = vxpose.xlu0.b32.end [16/16] 0.0, 128
    %v2942 = vpop.trf.xlu0
    %v2943 = vpop.trf.xlu0
    %v2944 = vpop.trf.xlu0
    %v2945 = vpop.trf.xlu0
    %v2946 = vpop.trf.xlu0
    %v2947 = vpop.trf.xlu0
    %v2948 = vpop.trf.xlu0
    %v2949 = vpop.trf.xlu0
    %v2950 = vpop.trf.xlu0
    %v2951 = vpop.trf.xlu0
    %v2952 = vpop.trf.xlu0
    %v2953 = vpop.trf.xlu0
    %v2954 = vpop.trf.xlu0
    %v2955 = vpop.trf.xlu0
    %v2956 = vpop.trf.xlu0
    %v2957 = vpop.trf.xlu0
    %v2959 = vsel %vm729, %v2942, 0
    %2961 = vmatprep.subr.mxu0 0.0
    %2962 = vmatpush1.msra.mxu0 %v2846
    %2963 = vmatprep.subr.mxu0 0.0
    %2964 = vmatpush1.msra.mxu0 0.0
    %2965 = vmatprep.subr.mxu0 0.0
    %2966 = vmatpush1.msra.mxu0 0.0
    %2967 = vmatprep.subr.mxu0 0.0
    %2968 = vmatpush1.msra.mxu0 0.0
    %2969 = vmatprep.subr.mxu0 0.0
    %2970 = vmatpush1.msra.mxu0 0.0
    %2971 = vmatprep.subr.mxu0 0.0
    %2972 = vmatpush1.msra.mxu0 0.0
    %2973 = vmatprep.subr.mxu0 0.0
    %2974 = vmatpush1.msra.mxu0 0.0
    %2975 = vmatprep.subr.mxu0 0.0
    %2976 = vmatpush1.msra.mxu0 0.0
    %2977 = vmatprep.subr.mxu0 0.0
    %2978 = vmatpush1.msra.mxu0 0.0
    %2979 = vmatprep.subr.mxu0 0.0
    %2980 = vmatpush1.msra.mxu0 0.0
    %2981 = vmatprep.subr.mxu0 0.0
    %2982 = vmatpush1.msra.mxu0 0.0
    %2983 = vmatprep.subr.mxu0 0.0
    %2984 = vmatpush1.msra.mxu0 0.0
    %2985 = vmatprep.subr.mxu0 0.0
    %2986 = vmatpush1.msra.mxu0 0.0
    %2987 = vmatprep.subr.mxu0 0.0
    %2988 = vmatpush1.msra.mxu0 0.0
    %2989 = vmatprep.subr.mxu0 0.0
    %2990 = vmatpush1.msra.mxu0 0.0
    %2991 = vmatprep.subr.mxu0 0.0
    %2992 = vmatpush1.msra.mxu0 0.0
    %2993 = vmatprep.subr.mxu0 0.0
    %2994 = vmatpush1.msra.mxu0 0.0
    %2995 = vmatprep.subr.mxu0 0.0
    %2996 = vmatpush1.msra.mxu0 0.0
    %2997 = vmatprep.subr.mxu0 0.0
    %2998 = vmatpush1.msra.mxu0 0.0
    %2999 = vmatprep.subr.mxu0 0.0
    %3000 = vmatpush1.msra.mxu0 0.0
    %3001 = vmatprep.subr.mxu0 0.0
    %3002 = vmatpush1.msra.mxu0 0.0
    %3003 = vmatprep.subr.mxu0 0.0
    %3004 = vmatpush1.msra.mxu0 0.0
    %3005 = vmatprep.subr.mxu0 0.0
    %3006 = vmatpush1.msra.mxu0 0.0
    %3007 = vmatprep.subr.mxu0 0.0
    %3008 = vmatpush1.msra.mxu0 0.0
    %3009 = vmatprep.subr.mxu0 0.0
    %3010 = vmatpush1.msra.mxu0 0.0
    %3011 = vmatprep.subr.mxu0 0.0
    %3012 = vmatpush1.msra.mxu0 0.0
    %3013 = vmatprep.subr.mxu0 0.0
    %3014 = vmatpush1.msra.mxu0 0.0
    %3015 = vmatprep.subr.mxu0 0.0
    %3016 = vmatpush1.msra.mxu0 0.0
    %3017 = vmatprep.subr.mxu0 0.0
    %3018 = vmatpush1.msra.mxu0 0.0
    %3019 = vmatprep.subr.mxu0 0.0
    %3020 = vmatpush1.msra.mxu0 0.0
    %3021 = vmatprep.subr.mxu0 0.0
    %3022 = vmatpush1.msra.mxu0 0.0
    %3023 = vmatprep.subr.mxu0 0.0
    %3024 = vmatpush1.msra.mxu0 0.0
    %3025 = vmatprep.mubr.f32.mxu0 0.0
    %3026 = vmatmul.mubr.f32.gmra.mrb[0].mxu0 %v2959
    %v3027 = vpop.f32.mrb[0].mxu0
    %v3028 = vadd.f32 0.0, %v3027
    %v3029 = vpop.f32.mrb[0].mxu0
    %3030 = vdwg.mxu0
    %v3031 = vsub.f32 %v882, %v3028
    %v3033 = vrot.slane %v3031, 1
    %3034 = vrot.lane.b32.xlu0 %v3033, 127
    %v3035 = vpop.permute.xlu0 %3034
    %v3037 = vmul.f32 %v3031, %v3035
    %v3039 = vrot.slane %v3037, 2
    %v3041 = vsub.f32 %v3037, %v3039
    %3042 = vrot.lane.b32.xlu0 %v3033, 1
    %v3043 = vpop.permute.xlu0 %3042
    %v3045 = vmul.f32 %v3031, %v3043
    %v3047 = vrot.slane %v3045, 2
    %v3049 = vsub.f32 %v3045, %v3047
    %3051 = vrot.lane.b32.xlu0 %v3049, 127
    %v3052 = vpop.permute.xlu0 %3051
    %v3054 = vsub.f32 %v3041, %v3052
    %v3055 = vrot.slane %v3031, 3
    %3056 = vrot.lane.b32.xlu0 %v3055, 127
    %v3057 = vpop.permute.xlu0 %3056
    %v3059 = vmul.f32 %v3031, %v3057
    %v3060 = vrot.slane %v3031, 7
    %3061 = vrot.lane.b32.xlu0 %v3060, 127
    %v3062 = vpop.permute.xlu0 %3061
    %v3064 = vmul.f32 %v3031, %v3062
    %v3066 = vrot.slane %v3064, 2
    %v3068 = vadd.f32 %v3059, %v3066
    %3069 = vrot.lane.b32.xlu0 %v3055, 1
    %v3070 = vpop.permute.xlu0 %3069
    %v3072 = vmul.f32 %v3031, %v3070
    %3073 = vrot.lane.b32.xlu0 %v3060, 1
    %v3074 = vpop.permute.xlu0 %3073
    %v3076 = vmul.f32 %v3031, %v3074
    %v3078 = vrot.slane %v3076, 2
    %v3080 = vadd.f32 %v3072, %v3078
    %3082 = vrot.lane.b32.xlu0 %v3080, 127
    %v3083 = vpop.permute.xlu0 %3082
    %v3085 = vsub.f32 %v3068, %v3083
    %v3086 = vmul.f32 %v3054, %v3054
    %v3087 = vmul.f32 %v3085, %v3085
    %v3088 = vadd.f32 %v3086, %v3087
    %v3089 = vrcp.pop %v3088
    %v3090 = vmul.f32 %v3054, %v3089
    %v3091 = vsub.f32 0.0, %v3085
    %v3092 = vmul.f32 %v3091, %v3089
    %v3093 = vsub.f32 0.0, %v3031
    %v3095 = vrot.slane %v3093, 1
    %s3096 = vtos %v3095
    %v3097 = vstv %s3096
    %s3099 = vtos %v3031
    %v3100 = vstv %s3099
    %v3102 = vsel %vm2040, %v3097, %v3100
    %3103 = vrot.lane.b32.xlu0 %v3093, 127
    %v3104 = vpop.permute.xlu0 %3103
    %s3105 = vtos %v3104
    %v3106 = vstv %s3105
    %v3108 = vsel %vm2038, %v3106, %v3102
    %s3109 = vtos %v3035
    %v3110 = vstv %s3109
    %v3112 = vsel %vm2037, %v3110, %v3108
    %v3113 = vrot.slane %v3093, 3
    %s3114 = vtos %v3113
    %v3115 = vstv %s3114
    %v3117 = vrot.slane %v3031, 2
    %s3118 = vtos %v3117
    %v3119 = vstv %s3118
    %v3121 = vsel %vm2040, %v3115, %v3119
    %v3122 = vrot.slane %v3093, 2
    %3123 = vrot.lane.b32.xlu0 %v3122, 127
    %v3124 = vpop.permute.xlu0 %3123
    %s3125 = vtos %v3124
    %v3126 = vstv %s3125
    %v3128 = vsel %vm2038, %v3126, %v3121
    %s3129 = vtos %v3057
    %v3130 = vstv %s3129
    %v3132 = vsel %vm2037, %v3130, %v3128
    %s3134 = vtos %v3090
    %v3135 = vstv %s3134
    %v3137 = vmul.f32 %v3112, %v3135
    %s3139 = vtos %v3092
    %v3140 = vstv %s3139
    %v3142 = vmul.f32 %v3132, %v3140
    %v3143 = vsub.f32 %v3137, %v3142
    %v3144 = vmul.f32 %v3112, %v3140
    %v3145 = vmul.f32 %v3132, %v3135
    %v3146 = vadd.f32 %v3144, %v3145
    %v3147 = vsub.f32 0.0, %v3146
    %3149 = vrot.lane.b32.xlu0 %v3147, 2
    %v3150 = vpop.permute.xlu0 %3149
    %v3152 = vsel %vm788, %v3143, %v3150
    %3154 = vrot.lane.b32.xlu0 %v3143, 2
    %v3155 = vpop.permute.xlu0 %3154
    %v3157 = vsel %vm788, %v3146, %v3155
    %v3159 = vrot.slane %v3157, 6
    %v3161 = vsel %vm2108, %v3152, %v3159
    %s3162 = scalar_lea.vmem [#allocation10], 4
    %3163 = vst.msk [vmem:[%s3162] sm:$0x3] %vm2110, %v3143
    %s3164 = scalar_lea.vmem [#allocation10], 6
    %3165 = vst.msk [vmem:[%s3164] sm:$0x3] %vm2110, %v3146
    %3166 = vxpose.xlu0.b32.start [1/16] %v716, 128
    %3167 = vxpose.xlu0.b32.cont [2/16] %v720, 128
    %3168 = vxpose.xlu0.b32.cont [3/16] 0.0, 128
    %3169 = vxpose.xlu0.b32.cont [4/16] 0.0, 128
    %3170 = vxpose.xlu0.b32.cont [5/16] 0.0, 128
    %3171 = vxpose.xlu0.b32.cont [6/16] 0.0, 128
    %3172 = vxpose.xlu0.b32.cont [7/16] 0.0, 128
    %3173 = vxpose.xlu0.b32.cont [8/16] 0.0, 128
    %3174 = vxpose.xlu0.b32.cont [9/16] 0.0, 128
    %3175 = vxpose.xlu0.b32.cont [10/16] 0.0, 128
    %3176 = vxpose.xlu0.b32.cont [11/16] 0.0, 128
    %3177 = vxpose.xlu0.b32.cont [12/16] 0.0, 128
    %3178 = vxpose.xlu0.b32.cont [13/16] 0.0, 128
    %3179 = vxpose.xlu0.b32.cont [14/16] 0.0, 128
    %3180 = vxpose.xlu0.b32.cont [15/16] 0.0, 128
    %3181 = vxpose.xlu0.b32.end [16/16] 0.0, 128
    %v3182 = vpop.trf.xlu0
    %v3183 = vpop.trf.xlu0
    %v3184 = vpop.trf.xlu0
    %v3185 = vpop.trf.xlu0
    %v3186 = vpop.trf.xlu0
    %v3187 = vpop.trf.xlu0
    %v3188 = vpop.trf.xlu0
    %v3189 = vpop.trf.xlu0
    %v3190 = vpop.trf.xlu0
    %v3191 = vpop.trf.xlu0
    %v3192 = vpop.trf.xlu0
    %v3193 = vpop.trf.xlu0
    %v3194 = vpop.trf.xlu0
    %v3195 = vpop.trf.xlu0
    %v3196 = vpop.trf.xlu0
    %v3197 = vpop.trf.xlu0
    %v3199 = vsel %vm1047, %v3182, 0
    %3201 = vmatprep.subr.mxu0 0.0
    %3202 = vmatpush1.msra.mxu0 %v716
    %3203 = vmatprep.subr.mxu0 0.0
    %3204 = vmatpush1.msra.mxu0 %v720
    %3205 = vmatprep.subr.mxu0 0.0
    %3206 = vmatpush1.msra.mxu0 0.0
    %3207 = vmatprep.subr.mxu0 0.0
    %3208 = vmatpush1.msra.mxu0 0.0
    %3209 = vmatprep.subr.mxu0 0.0
    %3210 = vmatpush1.msra.mxu0 0.0
    %3211 = vmatprep.subr.mxu0 0.0
    %3212 = vmatpush1.msra.mxu0 0.0
    %3213 = vmatprep.subr.mxu0 0.0
    %3214 = vmatpush1.msra.mxu0 0.0
    %3215 = vmatprep.subr.mxu0 0.0
    %3216 = vmatpush1.msra.mxu0 0.0
    %3217 = vmatprep.subr.mxu0 0.0
    %3218 = vmatpush1.msra.mxu0 0.0
    %3219 = vmatprep.subr.mxu0 0.0
    %3220 = vmatpush1.msra.mxu0 0.0
    %3221 = vmatprep.subr.mxu0 0.0
    %3222 = vmatpush1.msra.mxu0 0.0
    %3223 = vmatprep.subr.mxu0 0.0
    %3224 = vmatpush1.msra.mxu0 0.0
    %3225 = vmatprep.subr.mxu0 0.0
    %3226 = vmatpush1.msra.mxu0 0.0
    %3227 = vmatprep.subr.mxu0 0.0
    %3228 = vmatpush1.msra.mxu0 0.0
    %3229 = vmatprep.subr.mxu0 0.0
    %3230 = vmatpush1.msra.mxu0 0.0
    %3231 = vmatprep.subr.mxu0 0.0
    %3232 = vmatpush1.msra.mxu0 0.0
    %3233 = vmatprep.subr.mxu0 0.0
    %3234 = vmatpush1.msra.mxu0 0.0
    %3235 = vmatprep.subr.mxu0 0.0
    %3236 = vmatpush1.msra.mxu0 0.0
    %3237 = vmatprep.subr.mxu0 0.0
    %3238 = vmatpush1.msra.mxu0 0.0
    %3239 = vmatprep.subr.mxu0 0.0
    %3240 = vmatpush1.msra.mxu0 0.0
    %3241 = vmatprep.subr.mxu0 0.0
    %3242 = vmatpush1.msra.mxu0 0.0
    %3243 = vmatprep.subr.mxu0 0.0
    %3244 = vmatpush1.msra.mxu0 0.0
    %3245 = vmatprep.subr.mxu0 0.0
    %3246 = vmatpush1.msra.mxu0 0.0
    %3247 = vmatprep.subr.mxu0 0.0
    %3248 = vmatpush1.msra.mxu0 0.0
    %3249 = vmatprep.subr.mxu0 0.0
    %3250 = vmatpush1.msra.mxu0 0.0
    %3251 = vmatprep.subr.mxu0 0.0
    %3252 = vmatpush1.msra.mxu0 0.0
    %3253 = vmatprep.subr.mxu0 0.0
    %3254 = vmatpush1.msra.mxu0 0.0
    %3255 = vmatprep.subr.mxu0 0.0
    %3256 = vmatpush1.msra.mxu0 0.0
    %3257 = vmatprep.subr.mxu0 0.0
    %3258 = vmatpush1.msra.mxu0 0.0
    %3259 = vmatprep.subr.mxu0 0.0
    %3260 = vmatpush1.msra.mxu0 0.0
    %3261 = vmatprep.subr.mxu0 0.0
    %3262 = vmatpush1.msra.mxu0 0.0
    %3263 = vmatprep.subr.mxu0 0.0
    %3264 = vmatpush1.msra.mxu0 0.0
    %3265 = vmatprep.mubr.f32.mxu0 0.0
    %3266 = vmatmul.mubr.f32.gmra.mrb[0].mxu0 %v3199
    %v3267 = vpop.f32.mrb[0].mxu0
    %v3268 = vadd.f32 0.0, %v3267
    %v3269 = vpop.f32.mrb[0].mxu0
    %3270 = vdwg.mxu0
    %v3271 = vsel %vm670, %v3268, %v1393
    %v3272 = vsel %vm670, %v3268, 0.0
    %v3273 = vmul.f32 %v3271, %v3271
    %v3274 = vmul.f32 %v3272, %v3272
    %v3276 = vrot.slane %v3274, 4
    %v3278 = vadd.f32 %v3273, %v3276
    %v3279 = vrcp.pop %v3278
    %v3280 = vmul.f32 %v3271, %v3279
    %v3281 = vsub.f32 0.0, %v3272
    %v3283 = vrot.slane %v3278, 4
    %v3285 = vrcp.pop %v3283
    %v3286 = vmul.f32 %v3281, %v3285
    %3288 = vset.pattern.permute.xlu0 0
    %3289 = vperm.xlu0 %3288, %v3280
    %v3290 = vpop.permute.xlu0 %3289
    %v3292 = vmul.f32 %v3271, %v3290
    %3294 = vset.pattern.permute.xlu0 0
    %3295 = vperm.xlu0 %3294, %v3286
    %v3296 = vpop.permute.xlu0 %3295
    %v3298 = vmul.f32 %v3272, %v3296
    %v3300 = vrot.slane %v3298, 4
    %v3302 = vsub.f32 %v3292, %v3300
    %v3303 = vrot.slane %v3296, 4
    %v3305 = vmul.f32 %v3271, %v3303
    %v3306 = vrot.slane %v3290, 4
    %v3308 = vmul.f32 %v3272, %v3306
    %v3310 = vrot.slane %v3308, 4
    %v3312 = vadd.f32 %v3305, %v3310
    %3314 = vset.pattern.permute.xlu0 0
    %3315 = vperm.xlu0 %3314, %v3271
    %v3316 = vpop.permute.xlu0 %3315
    %v3318 = vlaneseq
    %v3319 = vshrl.u32 %v3318, 7
    %v3320 = vsub.s32 0, %v3319
    %v3321 = vrot.slane %v3302, %v3320
    %v3322 = vmul.f32 %v3316, %v3321
    %3324 = vset.pattern.permute.xlu0 0
    %3325 = vperm.xlu0 %3324, %v3272
    %v3326 = vpop.permute.xlu0 %3325
    %v3328 = vlaneseq
    %v3329 = vshrl.u32 %v3328, 7
    %v3330 = vsub.s32 0, %v3329
    %v3331 = vrot.slane %v3312, %v3330
    %v3332 = vmul.f32 %v3326, %v3331
    %v3334 = vrot.slane %v3332, 4
    %v3336 = vsub.f32 %v3322, %v3334
    %v3337 = vsub.f32 %v3271, %v3336
    %v3338 = vmul.f32 %v3316, %v3331
    %v3339 = vmul.f32 %v3326, %v3321
    %v3341 = vrot.slane %v3339, 4
    %v3343 = vadd.f32 %v3338, %v3341
    %v3345 = vrot.slane %v3343, 4
    %v3347 = vsub.f32 %v3272, %v3345
    %v3348 = vsel %vm554, %v3321, %v3337
    %v3350 = vrot.slane %v3347, 4
    %v3352 = vsel %vm554, %v3331, %v3350
    %v3353 = vmul.f32 %v3348, %v3348
    %v3354 = vmul.f32 %v3352, %v3352
    %v3355 = vadd.f32 %v3353, %v3354
    %v3356 = vrcp.pop %v3355
    %v3357 = vmul.f32 %v3348, %v3356
    %v3358 = vsub.f32 0.0, %v3352
    %v3359 = vmul.f32 %v3358, %v3356
    %3361 = vset.pattern.permute.xlu0 1
    %3362 = vperm.xlu0 %3361, %v3357
    %v3363 = vpop.permute.xlu0 %3362
    %v3365 = vmul.f32 %v3348, %v3363
    %3367 = vset.pattern.permute.xlu0 1
    %3368 = vperm.xlu0 %3367, %v3359
    %v3369 = vpop.permute.xlu0 %3368
    %v3371 = vmul.f32 %v3352, %v3369
    %v3372 = vsub.f32 %v3365, %v3371
    %v3373 = vmul.f32 %v3348, %v3369
    %v3374 = vmul.f32 %v3352, %v3363
    %v3375 = vadd.f32 %v3373, %v3374
    %3377 = vset.pattern.permute.xlu0 1
    %3378 = vperm.xlu0 %3377, %v3348
    %v3379 = vpop.permute.xlu0 %3378
    %v3381 = vlaneseq
    %v3382 = vshrl.u32 %v3381, 7
    %v3383 = vsub.s32 1, %v3382
    %v3384 = vrot.slane %v3372, %v3383
    %v3385 = vmul.f32 %v3379, %v3384
    %3387 = vset.pattern.permute.xlu0 1
    %3388 = vperm.xlu0 %3387, %v3352
    %v3389 = vpop.permute.xlu0 %3388
    %v3391 = vlaneseq
    %v3392 = vshrl.u32 %v3391, 7
    %v3393 = vsub.s32 1, %v3392
    %v3394 = vrot.slane %v3375, %v3393
    %v3395 = vmul.f32 %v3389, %v3394
    %v3396 = vsub.f32 %v3385, %v3395
    %v3397 = vsub.f32 %v3348, %v3396
    %v3398 = vmul.f32 %v3379, %v3394
    %v3399 = vmul.f32 %v3389, %v3384
    %v3400 = vadd.f32 %v3398, %v3399
    %v3401 = vsub.f32 %v3352, %v3400
    %v3402 = vsel %vm563, %v3384, %v3397
    %v3403 = vsel %vm563, %v3394, %v3401
    %v3404 = vmul.f32 %v3402, %v3402
    %v3405 = vmul.f32 %v3403, %v3403
    %v3406 = vadd.f32 %v3404, %v3405
    %v3407 = vrcp.pop %v3406
    %v3408 = vmul.f32 %v3402, %v3407
    %v3409 = vsub.f32 0.0, %v3403
    %v3410 = vmul.f32 %v3409, %v3407
    %3412 = vset.pattern.permute.xlu0 2
    %3413 = vperm.xlu0 %3412, %v3408
    %v3414 = vpop.permute.xlu0 %3413
    %v3416 = vmul.f32 %v3402, %v3414
    %3418 = vset.pattern.permute.xlu0 2
    %3419 = vperm.xlu0 %3418, %v3410
    %v3420 = vpop.permute.xlu0 %3419
    %v3422 = vmul.f32 %v3403, %v3420
    %v3423 = vsub.f32 %v3416, %v3422
    %v3424 = vmul.f32 %v3402, %v3420
    %v3425 = vmul.f32 %v3403, %v3414
    %v3426 = vadd.f32 %v3424, %v3425
    %3428 = vset.pattern.permute.xlu0 2
    %3429 = vperm.xlu0 %3428, %v3402
    %v3430 = vpop.permute.xlu0 %3429
    %v3432 = vlaneseq
    %v3433 = vshrl.u32 %v3432, 7
    %v3434 = vsub.s32 2, %v3433
    %v3435 = vrot.slane %v3423, %v3434
    %v3436 = vmul.f32 %v3430, %v3435
    %3438 = vset.pattern.permute.xlu0 2
    %3439 = vperm.xlu0 %3438, %v3403
    %v3440 = vpop.permute.xlu0 %3439
    %v3442 = vlaneseq
    %v3443 = vshrl.u32 %v3442, 7
    %v3444 = vsub.s32 2, %v3443
    %v3445 = vrot.slane %v3426, %v3444
    %v3446 = vmul.f32 %v3440, %v3445
    %v3447 = vsub.f32 %v3436, %v3446
    %v3448 = vsub.f32 %v3402, %v3447
    %v3449 = vmul.f32 %v3430, %v3445
    %v3450 = vmul.f32 %v3440, %v3435
    %v3451 = vadd.f32 %v3449, %v3450
    %v3452 = vsub.f32 %v3403, %v3451
    %v3453 = vsel %vm572, %v3435, %v3448
    %v3454 = vsel %vm572, %v3445, %v3452
    %v3455 = vmul.f32 %v3453, %v3453
    %v3456 = vmul.f32 %v3454, %v3454
    %v3457 = vadd.f32 %v3455, %v3456
    %v3458 = vrcp.pop %v3457
    %v3459 = vmul.f32 %v3453, %v3458
    %v3460 = vsub.f32 0.0, %v3454
    %v3461 = vmul.f32 %v3460, %v3458
    %3463 = vset.pattern.permute.xlu0 3
    %3464 = vperm.xlu0 %3463, %v3459
    %v3465 = vpop.permute.xlu0 %3464
    %v3467 = vmul.f32 %v3453, %v3465
    %3469 = vset.pattern.permute.xlu0 3
    %3470 = vperm.xlu0 %3469, %v3461
    %v3471 = vpop.permute.xlu0 %3470
    %v3473 = vmul.f32 %v3454, %v3471
    %v3474 = vsub.f32 %v3467, %v3473
    %v3475 = vmul.f32 %v3453, %v3471
    %v3476 = vmul.f32 %v3454, %v3465
    %v3477 = vadd.f32 %v3475, %v3476
    %3479 = vset.pattern.permute.xlu0 3
    %3480 = vperm.xlu0 %3479, %v3453
    %v3481 = vpop.permute.xlu0 %3480
    %v3483 = vlaneseq
    %v3484 = vshrl.u32 %v3483, 7
    %v3485 = vsub.s32 3, %v3484
    %v3486 = vrot.slane %v3474, %v3485
    %v3487 = vmul.f32 %v3481, %v3486
    %3489 = vset.pattern.permute.xlu0 3
    %3490 = vperm.xlu0 %3489, %v3454
    %v3491 = vpop.permute.xlu0 %3490
    %v3493 = vlaneseq
    %v3494 = vshrl.u32 %v3493, 7
    %v3495 = vsub.s32 3, %v3494
    %v3496 = vrot.slane %v3477, %v3495
    %v3497 = vmul.f32 %v3491, %v3496
    %v3498 = vsub.f32 %v3487, %v3497
    %v3499 = vsub.f32 %v3453, %v3498
    %v3500 = vmul.f32 %v3481, %v3496
    %v3501 = vmul.f32 %v3491, %v3486
    %v3502 = vadd.f32 %v3500, %v3501
    %v3503 = vsub.f32 %v3454, %v3502
    %v3504 = vsel %vm581, %v3486, %v3499
    %v3505 = vsel %vm581, %v3496, %v3503
    %v3506 = vsub.f32 0.0, %v3505
    %3508 = vrot.lane.b32.xlu0 %v3504, 124
    %v3509 = vpop.permute.xlu0 %3508
    %v3511 = vsel %vm670, %v3509, %v3506
    %3513 = vrot.lane.b32.xlu0 %v3505, 124
    %v3514 = vpop.permute.xlu0 %3513
    %v3516 = vsel %vm670, %v3514, %v3504
    %v3518 = vrot.slane %v3516, 4
    %v3520 = vsel %vm856, %v3511, %v3518
    %v3521 = vstv %s107
    %v3522 = vmul.f32 %v3521, %v818
    %v3523 = vmul.f32 %v3521, %v823
    %v3524 = vadd.f32 %v789, %v3522
    %v3525 = vadd.f32 %v794, %v3523
    %3526 = vmatprep.subr.mxu0 0.0
    %3527 = vmatpush1.msra.mxu0 %v3524
    %3528 = vmatprep.subr.mxu0 0.0
    %3529 = vmatpush1.msra.mxu0 %v3525
    %3530 = vmatprep.subr.mxu0 0.0
    %3531 = vmatpush1.msra.mxu0 0.0
    %3532 = vmatprep.subr.mxu0 0.0
    %3533 = vmatpush1.msra.mxu0 0.0
    %3534 = vmatprep.subr.mxu0 0.0
    %3535 = vmatpush1.msra.mxu0 0.0
    %3536 = vmatprep.subr.mxu0 0.0
    %3537 = vmatpush1.msra.mxu0 0.0
    %3538 = vmatprep.subr.mxu0 0.0
    %3539 = vmatpush1.msra.mxu0 0.0
    %3540 = vmatprep.subr.mxu0 0.0
    %3541 = vmatpush1.msra.mxu0 0.0
    %3542 = vmatprep.subr.mxu0 0.0
    %3543 = vmatpush1.msra.mxu0 0.0
    %3544 = vmatprep.subr.mxu0 0.0
    %3545 = vmatpush1.msra.mxu0 0.0
    %3546 = vmatprep.subr.mxu0 0.0
    %3547 = vmatpush1.msra.mxu0 0.0
    %3548 = vmatprep.subr.mxu0 0.0
    %3549 = vmatpush1.msra.mxu0 0.0
    %3550 = vmatprep.subr.mxu0 0.0
    %3551 = vmatpush1.msra.mxu0 0.0
    %3552 = vmatprep.subr.mxu0 0.0
    %3553 = vmatpush1.msra.mxu0 0.0
    %3554 = vmatprep.subr.mxu0 0.0
    %3555 = vmatpush1.msra.mxu0 0.0
    %3556 = vmatprep.subr.mxu0 0.0
    %3557 = vmatpush1.msra.mxu0 0.0
    %3558 = vmatprep.subr.mxu0 0.0
    %3559 = vmatpush1.msra.mxu0 0.0
    %3560 = vmatprep.subr.mxu0 0.0
    %3561 = vmatpush1.msra.mxu0 0.0
    %3562 = vmatprep.subr.mxu0 0.0
    %3563 = vmatpush1.msra.mxu0 0.0
    %3564 = vmatprep.subr.mxu0 0.0
    %3565 = vmatpush1.msra.mxu0 0.0
    %3566 = vmatprep.subr.mxu0 0.0
    %3567 = vmatpush1.msra.mxu0 0.0
    %3568 = vmatprep.subr.mxu0 0.0
    %3569 = vmatpush1.msra.mxu0 0.0
    %3570 = vmatprep.subr.mxu0 0.0
    %3571 = vmatpush1.msra.mxu0 0.0
    %3572 = vmatprep.subr.mxu0 0.0
    %3573 = vmatpush1.msra.mxu0 0.0
    %3574 = vmatprep.subr.mxu0 0.0
    %3575 = vmatpush1.msra.mxu0 0.0
    %3576 = vmatprep.subr.mxu0 0.0
    %3577 = vmatpush1.msra.mxu0 0.0
    %3578 = vmatprep.subr.mxu0 0.0
    %3579 = vmatpush1.msra.mxu0 0.0
    %3580 = vmatprep.subr.mxu0 0.0
    %3581 = vmatpush1.msra.mxu0 0.0
    %3582 = vmatprep.subr.mxu0 0.0
    %3583 = vmatpush1.msra.mxu0 0.0
    %3584 = vmatprep.subr.mxu0 0.0
    %3585 = vmatpush1.msra.mxu0 0.0
    %3586 = vmatprep.subr.mxu0 0.0
    %3587 = vmatpush1.msra.mxu0 0.0
    %3588 = vmatprep.subr.mxu0 0.0
    %3589 = vmatpush1.msra.mxu0 0.0
    %3590 = vmatprep.mubr.f32.mxu0 0.0
    %3591 = vmatmul.mubr.f32.gmra.mrb[0].mxu0 %v3199
    %v3592 = vpop.f32.mrb[0].mxu0
    %v3593 = vadd.f32 0.0, %v3592
    %v3594 = vpop.f32.mrb[0].mxu0
    %3595 = vdwg.mxu0
    %v3597 = vsel %vm729, %v3520, 0
    %3599 = vmatprep.subr.mxu0 0.0
    %3600 = vmatpush1.msra.mxu0 %v3593
    %3601 = vmatprep.subr.mxu0 0.0
    %3602 = vmatpush1.msra.mxu0 0.0
    %3603 = vmatprep.subr.mxu0 0.0
    %3604 = vmatpush1.msra.mxu0 0.0
    %3605 = vmatprep.subr.mxu0 0.0
    %3606 = vmatpush1.msra.mxu0 0.0
    %3607 = vmatprep.subr.mxu0 0.0
    %3608 = vmatpush1.msra.mxu0 0.0
    %3609 = vmatprep.subr.mxu0 0.0
    %3610 = vmatpush1.msra.mxu0 0.0
    %3611 = vmatprep.subr.mxu0 0.0
    %3612 = vmatpush1.msra.mxu0 0.0
    %3613 = vmatprep.subr.mxu0 0.0
    %3614 = vmatpush1.msra.mxu0 0.0
    %3615 = vmatprep.subr.mxu0 0.0
    %3616 = vmatpush1.msra.mxu0 0.0
    %3617 = vmatprep.subr.mxu0 0.0
    %3618 = vmatpush1.msra.mxu0 0.0
    %3619 = vmatprep.subr.mxu0 0.0
    %3620 = vmatpush1.msra.mxu0 0.0
    %3621 = vmatprep.subr.mxu0 0.0
    %3622 = vmatpush1.msra.mxu0 0.0
    %3623 = vmatprep.subr.mxu0 0.0
    %3624 = vmatpush1.msra.mxu0 0.0
    %3625 = vmatprep.subr.mxu0 0.0
    %3626 = vmatpush1.msra.mxu0 0.0
    %3627 = vmatprep.subr.mxu0 0.0
    %3628 = vmatpush1.msra.mxu0 0.0
    %3629 = vmatprep.subr.mxu0 0.0
    %3630 = vmatpush1.msra.mxu0 0.0
    %3631 = vmatprep.subr.mxu0 0.0
    %3632 = vmatpush1.msra.mxu0 0.0
    %3633 = vmatprep.subr.mxu0 0.0
    %3634 = vmatpush1.msra.mxu0 0.0
    %3635 = vmatprep.subr.mxu0 0.0
    %3636 = vmatpush1.msra.mxu0 0.0
    %3637 = vmatprep.subr.mxu0 0.0
    %3638 = vmatpush1.msra.mxu0 0.0
    %3639 = vmatprep.subr.mxu0 0.0
    %3640 = vmatpush1.msra.mxu0 0.0
    %3641 = vmatprep.subr.mxu0 0.0
    %3642 = vmatpush1.msra.mxu0 0.0
    %3643 = vmatprep.subr.mxu0 0.0
    %3644 = vmatpush1.msra.mxu0 0.0
    %3645 = vmatprep.subr.mxu0 0.0
    %3646 = vmatpush1.msra.mxu0 0.0
    %3647 = vmatprep.subr.mxu0 0.0
    %3648 = vmatpush1.msra.mxu0 0.0
    %3649 = vmatprep.subr.mxu0 0.0
    %3650 = vmatpush1.msra.mxu0 0.0
    %3651 = vmatprep.subr.mxu0 0.0
    %3652 = vmatpush1.msra.mxu0 0.0
    %3653 = vmatprep.subr.mxu0 0.0
    %3654 = vmatpush1.msra.mxu0 0.0
    %3655 = vmatprep.subr.mxu0 0.0
    %3656 = vmatpush1.msra.mxu0 0.0
    %3657 = vmatprep.subr.mxu0 0.0
    %3658 = vmatpush1.msra.mxu0 0.0
    %3659 = vmatprep.subr.mxu0 0.0
    %3660 = vmatpush1.msra.mxu0 0.0
    %3661 = vmatprep.subr.mxu0 0.0
    %3662 = vmatpush1.msra.mxu0 0.0
    %3663 = vmatprep.mubr.f32.mxu0 0.0
    %3664 = vmatmul.mubr.f32.gmra.mrb[0].mxu0 %v3597
    %v3665 = vpop.f32.mrb[0].mxu0
    %v3666 = vadd.f32 %v857, %v3665
    %v3667 = vpop.f32.mrb[0].mxu0
    %3668 = vdwg.mxu0
    %3669 = vst.msk [vmem:[%s15] sm:$0xf] %vm1863, %v3666
    %s3670 = scalar_lea.vmem %s15, 4
    %3671 = vst.msk [vmem:[%s3670 - $0x4] sm:$0xf0] %vm1866, %v3666
    %v3672 = vmul.f32 %v3521, %v833
    %v3673 = vmul.f32 %v3521, %v838
    %v3674 = vadd.f32 %v804, %v3672
    %v3675 = vadd.f32 %v809, %v3673
    %3676 = vmatprep.subr.mxu0 0.0
    %3677 = vmatpush1.msra.mxu0 %v3674
    %3678 = vmatprep.subr.mxu0 0.0
    %3679 = vmatpush1.msra.mxu0 %v3675
    %3680 = vmatprep.subr.mxu0 0.0
    %3681 = vmatpush1.msra.mxu0 0.0
    %3682 = vmatprep.subr.mxu0 0.0
    %3683 = vmatpush1.msra.mxu0 0.0
    %3684 = vmatprep.subr.mxu0 0.0
    %3685 = vmatpush1.msra.mxu0 0.0
    %3686 = vmatprep.subr.mxu0 0.0
    %3687 = vmatpush1.msra.mxu0 0.0
    %3688 = vmatprep.subr.mxu0 0.0
    %3689 = vmatpush1.msra.mxu0 0.0
    %3690 = vmatprep.subr.mxu0 0.0
    %3691 = vmatpush1.msra.mxu0 0.0
    %3692 = vmatprep.subr.mxu0 0.0
    %3693 = vmatpush1.msra.mxu0 0.0
    %3694 = vmatprep.subr.mxu0 0.0
    %3695 = vmatpush1.msra.mxu0 0.0
    %3696 = vmatprep.subr.mxu0 0.0
    %3697 = vmatpush1.msra.mxu0 0.0
    %3698 = vmatprep.subr.mxu0 0.0
    %3699 = vmatpush1.msra.mxu0 0.0
    %3700 = vmatprep.subr.mxu0 0.0
    %3701 = vmatpush1.msra.mxu0 0.0
    %3702 = vmatprep.subr.mxu0 0.0
    %3703 = vmatpush1.msra.mxu0 0.0
    %3704 = vmatprep.subr.mxu0 0.0
    %3705 = vmatpush1.msra.mxu0 0.0
    %3706 = vmatprep.subr.mxu0 0.0
    %3707 = vmatpush1.msra.mxu0 0.0
    %3708 = vmatprep.subr.mxu0 0.0
    %3709 = vmatpush1.msra.mxu0 0.0
    %3710 = vmatprep.subr.mxu0 0.0
    %3711 = vmatpush1.msra.mxu0 0.0
    %3712 = vmatprep.subr.mxu0 0.0
    %3713 = vmatpush1.msra.mxu0 0.0
    %3714 = vmatprep.subr.mxu0 0.0
    %3715 = vmatpush1.msra.mxu0 0.0
    %3716 = vmatprep.subr.mxu0 0.0
    %3717 = vmatpush1.msra.mxu0 0.0
    %3718 = vmatprep.subr.mxu0 0.0
    %3719 = vmatpush1.msra.mxu0 0.0
    %3720 = vmatprep.subr.mxu0 0.0
    %3721 = vmatpush1.msra.mxu0 0.0
    %3722 = vmatprep.subr.mxu0 0.0
    %3723 = vmatpush1.msra.mxu0 0.0
    %3724 = vmatprep.subr.mxu0 0.0
    %3725 = vmatpush1.msra.mxu0 0.0
    %3726 = vmatprep.subr.mxu0 0.0
    %3727 = vmatpush1.msra.mxu0 0.0
    %3728 = vmatprep.subr.mxu0 0.0
    %3729 = vmatpush1.msra.mxu0 0.0
    %3730 = vmatprep.subr.mxu0 0.0
    %3731 = vmatpush1.msra.mxu0 0.0
    %3732 = vmatprep.subr.mxu0 0.0
    %3733 = vmatpush1.msra.mxu0 0.0
    %3734 = vmatprep.subr.mxu0 0.0
    %3735 = vmatpush1.msra.mxu0 0.0
    %3736 = vmatprep.subr.mxu0 0.0
    %3737 = vmatpush1.msra.mxu0 0.0
    %3738 = vmatprep.subr.mxu0 0.0
    %3739 = vmatpush1.msra.mxu0 0.0
    %3740 = vmatprep.mubr.f32.mxu0 0.0
    %3741 = vmatmul.mubr.f32.gmra.mrb[0].mxu0 %v3199
    %v3742 = vpop.f32.mrb[0].mxu0
    %v3743 = vadd.f32 0.0, %v3742
    %v3744 = vpop.f32.mrb[0].mxu0
    %3745 = vdwg.mxu0
    %3746 = vmatprep.subr.mxu0 0.0
    %3747 = vmatpush1.msra.mxu0 %v3743
    %3748 = vmatprep.subr.mxu0 0.0
    %3749 = vmatpush1.msra.mxu0 0.0
    %3750 = vmatprep.subr.mxu0 0.0
    %3751 = vmatpush1.msra.mxu0 0.0
    %3752 = vmatprep.subr.mxu0 0.0
    %3753 = vmatpush1.msra.mxu0 0.0
    %3754 = vmatprep.subr.mxu0 0.0
    %3755 = vmatpush1.msra.mxu0 0.0
    %3756 = vmatprep.subr.mxu0 0.0
    %3757 = vmatpush1.msra.mxu0 0.0
    %3758 = vmatprep.subr.mxu0 0.0
    %3759 = vmatpush1.msra.mxu0 0.0
    %3760 = vmatprep.subr.mxu0 0.0
    %3761 = vmatpush1.msra.mxu0 0.0
    %3762 = vmatprep.subr.mxu0 0.0
    %3763 = vmatpush1.msra.mxu0 0.0
    %3764 = vmatprep.subr.mxu0 0.0
    %3765 = vmatpush1.msra.mxu0 0.0
    %3766 = vmatprep.subr.mxu0 0.0
    %3767 = vmatpush1.msra.mxu0 0.0
    %3768 = vmatprep.subr.mxu0 0.0
    %3769 = vmatpush1.msra.mxu0 0.0
    %3770 = vmatprep.subr.mxu0 0.0
    %3771 = vmatpush1.msra.mxu0 0.0
    %3772 = vmatprep.subr.mxu0 0.0
    %3773 = vmatpush1.msra.mxu0 0.0
    %3774 = vmatprep.subr.mxu0 0.0
    %3775 = vmatpush1.msra.mxu0 0.0
    %3776 = vmatprep.subr.mxu0 0.0
    %3777 = vmatpush1.msra.mxu0 0.0
    %3778 = vmatprep.subr.mxu0 0.0
    %3779 = vmatpush1.msra.mxu0 0.0
    %3780 = vmatprep.subr.mxu0 0.0
    %3781 = vmatpush1.msra.mxu0 0.0
    %3782 = vmatprep.subr.mxu0 0.0
    %3783 = vmatpush1.msra.mxu0 0.0
    %3784 = vmatprep.subr.mxu0 0.0
    %3785 = vmatpush1.msra.mxu0 0.0
    %3786 = vmatprep.subr.mxu0 0.0
    %3787 = vmatpush1.msra.mxu0 0.0
    %3788 = vmatprep.subr.mxu0 0.0
    %3789 = vmatpush1.msra.mxu0 0.0
    %3790 = vmatprep.subr.mxu0 0.0
    %3791 = vmatpush1.msra.mxu0 0.0
    %3792 = vmatprep.subr.mxu0 0.0
    %3793 = vmatpush1.msra.mxu0 0.0
    %3794 = vmatprep.subr.mxu0 0.0
    %3795 = vmatpush1.msra.mxu0 0.0
    %3796 = vmatprep.subr.mxu0 0.0
    %3797 = vmatpush1.msra.mxu0 0.0
    %3798 = vmatprep.subr.mxu0 0.0
    %3799 = vmatpush1.msra.mxu0 0.0
    %3800 = vmatprep.subr.mxu0 0.0
    %3801 = vmatpush1.msra.mxu0 0.0
    %3802 = vmatprep.subr.mxu0 0.0
    %3803 = vmatpush1.msra.mxu0 0.0
    %3804 = vmatprep.subr.mxu0 0.0
    %3805 = vmatpush1.msra.mxu0 0.0
    %3806 = vmatprep.subr.mxu0 0.0
    %3807 = vmatpush1.msra.mxu0 0.0
    %3808 = vmatprep.subr.mxu0 0.0
    %3809 = vmatpush1.msra.mxu0 0.0
    %3810 = vmatprep.mubr.f32.mxu0 0.0
    %3811 = vmatmul.mubr.f32.gmra.mrb[0].mxu0 %v3597
    %v3812 = vpop.f32.mrb[0].mxu0
    %v3813 = vadd.f32 %v876, %v3812
    %v3814 = vpop.f32.mrb[0].mxu0
    %3815 = vdwg.mxu0
    %s3816 = scalar_lea.vmem %s15, 8
    %3817 = vst.msk [vmem:[%s3816] sm:$0xf] %vm1863, %v3813
    %s3818 = scalar_lea.vmem %s15, 12
    %3819 = vst.msk [vmem:[%s3818 - $0x4] sm:$0xf0] %vm1866, %v3813
    %3820 = vxpose.xlu0.b32.start [1/16] %v730, 128
    %3821 = vxpose.xlu0.b32.cont [2/16] %v735, 128
    %3822 = vxpose.xlu0.b32.cont [3/16] 0.0, 128
    %3823 = vxpose.xlu0.b32.cont [4/16] 0.0, 128
    %3824 = vxpose.xlu0.b32.cont [5/16] 0.0, 128
    %3825 = vxpose.xlu0.b32.cont [6/16] 0.0, 128
    %3826 = vxpose.xlu0.b32.cont [7/16] 0.0, 128
    %3827 = vxpose.xlu0.b32.cont [8/16] 0.0, 128
    %3828 = vxpose.xlu0.b32.cont [9/16] 0.0, 128
    %3829 = vxpose.xlu0.b32.cont [10/16] 0.0, 128
    %3830 = vxpose.xlu0.b32.cont [11/16] 0.0, 128
    %3831 = vxpose.xlu0.b32.cont [12/16] 0.0, 128
    %3832 = vxpose.xlu0.b32.cont [13/16] 0.0, 128
    %3833 = vxpose.xlu0.b32.cont [14/16] 0.0, 128
    %3834 = vxpose.xlu0.b32.cont [15/16] 0.0, 128
    %3835 = vxpose.xlu0.b32.end [16/16] 0.0, 128
    %v3836 = vpop.trf.xlu0
    %v3837 = vpop.trf.xlu0
    %v3838 = vpop.trf.xlu0
    %v3839 = vpop.trf.xlu0
    %v3840 = vpop.trf.xlu0
    %v3841 = vpop.trf.xlu0
    %v3842 = vpop.trf.xlu0
    %v3843 = vpop.trf.xlu0
    %v3844 = vpop.trf.xlu0
    %v3845 = vpop.trf.xlu0
    %v3846 = vpop.trf.xlu0
    %v3847 = vpop.trf.xlu0
    %v3848 = vpop.trf.xlu0
    %v3849 = vpop.trf.xlu0
    %v3850 = vpop.trf.xlu0
    %v3851 = vpop.trf.xlu0
    %v3853 = vsel %vm1047, %v3836, 0
    %v3856 = vsel %vm1047, %v3837, 0
    %3858 = vmatprep.subr.mxu0 0.0
    %3859 = vmatpush1.msra.mxu0 %v679
    %3860 = vmatprep.subr.mxu0 0.0
    %3861 = vmatpush1.msra.mxu0 %v684
    %3862 = vmatprep.subr.mxu0 0.0
    %3863 = vmatpush1.msra.mxu0 0.0
    %3864 = vmatprep.subr.mxu0 0.0
    %3865 = vmatpush1.msra.mxu0 0.0
    %3866 = vmatprep.subr.mxu0 0.0
    %3867 = vmatpush1.msra.mxu0 0.0
    %3868 = vmatprep.subr.mxu0 0.0
    %3869 = vmatpush1.msra.mxu0 0.0
    %3870 = vmatprep.subr.mxu0 0.0
    %3871 = vmatpush1.msra.mxu0 0.0
    %3872 = vmatprep.subr.mxu0 0.0
    %3873 = vmatpush1.msra.mxu0 0.0
    %3874 = vmatprep.subr.mxu0 0.0
    %3875 = vmatpush1.msra.mxu0 0.0
    %3876 = vmatprep.subr.mxu0 0.0
    %3877 = vmatpush1.msra.mxu0 0.0
    %3878 = vmatprep.subr.mxu0 0.0
    %3879 = vmatpush1.msra.mxu0 0.0
    %3880 = vmatprep.subr.mxu0 0.0
    %3881 = vmatpush1.msra.mxu0 0.0
    %3882 = vmatprep.subr.mxu0 0.0
    %3883 = vmatpush1.msra.mxu0 0.0
    %3884 = vmatprep.subr.mxu0 0.0
    %3885 = vmatpush1.msra.mxu0 0.0
    %3886 = vmatprep.subr.mxu0 0.0
    %3887 = vmatpush1.msra.mxu0 0.0
    %3888 = vmatprep.subr.mxu0 0.0
    %3889 = vmatpush1.msra.mxu0 0.0
    %3890 = vmatprep.subr.mxu0 0.0
    %3891 = vmatpush1.msra.mxu0 0.0
    %3892 = vmatprep.subr.mxu0 0.0
    %3893 = vmatpush1.msra.mxu0 0.0
    %3894 = vmatprep.subr.mxu0 0.0
    %3895 = vmatpush1.msra.mxu0 0.0
    %3896 = vmatprep.subr.mxu0 0.0
    %3897 = vmatpush1.msra.mxu0 0.0
    %3898 = vmatprep.subr.mxu0 0.0
    %3899 = vmatpush1.msra.mxu0 0.0
    %3900 = vmatprep.subr.mxu0 0.0
    %3901 = vmatpush1.msra.mxu0 0.0
    %3902 = vmatprep.subr.mxu0 0.0
    %3903 = vmatpush1.msra.mxu0 0.0
    %3904 = vmatprep.subr.mxu0 0.0
    %3905 = vmatpush1.msra.mxu0 0.0
    %3906 = vmatprep.subr.mxu0 0.0
    %3907 = vmatpush1.msra.mxu0 0.0
    %3908 = vmatprep.subr.mxu0 0.0
    %3909 = vmatpush1.msra.mxu0 0.0
    %3910 = vmatprep.subr.mxu0 0.0
    %3911 = vmatpush1.msra.mxu0 0.0
    %3912 = vmatprep.subr.mxu0 0.0
    %3913 = vmatpush1.msra.mxu0 0.0
    %3914 = vmatprep.subr.mxu0 0.0
    %3915 = vmatpush1.msra.mxu0 0.0
    %3916 = vmatprep.subr.mxu0 0.0
    %3917 = vmatpush1.msra.mxu0 0.0
    %3918 = vmatprep.subr.mxu0 0.0
    %3919 = vmatpush1.msra.mxu0 0.0
    %3920 = vmatprep.subr.mxu0 0.0
    %3921 = vmatpush1.msra.mxu0 0.0
    %3922 = vmatprep.mubr.f32.mxu0 0.0
    %3923 = vmatmul.mubr.f32.gmra.mrb[0].mxu0 %v3853
    %v3924 = vpop.f32.mrb[0].mxu0
    %v3925 = vadd.f32 0.0, %v3924
    %v3926 = vpop.f32.mrb[0].mxu0
    %3927 = vmatprep.mubr.f32.mxu0 0.0
    %3928 = vmatmul.mubr.f32.gmra.mrb[0].mxu0 %v3856
    %v3929 = vpop.f32.mrb[0].mxu0
    %v3930 = vadd.f32 0.0, %v3929
    %v3931 = vpop.f32.mrb[0].mxu0
    %3932 = vdwg.mxu0
    %v3934 = vsel %vm729, %v3925, 0
    %v3937 = vsel %vm729, %v3930, 0
    %3939 = vmatprep.subr.mxu0 0.0
    %3940 = vmatpush1.msra.mxu0 %v1860
    %3941 = vmatprep.subr.mxu0 0.0
    %3942 = vmatpush1.msra.mxu0 0.0
    %3943 = vmatprep.subr.mxu0 0.0
    %3944 = vmatpush1.msra.mxu0 0.0
    %3945 = vmatprep.subr.mxu0 0.0
    %3946 = vmatpush1.msra.mxu0 0.0
    %3947 = vmatprep.subr.mxu0 0.0
    %3948 = vmatpush1.msra.mxu0 0.0
    %3949 = vmatprep.subr.mxu0 0.0
    %3950 = vmatpush1.msra.mxu0 0.0
    %3951 = vmatprep.subr.mxu0 0.0
    %3952 = vmatpush1.msra.mxu0 0.0
    %3953 = vmatprep.subr.mxu0 0.0
    %3954 = vmatpush1.msra.mxu0 0.0
    %3955 = vmatprep.subr.mxu0 0.0
    %3956 = vmatpush1.msra.mxu0 0.0
    %3957 = vmatprep.subr.mxu0 0.0
    %3958 = vmatpush1.msra.mxu0 0.0
    %3959 = vmatprep.subr.mxu0 0.0
    %3960 = vmatpush1.msra.mxu0 0.0
    %3961 = vmatprep.subr.mxu0 0.0
    %3962 = vmatpush1.msra.mxu0 0.0
    %3963 = vmatprep.subr.mxu0 0.0
    %3964 = vmatpush1.msra.mxu0 0.0
    %3965 = vmatprep.subr.mxu0 0.0
    %3966 = vmatpush1.msra.mxu0 0.0
    %3967 = vmatprep.subr.mxu0 0.0
    %3968 = vmatpush1.msra.mxu0 0.0
    %3969 = vmatprep.subr.mxu0 0.0
    %3970 = vmatpush1.msra.mxu0 0.0
    %3971 = vmatprep.subr.mxu0 0.0
    %3972 = vmatpush1.msra.mxu0 0.0
    %3973 = vmatprep.subr.mxu0 0.0
    %3974 = vmatpush1.msra.mxu0 0.0
    %3975 = vmatprep.subr.mxu0 0.0
    %3976 = vmatpush1.msra.mxu0 0.0
    %3977 = vmatprep.subr.mxu0 0.0
    %3978 = vmatpush1.msra.mxu0 0.0
    %3979 = vmatprep.subr.mxu0 0.0
    %3980 = vmatpush1.msra.mxu0 0.0
    %3981 = vmatprep.subr.mxu0 0.0
    %3982 = vmatpush1.msra.mxu0 0.0
    %3983 = vmatprep.subr.mxu0 0.0
    %3984 = vmatpush1.msra.mxu0 0.0
    %3985 = vmatprep.subr.mxu0 0.0
    %3986 = vmatpush1.msra.mxu0 0.0
    %3987 = vmatprep.subr.mxu0 0.0
    %3988 = vmatpush1.msra.mxu0 0.0
    %3989 = vmatprep.subr.mxu0 0.0
    %3990 = vmatpush1.msra.mxu0 0.0
    %3991 = vmatprep.subr.mxu0 0.0
    %3992 = vmatpush1.msra.mxu0 0.0
    %3993 = vmatprep.subr.mxu0 0.0
    %3994 = vmatpush1.msra.mxu0 0.0
    %3995 = vmatprep.subr.mxu0 0.0
    %3996 = vmatpush1.msra.mxu0 0.0
    %3997 = vmatprep.subr.mxu0 0.0
    %3998 = vmatpush1.msra.mxu0 0.0
    %3999 = vmatprep.subr.mxu0 0.0
    %4000 = vmatpush1.msra.mxu0 0.0
    %4001 = vmatprep.subr.mxu0 0.0
    %4002 = vmatpush1.msra.mxu0 0.0
    %4003 = vmatprep.mubr.f32.mxu0 0.0
    %4004 = vmatmul.mubr.f32.gmra.mrb[0].mxu0 %v3934
    %v4005 = vpop.f32.mrb[0].mxu0
    %v4006 = vadd.f32 0.0, %v4005
    %v4007 = vpop.f32.mrb[0].mxu0
    %4008 = vmatprep.mubr.f32.mxu0 0.0
    %4009 = vmatmul.mubr.f32.gmra.mrb[0].mxu0 %v3937
    %v4010 = vpop.f32.mrb[0].mxu0
    %v4011 = vadd.f32 0.0, %v4010
    %v4012 = vpop.f32.mrb[0].mxu0
    %4013 = vdwg.mxu0
    %v4015 = vsel %vm670, %v4006, 0
    %v4018 = vsel %vm670, %v4011, 0
    %v4021 = vsel %vm856, %v2109, 0
    %4023 = vmatprep.subr.mxu0 0.0
    %4024 = vmatpush1.msra.mxu0 %v4021
    %4025 = vmatprep.subr.mxu0 0.0
    %4026 = vmatpush1.msra.mxu0 0.0
    %4027 = vmatprep.subr.mxu0 0.0
    %4028 = vmatpush1.msra.mxu0 0.0
    %4029 = vmatprep.subr.mxu0 0.0
    %4030 = vmatpush1.msra.mxu0 0.0
    %4031 = vmatprep.subr.mxu0 0.0
    %4032 = vmatpush1.msra.mxu0 0.0
    %4033 = vmatprep.subr.mxu0 0.0
    %4034 = vmatpush1.msra.mxu0 0.0
    %4035 = vmatprep.subr.mxu0 0.0
    %4036 = vmatpush1.msra.mxu0 0.0
    %4037 = vmatprep.subr.mxu0 0.0
    %4038 = vmatpush1.msra.mxu0 0.0
    %4039 = vmatprep.subr.mxu0 0.0
    %4040 = vmatpush1.msra.mxu0 0.0
    %4041 = vmatprep.subr.mxu0 0.0
    %4042 = vmatpush1.msra.mxu0 0.0
    %4043 = vmatprep.subr.mxu0 0.0
    %4044 = vmatpush1.msra.mxu0 0.0
    %4045 = vmatprep.subr.mxu0 0.0
    %4046 = vmatpush1.msra.mxu0 0.0
    %4047 = vmatprep.subr.mxu0 0.0
    %4048 = vmatpush1.msra.mxu0 0.0
    %4049 = vmatprep.subr.mxu0 0.0
    %4050 = vmatpush1.msra.mxu0 0.0
    %4051 = vmatprep.subr.mxu0 0.0
    %4052 = vmatpush1.msra.mxu0 0.0
    %4053 = vmatprep.subr.mxu0 0.0
    %4054 = vmatpush1.msra.mxu0 0.0
    %4055 = vmatprep.subr.mxu0 0.0
    %4056 = vmatpush1.msra.mxu0 0.0
    %4057 = vmatprep.subr.mxu0 0.0
    %4058 = vmatpush1.msra.mxu0 0.0
    %4059 = vmatprep.subr.mxu0 0.0
    %4060 = vmatpush1.msra.mxu0 0.0
    %4061 = vmatprep.subr.mxu0 0.0
    %4062 = vmatpush1.msra.mxu0 0.0
    %4063 = vmatprep.subr.mxu0 0.0
    %4064 = vmatpush1.msra.mxu0 0.0
    %4065 = vmatprep.subr.mxu0 0.0
    %4066 = vmatpush1.msra.mxu0 0.0
    %4067 = vmatprep.subr.mxu0 0.0
    %4068 = vmatpush1.msra.mxu0 0.0
    %4069 = vmatprep.subr.mxu0 0.0
    %4070 = vmatpush1.msra.mxu0 0.0
    %4071 = vmatprep.subr.mxu0 0.0
    %4072 = vmatpush1.msra.mxu0 0.0
    %4073 = vmatprep.subr.mxu0 0.0
    %4074 = vmatpush1.msra.mxu0 0.0
    %4075 = vmatprep.subr.mxu0 0.0
    %4076 = vmatpush1.msra.mxu0 0.0
    %4077 = vmatprep.subr.mxu0 0.0
    %4078 = vmatpush1.msra.mxu0 0.0
    %4079 = vmatprep.subr.mxu0 0.0
    %4080 = vmatpush1.msra.mxu0 0.0
    %4081 = vmatprep.subr.mxu0 0.0
    %4082 = vmatpush1.msra.mxu0 0.0
    %4083 = vmatprep.subr.mxu0 0.0
    %4084 = vmatpush1.msra.mxu0 0.0
    %4085 = vmatprep.subr.mxu0 0.0
    %4086 = vmatpush1.msra.mxu0 0.0
    %4087 = vmatprep.mubr.f32.mxu0 0.0
    %4088 = vmatmul.mubr.f32.gmra.mrb[0].mxu0 %v4015
    %v4089 = vpop.f32.mrb[0].mxu0
    %v4090 = vadd.f32 0.0, %v4089
    %v4091 = vpop.f32.mrb[0].mxu0
    %4092 = vmatprep.mubr.f32.mxu0 0.0
    %4093 = vmatmul.mubr.f32.gmra.mrb[0].mxu0 %v4018
    %v4094 = vpop.f32.mrb[0].mxu0
    %v4095 = vadd.f32 0.0, %v4094
    %v4096 = vpop.f32.mrb[0].mxu0
    %4097 = vdwg.mxu0
    %4098 = vxpose.xlu0.b32.start [1/16] %v745, 128
    %4099 = vxpose.xlu0.b32.cont [2/16] %v750, 128
    %4100 = vxpose.xlu0.b32.cont [3/16] 0.0, 128
    %4101 = vxpose.xlu0.b32.cont [4/16] 0.0, 128
    %4102 = vxpose.xlu0.b32.cont [5/16] 0.0, 128
    %4103 = vxpose.xlu0.b32.cont [6/16] 0.0, 128
    %4104 = vxpose.xlu0.b32.cont [7/16] 0.0, 128
    %4105 = vxpose.xlu0.b32.cont [8/16] 0.0, 128
    %4106 = vxpose.xlu0.b32.cont [9/16] 0.0, 128
    %4107 = vxpose.xlu0.b32.cont [10/16] 0.0, 128
    %4108 = vxpose.xlu0.b32.cont [11/16] 0.0, 128
    %4109 = vxpose.xlu0.b32.cont [12/16] 0.0, 128
    %4110 = vxpose.xlu0.b32.cont [13/16] 0.0, 128
    %4111 = vxpose.xlu0.b32.cont [14/16] 0.0, 128
    %4112 = vxpose.xlu0.b32.cont [15/16] 0.0, 128
    %4113 = vxpose.xlu0.b32.end [16/16] 0.0, 128
    %v4114 = vpop.trf.xlu0
    %v4115 = vpop.trf.xlu0
    %v4116 = vpop.trf.xlu0
    %v4117 = vpop.trf.xlu0
    %v4118 = vpop.trf.xlu0
    %v4119 = vpop.trf.xlu0
    %v4120 = vpop.trf.xlu0
    %v4121 = vpop.trf.xlu0
    %v4122 = vpop.trf.xlu0
    %v4123 = vpop.trf.xlu0
    %v4124 = vpop.trf.xlu0
    %v4125 = vpop.trf.xlu0
    %v4126 = vpop.trf.xlu0
    %v4127 = vpop.trf.xlu0
    %v4128 = vpop.trf.xlu0
    %v4129 = vpop.trf.xlu0
    %v4131 = vsel %vm1047, %v4114, 0
    %v4134 = vsel %vm1047, %v4115, 0
    %4136 = vmatprep.subr.mxu0 0.0
    %4137 = vmatpush1.msra.mxu0 %v699
    %4138 = vmatprep.subr.mxu0 0.0
    %4139 = vmatpush1.msra.mxu0 %v703
    %4140 = vmatprep.subr.mxu0 0.0
    %4141 = vmatpush1.msra.mxu0 0.0
    %4142 = vmatprep.subr.mxu0 0.0
    %4143 = vmatpush1.msra.mxu0 0.0
    %4144 = vmatprep.subr.mxu0 0.0
    %4145 = vmatpush1.msra.mxu0 0.0
    %4146 = vmatprep.subr.mxu0 0.0
    %4147 = vmatpush1.msra.mxu0 0.0
    %4148 = vmatprep.subr.mxu0 0.0
    %4149 = vmatpush1.msra.mxu0 0.0
    %4150 = vmatprep.subr.mxu0 0.0
    %4151 = vmatpush1.msra.mxu0 0.0
    %4152 = vmatprep.subr.mxu0 0.0
    %4153 = vmatpush1.msra.mxu0 0.0
    %4154 = vmatprep.subr.mxu0 0.0
    %4155 = vmatpush1.msra.mxu0 0.0
    %4156 = vmatprep.subr.mxu0 0.0
    %4157 = vmatpush1.msra.mxu0 0.0
    %4158 = vmatprep.subr.mxu0 0.0
    %4159 = vmatpush1.msra.mxu0 0.0
    %4160 = vmatprep.subr.mxu0 0.0
    %4161 = vmatpush1.msra.mxu0 0.0
    %4162 = vmatprep.subr.mxu0 0.0
    %4163 = vmatpush1.msra.mxu0 0.0
    %4164 = vmatprep.subr.mxu0 0.0
    %4165 = vmatpush1.msra.mxu0 0.0
    %4166 = vmatprep.subr.mxu0 0.0
    %4167 = vmatpush1.msra.mxu0 0.0
    %4168 = vmatprep.subr.mxu0 0.0
    %4169 = vmatpush1.msra.mxu0 0.0
    %4170 = vmatprep.subr.mxu0 0.0
    %4171 = vmatpush1.msra.mxu0 0.0
    %4172 = vmatprep.subr.mxu0 0.0
    %4173 = vmatpush1.msra.mxu0 0.0
    %4174 = vmatprep.subr.mxu0 0.0
    %4175 = vmatpush1.msra.mxu0 0.0
    %4176 = vmatprep.subr.mxu0 0.0
    %4177 = vmatpush1.msra.mxu0 0.0
    %4178 = vmatprep.subr.mxu0 0.0
    %4179 = vmatpush1.msra.mxu0 0.0
    %4180 = vmatprep.subr.mxu0 0.0
    %4181 = vmatpush1.msra.mxu0 0.0
    %4182 = vmatprep.subr.mxu0 0.0
    %4183 = vmatpush1.msra.mxu0 0.0
    %4184 = vmatprep.subr.mxu0 0.0
    %4185 = vmatpush1.msra.mxu0 0.0
    %4186 = vmatprep.subr.mxu0 0.0
    %4187 = vmatpush1.msra.mxu0 0.0
    %4188 = vmatprep.subr.mxu0 0.0
    %4189 = vmatpush1.msra.mxu0 0.0
    %4190 = vmatprep.subr.mxu0 0.0
    %4191 = vmatpush1.msra.mxu0 0.0
    %4192 = vmatprep.subr.mxu0 0.0
    %4193 = vmatpush1.msra.mxu0 0.0
    %4194 = vmatprep.subr.mxu0 0.0
    %4195 = vmatpush1.msra.mxu0 0.0
    %4196 = vmatprep.subr.mxu0 0.0
    %4197 = vmatpush1.msra.mxu0 0.0
    %4198 = vmatprep.subr.mxu0 0.0
    %4199 = vmatpush1.msra.mxu0 0.0
    %4200 = vmatprep.mubr.f32.mxu0 0.0
    %4201 = vmatmul.mubr.f32.gmra.mrb[0].mxu0 %v4131
    %v4202 = vpop.f32.mrb[0].mxu0
    %v4203 = vadd.f32 0.0, %v4202
    %v4204 = vpop.f32.mrb[0].mxu0
    %4205 = vmatprep.mubr.f32.mxu0 0.0
    %4206 = vmatmul.mubr.f32.gmra.mrb[0].mxu0 %v4134
    %v4207 = vpop.f32.mrb[0].mxu0
    %v4208 = vadd.f32 0.0, %v4207
    %v4209 = vpop.f32.mrb[0].mxu0
    %4210 = vdwg.mxu0
    %v4212 = vsel %vm729, %v4203, 0
    %v4215 = vsel %vm729, %v4208, 0
    %4217 = vmatprep.subr.mxu0 0.0
    %4218 = vmatpush1.msra.mxu0 %v2919
    %4219 = vmatprep.subr.mxu0 0.0
    %4220 = vmatpush1.msra.mxu0 0.0
    %4221 = vmatprep.subr.mxu0 0.0
    %4222 = vmatpush1.msra.mxu0 0.0
    %4223 = vmatprep.subr.mxu0 0.0
    %4224 = vmatpush1.msra.mxu0 0.0
    %4225 = vmatprep.subr.mxu0 0.0
    %4226 = vmatpush1.msra.mxu0 0.0
    %4227 = vmatprep.subr.mxu0 0.0
    %4228 = vmatpush1.msra.mxu0 0.0
    %4229 = vmatprep.subr.mxu0 0.0
    %4230 = vmatpush1.msra.mxu0 0.0
    %4231 = vmatprep.subr.mxu0 0.0
    %4232 = vmatpush1.msra.mxu0 0.0
    %4233 = vmatprep.subr.mxu0 0.0
    %4234 = vmatpush1.msra.mxu0 0.0
    %4235 = vmatprep.subr.mxu0 0.0
    %4236 = vmatpush1.msra.mxu0 0.0
    %4237 = vmatprep.subr.mxu0 0.0
    %4238 = vmatpush1.msra.mxu0 0.0
    %4239 = vmatprep.subr.mxu0 0.0
    %4240 = vmatpush1.msra.mxu0 0.0
    %4241 = vmatprep.subr.mxu0 0.0
    %4242 = vmatpush1.msra.mxu0 0.0
    %4243 = vmatprep.subr.mxu0 0.0
    %4244 = vmatpush1.msra.mxu0 0.0
    %4245 = vmatprep.subr.mxu0 0.0
    %4246 = vmatpush1.msra.mxu0 0.0
    %4247 = vmatprep.subr.mxu0 0.0
    %4248 = vmatpush1.msra.mxu0 0.0
    %4249 = vmatprep.subr.mxu0 0.0
    %4250 = vmatpush1.msra.mxu0 0.0
    %4251 = vmatprep.subr.mxu0 0.0
    %4252 = vmatpush1.msra.mxu0 0.0
    %4253 = vmatprep.subr.mxu0 0.0
    %4254 = vmatpush1.msra.mxu0 0.0
    %4255 = vmatprep.subr.mxu0 0.0
    %4256 = vmatpush1.msra.mxu0 0.0
    %4257 = vmatprep.subr.mxu0 0.0
    %4258 = vmatpush1.msra.mxu0 0.0
    %4259 = vmatprep.subr.mxu0 0.0
    %4260 = vmatpush1.msra.mxu0 0.0
    %4261 = vmatprep.subr.mxu0 0.0
    %4262 = vmatpush1.msra.mxu0 0.0
    %4263 = vmatprep.subr.mxu0 0.0
    %4264 = vmatpush1.msra.mxu0 0.0
    %4265 = vmatprep.subr.mxu0 0.0
    %4266 = vmatpush1.msra.mxu0 0.0
    %4267 = vmatprep.subr.mxu0 0.0
    %4268 = vmatpush1.msra.mxu0 0.0
    %4269 = vmatprep.subr.mxu0 0.0
    %4270 = vmatpush1.msra.mxu0 0.0
    %4271 = vmatprep.subr.mxu0 0.0
    %4272 = vmatpush1.msra.mxu0 0.0
    %4273 = vmatprep.subr.mxu0 0.0
    %4274 = vmatpush1.msra.mxu0 0.0
    %4275 = vmatprep.subr.mxu0 0.0
    %4276 = vmatpush1.msra.mxu0 0.0
    %4277 = vmatprep.subr.mxu0 0.0
    %4278 = vmatpush1.msra.mxu0 0.0
    %4279 = vmatprep.subr.mxu0 0.0
    %4280 = vmatpush1.msra.mxu0 0.0
    %4281 = vmatprep.mubr.f32.mxu0 0.0
    %4282 = vmatmul.mubr.f32.gmra.mrb[0].mxu0 %v4212
    %v4283 = vpop.f32.mrb[0].mxu0
    %v4284 = vadd.f32 0.0, %v4283
    %v4285 = vpop.f32.mrb[0].mxu0
    %4286 = vmatprep.mubr.f32.mxu0 0.0
    %4287 = vmatmul.mubr.f32.gmra.mrb[0].mxu0 %v4215
    %v4288 = vpop.f32.mrb[0].mxu0
    %v4289 = vadd.f32 0.0, %v4288
    %v4290 = vpop.f32.mrb[0].mxu0
    %4291 = vdwg.mxu0
    %v4293 = vsel %vm670, %v4284, 0
    %v4296 = vsel %vm670, %v4289, 0
    %v4299 = vsel %vm856, %v3161, 0
    %4301 = vmatprep.subr.mxu0 0.0
    %4302 = vmatpush1.msra.mxu0 %v4299
    %4303 = vmatprep.subr.mxu0 0.0
    %4304 = vmatpush1.msra.mxu0 0.0
    %4305 = vmatprep.subr.mxu0 0.0
    %4306 = vmatpush1.msra.mxu0 0.0
    %4307 = vmatprep.subr.mxu0 0.0
    %4308 = vmatpush1.msra.mxu0 0.0
    %4309 = vmatprep.subr.mxu0 0.0
    %4310 = vmatpush1.msra.mxu0 0.0
    %4311 = vmatprep.subr.mxu0 0.0
    %4312 = vmatpush1.msra.mxu0 0.0
    %4313 = vmatprep.subr.mxu0 0.0
    %4314 = vmatpush1.msra.mxu0 0.0
    %4315 = vmatprep.subr.mxu0 0.0
    %4316 = vmatpush1.msra.mxu0 0.0
    %4317 = vmatprep.subr.mxu0 0.0
    %4318 = vmatpush1.msra.mxu0 0.0
    %4319 = vmatprep.subr.mxu0 0.0
    %4320 = vmatpush1.msra.mxu0 0.0
    %4321 = vmatprep.subr.mxu0 0.0
    %4322 = vmatpush1.msra.mxu0 0.0
    %4323 = vmatprep.subr.mxu0 0.0
    %4324 = vmatpush1.msra.mxu0 0.0
    %4325 = vmatprep.subr.mxu0 0.0
    %4326 = vmatpush1.msra.mxu0 0.0
    %4327 = vmatprep.subr.mxu0 0.0
    %4328 = vmatpush1.msra.mxu0 0.0
    %4329 = vmatprep.subr.mxu0 0.0
    %4330 = vmatpush1.msra.mxu0 0.0
    %4331 = vmatprep.subr.mxu0 0.0
    %4332 = vmatpush1.msra.mxu0 0.0
    %4333 = vmatprep.subr.mxu0 0.0
    %4334 = vmatpush1.msra.mxu0 0.0
    %4335 = vmatprep.subr.mxu0 0.0
    %4336 = vmatpush1.msra.mxu0 0.0
    %4337 = vmatprep.subr.mxu0 0.0
    %4338 = vmatpush1.msra.mxu0 0.0
    %4339 = vmatprep.subr.mxu0 0.0
    %4340 = vmatpush1.msra.mxu0 0.0
    %4341 = vmatprep.subr.mxu0 0.0
    %4342 = vmatpush1.msra.mxu0 0.0
    %4343 = vmatprep.subr.mxu0 0.0
    %4344 = vmatpush1.msra.mxu0 0.0
    %4345 = vmatprep.subr.mxu0 0.0
    %4346 = vmatpush1.msra.mxu0 0.0
    %4347 = vmatprep.subr.mxu0 0.0
    %4348 = vmatpush1.msra.mxu0 0.0
    %4349 = vmatprep.subr.mxu0 0.0
    %4350 = vmatpush1.msra.mxu0 0.0
    %4351 = vmatprep.subr.mxu0 0.0
    %4352 = vmatpush1.msra.mxu0 0.0
    %4353 = vmatprep.subr.mxu0 0.0
    %4354 = vmatpush1.msra.mxu0 0.0
    %4355 = vmatprep.subr.mxu0 0.0
    %4356 = vmatpush1.msra.mxu0 0.0
    %4357 = vmatprep.subr.mxu0 0.0
    %4358 = vmatpush1.msra.mxu0 0.0
    %4359 = vmatprep.subr.mxu0 0.0
    %4360 = vmatpush1.msra.mxu0 0.0
    %4361 = vmatprep.subr.mxu0 0.0
    %4362 = vmatpush1.msra.mxu0 0.0
    %4363 = vmatprep.subr.mxu0 0.0
    %4364 = vmatpush1.msra.mxu0 0.0
    %4365 = vmatprep.mubr.f32.mxu0 0.0
    %4366 = vmatmul.mubr.f32.gmra.mrb[0].mxu0 %v4293
    %v4367 = vpop.f32.mrb[0].mxu0
    %v4368 = vadd.f32 0.0, %v4367
    %v4369 = vpop.f32.mrb[0].mxu0
    %4370 = vmatprep.mubr.f32.mxu0 0.0
    %4371 = vmatmul.mubr.f32.gmra.mrb[0].mxu0 %v4296
    %v4372 = vpop.f32.mrb[0].mxu0
    %v4373 = vadd.f32 0.0, %v4372
    %v4374 = vpop.f32.mrb[0].mxu0
    %4375 = vdwg.mxu0
    %v4377 = vsel %vm670, %v4368, 0
    %v4380 = vsel %vm670, %v4373, 0
    %4382 = vmatprep.subr.mxu0 0.0
    %4383 = vmatpush1.xpose.msra.mxu0 %v4293
    %4384 = vmatprep.subr.mxu0 0.0
    %4385 = vmatpush1.xpose.msra.mxu0 %v4296
    %4386 = vmatprep.subr.mxu0 0.0
    %4387 = vmatpush1.xpose.msra.mxu0 0.0
    %4388 = vmatprep.subr.mxu0 0.0
    %4389 = vmatpush1.xpose.msra.mxu0 0.0
    %4390 = vmatprep.subr.mxu0 0.0
    %4391 = vmatpush1.xpose.msra.mxu0 0.0
    %4392 = vmatprep.subr.mxu0 0.0
    %4393 = vmatpush1.xpose.msra.mxu0 0.0
    %4394 = vmatprep.subr.mxu0 0.0
    %4395 = vmatpush1.xpose.msra.mxu0 0.0
    %4396 = vmatprep.subr.mxu0 0.0
    %4397 = vmatpush1.xpose.msra.mxu0 0.0
    %4398 = vmatprep.subr.mxu0 0.0
    %4399 = vmatpush1.xpose.msra.mxu0 0.0
    %4400 = vmatprep.subr.mxu0 0.0
    %4401 = vmatpush1.xpose.msra.mxu0 0.0
    %4402 = vmatprep.subr.mxu0 0.0
    %4403 = vmatpush1.xpose.msra.mxu0 0.0
    %4404 = vmatprep.subr.mxu0 0.0
    %4405 = vmatpush1.xpose.msra.mxu0 0.0
    %4406 = vmatprep.subr.mxu0 0.0
    %4407 = vmatpush1.xpose.msra.mxu0 0.0
    %4408 = vmatprep.subr.mxu0 0.0
    %4409 = vmatpush1.xpose.msra.mxu0 0.0
    %4410 = vmatprep.subr.mxu0 0.0
    %4411 = vmatpush1.xpose.msra.mxu0 0.0
    %4412 = vmatprep.subr.mxu0 0.0
    %4413 = vmatpush1.xpose.msra.mxu0 0.0
    %4414 = vmatprep.subr.mxu0 0.0
    %4415 = vmatpush1.xpose.msra.mxu0 0.0
    %4416 = vmatprep.subr.mxu0 0.0
    %4417 = vmatpush1.xpose.msra.mxu0 0.0
    %4418 = vmatprep.subr.mxu0 0.0
    %4419 = vmatpush1.xpose.msra.mxu0 0.0
    %4420 = vmatprep.subr.mxu0 0.0
    %4421 = vmatpush1.xpose.msra.mxu0 0.0
    %4422 = vmatprep.subr.mxu0 0.0
    %4423 = vmatpush1.xpose.msra.mxu0 0.0
    %4424 = vmatprep.subr.mxu0 0.0
    %4425 = vmatpush1.xpose.msra.mxu0 0.0
    %4426 = vmatprep.subr.mxu0 0.0
    %4427 = vmatpush1.xpose.msra.mxu0 0.0
    %4428 = vmatprep.subr.mxu0 0.0
    %4429 = vmatpush1.xpose.msra.mxu0 0.0
    %4430 = vmatprep.subr.mxu0 0.0
    %4431 = vmatpush1.xpose.msra.mxu0 0.0
    %4432 = vmatprep.subr.mxu0 0.0
    %4433 = vmatpush1.xpose.msra.mxu0 0.0
    %4434 = vmatprep.subr.mxu0 0.0
    %4435 = vmatpush1.xpose.msra.mxu0 0.0
    %4436 = vmatprep.subr.mxu0 0.0
    %4437 = vmatpush1.xpose.msra.mxu0 0.0
    %4438 = vmatprep.subr.mxu0 0.0
    %4439 = vmatpush1.xpose.msra.mxu0 0.0
    %4440 = vmatprep.subr.mxu0 0.0
    %4441 = vmatpush1.xpose.msra.mxu0 0.0
    %4442 = vmatprep.subr.mxu0 0.0
    %4443 = vmatpush1.xpose.msra.mxu0 0.0
    %4444 = vmatprep.subr.mxu0 0.0
    %4445 = vmatpush1.xpose.msra.mxu0 0.0
    %4446 = vmatprep.mubr.f32.mxu0 0.0
    %4447 = vmatmul.mubr.f32.gmra.mrb[0].mxu0 %v4377
    %v4448 = vpop.f32.mrb[0].mxu0
    %v4449 = vadd.f32 0.0, %v4448
    %v4450 = vpop.f32.mrb[0].mxu0
    %4451 = vmatprep.mubr.f32.mxu0 0.0
    %4452 = vmatmul.mubr.f32.gmra.mrb[0].mxu0 %v4380
    %v4453 = vpop.f32.mrb[0].mxu0
    %v4454 = vadd.f32 0.0, %v4453
    %v4455 = vpop.f32.mrb[0].mxu0
    %4456 = vdwg.mxu0
    %v4458 = vsel %vm670, %v4090, 0
    %v4461 = vsel %vm670, %v4095, 0
    %4463 = vmatprep.subr.mxu0 0.0
    %4464 = vmatpush1.xpose.msra.mxu0 %v4015
    %4465 = vmatprep.subr.mxu0 0.0
    %4466 = vmatpush1.xpose.msra.mxu0 %v4018
    %4467 = vmatprep.subr.mxu0 0.0
    %4468 = vmatpush1.xpose.msra.mxu0 0.0
    %4469 = vmatprep.subr.mxu0 0.0
    %4470 = vmatpush1.xpose.msra.mxu0 0.0
    %4471 = vmatprep.subr.mxu0 0.0
    %4472 = vmatpush1.xpose.msra.mxu0 0.0
    %4473 = vmatprep.subr.mxu0 0.0
    %4474 = vmatpush1.xpose.msra.mxu0 0.0
    %4475 = vmatprep.subr.mxu0 0.0
    %4476 = vmatpush1.xpose.msra.mxu0 0.0
    %4477 = vmatprep.subr.mxu0 0.0
    %4478 = vmatpush1.xpose.msra.mxu0 0.0
    %4479 = vmatprep.subr.mxu0 0.0
    %4480 = vmatpush1.xpose.msra.mxu0 0.0
    %4481 = vmatprep.subr.mxu0 0.0
    %4482 = vmatpush1.xpose.msra.mxu0 0.0
    %4483 = vmatprep.subr.mxu0 0.0
    %4484 = vmatpush1.xpose.msra.mxu0 0.0
    %4485 = vmatprep.subr.mxu0 0.0
    %4486 = vmatpush1.xpose.msra.mxu0 0.0
    %4487 = vmatprep.subr.mxu0 0.0
    %4488 = vmatpush1.xpose.msra.mxu0 0.0
    %4489 = vmatprep.subr.mxu0 0.0
    %4490 = vmatpush1.xpose.msra.mxu0 0.0
    %4491 = vmatprep.subr.mxu0 0.0
    %4492 = vmatpush1.xpose.msra.mxu0 0.0
    %4493 = vmatprep.subr.mxu0 0.0
    %4494 = vmatpush1.xpose.msra.mxu0 0.0
    %4495 = vmatprep.subr.mxu0 0.0
    %4496 = vmatpush1.xpose.msra.mxu0 0.0
    %4497 = vmatprep.subr.mxu0 0.0
    %4498 = vmatpush1.xpose.msra.mxu0 0.0
    %4499 = vmatprep.subr.mxu0 0.0
    %4500 = vmatpush1.xpose.msra.mxu0 0.0
    %4501 = vmatprep.subr.mxu0 0.0
    %4502 = vmatpush1.xpose.msra.mxu0 0.0
    %4503 = vmatprep.subr.mxu0 0.0
    %4504 = vmatpush1.xpose.msra.mxu0 0.0
    %4505 = vmatprep.subr.mxu0 0.0
    %4506 = vmatpush1.xpose.msra.mxu0 0.0
    %4507 = vmatprep.subr.mxu0 0.0
    %4508 = vmatpush1.xpose.msra.mxu0 0.0
    %4509 = vmatprep.subr.mxu0 0.0
    %4510 = vmatpush1.xpose.msra.mxu0 0.0
    %4511 = vmatprep.subr.mxu0 0.0
    %4512 = vmatpush1.xpose.msra.mxu0 0.0
    %4513 = vmatprep.subr.mxu0 0.0
    %4514 = vmatpush1.xpose.msra.mxu0 0.0
    %4515 = vmatprep.subr.mxu0 0.0
    %4516 = vmatpush1.xpose.msra.mxu0 0.0
    %4517 = vmatprep.subr.mxu0 0.0
    %4518 = vmatpush1.xpose.msra.mxu0 0.0
    %4519 = vmatprep.subr.mxu0 0.0
    %4520 = vmatpush1.xpose.msra.mxu0 0.0
    %4521 = vmatprep.subr.mxu0 0.0
    %4522 = vmatpush1.xpose.msra.mxu0 0.0
    %4523 = vmatprep.subr.mxu0 0.0
    %4524 = vmatpush1.xpose.msra.mxu0 0.0
    %4525 = vmatprep.subr.mxu0 0.0
    %4526 = vmatpush1.xpose.msra.mxu0 0.0
    %4527 = vmatprep.mubr.f32.mxu0 0.0
    %4528 = vmatmul.mubr.f32.gmra.mrb[0].mxu0 %v4458
    %v4529 = vpop.f32.mrb[0].mxu0
    %v4530 = vadd.f32 %v4449, %v4529
    %v4531 = vpop.f32.mrb[0].mxu0
    %4532 = vmatprep.mubr.f32.mxu0 0.0
    %4533 = vmatmul.mubr.f32.gmra.mrb[0].mxu0 %v4461
    %v4534 = vpop.f32.mrb[0].mxu0
    %v4535 = vadd.f32 %v4454, %v4534
    %v4536 = vpop.f32.mrb[0].mxu0
    %4537 = vdwg.mxu0
    %v4538 = vstv %s108
    %v4539 = vrcp.pop %v4538
    %s4540 = vtos %v4539
    %s4541 = smul.f32 0.5, %s4540
    %s4542 = sadd.f32 %s4541, %s109
    %v4543 = vstv %s4542
    %v4544 = vmul.f32 %v4543, %v882
    %v4545 = vmul.f32 %v4543, %v883
    %v4546 = vadd.f32 %v4530, %v4544
    %v4547 = vadd.f32 %v4535, %v4545
    %4548 = vrot.lane.b32.xlu0 %v882, 8
    %v4549 = vpop.permute.xlu0 %4548
    %v4551 = vsel %vm729, %v4546, %v4549
    %v4552 = vsel %vm729, %v4547, 0.0
    %v4553 = vmul.f32 %v4551, %v4551
    %v4554 = vmul.f32 %v4552, %v4552
    %v4555 = vadd.f32 %v4553, %v4554
    %v4556 = vrcp.pop %v4555
    %v4557 = vmul.f32 %v4551, %v4556
    %v4558 = vsub.f32 0.0, %v4552
    %v4559 = vmul.f32 %v4558, %v4556
    %4561 = vset.pattern.permute.xlu0 0
    %4562 = vperm.xlu0 %4561, %v4557
    %v4563 = vpop.permute.xlu0 %4562
    %v4565 = vmul.f32 %v4551, %v4563
    %4567 = vset.pattern.permute.xlu0 0
    %4568 = vperm.xlu0 %4567, %v4559
    %v4569 = vpop.permute.xlu0 %4568
    %v4571 = vmul.f32 %v4552, %v4569
    %v4572 = vsub.f32 %v4565, %v4571
    %v4573 = vmul.f32 %v4551, %v4569
    %v4574 = vmul.f32 %v4552, %v4563
    %v4575 = vadd.f32 %v4573, %v4574
    %4577 = vset.pattern.permute.xlu0 0
    %4578 = vperm.xlu0 %4577, %v4551
    %v4579 = vpop.permute.xlu0 %4578
    %v4581 = vlaneseq
    %v4582 = vshrl.u32 %v4581, 7
    %v4583 = vsub.s32 0, %v4582
    %v4584 = vrot.slane %v4572, %v4583
    %v4585 = vmul.f32 %v4579, %v4584
    %4587 = vset.pattern.permute.xlu0 0
    %4588 = vperm.xlu0 %4587, %v4552
    %v4589 = vpop.permute.xlu0 %4588
    %v4591 = vlaneseq
    %v4592 = vshrl.u32 %v4591, 7
    %v4593 = vsub.s32 0, %v4592
    %v4594 = vrot.slane %v4575, %v4593
    %v4595 = vmul.f32 %v4589, %v4594
    %v4596 = vsub.f32 %v4585, %v4595
    %v4597 = vsub.f32 %v4551, %v4596
    %v4598 = vmul.f32 %v4579, %v4594
    %v4599 = vmul.f32 %v4589, %v4584
    %v4600 = vadd.f32 %v4598, %v4599
    %v4601 = vsub.f32 %v4552, %v4600
    %v4602 = vsel %vm554, %v4584, %v4597
    %v4603 = vsel %vm554, %v4594, %v4601
    %v4604 = vmul.f32 %v4602, %v4602
    %v4605 = vmul.f32 %v4603, %v4603
    %v4606 = vadd.f32 %v4604, %v4605
    %v4607 = vrcp.pop %v4606
    %v4608 = vmul.f32 %v4602, %v4607
    %v4609 = vsub.f32 0.0, %v4603
    %v4610 = vmul.f32 %v4609, %v4607
    %4612 = vset.pattern.permute.xlu0 1
    %4613 = vperm.xlu0 %4612, %v4608
    %v4614 = vpop.permute.xlu0 %4613
    %v4616 = vmul.f32 %v4602, %v4614
    %4618 = vset.pattern.permute.xlu0 1
    %4619 = vperm.xlu0 %4618, %v4610
    %v4620 = vpop.permute.xlu0 %4619
    %v4622 = vmul.f32 %v4603, %v4620
    %v4623 = vsub.f32 %v4616, %v4622
    %v4624 = vmul.f32 %v4602, %v4620
    %v4625 = vmul.f32 %v4603, %v4614
    %v4626 = vadd.f32 %v4624, %v4625
    %4628 = vset.pattern.permute.xlu0 1
    %4629 = vperm.xlu0 %4628, %v4602
    %v4630 = vpop.permute.xlu0 %4629
    %v4632 = vlaneseq
    %v4633 = vshrl.u32 %v4632, 7
    %v4634 = vsub.s32 1, %v4633
    %v4635 = vrot.slane %v4623, %v4634
    %v4636 = vmul.f32 %v4630, %v4635
    %4638 = vset.pattern.permute.xlu0 1
    %4639 = vperm.xlu0 %4638, %v4603
    %v4640 = vpop.permute.xlu0 %4639
    %v4642 = vlaneseq
    %v4643 = vshrl.u32 %v4642, 7
    %v4644 = vsub.s32 1, %v4643
    %v4645 = vrot.slane %v4626, %v4644
    %v4646 = vmul.f32 %v4640, %v4645
    %v4647 = vsub.f32 %v4636, %v4646
    %v4648 = vsub.f32 %v4602, %v4647
    %v4649 = vmul.f32 %v4630, %v4645
    %v4650 = vmul.f32 %v4640, %v4635
    %v4651 = vadd.f32 %v4649, %v4650
    %v4652 = vsub.f32 %v4603, %v4651
    %v4653 = vsel %vm563, %v4635, %v4648
    %v4654 = vsel %vm563, %v4645, %v4652
    %v4655 = vmul.f32 %v4653, %v4653
    %v4656 = vmul.f32 %v4654, %v4654
    %v4657 = vadd.f32 %v4655, %v4656
    %v4658 = vrcp.pop %v4657
    %v4659 = vmul.f32 %v4653, %v4658
    %v4660 = vsub.f32 0.0, %v4654
    %v4661 = vmul.f32 %v4660, %v4658
    %4663 = vset.pattern.permute.xlu0 2
    %4664 = vperm.xlu0 %4663, %v4659
    %v4665 = vpop.permute.xlu0 %4664
    %v4667 = vmul.f32 %v4653, %v4665
    %4669 = vset.pattern.permute.xlu0 2
    %4670 = vperm.xlu0 %4669, %v4661
    %v4671 = vpop.permute.xlu0 %4670
    %v4673 = vmul.f32 %v4654, %v4671
    %v4674 = vsub.f32 %v4667, %v4673
    %v4675 = vmul.f32 %v4653, %v4671
    %v4676 = vmul.f32 %v4654, %v4665
    %v4677 = vadd.f32 %v4675, %v4676
    %4679 = vset.pattern.permute.xlu0 2
    %4680 = vperm.xlu0 %4679, %v4653
    %v4681 = vpop.permute.xlu0 %4680
    %v4683 = vlaneseq
    %v4684 = vshrl.u32 %v4683, 7
    %v4685 = vsub.s32 2, %v4684
    %v4686 = vrot.slane %v4674, %v4685
    %v4687 = vmul.f32 %v4681, %v4686
    %4689 = vset.pattern.permute.xlu0 2
    %4690 = vperm.xlu0 %4689, %v4654
    %v4691 = vpop.permute.xlu0 %4690
    %v4693 = vlaneseq
    %v4694 = vshrl.u32 %v4693, 7
    %v4695 = vsub.s32 2, %v4694
    %v4696 = vrot.slane %v4677, %v4695
    %v4697 = vmul.f32 %v4691, %v4696
    %v4698 = vsub.f32 %v4687, %v4697
    %v4699 = vsub.f32 %v4653, %v4698
    %v4700 = vmul.f32 %v4681, %v4696
    %v4701 = vmul.f32 %v4691, %v4686
    %v4702 = vadd.f32 %v4700, %v4701
    %v4703 = vsub.f32 %v4654, %v4702
    %v4704 = vsel %vm572, %v4686, %v4699
    %v4705 = vsel %vm572, %v4696, %v4703
    %v4706 = vmul.f32 %v4704, %v4704
    %v4707 = vmul.f32 %v4705, %v4705
    %v4708 = vadd.f32 %v4706, %v4707
    %v4709 = vrcp.pop %v4708
    %v4710 = vmul.f32 %v4704, %v4709
    %v4711 = vsub.f32 0.0, %v4705
    %v4712 = vmul.f32 %v4711, %v4709
    %4714 = vset.pattern.permute.xlu0 3
    %4715 = vperm.xlu0 %4714, %v4710
    %v4716 = vpop.permute.xlu0 %4715
    %v4718 = vmul.f32 %v4704, %v4716
    %4720 = vset.pattern.permute.xlu0 3
    %4721 = vperm.xlu0 %4720, %v4712
    %v4722 = vpop.permute.xlu0 %4721
    %v4724 = vmul.f32 %v4705, %v4722
    %v4725 = vsub.f32 %v4718, %v4724
    %v4726 = vmul.f32 %v4704, %v4722
    %v4727 = vmul.f32 %v4705, %v4716
    %v4728 = vadd.f32 %v4726, %v4727
    %4730 = vset.pattern.permute.xlu0 3
    %4731 = vperm.xlu0 %4730, %v4704
    %v4732 = vpop.permute.xlu0 %4731
    %v4734 = vlaneseq
    %v4735 = vshrl.u32 %v4734, 7
    %v4736 = vsub.s32 3, %v4735
    %v4737 = vrot.slane %v4725, %v4736
    %v4738 = vmul.f32 %v4732, %v4737
    %4740 = vset.pattern.permute.xlu0 3
    %4741 = vperm.xlu0 %4740, %v4705
    %v4742 = vpop.permute.xlu0 %4741
    %v4744 = vlaneseq
    %v4745 = vshrl.u32 %v4744, 7
    %v4746 = vsub.s32 3, %v4745
    %v4747 = vrot.slane %v4728, %v4746
    %v4748 = vmul.f32 %v4742, %v4747
    %v4749 = vsub.f32 %v4738, %v4748
    %v4750 = vsub.f32 %v4704, %v4749
    %v4751 = vmul.f32 %v4732, %v4747
    %v4752 = vmul.f32 %v4742, %v4737
    %v4753 = vadd.f32 %v4751, %v4752
    %v4754 = vsub.f32 %v4705, %v4753
    %v4755 = vsel %vm581, %v4737, %v4750
    %v4756 = vsel %vm581, %v4747, %v4754
    %v4757 = vmul.f32 %v4755, %v4755
    %v4758 = vmul.f32 %v4756, %v4756
    %v4759 = vadd.f32 %v4757, %v4758
    %v4760 = vrcp.pop %v4759
    %v4761 = vmul.f32 %v4755, %v4760
    %v4762 = vsub.f32 0.0, %v4756
    %v4763 = vmul.f32 %v4762, %v4760
    %4765 = vset.pattern.permute.xlu0 4
    %4766 = vperm.xlu0 %4765, %v4761
    %v4767 = vpop.permute.xlu0 %4766
    %v4769 = vmul.f32 %v4755, %v4767
    %4771 = vset.pattern.permute.xlu0 4
    %4772 = vperm.xlu0 %4771, %v4763
    %v4773 = vpop.permute.xlu0 %4772
    %v4775 = vmul.f32 %v4756, %v4773
    %v4776 = vsub.f32 %v4769, %v4775
    %v4777 = vmul.f32 %v4755, %v4773
    %v4778 = vmul.f32 %v4756, %v4767
    %v4779 = vadd.f32 %v4777, %v4778
    %4781 = vset.pattern.permute.xlu0 4
    %4782 = vperm.xlu0 %4781, %v4755
    %v4783 = vpop.permute.xlu0 %4782
    %v4785 = vlaneseq
    %v4786 = vshrl.u32 %v4785, 7
    %v4787 = vsub.s32 4, %v4786
    %v4788 = vrot.slane %v4776, %v4787
    %v4789 = vmul.f32 %v4783, %v4788
    %4791 = vset.pattern.permute.xlu0 4
    %4792 = vperm.xlu0 %4791, %v4756
    %v4793 = vpop.permute.xlu0 %4792
    %v4795 = vlaneseq
    %v4796 = vshrl.u32 %v4795, 7
    %v4797 = vsub.s32 4, %v4796
    %v4798 = vrot.slane %v4779, %v4797
    %v4799 = vmul.f32 %v4793, %v4798
    %v4800 = vsub.f32 %v4789, %v4799
    %v4801 = vsub.f32 %v4755, %v4800
    %v4802 = vmul.f32 %v4783, %v4798
    %v4803 = vmul.f32 %v4793, %v4788
    %v4804 = vadd.f32 %v4802, %v4803
    %v4805 = vsub.f32 %v4756, %v4804
    %v4806 = vsel %vm590, %v4788, %v4801
    %v4807 = vsel %vm590, %v4798, %v4805
    %v4808 = vmul.f32 %v4806, %v4806
    %v4809 = vmul.f32 %v4807, %v4807
    %v4810 = vadd.f32 %v4808, %v4809
    %v4811 = vrcp.pop %v4810
    %v4812 = vmul.f32 %v4806, %v4811
    %v4813 = vsub.f32 0.0, %v4807
    %v4814 = vmul.f32 %v4813, %v4811
    %4816 = vset.pattern.permute.xlu0 5
    %4817 = vperm.xlu0 %4816, %v4812
    %v4818 = vpop.permute.xlu0 %4817
    %v4820 = vmul.f32 %v4806, %v4818
    %4822 = vset.pattern.permute.xlu0 5
    %4823 = vperm.xlu0 %4822, %v4814
    %v4824 = vpop.permute.xlu0 %4823
    %v4826 = vmul.f32 %v4807, %v4824
    %v4827 = vsub.f32 %v4820, %v4826
    %v4828 = vmul.f32 %v4806, %v4824
    %v4829 = vmul.f32 %v4807, %v4818
    %v4830 = vadd.f32 %v4828, %v4829
    %4832 = vset.pattern.permute.xlu0 5
    %4833 = vperm.xlu0 %4832, %v4806
    %v4834 = vpop.permute.xlu0 %4833
    %v4836 = vlaneseq
    %v4837 = vshrl.u32 %v4836, 7
    %v4838 = vsub.s32 5, %v4837
    %v4839 = vrot.slane %v4827, %v4838
    %v4840 = vmul.f32 %v4834, %v4839
    %4842 = vset.pattern.permute.xlu0 5
    %4843 = vperm.xlu0 %4842, %v4807
    %v4844 = vpop.permute.xlu0 %4843
    %v4846 = vlaneseq
    %v4847 = vshrl.u32 %v4846, 7
    %v4848 = vsub.s32 5, %v4847
    %v4849 = vrot.slane %v4830, %v4848
    %v4850 = vmul.f32 %v4844, %v4849
    %v4851 = vsub.f32 %v4840, %v4850
    %v4852 = vsub.f32 %v4806, %v4851
    %v4853 = vmul.f32 %v4834, %v4849
    %v4854 = vmul.f32 %v4844, %v4839
    %v4855 = vadd.f32 %v4853, %v4854
    %v4856 = vsub.f32 %v4807, %v4855
    %v4857 = vsel %vm599, %v4839, %v4852
    %v4858 = vsel %vm599, %v4849, %v4856
    %v4859 = vmul.f32 %v4857, %v4857
    %v4860 = vmul.f32 %v4858, %v4858
    %v4861 = vadd.f32 %v4859, %v4860
    %v4862 = vrcp.pop %v4861
    %v4863 = vmul.f32 %v4857, %v4862
    %v4864 = vsub.f32 0.0, %v4858
    %v4865 = vmul.f32 %v4864, %v4862
    %4867 = vset.pattern.permute.xlu0 6
    %4868 = vperm.xlu0 %4867, %v4863
    %v4869 = vpop.permute.xlu0 %4868
    %v4871 = vmul.f32 %v4857, %v4869
    %4873 = vset.pattern.permute.xlu0 6
    %4874 = vperm.xlu0 %4873, %v4865
    %v4875 = vpop.permute.xlu0 %4874
    %v4877 = vmul.f32 %v4858, %v4875
    %v4878 = vsub.f32 %v4871, %v4877
    %v4879 = vmul.f32 %v4857, %v4875
    %v4880 = vmul.f32 %v4858, %v4869
    %v4881 = vadd.f32 %v4879, %v4880
    %4883 = vset.pattern.permute.xlu0 6
    %4884 = vperm.xlu0 %4883, %v4857
    %v4885 = vpop.permute.xlu0 %4884
    %v4887 = vlaneseq
    %v4888 = vshrl.u32 %v4887, 7
    %v4889 = vsub.s32 6, %v4888
    %v4890 = vrot.slane %v4878, %v4889
    %v4891 = vmul.f32 %v4885, %v4890
    %4893 = vset.pattern.permute.xlu0 6
    %4894 = vperm.xlu0 %4893, %v4858
    %v4895 = vpop.permute.xlu0 %4894
    %v4897 = vlaneseq
    %v4898 = vshrl.u32 %v4897, 7
    %v4899 = vsub.s32 6, %v4898
    %v4900 = vrot.slane %v4881, %v4899
    %v4901 = vmul.f32 %v4895, %v4900
    %v4902 = vsub.f32 %v4891, %v4901
    %v4903 = vsub.f32 %v4857, %v4902
    %v4904 = vmul.f32 %v4885, %v4900
    %v4905 = vmul.f32 %v4895, %v4890
    %v4906 = vadd.f32 %v4904, %v4905
    %v4907 = vsub.f32 %v4858, %v4906
    %v4908 = vsel %vm608, %v4890, %v4903
    %v4909 = vsel %vm608, %v4900, %v4907
    %v4910 = vmul.f32 %v4908, %v4908
    %v4911 = vmul.f32 %v4909, %v4909
    %v4912 = vadd.f32 %v4910, %v4911
    %v4913 = vrcp.pop %v4912
    %v4914 = vmul.f32 %v4908, %v4913
    %v4915 = vsub.f32 0.0, %v4909
    %v4916 = vmul.f32 %v4915, %v4913
    %4918 = vset.pattern.permute.xlu0 7
    %4919 = vperm.xlu0 %4918, %v4914
    %v4920 = vpop.permute.xlu0 %4919
    %v4922 = vmul.f32 %v4908, %v4920
    %4924 = vset.pattern.permute.xlu0 7
    %4925 = vperm.xlu0 %4924, %v4916
    %v4926 = vpop.permute.xlu0 %4925
    %v4928 = vmul.f32 %v4909, %v4926
    %v4929 = vsub.f32 %v4922, %v4928
    %v4930 = vmul.f32 %v4908, %v4926
    %v4931 = vmul.f32 %v4909, %v4920
    %v4932 = vadd.f32 %v4930, %v4931
    %4934 = vset.pattern.permute.xlu0 7
    %4935 = vperm.xlu0 %4934, %v4908
    %v4936 = vpop.permute.xlu0 %4935
    %v4938 = vlaneseq
    %v4939 = vshrl.u32 %v4938, 7
    %v4940 = vsub.s32 7, %v4939
    %v4941 = vrot.slane %v4929, %v4940
    %v4942 = vmul.f32 %v4936, %v4941
    %4944 = vset.pattern.permute.xlu0 7
    %4945 = vperm.xlu0 %4944, %v4909
    %v4946 = vpop.permute.xlu0 %4945
    %v4948 = vlaneseq
    %v4949 = vshrl.u32 %v4948, 7
    %v4950 = vsub.s32 7, %v4949
    %v4951 = vrot.slane %v4932, %v4950
    %v4952 = vmul.f32 %v4946, %v4951
    %v4953 = vsub.f32 %v4942, %v4952
    %v4954 = vsub.f32 %v4908, %v4953
    %v4955 = vmul.f32 %v4936, %v4951
    %v4956 = vmul.f32 %v4946, %v4941
    %v4957 = vadd.f32 %v4955, %v4956
    %v4958 = vsub.f32 %v4909, %v4957
    %v4959 = vsel %vm617, %v4941, %v4954
    %v4960 = vsel %vm617, %v4951, %v4958
    %v4961 = vsub.f32 0.0, %v4960
    %4963 = vrot.lane.b32.xlu0 %v4959, 120
    %v4964 = vpop.permute.xlu0 %4963
    %v4966 = vsel %vm729, %v4964, %v4961
    %4968 = vrot.lane.b32.xlu0 %v4960, 120
    %v4969 = vpop.permute.xlu0 %4968
    %v4971 = vsel %vm729, %v4969, %v4959
    %v4972 = vstv %s108
    %v4973 = vrcp.pop %v4972
    %s4974 = vtos %v4973
    %v4976 = vsel %vm729, %v716, 0
    %v4979 = vsel %vm729, %v720, 0
    %4981 = vmatprep.subr.mxu0 0.0
    %4982 = vmatpush1.msra.mxu0 %v3666
    %4983 = vmatprep.subr.mxu0 0.0
    %4984 = vmatpush1.msra.mxu0 0.0
    %4985 = vmatprep.subr.mxu0 0.0
    %4986 = vmatpush1.msra.mxu0 0.0
    %4987 = vmatprep.subr.mxu0 0.0
    %4988 = vmatpush1.msra.mxu0 0.0
    %4989 = vmatprep.subr.mxu0 0.0
    %4990 = vmatpush1.msra.mxu0 0.0
    %4991 = vmatprep.subr.mxu0 0.0
    %4992 = vmatpush1.msra.mxu0 0.0
    %4993 = vmatprep.subr.mxu0 0.0
    %4994 = vmatpush1.msra.mxu0 0.0
    %4995 = vmatprep.subr.mxu0 0.0
    %4996 = vmatpush1.msra.mxu0 0.0
    %4997 = vmatprep.subr.mxu0 0.0
    %4998 = vmatpush1.msra.mxu0 0.0
    %4999 = vmatprep.subr.mxu0 0.0
    %5000 = vmatpush1.msra.mxu0 0.0
    %5001 = vmatprep.subr.mxu0 0.0
    %5002 = vmatpush1.msra.mxu0 0.0
    %5003 = vmatprep.subr.mxu0 0.0
    %5004 = vmatpush1.msra.mxu0 0.0
    %5005 = vmatprep.subr.mxu0 0.0
    %5006 = vmatpush1.msra.mxu0 0.0
    %5007 = vmatprep.subr.mxu0 0.0
    %5008 = vmatpush1.msra.mxu0 0.0
    %5009 = vmatprep.subr.mxu0 0.0
    %5010 = vmatpush1.msra.mxu0 0.0
    %5011 = vmatprep.subr.mxu0 0.0
    %5012 = vmatpush1.msra.mxu0 0.0
    %5013 = vmatprep.subr.mxu0 0.0
    %5014 = vmatpush1.msra.mxu0 0.0
    %5015 = vmatprep.subr.mxu0 0.0
    %5016 = vmatpush1.msra.mxu0 0.0
    %5017 = vmatprep.subr.mxu0 0.0
    %5018 = vmatpush1.msra.mxu0 0.0
    %5019 = vmatprep.subr.mxu0 0.0
    %5020 = vmatpush1.msra.mxu0 0.0
    %5021 = vmatprep.subr.mxu0 0.0
    %5022 = vmatpush1.msra.mxu0 0.0
    %5023 = vmatprep.subr.mxu0 0.0
    %5024 = vmatpush1.msra.mxu0 0.0
    %5025 = vmatprep.subr.mxu0 0.0
    %5026 = vmatpush1.msra.mxu0 0.0
    %5027 = vmatprep.subr.mxu0 0.0
    %5028 = vmatpush1.msra.mxu0 0.0
    %5029 = vmatprep.subr.mxu0 0.0
    %5030 = vmatpush1.msra.mxu0 0.0
    %5031 = vmatprep.subr.mxu0 0.0
    %5032 = vmatpush1.msra.mxu0 0.0
    %5033 = vmatprep.subr.mxu0 0.0
    %5034 = vmatpush1.msra.mxu0 0.0
    %5035 = vmatprep.subr.mxu0 0.0
    %5036 = vmatpush1.msra.mxu0 0.0
    %5037 = vmatprep.subr.mxu0 0.0
    %5038 = vmatpush1.msra.mxu0 0.0
    %5039 = vmatprep.subr.mxu0 0.0
    %5040 = vmatpush1.msra.mxu0 0.0
    %5041 = vmatprep.subr.mxu0 0.0
    %5042 = vmatpush1.msra.mxu0 0.0
    %5043 = vmatprep.subr.mxu0 0.0
    %5044 = vmatpush1.msra.mxu0 0.0
    %5045 = vmatprep.mubr.f32.mxu0 0.0
    %5046 = vmatmul.mubr.f32.gmra.mrb[0].mxu0 %v4976
    %v5047 = vpop.f32.mrb[0].mxu0
    %v5048 = vadd.f32 0.0, %v5047
    %v5049 = vpop.f32.mrb[0].mxu0
    %5050 = vmatprep.mubr.f32.mxu0 0.0
    %5051 = vmatmul.mubr.f32.gmra.mrb[0].mxu0 %v4979
    %v5052 = vpop.f32.mrb[0].mxu0
    %v5053 = vadd.f32 0.0, %v5052
    %v5054 = vpop.f32.mrb[0].mxu0
    %5055 = vdwg.mxu0
    %v5056 = vstv %s4974
    %v5057 = vmul.f32 %v5056, %v5048
    %v5058 = vmul.f32 %v5056, %v5053
    %v5059 = vsub.f32 %v5057, %v818
    %v5060 = vsub.f32 %v5058, %v823
    %v5061 = vmul.f32 %v5059, 0.5
    %v5062 = vmul.f32 %v5060, 0.5
    %v5063 = vadd.f32 %v4090, %v5061
    %v5064 = vadd.f32 %v4095, %v5062
    %v5066 = vsel %vm1047, %v4966, 0
    %v5069 = vsel %vm1047, %v4971, 0
    %5071 = vmatprep.subr.mxu0 0.0
    %5072 = vmatpush1.msra.mxu0 %v5063
    %5073 = vmatprep.subr.mxu0 0.0
    %5074 = vmatpush1.msra.mxu0 %v5064
    %5075 = vmatprep.subr.mxu0 0.0
    %5076 = vmatpush1.msra.mxu0 0.0
    %5077 = vmatprep.subr.mxu0 0.0
    %5078 = vmatpush1.msra.mxu0 0.0
    %5079 = vmatprep.subr.mxu0 0.0
    %5080 = vmatpush1.msra.mxu0 0.0
    %5081 = vmatprep.subr.mxu0 0.0
    %5082 = vmatpush1.msra.mxu0 0.0
    %5083 = vmatprep.subr.mxu0 0.0
    %5084 = vmatpush1.msra.mxu0 0.0
    %5085 = vmatprep.subr.mxu0 0.0
    %5086 = vmatpush1.msra.mxu0 0.0
    %5087 = vmatprep.subr.mxu0 0.0
    %5088 = vmatpush1.msra.mxu0 0.0
    %5089 = vmatprep.subr.mxu0 0.0
    %5090 = vmatpush1.msra.mxu0 0.0
    %5091 = vmatprep.subr.mxu0 0.0
    %5092 = vmatpush1.msra.mxu0 0.0
    %5093 = vmatprep.subr.mxu0 0.0
    %5094 = vmatpush1.msra.mxu0 0.0
    %5095 = vmatprep.subr.mxu0 0.0
    %5096 = vmatpush1.msra.mxu0 0.0
    %5097 = vmatprep.subr.mxu0 0.0
    %5098 = vmatpush1.msra.mxu0 0.0
    %5099 = vmatprep.subr.mxu0 0.0
    %5100 = vmatpush1.msra.mxu0 0.0
    %5101 = vmatprep.subr.mxu0 0.0
    %5102 = vmatpush1.msra.mxu0 0.0
    %5103 = vmatprep.subr.mxu0 0.0
    %5104 = vmatpush1.msra.mxu0 0.0
    %5105 = vmatprep.subr.mxu0 0.0
    %5106 = vmatpush1.msra.mxu0 0.0
    %5107 = vmatprep.subr.mxu0 0.0
    %5108 = vmatpush1.msra.mxu0 0.0
    %5109 = vmatprep.subr.mxu0 0.0
    %5110 = vmatpush1.msra.mxu0 0.0
    %5111 = vmatprep.subr.mxu0 0.0
    %5112 = vmatpush1.msra.mxu0 0.0
    %5113 = vmatprep.subr.mxu0 0.0
    %5114 = vmatpush1.msra.mxu0 0.0
    %5115 = vmatprep.subr.mxu0 0.0
    %5116 = vmatpush1.msra.mxu0 0.0
    %5117 = vmatprep.subr.mxu0 0.0
    %5118 = vmatpush1.msra.mxu0 0.0
    %5119 = vmatprep.subr.mxu0 0.0
    %5120 = vmatpush1.msra.mxu0 0.0
    %5121 = vmatprep.subr.mxu0 0.0
    %5122 = vmatpush1.msra.mxu0 0.0
    %5123 = vmatprep.subr.mxu0 0.0
    %5124 = vmatpush1.msra.mxu0 0.0
    %5125 = vmatprep.subr.mxu0 0.0
    %5126 = vmatpush1.msra.mxu0 0.0
    %5127 = vmatprep.subr.mxu0 0.0
    %5128 = vmatpush1.msra.mxu0 0.0
    %5129 = vmatprep.subr.mxu0 0.0
    %5130 = vmatpush1.msra.mxu0 0.0
    %5131 = vmatprep.subr.mxu0 0.0
    %5132 = vmatpush1.msra.mxu0 0.0
    %5133 = vmatprep.subr.mxu0 0.0
    %5134 = vmatpush1.msra.mxu0 0.0
    %5135 = vmatprep.mubr.f32.mxu0 0.0
    %5136 = vmatmul.mubr.f32.gmra.mrb[0].mxu0 %v5066
    %v5137 = vpop.f32.mrb[0].mxu0
    %v5138 = vadd.f32 0.0, %v5137
    %v5139 = vpop.f32.mrb[0].mxu0
    %5140 = vmatprep.mubr.f32.mxu0 0.0
    %5141 = vmatmul.mubr.f32.gmra.mrb[0].mxu0 %v5069
    %v5142 = vpop.f32.mrb[0].mxu0
    %v5143 = vadd.f32 0.0, %v5142
    %v5144 = vpop.f32.mrb[0].mxu0
    %5145 = vdwg.mxu0
    %v5146 = vld [vmem:[%s7] sm:$0xff]
    %v5147 = vadd.f32 %v5138, %v5146
    %5148 = vst.msk [vmem:[%s19] sm:$0xff] %vm788, %v5147
    %s5149 = scalar_lea.vmem %s7, 8
    %v5150 = vld [vmem:[%s5149] sm:$0xff]
    %v5151 = vadd.f32 %v5143, %v5150
    %s5152 = scalar_lea.vmem %s19, 8
    %5153 = vst.msk [vmem:[%s5152] sm:$0xff] %vm788, %v5151
    %5154 = vmatprep.subr.mxu0 0.0
    %5155 = vmatpush1.msra.mxu0 %v3813
    %5156 = vmatprep.subr.mxu0 0.0
    %5157 = vmatpush1.msra.mxu0 0.0
    %5158 = vmatprep.subr.mxu0 0.0
    %5159 = vmatpush1.msra.mxu0 0.0
    %5160 = vmatprep.subr.mxu0 0.0
    %5161 = vmatpush1.msra.mxu0 0.0
    %5162 = vmatprep.subr.mxu0 0.0
    %5163 = vmatpush1.msra.mxu0 0.0
    %5164 = vmatprep.subr.mxu0 0.0
    %5165 = vmatpush1.msra.mxu0 0.0
    %5166 = vmatprep.subr.mxu0 0.0
    %5167 = vmatpush1.msra.mxu0 0.0
    %5168 = vmatprep.subr.mxu0 0.0
    %5169 = vmatpush1.msra.mxu0 0.0
    %5170 = vmatprep.subr.mxu0 0.0
    %5171 = vmatpush1.msra.mxu0 0.0
    %5172 = vmatprep.subr.mxu0 0.0
    %5173 = vmatpush1.msra.mxu0 0.0
    %5174 = vmatprep.subr.mxu0 0.0
    %5175 = vmatpush1.msra.mxu0 0.0
    %5176 = vmatprep.subr.mxu0 0.0
    %5177 = vmatpush1.msra.mxu0 0.0
    %5178 = vmatprep.subr.mxu0 0.0
    %5179 = vmatpush1.msra.mxu0 0.0
    %5180 = vmatprep.subr.mxu0 0.0
    %5181 = vmatpush1.msra.mxu0 0.0
    %5182 = vmatprep.subr.mxu0 0.0
    %5183 = vmatpush1.msra.mxu0 0.0
    %5184 = vmatprep.subr.mxu0 0.0
    %5185 = vmatpush1.msra.mxu0 0.0
    %5186 = vmatprep.subr.mxu0 0.0
    %5187 = vmatpush1.msra.mxu0 0.0
    %5188 = vmatprep.subr.mxu0 0.0
    %5189 = vmatpush1.msra.mxu0 0.0
    %5190 = vmatprep.subr.mxu0 0.0
    %5191 = vmatpush1.msra.mxu0 0.0
    %5192 = vmatprep.subr.mxu0 0.0
    %5193 = vmatpush1.msra.mxu0 0.0
    %5194 = vmatprep.subr.mxu0 0.0
    %5195 = vmatpush1.msra.mxu0 0.0
    %5196 = vmatprep.subr.mxu0 0.0
    %5197 = vmatpush1.msra.mxu0 0.0
    %5198 = vmatprep.subr.mxu0 0.0
    %5199 = vmatpush1.msra.mxu0 0.0
    %5200 = vmatprep.subr.mxu0 0.0
    %5201 = vmatpush1.msra.mxu0 0.0
    %5202 = vmatprep.subr.mxu0 0.0
    %5203 = vmatpush1.msra.mxu0 0.0
    %5204 = vmatprep.subr.mxu0 0.0
    %5205 = vmatpush1.msra.mxu0 0.0
    %5206 = vmatprep.subr.mxu0 0.0
    %5207 = vmatpush1.msra.mxu0 0.0
    %5208 = vmatprep.subr.mxu0 0.0
    %5209 = vmatpush1.msra.mxu0 0.0
    %5210 = vmatprep.subr.mxu0 0.0
    %5211 = vmatpush1.msra.mxu0 0.0
    %5212 = vmatprep.subr.mxu0 0.0
    %5213 = vmatpush1.msra.mxu0 0.0
    %5214 = vmatprep.subr.mxu0 0.0
    %5215 = vmatpush1.msra.mxu0 0.0
    %5216 = vmatprep.subr.mxu0 0.0
    %5217 = vmatpush1.msra.mxu0 0.0
    %5218 = vmatprep.mubr.f32.mxu0 0.0
    %5219 = vmatmul.mubr.f32.gmra.mrb[0].mxu0 %v4976
    %v5220 = vpop.f32.mrb[0].mxu0
    %v5221 = vadd.f32 0.0, %v5220
    %v5222 = vpop.f32.mrb[0].mxu0
    %5223 = vmatprep.mubr.f32.mxu0 0.0
    %5224 = vmatmul.mubr.f32.gmra.mrb[0].mxu0 %v4979
    %v5225 = vpop.f32.mrb[0].mxu0
    %v5226 = vadd.f32 0.0, %v5225
    %v5227 = vpop.f32.mrb[0].mxu0
    %5228 = vdwg.mxu0
    %v5229 = vmul.f32 %v5056, %v5221
    %v5230 = vmul.f32 %v5056, %v5226
    %v5231 = vsub.f32 %v5229, %v833
    %v5232 = vsub.f32 %v5230, %v838
    %v5233 = vmul.f32 %v5231, 0.5
    %v5234 = vmul.f32 %v5232, 0.5
    %v5235 = vadd.f32 %v4368, %v5233
    %v5236 = vadd.f32 %v4373, %v5234
    %5237 = vmatprep.subr.mxu0 0.0
    %5238 = vmatpush1.msra.mxu0 %v5235
    %5239 = vmatprep.subr.mxu0 0.0
    %5240 = vmatpush1.msra.mxu0 %v5236
    %5241 = vmatprep.subr.mxu0 0.0
    %5242 = vmatpush1.msra.mxu0 0.0
    %5243 = vmatprep.subr.mxu0 0.0
    %5244 = vmatpush1.msra.mxu0 0.0
    %5245 = vmatprep.subr.mxu0 0.0
    %5246 = vmatpush1.msra.mxu0 0.0
    %5247 = vmatprep.subr.mxu0 0.0
    %5248 = vmatpush1.msra.mxu0 0.0
    %5249 = vmatprep.subr.mxu0 0.0
    %5250 = vmatpush1.msra.mxu0 0.0
    %5251 = vmatprep.subr.mxu0 0.0
    %5252 = vmatpush1.msra.mxu0 0.0
    %5253 = vmatprep.subr.mxu0 0.0
    %5254 = vmatpush1.msra.mxu0 0.0
    %5255 = vmatprep.subr.mxu0 0.0
    %5256 = vmatpush1.msra.mxu0 0.0
    %5257 = vmatprep.subr.mxu0 0.0
    %5258 = vmatpush1.msra.mxu0 0.0
    %5259 = vmatprep.subr.mxu0 0.0
    %5260 = vmatpush1.msra.mxu0 0.0
    %5261 = vmatprep.subr.mxu0 0.0
    %5262 = vmatpush1.msra.mxu0 0.0
    %5263 = vmatprep.subr.mxu0 0.0
    %5264 = vmatpush1.msra.mxu0 0.0
    %5265 = vmatprep.subr.mxu0 0.0
    %5266 = vmatpush1.msra.mxu0 0.0
    %5267 = vmatprep.subr.mxu0 0.0
    %5268 = vmatpush1.msra.mxu0 0.0
    %5269 = vmatprep.subr.mxu0 0.0
    %5270 = vmatpush1.msra.mxu0 0.0
    %5271 = vmatprep.subr.mxu0 0.0
    %5272 = vmatpush1.msra.mxu0 0.0
    %5273 = vmatprep.subr.mxu0 0.0
    %5274 = vmatpush1.msra.mxu0 0.0
    %5275 = vmatprep.subr.mxu0 0.0
    %5276 = vmatpush1.msra.mxu0 0.0
    %5277 = vmatprep.subr.mxu0 0.0
    %5278 = vmatpush1.msra.mxu0 0.0
    %5279 = vmatprep.subr.mxu0 0.0
    %5280 = vmatpush1.msra.mxu0 0.0
    %5281 = vmatprep.subr.mxu0 0.0
    %5282 = vmatpush1.msra.mxu0 0.0
    %5283 = vmatprep.subr.mxu0 0.0
    %5284 = vmatpush1.msra.mxu0 0.0
    %5285 = vmatprep.subr.mxu0 0.0
    %5286 = vmatpush1.msra.mxu0 0.0
    %5287 = vmatprep.subr.mxu0 0.0
    %5288 = vmatpush1.msra.mxu0 0.0
    %5289 = vmatprep.subr.mxu0 0.0
    %5290 = vmatpush1.msra.mxu0 0.0
    %5291 = vmatprep.subr.mxu0 0.0
    %5292 = vmatpush1.msra.mxu0 0.0
    %5293 = vmatprep.subr.mxu0 0.0
    %5294 = vmatpush1.msra.mxu0 0.0
    %5295 = vmatprep.subr.mxu0 0.0
    %5296 = vmatpush1.msra.mxu0 0.0
    %5297 = vmatprep.subr.mxu0 0.0
    %5298 = vmatpush1.msra.mxu0 0.0
    %5299 = vmatprep.subr.mxu0 0.0
    %5300 = vmatpush1.msra.mxu0 0.0
    %5301 = vmatprep.mubr.f32.mxu0 0.0
    %5302 = vmatmul.mubr.f32.gmra.mrb[0].mxu0 %v5066
    %v5303 = vpop.f32.mrb[0].mxu0
    %v5304 = vadd.f32 0.0, %v5303
    %v5305 = vpop.f32.mrb[0].mxu0
    %5306 = vmatprep.mubr.f32.mxu0 0.0
    %5307 = vmatmul.mubr.f32.gmra.mrb[0].mxu0 %v5069
    %v5308 = vpop.f32.mrb[0].mxu0
    %v5309 = vadd.f32 0.0, %v5308
    %v5310 = vpop.f32.mrb[0].mxu0
    %5311 = vdwg.mxu0
    %s5312 = scalar_lea.vmem %s7, 16
    %v5313 = vld [vmem:[%s5312] sm:$0xff]
    %v5314 = vadd.f32 %v5304, %v5313
    %s5315 = scalar_lea.vmem %s19, 16
    %5316 = vst.msk [vmem:[%s5315] sm:$0xff] %vm788, %v5314
    %s5317 = scalar_lea.vmem %s7, 24
    %v5318 = vld [vmem:[%s5317] sm:$0xff]
    %v5319 = vadd.f32 %v5309, %v5318
    %s5320 = scalar_lea.vmem %s19, 24
    %5321 = vst.msk [vmem:[%s5320] sm:$0xff] %vm788, %v5319
    // Predicated region
    $region74: #{inner_layer_forward.1} parent=1 // pred_check
      _
    $region75: #{inner_layer_forward.1} parent=1 // pred_check_branch
      %5323 = sbr.rel (0) target = $region77
    $region76: #{inner_layer_forward.1} parent=1 // pred_region
      _
    $region77: #{inner_layer_forward.1} parent=1 // pred_fallthru
      _
    // Predicated region
    $region78: #{inner_layer_forward.1} parent=1 // pred_check
      _
    $region79: #{inner_layer_forward.1} parent=1 // pred_check_branch
      %5325 = sbr.rel (0) target = $region81
    $region80: #{inner_layer_forward.1} parent=1 // pred_region
      _
    $region81: #{inner_layer_forward.1} parent=1 // pred_fallthru
      _
    // Predicated region
    $region82: #{inner_layer_forward.1} parent=1 // pred_check
      _
    $region83: #{inner_layer_forward.1} parent=1 // pred_check_branch
      %5327 = sbr.rel (0) target = $region85
    $region84: #{inner_layer_forward.1} parent=1 // pred_region
      _
    $region85: #{inner_layer_forward.1} parent=1 // pred_fallthru
      _
    // Predicated region
    $region86: #{inner_layer_forward.1} parent=1 // pred_check
      _
    $region87: #{inner_layer_forward.1} parent=1 // pred_check_branch
      %5329 = sbr.rel (0) target = $region89
    $region88: #{inner_layer_forward.1} parent=1 // pred_region
      _
    $region89: #{inner_layer_forward.1} parent=1 // pred_fallthru
      _
    // Predicated region
    $region90: #{inner_layer_forward.1} parent=1 // pred_check
      _
    $region91: #{inner_layer_forward.1} parent=1 // pred_check_branch
      %5331 = sbr.rel (0) target = $region93
    $region92: #{inner_layer_forward.1} parent=1 // pred_region
      %s5333 = ssub.s32 128, 128
      %5334 = vsyncadd [#allocation4], %s5333
      %s5335 = sshll.u32 [#allocation10], 4
      %s5336 = int_to_ptr.vmem [resolvable:$true] %s5335
      %5341 = dma.vmem_to_hbm [thread:$0]  %s5336, 128, %s18, [#allocation4], 32, 32, 2
    $region93: #{inner_layer_forward.1} parent=1 // pred_fallthru
      _
    // Predicated region
    $region94: #{inner_layer_forward.1} parent=1 // pred_check
      _
    $region95: #{inner_layer_forward.1} parent=1 // pred_check_branch
      %5343 = sbr.rel (0) target = $region97
    $region96: #{inner_layer_forward.1} parent=1 // pred_region
      _
    $region97: #{inner_layer_forward.1} parent=1 // pred_fallthru
      _
    // Predicated region
    $region98: #{inner_layer_forward.1} parent=1 // pred_check
      _
    $region99: #{inner_layer_forward.1} parent=1 // pred_check_branch
      %5345 = sbr.rel (0) target = $region101
    $region100: #{inner_layer_forward.1} parent=1 // pred_region
      _
    $region101: #{inner_layer_forward.1} parent=1 // pred_fallthru
      _
    // Predicated region
    $region102: #{inner_layer_forward.1} parent=1 // pred_check
      _
    $region103: #{inner_layer_forward.1} parent=1 // pred_check_branch
      %5347 = sbr.rel (0) target = $region105
    $region104: #{inner_layer_forward.1} parent=1 // pred_region
      _
    $region105: #{inner_layer_forward.1} parent=1 // pred_fallthru
      _
    // Predicated region
    $region106: #{inner_layer_forward.1} parent=1 // pred_check
      _
    $region107: #{inner_layer_forward.1} parent=1 // pred_check_branch
      %5349 = sbr.rel (0) target = $region109
    $region108: #{inner_layer_forward.1} parent=1 // pred_region
      _
    $region109: #{inner_layer_forward.1} parent=1 // pred_fallthru
      _
    // Predicated region
    $region110: #{inner_layer_forward.1} parent=1 // pred_check
      _
    $region111: #{inner_layer_forward.1} parent=1 // pred_check_branch
      %5351 = sbr.rel (0) target = $region113
    $region112: #{inner_layer_forward.1} parent=1 // pred_region
      _
    $region113: #{inner_layer_forward.1} parent=1 // pred_fallthru
      _
    // Predicated region
    $region114: #{inner_layer_forward.1} parent=1 // pred_check
      _
    $region115: #{inner_layer_forward.1} parent=1 // pred_check_branch
      %5353 = sbr.rel (0) target = $region117
    $region116: #{inner_layer_forward.1} parent=1 // pred_region
      %5354 = dma.done [#allocation4], 128
    $region117: #{inner_layer_forward.1} parent=1 // pred_fallthru
      _
    // Predicated region
    $region118: #{inner_layer_forward.1} parent=1 // pred_check
      _
    $region119: #{inner_layer_forward.1} parent=1 // pred_check_branch
      %5356 = sbr.rel (0) target = $region121
    $region120: #{inner_layer_forward.1} parent=1 // pred_region
      _
    $region121: #{inner_layer_forward.1} parent=1 // pred_fallthru
      _
    %5357 = vsyncpa [#allocation3], 1
    %5358 = vsyncpa [#allocation8], 1
    %5359 = vsyncpa [#allocation4], 1
    %5360 = vsyncpa [#allocation5], 1

</llo_original>
